<compile_context>
chip_gen: v7x
topology: tpu7x:2x2x1
jax: 0.10.0
libtpu: 0.0.40
codegen_flags: <defaults>
</compile_context>

<pallas_src>
import functools

import jax
import jax.numpy as jnp
from jax import lax
from jax.experimental import pallas as pl
from jax.experimental.pallas import tpu as pltpu


# ---------------------------------------------------------------------------
# Static lane-chunking helper (128-aligned chunks -> unmasked, aligned stores)
# ---------------------------------------------------------------------------
def _lane_chunks(S, max_chunk=384):
    chunks, c = [], 0
    while c < S:
        size = min(max_chunk, S - c)
        chunks.append((c, size))
        c += size
    return tuple(chunks)


# ---------------------------------------------------------------------------
# Fused network kernel (one grid step = one batch element)
# ---------------------------------------------------------------------------
def _fused_sr_kernel(x_ref, w1_ref, b1_ref, w2_ref, b2_ref, w3_ref, b3_ref,
                     w4_ref, b4_ref, mask_ref, o_ref,
                     col_ref, a1_ref, a2_ref, a3_ref, *, Wp, S, M, chunks):
    # x_ref   : (1, Sx)  f32  input canvas (zeros outside the HxW interior)
    # w*_ref  : (Cout, KH*KW*Cin) bf16 im2col-flattened weights
    # b*_ref  : (Cout, 1) f32
    # mask_ref: (1, S)   f32, 1.0 on the valid HxW interior of the canvas
    # o_ref   : (16, S)  f32  conv4 canvas (lane dense, Cout padded 9->16)
    # col_ref : (25, S)  f32  im2col slab (conv1 only)
    # a*_ref  : (C, Sx)  bf16 activation canvases, Sx = S + 2*M margin lanes

    # Zero ONLY the margin lanes; the interior is fully overwritten (and
    # mask-zeroed) every layer.  Do NOT guard with program_id==0 (megacore).
    for a in (a1_ref, a2_ref, a3_ref):
        z = jnp.zeros((a.shape[0], M), a.dtype)
        a[:, :M] = z
        a[:, M + S:M + S + M] = z

    # ---- conv1: 5x5, Cin=1 -> im2col slab + one K=25 dot per lane chunk ----
    for kh in range(5):
        for kw in range(5):
            off = (kh - 2) * Wp + (kw - 2)
            t = kh * 5 + kw
            col_ref[t:t + 1, :] = x_ref[:, M + off:M + off + S]

    for c0, lc in chunks:
        y = jnp.dot(w1_ref[...],
                    col_ref[:, c0:c0 + lc].astype(jnp.bfloat16),
                    preferred_element_type=jnp.float32)
        y = jnp.maximum(y + b1_ref[...], 0.0) * mask_ref[:, c0:c0 + lc]
        a1_ref[:, M + c0:M + c0 + lc] = y.astype(a1_ref.dtype)

    # ---- 3x3 convs: shifted canvas slices fed straight into 9 accumulated
    #      (Cout, Cin) x (Cin, lc) MXU dots (f32 accumulation, no col slab) ---
    def conv3x3(src_ref, cin, w_ref, b_ref, dst_ref, dst_off, relu, apply_mask):
        for c0, lc in chunks:
            acc = None
            for kh in range(3):
                for kw in range(3):
                    off = (kh - 1) * Wp + (kw - 1)
                    t = kh * 3 + kw
                    d = jnp.dot(w_ref[:, t * cin:(t + 1) * cin],
                                src_ref[:, M + off + c0:M + off + c0 + lc],
                                preferred_element_type=jnp.float32)
                    acc = d if acc is None else acc + d
            y = acc + b_ref[...]
            if relu:
                y = jnp.maximum(y, 0.0)
            if apply_mask:
                y = y * mask_ref[:, c0:c0 + lc]
            dst_ref[:, dst_off + c0:dst_off + c0 + lc] = y.astype(dst_ref.dtype)

    conv3x3(a1_ref, 64, w2_ref, b2_ref, a2_ref, M, relu=True, apply_mask=True)
    conv3x3(a2_ref, 64, w3_ref, b3_ref, a3_ref, M, relu=True, apply_mask=True)
    # conv4: wrapper crops the valid interior -> no ReLU, no mask.
    conv3x3(a3_ref, 32, w4_ref, b4_ref, o_ref, 0, relu=False, apply_mask=False)


# ---------------------------------------------------------------------------
# Host-side parameter prep (done once, outside the forward pass)
# ---------------------------------------------------------------------------
def _flatten_weight(w_oihw):
    # (Cout, Cin, KH, KW) -> (Cout, KH*KW*Cin); column = (kh*KW + kw)*Cin + cin
    co, ci, kh, kw = w_oihw.shape
    return jnp.transpose(w_oihw, (0, 2, 3, 1)).reshape(co, kh * kw * ci)


def prepare_params(params):
    """Weights -> bf16 (Cout, KH*KW*Cin); biases -> f32 (Cout, 1).

    The last (pre-pixel-shuffle) layer is zero-padded to a multiple of 8
    output rows so the kernel's output store is a full sublane tile.
    """
    flat = []
    last = len(params) - 1
    for li, (w, b) in enumerate(params):
        wf = _flatten_weight(w.astype(jnp.float32))
        bf = b.reshape(-1, 1).astype(jnp.float32)
        if li == last:
            co = wf.shape[0]
            co_pad = -(-co // 8) * 8
            wf = jnp.pad(wf, ((0, co_pad - co), (0, 0)))
            bf = jnp.pad(bf, ((0, co_pad - co), (0, 0)))
        flat.append((wf.astype(jnp.bfloat16), bf))
    return tuple(flat)


# ---------------------------------------------------------------------------
# Forward pass (NCHW in / NCHW out, like the PyTorch module)
# ---------------------------------------------------------------------------
def _pixel_shuffle(y, r):
    # y: (N, r*r, H, W) -> (N, 1, H*r, W*r)
    N, r2, H, W = y.shape
    y = y.reshape(N, 1, r, r, H, W)
    y = jnp.transpose(y, (0, 1, 4, 2, 5, 3))
    return y.reshape(N, 1, H * r, W * r)


def super_resolution_forward(x_nchw, flat_params, r):
    (w1, b1), (w2, b2), (w3, b3), (w4, b4) = flat_params
    N, Cin, H, W = x_nchw.shape
    assert Cin == 1
    r2 = r * r
    co4 = w4.shape[0]
    assert co4 >= r2

    Hp, Wp = H + 4, W + 4                       # room for the 5x5 (pad=2) conv
    while (Hp * Wp) % 128 != 0:                 # lane-dense canvas width
        Wp += 1
    S = Hp * Wp
    M = -(-(2 * Wp + 2) // 128) * 128           # margin >= largest tap offset
    Sx = S + 2 * M
    chunks = _lane_chunks(S)

    # Input canvas: image at offset (2, 2), flattened, M-lane zero margins.
    xc = jnp.pad(x_nchw.astype(jnp.float32),
                 ((0, 0), (0, 0), (2, Hp - H - 2), (2, Wp - W - 2)))
    xc = xc.reshape(N, 1, S)
    xc = jnp.pad(xc, ((0, 0), (0, 0), (M, M)))

    lane = jnp.arange(S, dtype=jnp.int32)
    yy, xx = lane // Wp, lane % Wp
    mask = (((yy >= 2) & (yy < 2 + H) & (xx >= 2) & (xx < 2 + W))
            .astype(jnp.float32).reshape(1, S))

    kern = functools.partial(_fused_sr_kernel, Wp=Wp, S=S, M=M, chunks=chunks)

    def full(shape):
        return pl.BlockSpec(shape, lambda n: (0,) * len(shape))

    out_canvas = pl.pallas_call(
        kern,
        out_shape=jax.ShapeDtypeStruct((N, co4, S), jnp.float32),
        grid=(N,),
        in_specs=[
            pl.BlockSpec((None, 1, Sx), lambda n: (n, 0, 0)),   # input canvas
            full(w1.shape), full(b1.shape),
            full(w2.shape), full(b2.shape),
            full(w3.shape), full(b3.shape),
            full(w4.shape), full(b4.shape),
            full(mask.shape),
        ],
        out_specs=pl.BlockSpec((None, co4, S), lambda n: (n, 0, 0)),
        scratch_shapes=[
            pltpu.VMEM((25, S), jnp.float32),      # conv1 im2col slab
            pltpu.VMEM((64, Sx), jnp.bfloat16),    # act1 canvas
            pltpu.VMEM((64, Sx), jnp.bfloat16),    # act2 canvas
            pltpu.VMEM((32, Sx), jnp.bfloat16),    # act3 canvas
        ],
        compiler_params=pltpu.CompilerParams(
            dimension_semantics=("parallel",)),
    )(xc, w1, b1, w2, b2, w3, b3, w4, b4, mask)

    # Crop the padded Cout rows + the valid HxW interior, then the
    # PixelShuffle permutation (tiny pure data movement) in XLA.
    y = out_canvas[:, :r2, :].reshape(N, r2, Hp, Wp)[:, :, 2:2 + H, 2:2 + W]
    return _pixel_shuffle(y, r)


# ---------------------------------------------------------------------------
# Deterministic parameter init (mirrors torch.nn.init.orthogonal semantics)
# ---------------------------------------------------------------------------
def orthogonal_init(key, shape, gain=1.0):
    rows = shape[0]
    cols = 1
    for s in shape[1:]:
        cols *= s
    a = jax.random.normal(key, (max(rows, cols), min(rows, cols)), jnp.float32)
    q, rmat = jnp.linalg.qr(a)
    q = q * jnp.sign(jnp.diagonal(rmat))
    if rows < cols:
        q = q.T
    return (gain * q[:rows, :cols]).reshape(shape)


# ---------------------------------------------------------------------------
# Pure-JAX references for correctness checking
# ---------------------------------------------------------------------------
def _ref_conv(x, w, b, pad, relu, *, operand_dtype=jnp.float32, precision=None):
    y = lax.conv_general_dilated(
        x.astype(operand_dtype), w.astype(operand_dtype),
        window_strides=(1, 1), padding=[(pad, pad), (pad, pad)],
        dimension_numbers=("NCHW", "OIHW", "NCHW"),
        preferred_element_type=jnp.float32, precision=precision)
    y = y + b.reshape(1, -1, 1, 1).astype(jnp.float32)
    return jnp.maximum(y, 0.0) if relu else y


def reference_forward(x, params, r):
    """Full-f32 (HIGHEST precision) reference."""
    (w1, b1), (w2, b2), (w3, b3), (w4, b4) = params
    p = lax.Precision.HIGHEST
    x = _ref_conv(x, w1, b1, 2, True, precision=p)
    x = _ref_conv(x, w2, b2, 1, True, precision=p)
    x = _ref_conv(x, w3, b3, 1, True, precision=p)
    x = _ref_conv(x, w4, b4, 1, False, precision=p)
    return _pixel_shuffle(x, r)


def reference_forward_matched(x, params, r):
    """Reference with the kernel's numerics: bf16 conv operands, f32
    accumulation, f32 bias/ReLU, bf16 activations between layers."""
    (w1, b1), (w2, b2), (w3, b3), (w4, b4) = params
    bf = jnp.bfloat16
    x = _ref_conv(x, w1, b1, 2, True, operand_dtype=bf).astype(bf)
    x = _ref_conv(x, w2, b2, 1, True, operand_dtype=bf).astype(bf)
    x = _ref_conv(x, w3, b3, 1, True, operand_dtype=bf).astype(bf)
    x = _ref_conv(x, w4, b4, 1, False, operand_dtype=bf)
    return _pixel_shuffle(x, r)


if __name__ == "__main__":
    upscale = 3
    N, Cin, H, W = 2, 1, 16, 16

    key = jax.random.PRNGKey(0)
    keys = jax.random.split(key, 9)
    x = jax.random.normal(keys[0], (N, Cin, H, W), jnp.float32)   # NCHW

    gain_relu = float(jnp.sqrt(2.0))                              # gain('relu')
    w1 = orthogonal_init(keys[1], (64, 1, 5, 5), gain_relu)
    w2 = orthogonal_init(keys[2], (64, 64, 3, 3), gain_relu)
    w3 = orthogonal_init(keys[3], (32, 64, 3, 3), gain_relu)
    w4 = orthogonal_init(keys[4], (upscale ** 2, 32, 3, 3), 1.0)
    b1 = jax.random.uniform(keys[5], (64,), minval=-0.1, maxval=0.1)
    b2 = jax.random.uniform(keys[6], (64,), minval=-0.1, maxval=0.1)
    b3 = jax.random.uniform(keys[7], (32,), minval=-0.1, maxval=0.1)
    b4 = jax.random.uniform(keys[8], (upscale ** 2,), minval=-0.1, maxval=0.1)
    params = ((w1, b1), (w2, b2), (w3, b3), (w4, b4))

    flat_params = prepare_params(params)          # hoisted one-time prep
    fwd = jax.jit(functools.partial(super_resolution_forward, r=upscale))
    out = jax.block_until_ready(fwd(x, flat_params))
    assert out.shape == (N, 1, H * upscale, W * upscale), out.shape

    # Tight structural check vs a reference with matched numerics (bf16
    # operands, f32 accumulation): any tap / padding / bias / shuffle bug
    # would show up as O(0.1+) error; tolerance is sub-bf16-ulp at |y|~1.
    ref_m = reference_forward_matched(x, params, upscale)
    err_m = float(jnp.max(jnp.abs(out - ref_m)))
    assert err_m < 5e-3, f"mismatch vs matched-precision reference: {err_m}"

    # Loose sanity bound vs the full-f32 reference (bf16 quantization noise
    # of the chosen internal precision only).
    ref_f = reference_forward(x, params, upscale)
    err_f = float(jnp.max(jnp.abs(out - ref_f)))
    assert err_f < 1e-1, f"bf16 quantization error too large: {err_f}"

    print("KERNEL_OK")
</pallas_src>

<mosaic_0001>
module attributes {stable_mosaic.version = 11 : i64} {
  func.func @_fused_sr_kernel(%arg0: i32, %arg1: memref<1x1x896xf32, #tpu.memory_space<vmem>>, %arg2: memref<64x25xbf16, #tpu.memory_space<vmem>>, %arg3: memref<64x1xf32, #tpu.memory_space<vmem>>, %arg4: memref<64x576xbf16, #tpu.memory_space<vmem>>, %arg5: memref<64x1xf32, #tpu.memory_space<vmem>>, %arg6: memref<32x576xbf16, #tpu.memory_space<vmem>>, %arg7: memref<32x1xf32, #tpu.memory_space<vmem>>, %arg8: memref<16x288xbf16, #tpu.memory_space<vmem>>, %arg9: memref<16x1xf32, #tpu.memory_space<vmem>>, %arg10: memref<1x640xf32, #tpu.memory_space<vmem>>, %arg11: memref<1x16x640xf32, #tpu.memory_space<vmem>>, %arg12: memref<25x640xf32, #tpu.memory_space<vmem>>, %arg13: memref<64x896xbf16, #tpu.memory_space<vmem>>, %arg14: memref<64x896xbf16, #tpu.memory_space<vmem>>, %arg15: memref<32x896xbf16, #tpu.memory_space<vmem>>) attributes {dimension_semantics = [#tpu.dimension_semantics<parallel>], iteration_bounds = array<i64: 2>, scalar_prefetch = 0 : i64, scratch_operands = 4 : i64, tpu.core_type = #tpu.core_type<tc>, window_params = [{transform_indices = @transform_0, window_bounds = array<i64: 1, 1, 896>}, {pipeline_mode = #tpu.pipeline_mode<synchronous>, transform_indices = @transform_1, window_bounds = array<i64: 64, 25>}, {pipeline_mode = #tpu.pipeline_mode<synchronous>, transform_indices = @transform_2, window_bounds = array<i64: 64, 1>}, {pipeline_mode = #tpu.pipeline_mode<synchronous>, transform_indices = @transform_3, window_bounds = array<i64: 64, 576>}, {pipeline_mode = #tpu.pipeline_mode<synchronous>, transform_indices = @transform_4, window_bounds = array<i64: 64, 1>}, {pipeline_mode = #tpu.pipeline_mode<synchronous>, transform_indices = @transform_5, window_bounds = array<i64: 32, 576>}, {pipeline_mode = #tpu.pipeline_mode<synchronous>, transform_indices = @transform_6, window_bounds = array<i64: 32, 1>}, {pipeline_mode = #tpu.pipeline_mode<synchronous>, transform_indices = @transform_7, window_bounds = array<i64: 16, 288>}, {pipeline_mode = #tpu.pipeline_mode<synchronous>, transform_indices = @transform_8, window_bounds = array<i64: 16, 1>}, {pipeline_mode = #tpu.pipeline_mode<synchronous>, transform_indices = @transform_9, window_bounds = array<i64: 1, 640>}, {transform_indices = @transform_10, window_bounds = array<i64: 1, 16, 640>}]} {
    %cst = arith.constant 0.000000e+00 : bf16
    %0 = vector.broadcast %cst : bf16 to vector<64x128xbf16>
    %c0 = arith.constant 0 : index
    %c0_0 = arith.constant 0 : index
    %1 = vector.load %arg13[%c0, %c0_0] : memref<64x896xbf16, #tpu.memory_space<vmem>>, vector<64x128xbf16>
    tpu.vector_store %arg13[%c0, %c0_0], %0 {strides = array<i32>} : memref<64x896xbf16, #tpu.memory_space<vmem>>, vector<64x128xbf16>,
    %c0_1 = arith.constant 0 : index
    %c768 = arith.constant 768 : index
    %2 = vector.load %arg13[%c0_1, %c768] : memref<64x896xbf16, #tpu.memory_space<vmem>>, vector<64x128xbf16>
    tpu.vector_store %arg13[%c0_1, %c768], %0 {strides = array<i32>} : memref<64x896xbf16, #tpu.memory_space<vmem>>, vector<64x128xbf16>,
    %cst_2 = arith.constant 0.000000e+00 : bf16
    %3 = vector.broadcast %cst_2 : bf16 to vector<64x128xbf16>
    %c0_3 = arith.constant 0 : index
    %c0_4 = arith.constant 0 : index
    %4 = vector.load %arg14[%c0_3, %c0_4] : memref<64x896xbf16, #tpu.memory_space<vmem>>, vector<64x128xbf16>
    tpu.vector_store %arg14[%c0_3, %c0_4], %3 {strides = array<i32>} : memref<64x896xbf16, #tpu.memory_space<vmem>>, vector<64x128xbf16>,
    %c0_5 = arith.constant 0 : index
    %c768_6 = arith.constant 768 : index
    %5 = vector.load %arg14[%c0_5, %c768_6] : memref<64x896xbf16, #tpu.memory_space<vmem>>, vector<64x128xbf16>
    tpu.vector_store %arg14[%c0_5, %c768_6], %3 {strides = array<i32>} : memref<64x896xbf16, #tpu.memory_space<vmem>>, vector<64x128xbf16>,
    %cst_7 = arith.constant 0.000000e+00 : bf16
    %6 = vector.broadcast %cst_7 : bf16 to vector<32x128xbf16>
    %c0_8 = arith.constant 0 : index
    %c0_9 = arith.constant 0 : index
    %7 = vector.load %arg15[%c0_8, %c0_9] : memref<32x896xbf16, #tpu.memory_space<vmem>>, vector<32x128xbf16>
    tpu.vector_store %arg15[%c0_8, %c0_9], %6 {strides = array<i32>} : memref<32x896xbf16, #tpu.memory_space<vmem>>, vector<32x128xbf16>,
    %c0_10 = arith.constant 0 : index
    %c768_11 = arith.constant 768 : index
    %8 = vector.load %arg15[%c0_10, %c768_11] : memref<32x896xbf16, #tpu.memory_space<vmem>>, vector<32x128xbf16>
    tpu.vector_store %arg15[%c0_10, %c768_11], %6 {strides = array<i32>} : memref<32x896xbf16, #tpu.memory_space<vmem>>, vector<32x128xbf16>,
    %c0_12 = arith.constant 0 : index
    %c0_13 = arith.constant 0 : index
    %c62 = arith.constant 62 : index
    %9 = vector.load %arg1[%c0_12, %c0_13, %c62] : memref<1x1x896xf32, #tpu.memory_space<vmem>>, vector<1x1x640xf32>
    %10 = vector.shape_cast %9 : vector<1x1x640xf32> to vector<1x640xf32>
    %c0_14 = arith.constant 0 : index
    %c0_15 = arith.constant 0 : index
    %11 = vector.load %arg12[%c0_14, %c0_15] : memref<25x640xf32, #tpu.memory_space<vmem>>, vector<1x640xf32>
    tpu.vector_store %arg12[%c0_14, %c0_15], %10 {strides = array<i32>} : memref<25x640xf32, #tpu.memory_space<vmem>>, vector<1x640xf32>,
    %c0_16 = arith.constant 0 : index
    %c0_17 = arith.constant 0 : index
    %c63 = arith.constant 63 : index
    %12 = vector.load %arg1[%c0_16, %c0_17, %c63] : memref<1x1x896xf32, #tpu.memory_space<vmem>>, vector<1x1x640xf32>
    %13 = vector.shape_cast %12 : vector<1x1x640xf32> to vector<1x640xf32>
    %c1 = arith.constant 1 : index
    %c0_18 = arith.constant 0 : index
    %14 = vector.load %arg12[%c1, %c0_18] : memref<25x640xf32, #tpu.memory_space<vmem>>, vector<1x640xf32>
    tpu.vector_store %arg12[%c1, %c0_18], %13 {strides = array<i32>} : memref<25x640xf32, #tpu.memory_space<vmem>>, vector<1x640xf32>,
    %c0_19 = arith.constant 0 : index
    %c0_20 = arith.constant 0 : index
    %c64 = arith.constant 64 : index
    %15 = vector.load %arg1[%c0_19, %c0_20, %c64] : memref<1x1x896xf32, #tpu.memory_space<vmem>>, vector<1x1x640xf32>
    %16 = vector.shape_cast %15 : vector<1x1x640xf32> to vector<1x640xf32>
    %c2 = arith.constant 2 : index
    %c0_21 = arith.constant 0 : index
    %17 = vector.load %arg12[%c2, %c0_21] : memref<25x640xf32, #tpu.memory_space<vmem>>, vector<1x640xf32>
    tpu.vector_store %arg12[%c2, %c0_21], %16 {strides = array<i32>} : memref<25x640xf32, #tpu.memory_space<vmem>>, vector<1x640xf32>,
    %c0_22 = arith.constant 0 : index
    %c0_23 = arith.constant 0 : index
    %c65 = arith.constant 65 : index
    %18 = vector.load %arg1[%c0_22, %c0_23, %c65] : memref<1x1x896xf32, #tpu.memory_space<vmem>>, vector<1x1x640xf32>
    %19 = vector.shape_cast %18 : vector<1x1x640xf32> to vector<1x640xf32>
    %c3 = arith.constant 3 : index
    %c0_24 = arith.constant 0 : index
    %20 = vector.load %arg12[%c3, %c0_24] : memref<25x640xf32, #tpu.memory_space<vmem>>, vector<1x640xf32>
    tpu.vector_store %arg12[%c3, %c0_24], %19 {strides = array<i32>} : memref<25x640xf32, #tpu.memory_space<vmem>>, vector<1x640xf32>,
    %c0_25 = arith.constant 0 : index
    %c0_26 = arith.constant 0 : index
    %c66 = arith.constant 66 : index
    %21 = vector.load %arg1[%c0_25, %c0_26, %c66] : memref<1x1x896xf32, #tpu.memory_space<vmem>>, vector<1x1x640xf32>
    %22 = vector.shape_cast %21 : vector<1x1x640xf32> to vector<1x640xf32>
    %c4 = arith.constant 4 : index
    %c0_27 = arith.constant 0 : index
    %23 = vector.load %arg12[%c4, %c0_27] : memref<25x640xf32, #tpu.memory_space<vmem>>, vector<1x640xf32>
    tpu.vector_store %arg12[%c4, %c0_27], %22 {strides = array<i32>} : memref<25x640xf32, #tpu.memory_space<vmem>>, vector<1x640xf32>,
    %c0_28 = arith.constant 0 : index
    %c0_29 = arith.constant 0 : index
    %c94 = arith.constant 94 : index
    %24 = vector.load %arg1[%c0_28, %c0_29, %c94] : memref<1x1x896xf32, #tpu.memory_space<vmem>>, vector<1x1x640xf32>
    %25 = vector.shape_cast %24 : vector<1x1x640xf32> to vector<1x640xf32>
    %c5 = arith.constant 5 : index
    %c0_30 = arith.constant 0 : index
    %26 = vector.load %arg12[%c5, %c0_30] : memref<25x640xf32, #tpu.memory_space<vmem>>, vector<1x640xf32>
    tpu.vector_store %arg12[%c5, %c0_30], %25 {strides = array<i32>} : memref<25x640xf32, #tpu.memory_space<vmem>>, vector<1x640xf32>,
    %c0_31 = arith.constant 0 : index
    %c0_32 = arith.constant 0 : index
    %c95 = arith.constant 95 : index
    %27 = vector.load %arg1[%c0_31, %c0_32, %c95] : memref<1x1x896xf32, #tpu.memory_space<vmem>>, vector<1x1x640xf32>
    %28 = vector.shape_cast %27 : vector<1x1x640xf32> to vector<1x640xf32>
    %c6 = arith.constant 6 : index
    %c0_33 = arith.constant 0 : index
    %29 = vector.load %arg12[%c6, %c0_33] : memref<25x640xf32, #tpu.memory_space<vmem>>, vector<1x640xf32>
    tpu.vector_store %arg12[%c6, %c0_33], %28 {strides = array<i32>} : memref<25x640xf32, #tpu.memory_space<vmem>>, vector<1x640xf32>,
    %c0_34 = arith.constant 0 : index
    %c0_35 = arith.constant 0 : index
    %c96 = arith.constant 96 : index
    %30 = vector.load %arg1[%c0_34, %c0_35, %c96] : memref<1x1x896xf32, #tpu.memory_space<vmem>>, vector<1x1x640xf32>
    %31 = vector.shape_cast %30 : vector<1x1x640xf32> to vector<1x640xf32>
    %c7 = arith.constant 7 : index
    %c0_36 = arith.constant 0 : index
    %32 = vector.load %arg12[%c7, %c0_36] : memref<25x640xf32, #tpu.memory_space<vmem>>, vector<1x640xf32>
    tpu.vector_store %arg12[%c7, %c0_36], %31 {strides = array<i32>} : memref<25x640xf32, #tpu.memory_space<vmem>>, vector<1x640xf32>,
    %c0_37 = arith.constant 0 : index
    %c0_38 = arith.constant 0 : index
    %c97 = arith.constant 97 : index
    %33 = vector.load %arg1[%c0_37, %c0_38, %c97] : memref<1x1x896xf32, #tpu.memory_space<vmem>>, vector<1x1x640xf32>
    %34 = vector.shape_cast %33 : vector<1x1x640xf32> to vector<1x640xf32>
    %c8 = arith.constant 8 : index
    %c0_39 = arith.constant 0 : index
    %35 = vector.load %arg12[%c8, %c0_39] : memref<25x640xf32, #tpu.memory_space<vmem>>, vector<1x640xf32>
    tpu.vector_store %arg12[%c8, %c0_39], %34 {strides = array<i32>} : memref<25x640xf32, #tpu.memory_space<vmem>>, vector<1x640xf32>,
    %c0_40 = arith.constant 0 : index
    %c0_41 = arith.constant 0 : index
    %c98 = arith.constant 98 : index
    %36 = vector.load %arg1[%c0_40, %c0_41, %c98] : memref<1x1x896xf32, #tpu.memory_space<vmem>>, vector<1x1x640xf32>
    %37 = vector.shape_cast %36 : vector<1x1x640xf32> to vector<1x640xf32>
    %c9 = arith.constant 9 : index
    %c0_42 = arith.constant 0 : index
    %38 = vector.load %arg12[%c9, %c0_42] : memref<25x640xf32, #tpu.memory_space<vmem>>, vector<1x640xf32>
    tpu.vector_store %arg12[%c9, %c0_42], %37 {strides = array<i32>} : memref<25x640xf32, #tpu.memory_space<vmem>>, vector<1x640xf32>,
    %c0_43 = arith.constant 0 : index
    %c0_44 = arith.constant 0 : index
    %c126 = arith.constant 126 : index
    %39 = vector.load %arg1[%c0_43, %c0_44, %c126] : memref<1x1x896xf32, #tpu.memory_space<vmem>>, vector<1x1x640xf32>
    %40 = vector.shape_cast %39 : vector<1x1x640xf32> to vector<1x640xf32>
    %c10 = arith.constant 10 : index
    %c0_45 = arith.constant 0 : index
    %41 = vector.load %arg12[%c10, %c0_45] : memref<25x640xf32, #tpu.memory_space<vmem>>, vector<1x640xf32>
    tpu.vector_store %arg12[%c10, %c0_45], %40 {strides = array<i32>} : memref<25x640xf32, #tpu.memory_space<vmem>>, vector<1x640xf32>,
    %c0_46 = arith.constant 0 : index
    %c0_47 = arith.constant 0 : index
    %c127 = arith.constant 127 : index
    %42 = vector.load %arg1[%c0_46, %c0_47, %c127] : memref<1x1x896xf32, #tpu.memory_space<vmem>>, vector<1x1x640xf32>
    %43 = vector.shape_cast %42 : vector<1x1x640xf32> to vector<1x640xf32>
    %c11 = arith.constant 11 : index
    %c0_48 = arith.constant 0 : index
    %44 = vector.load %arg12[%c11, %c0_48] : memref<25x640xf32, #tpu.memory_space<vmem>>, vector<1x640xf32>
    tpu.vector_store %arg12[%c11, %c0_48], %43 {strides = array<i32>} : memref<25x640xf32, #tpu.memory_space<vmem>>, vector<1x640xf32>,
    %c0_49 = arith.constant 0 : index
    %c0_50 = arith.constant 0 : index
    %c128 = arith.constant 128 : index
    %45 = vector.load %arg1[%c0_49, %c0_50, %c128] : memref<1x1x896xf32, #tpu.memory_space<vmem>>, vector<1x1x640xf32>
    %46 = vector.shape_cast %45 : vector<1x1x640xf32> to vector<1x640xf32>
    %c12 = arith.constant 12 : index
    %c0_51 = arith.constant 0 : index
    %47 = vector.load %arg12[%c12, %c0_51] : memref<25x640xf32, #tpu.memory_space<vmem>>, vector<1x640xf32>
    tpu.vector_store %arg12[%c12, %c0_51], %46 {strides = array<i32>} : memref<25x640xf32, #tpu.memory_space<vmem>>, vector<1x640xf32>,
    %c0_52 = arith.constant 0 : index
    %c0_53 = arith.constant 0 : index
    %c129 = arith.constant 129 : index
    %48 = vector.load %arg1[%c0_52, %c0_53, %c129] : memref<1x1x896xf32, #tpu.memory_space<vmem>>, vector<1x1x640xf32>
    %49 = vector.shape_cast %48 : vector<1x1x640xf32> to vector<1x640xf32>
    %c13 = arith.constant 13 : index
    %c0_54 = arith.constant 0 : index
    %50 = vector.load %arg12[%c13, %c0_54] : memref<25x640xf32, #tpu.memory_space<vmem>>, vector<1x640xf32>
    tpu.vector_store %arg12[%c13, %c0_54], %49 {strides = array<i32>} : memref<25x640xf32, #tpu.memory_space<vmem>>, vector<1x640xf32>,
    %c0_55 = arith.constant 0 : index
    %c0_56 = arith.constant 0 : index
    %c130 = arith.constant 130 : index
    %51 = vector.load %arg1[%c0_55, %c0_56, %c130] : memref<1x1x896xf32, #tpu.memory_space<vmem>>, vector<1x1x640xf32>
    %52 = vector.shape_cast %51 : vector<1x1x640xf32> to vector<1x640xf32>
    %c14 = arith.constant 14 : index
    %c0_57 = arith.constant 0 : index
    %53 = vector.load %arg12[%c14, %c0_57] : memref<25x640xf32, #tpu.memory_space<vmem>>, vector<1x640xf32>
    tpu.vector_store %arg12[%c14, %c0_57], %52 {strides = array<i32>} : memref<25x640xf32, #tpu.memory_space<vmem>>, vector<1x640xf32>,
    %c0_58 = arith.constant 0 : index
    %c0_59 = arith.constant 0 : index
    %c158 = arith.constant 158 : index
    %54 = vector.load %arg1[%c0_58, %c0_59, %c158] : memref<1x1x896xf32, #tpu.memory_space<vmem>>, vector<1x1x640xf32>
    %55 = vector.shape_cast %54 : vector<1x1x640xf32> to vector<1x640xf32>
    %c15 = arith.constant 15 : index
    %c0_60 = arith.constant 0 : index
    %56 = vector.load %arg12[%c15, %c0_60] : memref<25x640xf32, #tpu.memory_space<vmem>>, vector<1x640xf32>
    tpu.vector_store %arg12[%c15, %c0_60], %55 {strides = array<i32>} : memref<25x640xf32, #tpu.memory_space<vmem>>, vector<1x640xf32>,
    %c0_61 = arith.constant 0 : index
    %c0_62 = arith.constant 0 : index
    %c159 = arith.constant 159 : index
    %57 = vector.load %arg1[%c0_61, %c0_62, %c159] : memref<1x1x896xf32, #tpu.memory_space<vmem>>, vector<1x1x640xf32>
    %58 = vector.shape_cast %57 : vector<1x1x640xf32> to vector<1x640xf32>
    %c16 = arith.constant 16 : index
    %c0_63 = arith.constant 0 : index
    %59 = vector.load %arg12[%c16, %c0_63] : memref<25x640xf32, #tpu.memory_space<vmem>>, vector<1x640xf32>
    tpu.vector_store %arg12[%c16, %c0_63], %58 {strides = array<i32>} : memref<25x640xf32, #tpu.memory_space<vmem>>, vector<1x640xf32>,
    %c0_64 = arith.constant 0 : index
    %c0_65 = arith.constant 0 : index
    %c160 = arith.constant 160 : index
    %60 = vector.load %arg1[%c0_64, %c0_65, %c160] : memref<1x1x896xf32, #tpu.memory_space<vmem>>, vector<1x1x640xf32>
    %61 = vector.shape_cast %60 : vector<1x1x640xf32> to vector<1x640xf32>
    %c17 = arith.constant 17 : index
    %c0_66 = arith.constant 0 : index
    %62 = vector.load %arg12[%c17, %c0_66] : memref<25x640xf32, #tpu.memory_space<vmem>>, vector<1x640xf32>
    tpu.vector_store %arg12[%c17, %c0_66], %61 {strides = array<i32>} : memref<25x640xf32, #tpu.memory_space<vmem>>, vector<1x640xf32>,
    %c0_67 = arith.constant 0 : index
    %c0_68 = arith.constant 0 : index
    %c161 = arith.constant 161 : index
    %63 = vector.load %arg1[%c0_67, %c0_68, %c161] : memref<1x1x896xf32, #tpu.memory_space<vmem>>, vector<1x1x640xf32>
    %64 = vector.shape_cast %63 : vector<1x1x640xf32> to vector<1x640xf32>
    %c18 = arith.constant 18 : index
    %c0_69 = arith.constant 0 : index
    %65 = vector.load %arg12[%c18, %c0_69] : memref<25x640xf32, #tpu.memory_space<vmem>>, vector<1x640xf32>
    tpu.vector_store %arg12[%c18, %c0_69], %64 {strides = array<i32>} : memref<25x640xf32, #tpu.memory_space<vmem>>, vector<1x640xf32>,
    %c0_70 = arith.constant 0 : index
    %c0_71 = arith.constant 0 : index
    %c162 = arith.constant 162 : index
    %66 = vector.load %arg1[%c0_70, %c0_71, %c162] : memref<1x1x896xf32, #tpu.memory_space<vmem>>, vector<1x1x640xf32>
    %67 = vector.shape_cast %66 : vector<1x1x640xf32> to vector<1x640xf32>
    %c19 = arith.constant 19 : index
    %c0_72 = arith.constant 0 : index
    %68 = vector.load %arg12[%c19, %c0_72] : memref<25x640xf32, #tpu.memory_space<vmem>>, vector<1x640xf32>
    tpu.vector_store %arg12[%c19, %c0_72], %67 {strides = array<i32>} : memref<25x640xf32, #tpu.memory_space<vmem>>, vector<1x640xf32>,
    %c0_73 = arith.constant 0 : index
    %c0_74 = arith.constant 0 : index
    %c190 = arith.constant 190 : index
    %69 = vector.load %arg1[%c0_73, %c0_74, %c190] : memref<1x1x896xf32, #tpu.memory_space<vmem>>, vector<1x1x640xf32>
    %70 = vector.shape_cast %69 : vector<1x1x640xf32> to vector<1x640xf32>
    %c20 = arith.constant 20 : index
    %c0_75 = arith.constant 0 : index
    %71 = vector.load %arg12[%c20, %c0_75] : memref<25x640xf32, #tpu.memory_space<vmem>>, vector<1x640xf32>
    tpu.vector_store %arg12[%c20, %c0_75], %70 {strides = array<i32>} : memref<25x640xf32, #tpu.memory_space<vmem>>, vector<1x640xf32>,
    %c0_76 = arith.constant 0 : index
    %c0_77 = arith.constant 0 : index
    %c191 = arith.constant 191 : index
    %72 = vector.load %arg1[%c0_76, %c0_77, %c191] : memref<1x1x896xf32, #tpu.memory_space<vmem>>, vector<1x1x640xf32>
    %73 = vector.shape_cast %72 : vector<1x1x640xf32> to vector<1x640xf32>
    %c21 = arith.constant 21 : index
    %c0_78 = arith.constant 0 : index
    %74 = vector.load %arg12[%c21, %c0_78] : memref<25x640xf32, #tpu.memory_space<vmem>>, vector<1x640xf32>
    tpu.vector_store %arg12[%c21, %c0_78], %73 {strides = array<i32>} : memref<25x640xf32, #tpu.memory_space<vmem>>, vector<1x640xf32>,
    %c0_79 = arith.constant 0 : index
    %c0_80 = arith.constant 0 : index
    %c192 = arith.constant 192 : index
    %75 = vector.load %arg1[%c0_79, %c0_80, %c192] : memref<1x1x896xf32, #tpu.memory_space<vmem>>, vector<1x1x640xf32>
    %76 = vector.shape_cast %75 : vector<1x1x640xf32> to vector<1x640xf32>
    %c22 = arith.constant 22 : index
    %c0_81 = arith.constant 0 : index
    %77 = vector.load %arg12[%c22, %c0_81] : memref<25x640xf32, #tpu.memory_space<vmem>>, vector<1x640xf32>
    tpu.vector_store %arg12[%c22, %c0_81], %76 {strides = array<i32>} : memref<25x640xf32, #tpu.memory_space<vmem>>, vector<1x640xf32>,
    %c0_82 = arith.constant 0 : index
    %c0_83 = arith.constant 0 : index
    %c193 = arith.constant 193 : index
    %78 = vector.load %arg1[%c0_82, %c0_83, %c193] : memref<1x1x896xf32, #tpu.memory_space<vmem>>, vector<1x1x640xf32>
    %79 = vector.shape_cast %78 : vector<1x1x640xf32> to vector<1x640xf32>
    %c23 = arith.constant 23 : index
    %c0_84 = arith.constant 0 : index
    %80 = vector.load %arg12[%c23, %c0_84] : memref<25x640xf32, #tpu.memory_space<vmem>>, vector<1x640xf32>
    tpu.vector_store %arg12[%c23, %c0_84], %79 {strides = array<i32>} : memref<25x640xf32, #tpu.memory_space<vmem>>, vector<1x640xf32>,
    %c0_85 = arith.constant 0 : index
    %c0_86 = arith.constant 0 : index
    %c194 = arith.constant 194 : index
    %81 = vector.load %arg1[%c0_85, %c0_86, %c194] : memref<1x1x896xf32, #tpu.memory_space<vmem>>, vector<1x1x640xf32>
    %82 = vector.shape_cast %81 : vector<1x1x640xf32> to vector<1x640xf32>
    %c24 = arith.constant 24 : index
    %c0_87 = arith.constant 0 : index
    %83 = vector.load %arg12[%c24, %c0_87] : memref<25x640xf32, #tpu.memory_space<vmem>>, vector<1x640xf32>
    tpu.vector_store %arg12[%c24, %c0_87], %82 {strides = array<i32>} : memref<25x640xf32, #tpu.memory_space<vmem>>, vector<1x640xf32>,
    %c0_88 = arith.constant 0 : index
    %c0_89 = arith.constant 0 : index
    %84 = vector.load %arg2[%c0_88, %c0_89] : memref<64x25xbf16, #tpu.memory_space<vmem>>, vector<64x25xbf16>
    %c0_90 = arith.constant 0 : index
    %c0_91 = arith.constant 0 : index
    %85 = vector.load %arg12[%c0_90, %c0_91] : memref<25x640xf32, #tpu.memory_space<vmem>>, vector<25x384xf32>
    %86 = arith.truncf %85 : vector<25x384xf32> to vector<25x384xbf16>
    %cst_92 = arith.constant dense<0.000000e+00> : vector<64x384xf32>
    %87 = tpu.matmul %84, %86, %cst_92 {dimension_numbers = #tpu.dot_dimension_numbers<[1], [0], [0], [1], [0, 0, 1, 1], [], []>} : vector<64x25xbf16>, vector<25x384xbf16>, vector<64x384xf32> -> vector<64x384xf32>
    %c0_93 = arith.constant 0 : index
    %c0_94 = arith.constant 0 : index
    %88 = vector.load %arg3[%c0_93, %c0_94] : memref<64x1xf32, #tpu.memory_space<vmem>>, vector<64x1xf32>
    %89 = vector.broadcast %88 : vector<64x1xf32> to vector<64x384xf32>
    %90 = arith.addf %87, %89 : vector<64x384xf32>
    %cst_95 = arith.constant 0.000000e+00 : f32
    %91 = vector.broadcast %cst_95 : f32 to vector<64x384xf32>
    %92 = arith.maximumf %90, %91 : vector<64x384xf32>
    %c0_96 = arith.constant 0 : index
    %c0_97 = arith.constant 0 : index
    %93 = vector.load %arg10[%c0_96, %c0_97] : memref<1x640xf32, #tpu.memory_space<vmem>>, vector<1x384xf32>
    %94 = vector.broadcast %93 : vector<1x384xf32> to vector<64x384xf32>
    %95 = arith.mulf %92, %94 : vector<64x384xf32>
    %96 = arith.truncf %95 : vector<64x384xf32> to vector<64x384xbf16>
    %c0_98 = arith.constant 0 : index
    %c128_99 = arith.constant 128 : index
    %97 = vector.load %arg13[%c0_98, %c128_99] : memref<64x896xbf16, #tpu.memory_space<vmem>>, vector<64x384xbf16>
    tpu.vector_store %arg13[%c0_98, %c128_99], %96 {strides = array<i32>} : memref<64x896xbf16, #tpu.memory_space<vmem>>, vector<64x384xbf16>,
    %c0_100 = arith.constant 0 : index
    %c0_101 = arith.constant 0 : index
    %98 = vector.load %arg2[%c0_100, %c0_101] : memref<64x25xbf16, #tpu.memory_space<vmem>>, vector<64x25xbf16>
    %c0_102 = arith.constant 0 : index
    %c384 = arith.constant 384 : index
    %99 = vector.load %arg12[%c0_102, %c384] : memref<25x640xf32, #tpu.memory_space<vmem>>, vector<25x256xf32>
    %100 = arith.truncf %99 : vector<25x256xf32> to vector<25x256xbf16>
    %cst_103 = arith.constant dense<0.000000e+00> : vector<64x256xf32>
    %101 = tpu.matmul %98, %100, %cst_103 {dimension_numbers = #tpu.dot_dimension_numbers<[1], [0], [0], [1], [0, 0, 1, 1], [], []>} : vector<64x25xbf16>, vector<25x256xbf16>, vector<64x256xf32> -> vector<64x256xf32>
    %c0_104 = arith.constant 0 : index
    %c0_105 = arith.constant 0 : index
    %102 = vector.load %arg3[%c0_104, %c0_105] : memref<64x1xf32, #tpu.memory_space<vmem>>, vector<64x1xf32>
    %103 = vector.broadcast %102 : vector<64x1xf32> to vector<64x256xf32>
    %104 = arith.addf %101, %103 : vector<64x256xf32>
    %cst_106 = arith.constant 0.000000e+00 : f32
    %105 = vector.broadcast %cst_106 : f32 to vector<64x256xf32>
    %106 = arith.maximumf %104, %105 : vector<64x256xf32>
    %c0_107 = arith.constant 0 : index
    %c384_108 = arith.constant 384 : index
    %107 = vector.load %arg10[%c0_107, %c384_108] : memref<1x640xf32, #tpu.memory_space<vmem>>, vector<1x256xf32>
    %108 = vector.broadcast %107 : vector<1x256xf32> to vector<64x256xf32>
    %109 = arith.mulf %106, %108 : vector<64x256xf32>
    %110 = arith.truncf %109 : vector<64x256xf32> to vector<64x256xbf16>
    %c0_109 = arith.constant 0 : index
    %c512 = arith.constant 512 : index
    %111 = vector.load %arg13[%c0_109, %c512] : memref<64x896xbf16, #tpu.memory_space<vmem>>, vector<64x256xbf16>
    tpu.vector_store %arg13[%c0_109, %c512], %110 {strides = array<i32>} : memref<64x896xbf16, #tpu.memory_space<vmem>>, vector<64x256xbf16>,
    %c0_110 = arith.constant 0 : index
    %c0_111 = arith.constant 0 : index
    %112 = vector.load %arg4[%c0_110, %c0_111] : memref<64x576xbf16, #tpu.memory_space<vmem>>, vector<64x64xbf16>
    %c0_112 = arith.constant 0 : index
    %c95_113 = arith.constant 95 : index
    %113 = vector.load %arg13[%c0_112, %c95_113] : memref<64x896xbf16, #tpu.memory_space<vmem>>, vector<64x384xbf16>
    %cst_114 = arith.constant dense<0.000000e+00> : vector<64x384xf32>
    %114 = tpu.matmul %112, %113, %cst_114 {dimension_numbers = #tpu.dot_dimension_numbers<[1], [0], [0], [1], [0, 0, 1, 1], [], []>} : vector<64x64xbf16>, vector<64x384xbf16>, vector<64x384xf32> -> vector<64x384xf32>
    %c0_115 = arith.constant 0 : index
    %c64_116 = arith.constant 64 : index
    %115 = vector.load %arg4[%c0_115, %c64_116] : memref<64x576xbf16, #tpu.memory_space<vmem>>, vector<64x64xbf16>
    %c0_117 = arith.constant 0 : index
    %c96_118 = arith.constant 96 : index
    %116 = vector.load %arg13[%c0_117, %c96_118] : memref<64x896xbf16, #tpu.memory_space<vmem>>, vector<64x384xbf16>
    %cst_119 = arith.constant dense<0.000000e+00> : vector<64x384xf32>
    %117 = tpu.matmul %115, %116, %cst_119 {dimension_numbers = #tpu.dot_dimension_numbers<[1], [0], [0], [1], [0, 0, 1, 1], [], []>} : vector<64x64xbf16>, vector<64x384xbf16>, vector<64x384xf32> -> vector<64x384xf32>
    %118 = arith.addf %114, %117 : vector<64x384xf32>
    %c0_120 = arith.constant 0 : index
    %c128_121 = arith.constant 128 : index
    %119 = vector.load %arg4[%c0_120, %c128_121] : memref<64x576xbf16, #tpu.memory_space<vmem>>, vector<64x64xbf16>
    %c0_122 = arith.constant 0 : index
    %c97_123 = arith.constant 97 : index
    %120 = vector.load %arg13[%c0_122, %c97_123] : memref<64x896xbf16, #tpu.memory_space<vmem>>, vector<64x384xbf16>
    %cst_124 = arith.constant dense<0.000000e+00> : vector<64x384xf32>
    %121 = tpu.matmul %119, %120, %cst_124 {dimension_numbers = #tpu.dot_dimension_numbers<[1], [0], [0], [1], [0, 0, 1, 1], [], []>} : vector<64x64xbf16>, vector<64x384xbf16>, vector<64x384xf32> -> vector<64x384xf32>
    %122 = arith.addf %118, %121 : vector<64x384xf32>
    %c0_125 = arith.constant 0 : index
    %c192_126 = arith.constant 192 : index
    %123 = vector.load %arg4[%c0_125, %c192_126] : memref<64x576xbf16, #tpu.memory_space<vmem>>, vector<64x64xbf16>
    %c0_127 = arith.constant 0 : index
    %c127_128 = arith.constant 127 : index
    %124 = vector.load %arg13[%c0_127, %c127_128] : memref<64x896xbf16, #tpu.memory_space<vmem>>, vector<64x384xbf16>
    %cst_129 = arith.constant dense<0.000000e+00> : vector<64x384xf32>
    %125 = tpu.matmul %123, %124, %cst_129 {dimension_numbers = #tpu.dot_dimension_numbers<[1], [0], [0], [1], [0, 0, 1, 1], [], []>} : vector<64x64xbf16>, vector<64x384xbf16>, vector<64x384xf32> -> vector<64x384xf32>
    %126 = arith.addf %122, %125 : vector<64x384xf32>
    %c0_130 = arith.constant 0 : index
    %c256 = arith.constant 256 : index
    %127 = vector.load %arg4[%c0_130, %c256] : memref<64x576xbf16, #tpu.memory_space<vmem>>, vector<64x64xbf16>
    %c0_131 = arith.constant 0 : index
    %c128_132 = arith.constant 128 : index
    %128 = vector.load %arg13[%c0_131, %c128_132] : memref<64x896xbf16, #tpu.memory_space<vmem>>, vector<64x384xbf16>
    %cst_133 = arith.constant dense<0.000000e+00> : vector<64x384xf32>
    %129 = tpu.matmul %127, %128, %cst_133 {dimension_numbers = #tpu.dot_dimension_numbers<[1], [0], [0], [1], [0, 0, 1, 1], [], []>} : vector<64x64xbf16>, vector<64x384xbf16>, vector<64x384xf32> -> vector<64x384xf32>
    %130 = arith.addf %126, %129 : vector<64x384xf32>
    %c0_134 = arith.constant 0 : index
    %c320 = arith.constant 320 : index
    %131 = vector.load %arg4[%c0_134, %c320] : memref<64x576xbf16, #tpu.memory_space<vmem>>, vector<64x64xbf16>
    %c0_135 = arith.constant 0 : index
    %c129_136 = arith.constant 129 : index
    %132 = vector.load %arg13[%c0_135, %c129_136] : memref<64x896xbf16, #tpu.memory_space<vmem>>, vector<64x384xbf16>
    %cst_137 = arith.constant dense<0.000000e+00> : vector<64x384xf32>
    %133 = tpu.matmul %131, %132, %cst_137 {dimension_numbers = #tpu.dot_dimension_numbers<[1], [0], [0], [1], [0, 0, 1, 1], [], []>} : vector<64x64xbf16>, vector<64x384xbf16>, vector<64x384xf32> -> vector<64x384xf32>
    %134 = arith.addf %130, %133 : vector<64x384xf32>
    %c0_138 = arith.constant 0 : index
    %c384_139 = arith.constant 384 : index
    %135 = vector.load %arg4[%c0_138, %c384_139] : memref<64x576xbf16, #tpu.memory_space<vmem>>, vector<64x64xbf16>
    %c0_140 = arith.constant 0 : index
    %c159_141 = arith.constant 159 : index
    %136 = vector.load %arg13[%c0_140, %c159_141] : memref<64x896xbf16, #tpu.memory_space<vmem>>, vector<64x384xbf16>
    %cst_142 = arith.constant dense<0.000000e+00> : vector<64x384xf32>
    %137 = tpu.matmul %135, %136, %cst_142 {dimension_numbers = #tpu.dot_dimension_numbers<[1], [0], [0], [1], [0, 0, 1, 1], [], []>} : vector<64x64xbf16>, vector<64x384xbf16>, vector<64x384xf32> -> vector<64x384xf32>
    %138 = arith.addf %134, %137 : vector<64x384xf32>
    %c0_143 = arith.constant 0 : index
    %c448 = arith.constant 448 : index
    %139 = vector.load %arg4[%c0_143, %c448] : memref<64x576xbf16, #tpu.memory_space<vmem>>, vector<64x64xbf16>
    %c0_144 = arith.constant 0 : index
    %c160_145 = arith.constant 160 : index
    %140 = vector.load %arg13[%c0_144, %c160_145] : memref<64x896xbf16, #tpu.memory_space<vmem>>, vector<64x384xbf16>
    %cst_146 = arith.constant dense<0.000000e+00> : vector<64x384xf32>
    %141 = tpu.matmul %139, %140, %cst_146 {dimension_numbers = #tpu.dot_dimension_numbers<[1], [0], [0], [1], [0, 0, 1, 1], [], []>} : vector<64x64xbf16>, vector<64x384xbf16>, vector<64x384xf32> -> vector<64x384xf32>
    %142 = arith.addf %138, %141 : vector<64x384xf32>
    %c0_147 = arith.constant 0 : index
    %c512_148 = arith.constant 512 : index
    %143 = vector.load %arg4[%c0_147, %c512_148] : memref<64x576xbf16, #tpu.memory_space<vmem>>, vector<64x64xbf16>
    %c0_149 = arith.constant 0 : index
    %c161_150 = arith.constant 161 : index
    %144 = vector.load %arg13[%c0_149, %c161_150] : memref<64x896xbf16, #tpu.memory_space<vmem>>, vector<64x384xbf16>
    %cst_151 = arith.constant dense<0.000000e+00> : vector<64x384xf32>
    %145 = tpu.matmul %143, %144, %cst_151 {dimension_numbers = #tpu.dot_dimension_numbers<[1], [0], [0], [1], [0, 0, 1, 1], [], []>} : vector<64x64xbf16>, vector<64x384xbf16>, vector<64x384xf32> -> vector<64x384xf32>
    %146 = arith.addf %142, %145 : vector<64x384xf32>
    %c0_152 = arith.constant 0 : index
    %c0_153 = arith.constant 0 : index
    %147 = vector.load %arg5[%c0_152, %c0_153] : memref<64x1xf32, #tpu.memory_space<vmem>>, vector<64x1xf32>
    %148 = vector.broadcast %147 : vector<64x1xf32> to vector<64x384xf32>
    %149 = arith.addf %146, %148 : vector<64x384xf32>
    %cst_154 = arith.constant 0.000000e+00 : f32
    %150 = vector.broadcast %cst_154 : f32 to vector<64x384xf32>
    %151 = arith.maximumf %149, %150 : vector<64x384xf32>
    %c0_155 = arith.constant 0 : index
    %c0_156 = arith.constant 0 : index
    %152 = vector.load %arg10[%c0_155, %c0_156] : memref<1x640xf32, #tpu.memory_space<vmem>>, vector<1x384xf32>
    %153 = vector.broadcast %152 : vector<1x384xf32> to vector<64x384xf32>
    %154 = arith.mulf %151, %153 : vector<64x384xf32>
    %155 = arith.truncf %154 : vector<64x384xf32> to vector<64x384xbf16>
    %c0_157 = arith.constant 0 : index
    %c128_158 = arith.constant 128 : index
    %156 = vector.load %arg14[%c0_157, %c128_158] : memref<64x896xbf16, #tpu.memory_space<vmem>>, vector<64x384xbf16>
    tpu.vector_store %arg14[%c0_157, %c128_158], %155 {strides = array<i32>} : memref<64x896xbf16, #tpu.memory_space<vmem>>, vector<64x384xbf16>,
    %c0_159 = arith.constant 0 : index
    %c0_160 = arith.constant 0 : index
    %157 = vector.load %arg4[%c0_159, %c0_160] : memref<64x576xbf16, #tpu.memory_space<vmem>>, vector<64x64xbf16>
    %c0_161 = arith.constant 0 : index
    %c479 = arith.constant 479 : index
    %158 = vector.load %arg13[%c0_161, %c479] : memref<64x896xbf16, #tpu.memory_space<vmem>>, vector<64x256xbf16>
    %cst_162 = arith.constant dense<0.000000e+00> : vector<64x256xf32>
    %159 = tpu.matmul %157, %158, %cst_162 {dimension_numbers = #tpu.dot_dimension_numbers<[1], [0], [0], [1], [0, 0, 1, 1], [], []>} : vector<64x64xbf16>, vector<64x256xbf16>, vector<64x256xf32> -> vector<64x256xf32>
    %c0_163 = arith.constant 0 : index
    %c64_164 = arith.constant 64 : index
    %160 = vector.load %arg4[%c0_163, %c64_164] : memref<64x576xbf16, #tpu.memory_space<vmem>>, vector<64x64xbf16>
    %c0_165 = arith.constant 0 : index
    %c480 = arith.constant 480 : index
    %161 = vector.load %arg13[%c0_165, %c480] : memref<64x896xbf16, #tpu.memory_space<vmem>>, vector<64x256xbf16>
    %cst_166 = arith.constant dense<0.000000e+00> : vector<64x256xf32>
    %162 = tpu.matmul %160, %161, %cst_166 {dimension_numbers = #tpu.dot_dimension_numbers<[1], [0], [0], [1], [0, 0, 1, 1], [], []>} : vector<64x64xbf16>, vector<64x256xbf16>, vector<64x256xf32> -> vector<64x256xf32>
    %163 = arith.addf %159, %162 : vector<64x256xf32>
    %c0_167 = arith.constant 0 : index
    %c128_168 = arith.constant 128 : index
    %164 = vector.load %arg4[%c0_167, %c128_168] : memref<64x576xbf16, #tpu.memory_space<vmem>>, vector<64x64xbf16>
    %c0_169 = arith.constant 0 : index
    %c481 = arith.constant 481 : index
    %165 = vector.load %arg13[%c0_169, %c481] : memref<64x896xbf16, #tpu.memory_space<vmem>>, vector<64x256xbf16>
    %cst_170 = arith.constant dense<0.000000e+00> : vector<64x256xf32>
    %166 = tpu.matmul %164, %165, %cst_170 {dimension_numbers = #tpu.dot_dimension_numbers<[1], [0], [0], [1], [0, 0, 1, 1], [], []>} : vector<64x64xbf16>, vector<64x256xbf16>, vector<64x256xf32> -> vector<64x256xf32>
    %167 = arith.addf %163, %166 : vector<64x256xf32>
    %c0_171 = arith.constant 0 : index
    %c192_172 = arith.constant 192 : index
    %168 = vector.load %arg4[%c0_171, %c192_172] : memref<64x576xbf16, #tpu.memory_space<vmem>>, vector<64x64xbf16>
    %c0_173 = arith.constant 0 : index
    %c511 = arith.constant 511 : index
    %169 = vector.load %arg13[%c0_173, %c511] : memref<64x896xbf16, #tpu.memory_space<vmem>>, vector<64x256xbf16>
    %cst_174 = arith.constant dense<0.000000e+00> : vector<64x256xf32>
    %170 = tpu.matmul %168, %169, %cst_174 {dimension_numbers = #tpu.dot_dimension_numbers<[1], [0], [0], [1], [0, 0, 1, 1], [], []>} : vector<64x64xbf16>, vector<64x256xbf16>, vector<64x256xf32> -> vector<64x256xf32>
    %171 = arith.addf %167, %170 : vector<64x256xf32>
    %c0_175 = arith.constant 0 : index
    %c256_176 = arith.constant 256 : index
    %172 = vector.load %arg4[%c0_175, %c256_176] : memref<64x576xbf16, #tpu.memory_space<vmem>>, vector<64x64xbf16>
    %c0_177 = arith.constant 0 : index
    %c512_178 = arith.constant 512 : index
    %173 = vector.load %arg13[%c0_177, %c512_178] : memref<64x896xbf16, #tpu.memory_space<vmem>>, vector<64x256xbf16>
    %cst_179 = arith.constant dense<0.000000e+00> : vector<64x256xf32>
    %174 = tpu.matmul %172, %173, %cst_179 {dimension_numbers = #tpu.dot_dimension_numbers<[1], [0], [0], [1], [0, 0, 1, 1], [], []>} : vector<64x64xbf16>, vector<64x256xbf16>, vector<64x256xf32> -> vector<64x256xf32>
    %175 = arith.addf %171, %174 : vector<64x256xf32>
    %c0_180 = arith.constant 0 : index
    %c320_181 = arith.constant 320 : index
    %176 = vector.load %arg4[%c0_180, %c320_181] : memref<64x576xbf16, #tpu.memory_space<vmem>>, vector<64x64xbf16>
    %c0_182 = arith.constant 0 : index
    %c513 = arith.constant 513 : index
    %177 = vector.load %arg13[%c0_182, %c513] : memref<64x896xbf16, #tpu.memory_space<vmem>>, vector<64x256xbf16>
    %cst_183 = arith.constant dense<0.000000e+00> : vector<64x256xf32>
    %178 = tpu.matmul %176, %177, %cst_183 {dimension_numbers = #tpu.dot_dimension_numbers<[1], [0], [0], [1], [0, 0, 1, 1], [], []>} : vector<64x64xbf16>, vector<64x256xbf16>, vector<64x256xf32> -> vector<64x256xf32>
    %179 = arith.addf %175, %178 : vector<64x256xf32>
    %c0_184 = arith.constant 0 : index
    %c384_185 = arith.constant 384 : index
    %180 = vector.load %arg4[%c0_184, %c384_185] : memref<64x576xbf16, #tpu.memory_space<vmem>>, vector<64x64xbf16>
    %c0_186 = arith.constant 0 : index
    %c543 = arith.constant 543 : index
    %181 = vector.load %arg13[%c0_186, %c543] : memref<64x896xbf16, #tpu.memory_space<vmem>>, vector<64x256xbf16>
    %cst_187 = arith.constant dense<0.000000e+00> : vector<64x256xf32>
    %182 = tpu.matmul %180, %181, %cst_187 {dimension_numbers = #tpu.dot_dimension_numbers<[1], [0], [0], [1], [0, 0, 1, 1], [], []>} : vector<64x64xbf16>, vector<64x256xbf16>, vector<64x256xf32> -> vector<64x256xf32>
    %183 = arith.addf %179, %182 : vector<64x256xf32>
    %c0_188 = arith.constant 0 : index
    %c448_189 = arith.constant 448 : index
    %184 = vector.load %arg4[%c0_188, %c448_189] : memref<64x576xbf16, #tpu.memory_space<vmem>>, vector<64x64xbf16>
    %c0_190 = arith.constant 0 : index
    %c544 = arith.constant 544 : index
    %185 = vector.load %arg13[%c0_190, %c544] : memref<64x896xbf16, #tpu.memory_space<vmem>>, vector<64x256xbf16>
    %cst_191 = arith.constant dense<0.000000e+00> : vector<64x256xf32>
    %186 = tpu.matmul %184, %185, %cst_191 {dimension_numbers = #tpu.dot_dimension_numbers<[1], [0], [0], [1], [0, 0, 1, 1], [], []>} : vector<64x64xbf16>, vector<64x256xbf16>, vector<64x256xf32> -> vector<64x256xf32>
    %187 = arith.addf %183, %186 : vector<64x256xf32>
    %c0_192 = arith.constant 0 : index
    %c512_193 = arith.constant 512 : index
    %188 = vector.load %arg4[%c0_192, %c512_193] : memref<64x576xbf16, #tpu.memory_space<vmem>>, vector<64x64xbf16>
    %c0_194 = arith.constant 0 : index
    %c545 = arith.constant 545 : index
    %189 = vector.load %arg13[%c0_194, %c545] : memref<64x896xbf16, #tpu.memory_space<vmem>>, vector<64x256xbf16>
    %cst_195 = arith.constant dense<0.000000e+00> : vector<64x256xf32>
    %190 = tpu.matmul %188, %189, %cst_195 {dimension_numbers = #tpu.dot_dimension_numbers<[1], [0], [0], [1], [0, 0, 1, 1], [], []>} : vector<64x64xbf16>, vector<64x256xbf16>, vector<64x256xf32> -> vector<64x256xf32>
    %191 = arith.addf %187, %190 : vector<64x256xf32>
    %c0_196 = arith.constant 0 : index
    %c0_197 = arith.constant 0 : index
    %192 = vector.load %arg5[%c0_196, %c0_197] : memref<64x1xf32, #tpu.memory_space<vmem>>, vector<64x1xf32>
    %193 = vector.broadcast %192 : vector<64x1xf32> to vector<64x256xf32>
    %194 = arith.addf %191, %193 : vector<64x256xf32>
    %cst_198 = arith.constant 0.000000e+00 : f32
    %195 = vector.broadcast %cst_198 : f32 to vector<64x256xf32>
    %196 = arith.maximumf %194, %195 : vector<64x256xf32>
    %c0_199 = arith.constant 0 : index
    %c384_200 = arith.constant 384 : index
    %197 = vector.load %arg10[%c0_199, %c384_200] : memref<1x640xf32, #tpu.memory_space<vmem>>, vector<1x256xf32>
    %198 = vector.broadcast %197 : vector<1x256xf32> to vector<64x256xf32>
    %199 = arith.mulf %196, %198 : vector<64x256xf32>
    %200 = arith.truncf %199 : vector<64x256xf32> to vector<64x256xbf16>
    %c0_201 = arith.constant 0 : index
    %c512_202 = arith.constant 512 : index
    %201 = vector.load %arg14[%c0_201, %c512_202] : memref<64x896xbf16, #tpu.memory_space<vmem>>, vector<64x256xbf16>
    tpu.vector_store %arg14[%c0_201, %c512_202], %200 {strides = array<i32>} : memref<64x896xbf16, #tpu.memory_space<vmem>>, vector<64x256xbf16>,
    %c0_203 = arith.constant 0 : index
    %c0_204 = arith.constant 0 : index
    %202 = vector.load %arg6[%c0_203, %c0_204] : memref<32x576xbf16, #tpu.memory_space<vmem>>, vector<32x64xbf16>
    %c0_205 = arith.constant 0 : index
    %c95_206 = arith.constant 95 : index
    %203 = vector.load %arg14[%c0_205, %c95_206] : memref<64x896xbf16, #tpu.memory_space<vmem>>, vector<64x384xbf16>
    %cst_207 = arith.constant dense<0.000000e+00> : vector<32x384xf32>
    %204 = tpu.matmul %202, %203, %cst_207 {dimension_numbers = #tpu.dot_dimension_numbers<[1], [0], [0], [1], [0, 0, 1, 1], [], []>} : vector<32x64xbf16>, vector<64x384xbf16>, vector<32x384xf32> -> vector<32x384xf32>
    %c0_208 = arith.constant 0 : index
    %c64_209 = arith.constant 64 : index
    %205 = vector.load %arg6[%c0_208, %c64_209] : memref<32x576xbf16, #tpu.memory_space<vmem>>, vector<32x64xbf16>
    %c0_210 = arith.constant 0 : index
    %c96_211 = arith.constant 96 : index
    %206 = vector.load %arg14[%c0_210, %c96_211] : memref<64x896xbf16, #tpu.memory_space<vmem>>, vector<64x384xbf16>
    %cst_212 = arith.constant dense<0.000000e+00> : vector<32x384xf32>
    %207 = tpu.matmul %205, %206, %cst_212 {dimension_numbers = #tpu.dot_dimension_numbers<[1], [0], [0], [1], [0, 0, 1, 1], [], []>} : vector<32x64xbf16>, vector<64x384xbf16>, vector<32x384xf32> -> vector<32x384xf32>
    %208 = arith.addf %204, %207 : vector<32x384xf32>
    %c0_213 = arith.constant 0 : index
    %c128_214 = arith.constant 128 : index
    %209 = vector.load %arg6[%c0_213, %c128_214] : memref<32x576xbf16, #tpu.memory_space<vmem>>, vector<32x64xbf16>
    %c0_215 = arith.constant 0 : index
    %c97_216 = arith.constant 97 : index
    %210 = vector.load %arg14[%c0_215, %c97_216] : memref<64x896xbf16, #tpu.memory_space<vmem>>, vector<64x384xbf16>
    %cst_217 = arith.constant dense<0.000000e+00> : vector<32x384xf32>
    %211 = tpu.matmul %209, %210, %cst_217 {dimension_numbers = #tpu.dot_dimension_numbers<[1], [0], [0], [1], [0, 0, 1, 1], [], []>} : vector<32x64xbf16>, vector<64x384xbf16>, vector<32x384xf32> -> vector<32x384xf32>
    %212 = arith.addf %208, %211 : vector<32x384xf32>
    %c0_218 = arith.constant 0 : index
    %c192_219 = arith.constant 192 : index
    %213 = vector.load %arg6[%c0_218, %c192_219] : memref<32x576xbf16, #tpu.memory_space<vmem>>, vector<32x64xbf16>
    %c0_220 = arith.constant 0 : index
    %c127_221 = arith.constant 127 : index
    %214 = vector.load %arg14[%c0_220, %c127_221] : memref<64x896xbf16, #tpu.memory_space<vmem>>, vector<64x384xbf16>
    %cst_222 = arith.constant dense<0.000000e+00> : vector<32x384xf32>
    %215 = tpu.matmul %213, %214, %cst_222 {dimension_numbers = #tpu.dot_dimension_numbers<[1], [0], [0], [1], [0, 0, 1, 1], [], []>} : vector<32x64xbf16>, vector<64x384xbf16>, vector<32x384xf32> -> vector<32x384xf32>
    %216 = arith.addf %212, %215 : vector<32x384xf32>
    %c0_223 = arith.constant 0 : index
    %c256_224 = arith.constant 256 : index
    %217 = vector.load %arg6[%c0_223, %c256_224] : memref<32x576xbf16, #tpu.memory_space<vmem>>, vector<32x64xbf16>
    %c0_225 = arith.constant 0 : index
    %c128_226 = arith.constant 128 : index
    %218 = vector.load %arg14[%c0_225, %c128_226] : memref<64x896xbf16, #tpu.memory_space<vmem>>, vector<64x384xbf16>
    %cst_227 = arith.constant dense<0.000000e+00> : vector<32x384xf32>
    %219 = tpu.matmul %217, %218, %cst_227 {dimension_numbers = #tpu.dot_dimension_numbers<[1], [0], [0], [1], [0, 0, 1, 1], [], []>} : vector<32x64xbf16>, vector<64x384xbf16>, vector<32x384xf32> -> vector<32x384xf32>
    %220 = arith.addf %216, %219 : vector<32x384xf32>
    %c0_228 = arith.constant 0 : index
    %c320_229 = arith.constant 320 : index
    %221 = vector.load %arg6[%c0_228, %c320_229] : memref<32x576xbf16, #tpu.memory_space<vmem>>, vector<32x64xbf16>
    %c0_230 = arith.constant 0 : index
    %c129_231 = arith.constant 129 : index
    %222 = vector.load %arg14[%c0_230, %c129_231] : memref<64x896xbf16, #tpu.memory_space<vmem>>, vector<64x384xbf16>
    %cst_232 = arith.constant dense<0.000000e+00> : vector<32x384xf32>
    %223 = tpu.matmul %221, %222, %cst_232 {dimension_numbers = #tpu.dot_dimension_numbers<[1], [0], [0], [1], [0, 0, 1, 1], [], []>} : vector<32x64xbf16>, vector<64x384xbf16>, vector<32x384xf32> -> vector<32x384xf32>
    %224 = arith.addf %220, %223 : vector<32x384xf32>
    %c0_233 = arith.constant 0 : index
    %c384_234 = arith.constant 384 : index
    %225 = vector.load %arg6[%c0_233, %c384_234] : memref<32x576xbf16, #tpu.memory_space<vmem>>, vector<32x64xbf16>
    %c0_235 = arith.constant 0 : index
    %c159_236 = arith.constant 159 : index
    %226 = vector.load %arg14[%c0_235, %c159_236] : memref<64x896xbf16, #tpu.memory_space<vmem>>, vector<64x384xbf16>
    %cst_237 = arith.constant dense<0.000000e+00> : vector<32x384xf32>
    %227 = tpu.matmul %225, %226, %cst_237 {dimension_numbers = #tpu.dot_dimension_numbers<[1], [0], [0], [1], [0, 0, 1, 1], [], []>} : vector<32x64xbf16>, vector<64x384xbf16>, vector<32x384xf32> -> vector<32x384xf32>
    %228 = arith.addf %224, %227 : vector<32x384xf32>
    %c0_238 = arith.constant 0 : index
    %c448_239 = arith.constant 448 : index
    %229 = vector.load %arg6[%c0_238, %c448_239] : memref<32x576xbf16, #tpu.memory_space<vmem>>, vector<32x64xbf16>
    %c0_240 = arith.constant 0 : index
    %c160_241 = arith.constant 160 : index
    %230 = vector.load %arg14[%c0_240, %c160_241] : memref<64x896xbf16, #tpu.memory_space<vmem>>, vector<64x384xbf16>
    %cst_242 = arith.constant dense<0.000000e+00> : vector<32x384xf32>
    %231 = tpu.matmul %229, %230, %cst_242 {dimension_numbers = #tpu.dot_dimension_numbers<[1], [0], [0], [1], [0, 0, 1, 1], [], []>} : vector<32x64xbf16>, vector<64x384xbf16>, vector<32x384xf32> -> vector<32x384xf32>
    %232 = arith.addf %228, %231 : vector<32x384xf32>
    %c0_243 = arith.constant 0 : index
    %c512_244 = arith.constant 512 : index
    %233 = vector.load %arg6[%c0_243, %c512_244] : memref<32x576xbf16, #tpu.memory_space<vmem>>, vector<32x64xbf16>
    %c0_245 = arith.constant 0 : index
    %c161_246 = arith.constant 161 : index
    %234 = vector.load %arg14[%c0_245, %c161_246] : memref<64x896xbf16, #tpu.memory_space<vmem>>, vector<64x384xbf16>
    %cst_247 = arith.constant dense<0.000000e+00> : vector<32x384xf32>
    %235 = tpu.matmul %233, %234, %cst_247 {dimension_numbers = #tpu.dot_dimension_numbers<[1], [0], [0], [1], [0, 0, 1, 1], [], []>} : vector<32x64xbf16>, vector<64x384xbf16>, vector<32x384xf32> -> vector<32x384xf32>
    %236 = arith.addf %232, %235 : vector<32x384xf32>
    %c0_248 = arith.constant 0 : index
    %c0_249 = arith.constant 0 : index
    %237 = vector.load %arg7[%c0_248, %c0_249] : memref<32x1xf32, #tpu.memory_space<vmem>>, vector<32x1xf32>
    %238 = vector.broadcast %237 : vector<32x1xf32> to vector<32x384xf32>
    %239 = arith.addf %236, %238 : vector<32x384xf32>
    %cst_250 = arith.constant 0.000000e+00 : f32
    %240 = vector.broadcast %cst_250 : f32 to vector<32x384xf32>
    %241 = arith.maximumf %239, %240 : vector<32x384xf32>
    %c0_251 = arith.constant 0 : index
    %c0_252 = arith.constant 0 : index
    %242 = vector.load %arg10[%c0_251, %c0_252] : memref<1x640xf32, #tpu.memory_space<vmem>>, vector<1x384xf32>
    %243 = vector.broadcast %242 : vector<1x384xf32> to vector<32x384xf32>
    %244 = arith.mulf %241, %243 : vector<32x384xf32>
    %245 = arith.truncf %244 : vector<32x384xf32> to vector<32x384xbf16>
    %c0_253 = arith.constant 0 : index
    %c128_254 = arith.constant 128 : index
    %246 = vector.load %arg15[%c0_253, %c128_254] : memref<32x896xbf16, #tpu.memory_space<vmem>>, vector<32x384xbf16>
    tpu.vector_store %arg15[%c0_253, %c128_254], %245 {strides = array<i32>} : memref<32x896xbf16, #tpu.memory_space<vmem>>, vector<32x384xbf16>,
    %c0_255 = arith.constant 0 : index
    %c0_256 = arith.constant 0 : index
    %247 = vector.load %arg6[%c0_255, %c0_256] : memref<32x576xbf16, #tpu.memory_space<vmem>>, vector<32x64xbf16>
    %c0_257 = arith.constant 0 : index
    %c479_258 = arith.constant 479 : index
    %248 = vector.load %arg14[%c0_257, %c479_258] : memref<64x896xbf16, #tpu.memory_space<vmem>>, vector<64x256xbf16>
    %cst_259 = arith.constant dense<0.000000e+00> : vector<32x256xf32>
    %249 = tpu.matmul %247, %248, %cst_259 {dimension_numbers = #tpu.dot_dimension_numbers<[1], [0], [0], [1], [0, 0, 1, 1], [], []>} : vector<32x64xbf16>, vector<64x256xbf16>, vector<32x256xf32> -> vector<32x256xf32>
    %c0_260 = arith.constant 0 : index
    %c64_261 = arith.constant 64 : index
    %250 = vector.load %arg6[%c0_260, %c64_261] : memref<32x576xbf16, #tpu.memory_space<vmem>>, vector<32x64xbf16>
    %c0_262 = arith.constant 0 : index
    %c480_263 = arith.constant 480 : index
    %251 = vector.load %arg14[%c0_262, %c480_263] : memref<64x896xbf16, #tpu.memory_space<vmem>>, vector<64x256xbf16>
    %cst_264 = arith.constant dense<0.000000e+00> : vector<32x256xf32>
    %252 = tpu.matmul %250, %251, %cst_264 {dimension_numbers = #tpu.dot_dimension_numbers<[1], [0], [0], [1], [0, 0, 1, 1], [], []>} : vector<32x64xbf16>, vector<64x256xbf16>, vector<32x256xf32> -> vector<32x256xf32>
    %253 = arith.addf %249, %252 : vector<32x256xf32>
    %c0_265 = arith.constant 0 : index
    %c128_266 = arith.constant 128 : index
    %254 = vector.load %arg6[%c0_265, %c128_266] : memref<32x576xbf16, #tpu.memory_space<vmem>>, vector<32x64xbf16>
    %c0_267 = arith.constant 0 : index
    %c481_268 = arith.constant 481 : index
    %255 = vector.load %arg14[%c0_267, %c481_268] : memref<64x896xbf16, #tpu.memory_space<vmem>>, vector<64x256xbf16>
    %cst_269 = arith.constant dense<0.000000e+00> : vector<32x256xf32>
    %256 = tpu.matmul %254, %255, %cst_269 {dimension_numbers = #tpu.dot_dimension_numbers<[1], [0], [0], [1], [0, 0, 1, 1], [], []>} : vector<32x64xbf16>, vector<64x256xbf16>, vector<32x256xf32> -> vector<32x256xf32>
    %257 = arith.addf %253, %256 : vector<32x256xf32>
    %c0_270 = arith.constant 0 : index
    %c192_271 = arith.constant 192 : index
    %258 = vector.load %arg6[%c0_270, %c192_271] : memref<32x576xbf16, #tpu.memory_space<vmem>>, vector<32x64xbf16>
    %c0_272 = arith.constant 0 : index
    %c511_273 = arith.constant 511 : index
    %259 = vector.load %arg14[%c0_272, %c511_273] : memref<64x896xbf16, #tpu.memory_space<vmem>>, vector<64x256xbf16>
    %cst_274 = arith.constant dense<0.000000e+00> : vector<32x256xf32>
    %260 = tpu.matmul %258, %259, %cst_274 {dimension_numbers = #tpu.dot_dimension_numbers<[1], [0], [0], [1], [0, 0, 1, 1], [], []>} : vector<32x64xbf16>, vector<64x256xbf16>, vector<32x256xf32> -> vector<32x256xf32>
    %261 = arith.addf %257, %260 : vector<32x256xf32>
    %c0_275 = arith.constant 0 : index
    %c256_276 = arith.constant 256 : index
    %262 = vector.load %arg6[%c0_275, %c256_276] : memref<32x576xbf16, #tpu.memory_space<vmem>>, vector<32x64xbf16>
    %c0_277 = arith.constant 0 : index
    %c512_278 = arith.constant 512 : index
    %263 = vector.load %arg14[%c0_277, %c512_278] : memref<64x896xbf16, #tpu.memory_space<vmem>>, vector<64x256xbf16>
    %cst_279 = arith.constant dense<0.000000e+00> : vector<32x256xf32>
    %264 = tpu.matmul %262, %263, %cst_279 {dimension_numbers = #tpu.dot_dimension_numbers<[1], [0], [0], [1], [0, 0, 1, 1], [], []>} : vector<32x64xbf16>, vector<64x256xbf16>, vector<32x256xf32> -> vector<32x256xf32>
    %265 = arith.addf %261, %264 : vector<32x256xf32>
    %c0_280 = arith.constant 0 : index
    %c320_281 = arith.constant 320 : index
    %266 = vector.load %arg6[%c0_280, %c320_281] : memref<32x576xbf16, #tpu.memory_space<vmem>>, vector<32x64xbf16>
    %c0_282 = arith.constant 0 : index
    %c513_283 = arith.constant 513 : index
    %267 = vector.load %arg14[%c0_282, %c513_283] : memref<64x896xbf16, #tpu.memory_space<vmem>>, vector<64x256xbf16>
    %cst_284 = arith.constant dense<0.000000e+00> : vector<32x256xf32>
    %268 = tpu.matmul %266, %267, %cst_284 {dimension_numbers = #tpu.dot_dimension_numbers<[1], [0], [0], [1], [0, 0, 1, 1], [], []>} : vector<32x64xbf16>, vector<64x256xbf16>, vector<32x256xf32> -> vector<32x256xf32>
    %269 = arith.addf %265, %268 : vector<32x256xf32>
    %c0_285 = arith.constant 0 : index
    %c384_286 = arith.constant 384 : index
    %270 = vector.load %arg6[%c0_285, %c384_286] : memref<32x576xbf16, #tpu.memory_space<vmem>>, vector<32x64xbf16>
    %c0_287 = arith.constant 0 : index
    %c543_288 = arith.constant 543 : index
    %271 = vector.load %arg14[%c0_287, %c543_288] : memref<64x896xbf16, #tpu.memory_space<vmem>>, vector<64x256xbf16>
    %cst_289 = arith.constant dense<0.000000e+00> : vector<32x256xf32>
    %272 = tpu.matmul %270, %271, %cst_289 {dimension_numbers = #tpu.dot_dimension_numbers<[1], [0], [0], [1], [0, 0, 1, 1], [], []>} : vector<32x64xbf16>, vector<64x256xbf16>, vector<32x256xf32> -> vector<32x256xf32>
    %273 = arith.addf %269, %272 : vector<32x256xf32>
    %c0_290 = arith.constant 0 : index
    %c448_291 = arith.constant 448 : index
    %274 = vector.load %arg6[%c0_290, %c448_291] : memref<32x576xbf16, #tpu.memory_space<vmem>>, vector<32x64xbf16>
    %c0_292 = arith.constant 0 : index
    %c544_293 = arith.constant 544 : index
    %275 = vector.load %arg14[%c0_292, %c544_293] : memref<64x896xbf16, #tpu.memory_space<vmem>>, vector<64x256xbf16>
    %cst_294 = arith.constant dense<0.000000e+00> : vector<32x256xf32>
    %276 = tpu.matmul %274, %275, %cst_294 {dimension_numbers = #tpu.dot_dimension_numbers<[1], [0], [0], [1], [0, 0, 1, 1], [], []>} : vector<32x64xbf16>, vector<64x256xbf16>, vector<32x256xf32> -> vector<32x256xf32>
    %277 = arith.addf %273, %276 : vector<32x256xf32>
    %c0_295 = arith.constant 0 : index
    %c512_296 = arith.constant 512 : index
    %278 = vector.load %arg6[%c0_295, %c512_296] : memref<32x576xbf16, #tpu.memory_space<vmem>>, vector<32x64xbf16>
    %c0_297 = arith.constant 0 : index
    %c545_298 = arith.constant 545 : index
    %279 = vector.load %arg14[%c0_297, %c545_298] : memref<64x896xbf16, #tpu.memory_space<vmem>>, vector<64x256xbf16>
    %cst_299 = arith.constant dense<0.000000e+00> : vector<32x256xf32>
    %280 = tpu.matmul %278, %279, %cst_299 {dimension_numbers = #tpu.dot_dimension_numbers<[1], [0], [0], [1], [0, 0, 1, 1], [], []>} : vector<32x64xbf16>, vector<64x256xbf16>, vector<32x256xf32> -> vector<32x256xf32>
    %281 = arith.addf %277, %280 : vector<32x256xf32>
    %c0_300 = arith.constant 0 : index
    %c0_301 = arith.constant 0 : index
    %282 = vector.load %arg7[%c0_300, %c0_301] : memref<32x1xf32, #tpu.memory_space<vmem>>, vector<32x1xf32>
    %283 = vector.broadcast %282 : vector<32x1xf32> to vector<32x256xf32>
    %284 = arith.addf %281, %283 : vector<32x256xf32>
    %cst_302 = arith.constant 0.000000e+00 : f32
    %285 = vector.broadcast %cst_302 : f32 to vector<32x256xf32>
    %286 = arith.maximumf %284, %285 : vector<32x256xf32>
    %c0_303 = arith.constant 0 : index
    %c384_304 = arith.constant 384 : index
    %287 = vector.load %arg10[%c0_303, %c384_304] : memref<1x640xf32, #tpu.memory_space<vmem>>, vector<1x256xf32>
    %288 = vector.broadcast %287 : vector<1x256xf32> to vector<32x256xf32>
    %289 = arith.mulf %286, %288 : vector<32x256xf32>
    %290 = arith.truncf %289 : vector<32x256xf32> to vector<32x256xbf16>
    %c0_305 = arith.constant 0 : index
    %c512_306 = arith.constant 512 : index
    %291 = vector.load %arg15[%c0_305, %c512_306] : memref<32x896xbf16, #tpu.memory_space<vmem>>, vector<32x256xbf16>
    tpu.vector_store %arg15[%c0_305, %c512_306], %290 {strides = array<i32>} : memref<32x896xbf16, #tpu.memory_space<vmem>>, vector<32x256xbf16>,
    %c0_307 = arith.constant 0 : index
    %c0_308 = arith.constant 0 : index
    %292 = vector.load %arg8[%c0_307, %c0_308] : memref<16x288xbf16, #tpu.memory_space<vmem>>, vector<16x32xbf16>
    %c0_309 = arith.constant 0 : index
    %c95_310 = arith.constant 95 : index
    %293 = vector.load %arg15[%c0_309, %c95_310] : memref<32x896xbf16, #tpu.memory_space<vmem>>, vector<32x384xbf16>
    %cst_311 = arith.constant dense<0.000000e+00> : vector<16x384xf32>
    %294 = tpu.matmul %292, %293, %cst_311 {dimension_numbers = #tpu.dot_dimension_numbers<[1], [0], [0], [1], [0, 0, 1, 1], [], []>} : vector<16x32xbf16>, vector<32x384xbf16>, vector<16x384xf32> -> vector<16x384xf32>
    %c0_312 = arith.constant 0 : index
    %c32 = arith.constant 32 : index
    %295 = vector.load %arg8[%c0_312, %c32] : memref<16x288xbf16, #tpu.memory_space<vmem>>, vector<16x32xbf16>
    %c0_313 = arith.constant 0 : index
    %c96_314 = arith.constant 96 : index
    %296 = vector.load %arg15[%c0_313, %c96_314] : memref<32x896xbf16, #tpu.memory_space<vmem>>, vector<32x384xbf16>
    %cst_315 = arith.constant dense<0.000000e+00> : vector<16x384xf32>
    %297 = tpu.matmul %295, %296, %cst_315 {dimension_numbers = #tpu.dot_dimension_numbers<[1], [0], [0], [1], [0, 0, 1, 1], [], []>} : vector<16x32xbf16>, vector<32x384xbf16>, vector<16x384xf32> -> vector<16x384xf32>
    %298 = arith.addf %294, %297 : vector<16x384xf32>
    %c0_316 = arith.constant 0 : index
    %c64_317 = arith.constant 64 : index
    %299 = vector.load %arg8[%c0_316, %c64_317] : memref<16x288xbf16, #tpu.memory_space<vmem>>, vector<16x32xbf16>
    %c0_318 = arith.constant 0 : index
    %c97_319 = arith.constant 97 : index
    %300 = vector.load %arg15[%c0_318, %c97_319] : memref<32x896xbf16, #tpu.memory_space<vmem>>, vector<32x384xbf16>
    %cst_320 = arith.constant dense<0.000000e+00> : vector<16x384xf32>
    %301 = tpu.matmul %299, %300, %cst_320 {dimension_numbers = #tpu.dot_dimension_numbers<[1], [0], [0], [1], [0, 0, 1, 1], [], []>} : vector<16x32xbf16>, vector<32x384xbf16>, vector<16x384xf32> -> vector<16x384xf32>
    %302 = arith.addf %298, %301 : vector<16x384xf32>
    %c0_321 = arith.constant 0 : index
    %c96_322 = arith.constant 96 : index
    %303 = vector.load %arg8[%c0_321, %c96_322] : memref<16x288xbf16, #tpu.memory_space<vmem>>, vector<16x32xbf16>
    %c0_323 = arith.constant 0 : index
    %c127_324 = arith.constant 127 : index
    %304 = vector.load %arg15[%c0_323, %c127_324] : memref<32x896xbf16, #tpu.memory_space<vmem>>, vector<32x384xbf16>
    %cst_325 = arith.constant dense<0.000000e+00> : vector<16x384xf32>
    %305 = tpu.matmul %303, %304, %cst_325 {dimension_numbers = #tpu.dot_dimension_numbers<[1], [0], [0], [1], [0, 0, 1, 1], [], []>} : vector<16x32xbf16>, vector<32x384xbf16>, vector<16x384xf32> -> vector<16x384xf32>
    %306 = arith.addf %302, %305 : vector<16x384xf32>
    %c0_326 = arith.constant 0 : index
    %c128_327 = arith.constant 128 : index
    %307 = vector.load %arg8[%c0_326, %c128_327] : memref<16x288xbf16, #tpu.memory_space<vmem>>, vector<16x32xbf16>
    %c0_328 = arith.constant 0 : index
    %c128_329 = arith.constant 128 : index
    %308 = vector.load %arg15[%c0_328, %c128_329] : memref<32x896xbf16, #tpu.memory_space<vmem>>, vector<32x384xbf16>
    %cst_330 = arith.constant dense<0.000000e+00> : vector<16x384xf32>
    %309 = tpu.matmul %307, %308, %cst_330 {dimension_numbers = #tpu.dot_dimension_numbers<[1], [0], [0], [1], [0, 0, 1, 1], [], []>} : vector<16x32xbf16>, vector<32x384xbf16>, vector<16x384xf32> -> vector<16x384xf32>
    %310 = arith.addf %306, %309 : vector<16x384xf32>
    %c0_331 = arith.constant 0 : index
    %c160_332 = arith.constant 160 : index
    %311 = vector.load %arg8[%c0_331, %c160_332] : memref<16x288xbf16, #tpu.memory_space<vmem>>, vector<16x32xbf16>
    %c0_333 = arith.constant 0 : index
    %c129_334 = arith.constant 129 : index
    %312 = vector.load %arg15[%c0_333, %c129_334] : memref<32x896xbf16, #tpu.memory_space<vmem>>, vector<32x384xbf16>
    %cst_335 = arith.constant dense<0.000000e+00> : vector<16x384xf32>
    %313 = tpu.matmul %311, %312, %cst_335 {dimension_numbers = #tpu.dot_dimension_numbers<[1], [0], [0], [1], [0, 0, 1, 1], [], []>} : vector<16x32xbf16>, vector<32x384xbf16>, vector<16x384xf32> -> vector<16x384xf32>
    %314 = arith.addf %310, %313 : vector<16x384xf32>
    %c0_336 = arith.constant 0 : index
    %c192_337 = arith.constant 192 : index
    %315 = vector.load %arg8[%c0_336, %c192_337] : memref<16x288xbf16, #tpu.memory_space<vmem>>, vector<16x32xbf16>
    %c0_338 = arith.constant 0 : index
    %c159_339 = arith.constant 159 : index
    %316 = vector.load %arg15[%c0_338, %c159_339] : memref<32x896xbf16, #tpu.memory_space<vmem>>, vector<32x384xbf16>
    %cst_340 = arith.constant dense<0.000000e+00> : vector<16x384xf32>
    %317 = tpu.matmul %315, %316, %cst_340 {dimension_numbers = #tpu.dot_dimension_numbers<[1], [0], [0], [1], [0, 0, 1, 1], [], []>} : vector<16x32xbf16>, vector<32x384xbf16>, vector<16x384xf32> -> vector<16x384xf32>
    %318 = arith.addf %314, %317 : vector<16x384xf32>
    %c0_341 = arith.constant 0 : index
    %c224 = arith.constant 224 : index
    %319 = vector.load %arg8[%c0_341, %c224] : memref<16x288xbf16, #tpu.memory_space<vmem>>, vector<16x32xbf16>
    %c0_342 = arith.constant 0 : index
    %c160_343 = arith.constant 160 : index
    %320 = vector.load %arg15[%c0_342, %c160_343] : memref<32x896xbf16, #tpu.memory_space<vmem>>, vector<32x384xbf16>
    %cst_344 = arith.constant dense<0.000000e+00> : vector<16x384xf32>
    %321 = tpu.matmul %319, %320, %cst_344 {dimension_numbers = #tpu.dot_dimension_numbers<[1], [0], [0], [1], [0, 0, 1, 1], [], []>} : vector<16x32xbf16>, vector<32x384xbf16>, vector<16x384xf32> -> vector<16x384xf32>
    %322 = arith.addf %318, %321 : vector<16x384xf32>
    %c0_345 = arith.constant 0 : index
    %c256_346 = arith.constant 256 : index
    %323 = vector.load %arg8[%c0_345, %c256_346] : memref<16x288xbf16, #tpu.memory_space<vmem>>, vector<16x32xbf16>
    %c0_347 = arith.constant 0 : index
    %c161_348 = arith.constant 161 : index
    %324 = vector.load %arg15[%c0_347, %c161_348] : memref<32x896xbf16, #tpu.memory_space<vmem>>, vector<32x384xbf16>
    %cst_349 = arith.constant dense<0.000000e+00> : vector<16x384xf32>
    %325 = tpu.matmul %323, %324, %cst_349 {dimension_numbers = #tpu.dot_dimension_numbers<[1], [0], [0], [1], [0, 0, 1, 1], [], []>} : vector<16x32xbf16>, vector<32x384xbf16>, vector<16x384xf32> -> vector<16x384xf32>
    %326 = arith.addf %322, %325 : vector<16x384xf32>
    %c0_350 = arith.constant 0 : index
    %c0_351 = arith.constant 0 : index
    %327 = vector.load %arg9[%c0_350, %c0_351] : memref<16x1xf32, #tpu.memory_space<vmem>>, vector<16x1xf32>
    %328 = vector.broadcast %327 : vector<16x1xf32> to vector<16x384xf32>
    %329 = arith.addf %326, %328 : vector<16x384xf32>
    %c0_352 = arith.constant 0 : index
    %c0_353 = arith.constant 0 : index
    %c0_354 = arith.constant 0 : index
    %330 = vector.load %arg11[%c0_352, %c0_353, %c0_354] : memref<1x16x640xf32, #tpu.memory_space<vmem>>, vector<1x16x384xf32>
    %331 = vector.shape_cast %330 : vector<1x16x384xf32> to vector<16x384xf32>
    %332 = vector.shape_cast %329 : vector<16x384xf32> to vector<1x16x384xf32>
    tpu.vector_store %arg11[%c0_352, %c0_353, %c0_354], %332 {strides = array<i32>} : memref<1x16x640xf32, #tpu.memory_space<vmem>>, vector<1x16x384xf32>,
    %c0_355 = arith.constant 0 : index
    %c0_356 = arith.constant 0 : index
    %333 = vector.load %arg8[%c0_355, %c0_356] : memref<16x288xbf16, #tpu.memory_space<vmem>>, vector<16x32xbf16>
    %c0_357 = arith.constant 0 : index
    %c479_358 = arith.constant 479 : index
    %334 = vector.load %arg15[%c0_357, %c479_358] : memref<32x896xbf16, #tpu.memory_space<vmem>>, vector<32x256xbf16>
    %cst_359 = arith.constant dense<0.000000e+00> : vector<16x256xf32>
    %335 = tpu.matmul %333, %334, %cst_359 {dimension_numbers = #tpu.dot_dimension_numbers<[1], [0], [0], [1], [0, 0, 1, 1], [], []>} : vector<16x32xbf16>, vector<32x256xbf16>, vector<16x256xf32> -> vector<16x256xf32>
    %c0_360 = arith.constant 0 : index
    %c32_361 = arith.constant 32 : index
    %336 = vector.load %arg8[%c0_360, %c32_361] : memref<16x288xbf16, #tpu.memory_space<vmem>>, vector<16x32xbf16>
    %c0_362 = arith.constant 0 : index
    %c480_363 = arith.constant 480 : index
    %337 = vector.load %arg15[%c0_362, %c480_363] : memref<32x896xbf16, #tpu.memory_space<vmem>>, vector<32x256xbf16>
    %cst_364 = arith.constant dense<0.000000e+00> : vector<16x256xf32>
    %338 = tpu.matmul %336, %337, %cst_364 {dimension_numbers = #tpu.dot_dimension_numbers<[1], [0], [0], [1], [0, 0, 1, 1], [], []>} : vector<16x32xbf16>, vector<32x256xbf16>, vector<16x256xf32> -> vector<16x256xf32>
    %339 = arith.addf %335, %338 : vector<16x256xf32>
    %c0_365 = arith.constant 0 : index
    %c64_366 = arith.constant 64 : index
    %340 = vector.load %arg8[%c0_365, %c64_366] : memref<16x288xbf16, #tpu.memory_space<vmem>>, vector<16x32xbf16>
    %c0_367 = arith.constant 0 : index
    %c481_368 = arith.constant 481 : index
    %341 = vector.load %arg15[%c0_367, %c481_368] : memref<32x896xbf16, #tpu.memory_space<vmem>>, vector<32x256xbf16>
    %cst_369 = arith.constant dense<0.000000e+00> : vector<16x256xf32>
    %342 = tpu.matmul %340, %341, %cst_369 {dimension_numbers = #tpu.dot_dimension_numbers<[1], [0], [0], [1], [0, 0, 1, 1], [], []>} : vector<16x32xbf16>, vector<32x256xbf16>, vector<16x256xf32> -> vector<16x256xf32>
    %343 = arith.addf %339, %342 : vector<16x256xf32>
    %c0_370 = arith.constant 0 : index
    %c96_371 = arith.constant 96 : index
    %344 = vector.load %arg8[%c0_370, %c96_371] : memref<16x288xbf16, #tpu.memory_space<vmem>>, vector<16x32xbf16>
    %c0_372 = arith.constant 0 : index
    %c511_373 = arith.constant 511 : index
    %345 = vector.load %arg15[%c0_372, %c511_373] : memref<32x896xbf16, #tpu.memory_space<vmem>>, vector<32x256xbf16>
    %cst_374 = arith.constant dense<0.000000e+00> : vector<16x256xf32>
    %346 = tpu.matmul %344, %345, %cst_374 {dimension_numbers = #tpu.dot_dimension_numbers<[1], [0], [0], [1], [0, 0, 1, 1], [], []>} : vector<16x32xbf16>, vector<32x256xbf16>, vector<16x256xf32> -> vector<16x256xf32>
    %347 = arith.addf %343, %346 : vector<16x256xf32>
    %c0_375 = arith.constant 0 : index
    %c128_376 = arith.constant 128 : index
    %348 = vector.load %arg8[%c0_375, %c128_376] : memref<16x288xbf16, #tpu.memory_space<vmem>>, vector<16x32xbf16>
    %c0_377 = arith.constant 0 : index
    %c512_378 = arith.constant 512 : index
    %349 = vector.load %arg15[%c0_377, %c512_378] : memref<32x896xbf16, #tpu.memory_space<vmem>>, vector<32x256xbf16>
    %cst_379 = arith.constant dense<0.000000e+00> : vector<16x256xf32>
    %350 = tpu.matmul %348, %349, %cst_379 {dimension_numbers = #tpu.dot_dimension_numbers<[1], [0], [0], [1], [0, 0, 1, 1], [], []>} : vector<16x32xbf16>, vector<32x256xbf16>, vector<16x256xf32> -> vector<16x256xf32>
    %351 = arith.addf %347, %350 : vector<16x256xf32>
    %c0_380 = arith.constant 0 : index
    %c160_381 = arith.constant 160 : index
    %352 = vector.load %arg8[%c0_380, %c160_381] : memref<16x288xbf16, #tpu.memory_space<vmem>>, vector<16x32xbf16>
    %c0_382 = arith.constant 0 : index
    %c513_383 = arith.constant 513 : index
    %353 = vector.load %arg15[%c0_382, %c513_383] : memref<32x896xbf16, #tpu.memory_space<vmem>>, vector<32x256xbf16>
    %cst_384 = arith.constant dense<0.000000e+00> : vector<16x256xf32>
    %354 = tpu.matmul %352, %353, %cst_384 {dimension_numbers = #tpu.dot_dimension_numbers<[1], [0], [0], [1], [0, 0, 1, 1], [], []>} : vector<16x32xbf16>, vector<32x256xbf16>, vector<16x256xf32> -> vector<16x256xf32>
    %355 = arith.addf %351, %354 : vector<16x256xf32>
    %c0_385 = arith.constant 0 : index
    %c192_386 = arith.constant 192 : index
    %356 = vector.load %arg8[%c0_385, %c192_386] : memref<16x288xbf16, #tpu.memory_space<vmem>>, vector<16x32xbf16>
    %c0_387 = arith.constant 0 : index
    %c543_388 = arith.constant 543 : index
    %357 = vector.load %arg15[%c0_387, %c543_388] : memref<32x896xbf16, #tpu.memory_space<vmem>>, vector<32x256xbf16>
    %cst_389 = arith.constant dense<0.000000e+00> : vector<16x256xf32>
    %358 = tpu.matmul %356, %357, %cst_389 {dimension_numbers = #tpu.dot_dimension_numbers<[1], [0], [0], [1], [0, 0, 1, 1], [], []>} : vector<16x32xbf16>, vector<32x256xbf16>, vector<16x256xf32> -> vector<16x256xf32>
    %359 = arith.addf %355, %358 : vector<16x256xf32>
    %c0_390 = arith.constant 0 : index
    %c224_391 = arith.constant 224 : index
    %360 = vector.load %arg8[%c0_390, %c224_391] : memref<16x288xbf16, #tpu.memory_space<vmem>>, vector<16x32xbf16>
    %c0_392 = arith.constant 0 : index
    %c544_393 = arith.constant 544 : index
    %361 = vector.load %arg15[%c0_392, %c544_393] : memref<32x896xbf16, #tpu.memory_space<vmem>>, vector<32x256xbf16>
    %cst_394 = arith.constant dense<0.000000e+00> : vector<16x256xf32>
    %362 = tpu.matmul %360, %361, %cst_394 {dimension_numbers = #tpu.dot_dimension_numbers<[1], [0], [0], [1], [0, 0, 1, 1], [], []>} : vector<16x32xbf16>, vector<32x256xbf16>, vector<16x256xf32> -> vector<16x256xf32>
    %363 = arith.addf %359, %362 : vector<16x256xf32>
    %c0_395 = arith.constant 0 : index
    %c256_396 = arith.constant 256 : index
    %364 = vector.load %arg8[%c0_395, %c256_396] : memref<16x288xbf16, #tpu.memory_space<vmem>>, vector<16x32xbf16>
    %c0_397 = arith.constant 0 : index
    %c545_398 = arith.constant 545 : index
    %365 = vector.load %arg15[%c0_397, %c545_398] : memref<32x896xbf16, #tpu.memory_space<vmem>>, vector<32x256xbf16>
    %cst_399 = arith.constant dense<0.000000e+00> : vector<16x256xf32>
    %366 = tpu.matmul %364, %365, %cst_399 {dimension_numbers = #tpu.dot_dimension_numbers<[1], [0], [0], [1], [0, 0, 1, 1], [], []>} : vector<16x32xbf16>, vector<32x256xbf16>, vector<16x256xf32> -> vector<16x256xf32>
    %367 = arith.addf %363, %366 : vector<16x256xf32>
    %c0_400 = arith.constant 0 : index
    %c0_401 = arith.constant 0 : index
    %368 = vector.load %arg9[%c0_400, %c0_401] : memref<16x1xf32, #tpu.memory_space<vmem>>, vector<16x1xf32>
    %369 = vector.broadcast %368 : vector<16x1xf32> to vector<16x256xf32>
    %370 = arith.addf %367, %369 : vector<16x256xf32>
    %c0_402 = arith.constant 0 : index
    %c0_403 = arith.constant 0 : index
    %c384_404 = arith.constant 384 : index
    %371 = vector.load %arg11[%c0_402, %c0_403, %c384_404] : memref<1x16x640xf32, #tpu.memory_space<vmem>>, vector<1x16x256xf32>
    %372 = vector.shape_cast %371 : vector<1x16x256xf32> to vector<16x256xf32>
    %373 = vector.shape_cast %370 : vector<16x256xf32> to vector<1x16x256xf32>
    tpu.vector_store %arg11[%c0_402, %c0_403, %c384_404], %373 {strides = array<i32>} : memref<1x16x640xf32, #tpu.memory_space<vmem>>, vector<1x16x256xf32>,
    return
  }
  func.func @transform_0(%arg0: i32) -> (i32, i32, i32) {
    %c0_i32 = arith.constant 0 : i32
    %c0_i32_0 = arith.constant 0 : i32
    %c0_i32_1 = arith.constant 0 : i32
    return %arg0, %c0_i32, %c0_i32_0 : i32, i32, i32
  }
  func.func @transform_1(%arg0: i32) -> (i32, i32) {
    %c0_i32 = arith.constant 0 : i32
    %c0_i32_0 = arith.constant 0 : i32
    %c0_i32_1 = arith.constant 0 : i32
    return %c0_i32, %c0_i32_0 : i32, i32
  }
  func.func @transform_2(%arg0: i32) -> (i32, i32) {
    %c0_i32 = arith.constant 0 : i32
    %c0_i32_0 = arith.constant 0 : i32
    %c0_i32_1 = arith.constant 0 : i32
    return %c0_i32, %c0_i32_0 : i32, i32
  }
  func.func @transform_3(%arg0: i32) -> (i32, i32) {
    %c0_i32 = arith.constant 0 : i32
    %c0_i32_0 = arith.constant 0 : i32
    %c0_i32_1 = arith.constant 0 : i32
    return %c0_i32, %c0_i32_0 : i32, i32
  }
  func.func @transform_4(%arg0: i32) -> (i32, i32) {
    %c0_i32 = arith.constant 0 : i32
    %c0_i32_0 = arith.constant 0 : i32
    %c0_i32_1 = arith.constant 0 : i32
    return %c0_i32, %c0_i32_0 : i32, i32
  }
  func.func @transform_5(%arg0: i32) -> (i32, i32) {
    %c0_i32 = arith.constant 0 : i32
    %c0_i32_0 = arith.constant 0 : i32
    %c0_i32_1 = arith.constant 0 : i32
    return %c0_i32, %c0_i32_0 : i32, i32
  }
  func.func @transform_6(%arg0: i32) -> (i32, i32) {
    %c0_i32 = arith.constant 0 : i32
    %c0_i32_0 = arith.constant 0 : i32
    %c0_i32_1 = arith.constant 0 : i32
    return %c0_i32, %c0_i32_0 : i32, i32
  }
  func.func @transform_7(%arg0: i32) -> (i32, i32) {
    %c0_i32 = arith.constant 0 : i32
    %c0_i32_0 = arith.constant 0 : i32
    %c0_i32_1 = arith.constant 0 : i32
    return %c0_i32, %c0_i32_0 : i32, i32
  }
  func.func @transform_8(%arg0: i32) -> (i32, i32) {
    %c0_i32 = arith.constant 0 : i32
    %c0_i32_0 = arith.constant 0 : i32
    %c0_i32_1 = arith.constant 0 : i32
    return %c0_i32, %c0_i32_0 : i32, i32
  }
  func.func @transform_9(%arg0: i32) -> (i32, i32) {
    %c0_i32 = arith.constant 0 : i32
    %c0_i32_0 = arith.constant 0 : i32
    %c0_i32_1 = arith.constant 0 : i32
    return %c0_i32, %c0_i32_0 : i32, i32
  }
  func.func @transform_10(%arg0: i32) -> (i32, i32, i32) {
    %c0_i32 = arith.constant 0 : i32
    %c0_i32_0 = arith.constant 0 : i32
    %c0_i32_1 = arith.constant 0 : i32
    return %arg0, %c0_i32, %c0_i32_0 : i32, i32, i32
  }
}

</mosaic_0001>

<llo_original>
// kernel: super_resolution_forward.1
$region0: #{super_resolution_forward.1}
  #allocation0 [shape = 'u32[]', space=smem, size = 0x4, offset = 0x4, fixed_abs, tag = 'smem constant byte address 0x4 - core index']
  #allocation1 [shape = 'u32[144,128]{1,0:T(1,128)}', space=vmem, size = 0x12000, scoped, tag = 'internal scratch']
  #allocation2 [shape = 'f32[25,640]{1,0:T(8,128)}', space=vmem, size = 0x14000, scoped, tag = 'scratch operand']
  #allocation3 [shape = 'bf16[64,896]{1,0:T(16,128)(2,1)}', space=vmem, size = 0x1c000, scoped, tag = 'scratch operand']
  #allocation4 [shape = 'bf16[64,896]{1,0:T(16,128)(2,1)}', space=vmem, size = 0x1c000, scoped, tag = 'scratch operand']
  #allocation5 [shape = 'bf16[32,896]{1,0:T(16,128)(2,1)}', space=vmem, size = 0xe000, scoped, tag = 'scratch operand']
  %s0 = inlined_call_operand.vmem [shape: f32[2,1,896], index: 0, kind: input, shape index: {}]
  %s1 = inlined_call_operand.vmem [shape: bf16[64,25], index: 1, kind: input, shape index: {}]
  %s2 = inlined_call_operand.vmem [shape: f32[64,1], index: 2, kind: input, shape index: {}]
  %s3 = inlined_call_operand.vmem [shape: bf16[64,576], index: 3, kind: input, shape index: {}]
  %s4 = inlined_call_operand.vmem [shape: f32[64,1], index: 4, kind: input, shape index: {}]
  %s5 = inlined_call_operand.vmem [shape: bf16[32,576], index: 5, kind: input, shape index: {}]
  %s6 = inlined_call_operand.vmem [shape: f32[32,1], index: 6, kind: input, shape index: {}]
  %s7 = inlined_call_operand.vmem [shape: bf16[16,288], index: 7, kind: input, shape index: {}]
  %s8 = inlined_call_operand.vmem [shape: f32[16,1], index: 8, kind: input, shape index: {}]
  %s9 = inlined_call_operand.vmem [shape: f32[1,640], index: 9, kind: input, shape index: {}]
  %s10 = inlined_call_operand.vmem [shape: f32[2,16,640], index: 10, kind: output, shape index: {}]
  %s11 = sld [smem:[#allocation0]]
  $region73: #{super_resolution_forward.1} parent=0
    _
  %s13 = ssub.s32 1, %s11
  %s14 = scalar_select 0, %s13, %s11
  loop: start=0, step=1, limit=4
  $region2: #{super_resolution_forward.1} parent=0 // loop_pre_header
    _
  $region3: #{super_resolution_forward.1} parent=0 // loop_header
    %s16 = sphi 0, %s20
    %p17 = scmp.ge.s32.totalorder %s16, 4
    %s26 = sphi 0, %s28
    %s29 = sphi 0, %s26
    %s30 = sphi 0, %s29
    %s46 = sphi 0, %s30
    %s50 = sphi 0, %s50
    %s52 = sphi 0, %s50
    %s53 = sphi 0, %s52
    %s67 = sphi 0, %s53
    %s71 = sphi 0, %s71
    %s73 = sphi 0, %s71
    %s74 = sphi 0, %s73
    %s88 = sphi 0, %s74
    %s92 = sphi 0, %s92
    %s94 = sphi 0, %s92
    %s95 = sphi 0, %s94
    %s109 = sphi 0, %s95
    %s113 = sphi 0, %s113
    %s115 = sphi 0, %s113
    %s116 = sphi 0, %s115
    %s130 = sphi 0, %s116
    %s134 = sphi 0, %s134
    %s136 = sphi 0, %s134
    %s137 = sphi 0, %s136
    %s151 = sphi 0, %s137
    %s155 = sphi 0, %s155
    %s157 = sphi 0, %s155
    %s158 = sphi 0, %s157
    %s172 = sphi 0, %s158
    %s176 = sphi 0, %s176
    %s178 = sphi 0, %s176
    %s179 = sphi 0, %s178
    %s193 = sphi 0, %s179
    %s197 = sphi 0, %s197
    %s199 = sphi 0, %s197
    %s200 = sphi 0, %s199
    %s214 = sphi 0, %s200
    %s218 = sphi 0, %s218
    %s220 = sphi 0, %s218
    %s221 = sphi 0, %s220
    %s235 = sphi 0, %s221
    %s241 = sphi 0, %s243
    %s244 = sphi 0, %s241
    %s245 = sphi 0, %s244
    %s261 = sphi 0, %s245
  $region4: #{super_resolution_forward.1} parent=0 // loop_header_branch
    %19 = sbr.rel (%p17) target = $region8
  $region5: #{super_resolution_forward.1} parent=0 // loop_body
    %s21 = ssub.s32 %s16, 1
    %s22 = ssub.s32 %s16, 2
    %s23 = sadd.s32 %s16, 1
    %s24 = ssub.s32 %s16, %s23
    %p25 = scmp.eq.s32.totalorder %s24, 0
    %s27 = sadd.s32 %s26, 1
    %s28 = scalar_select %p25, %s26, %s27
    %p31 = pneg %p25
    %p32 = scmp.eq.s32.totalorder %s16, 1
    %p33 = por %p31, %p32
    %p34 = scmp.ne.s32.totalorder %s26, %s29
    %p35 = scmp.eq.s32.totalorder %s16, 0
    %p36 = por %p34, %p35
    %p37 = scmp.ne.s32.totalorder %s26, %s29
    %p38 = scmp.eq.s32.totalorder %s21, 1
    %p39 = por %p37, %p38
    %p40 = scmp.ne.s32.totalorder %s29, %s30
    %p41 = scmp.eq.s32.totalorder %s21, 0
    %p42 = por %p40, %p41
    %p43 = scmp.ne.s32.totalorder %s29, %s30
    %p44 = scmp.eq.s32.totalorder %s22, 1
    %p45 = por %p43, %p44
    %p47 = scmp.ne.s32.totalorder %s30, %s46
    %p48 = scmp.eq.s32.totalorder %s22, 0
    %p49 = por %p47, %p48
    %s51 = sadd.s32 %s50, 1
    %p54 = scmp.eq.s32.totalorder %s16, 1
    %p55 = scmp.ne.s32.totalorder %s50, %s52
    %p56 = scmp.eq.s32.totalorder %s16, 0
    %p57 = por %p55, %p56
    %p58 = scmp.ne.s32.totalorder %s50, %s52
    %p59 = scmp.eq.s32.totalorder %s21, 1
    %p60 = por %p58, %p59
    %p61 = scmp.ne.s32.totalorder %s52, %s53
    %p62 = scmp.eq.s32.totalorder %s21, 0
    %p63 = por %p61, %p62
    %p64 = scmp.ne.s32.totalorder %s52, %s53
    %p65 = scmp.eq.s32.totalorder %s22, 1
    %p66 = por %p64, %p65
    %p68 = scmp.ne.s32.totalorder %s53, %s67
    %p69 = scmp.eq.s32.totalorder %s22, 0
    %p70 = por %p68, %p69
    %s72 = sadd.s32 %s71, 1
    %p75 = scmp.eq.s32.totalorder %s16, 1
    %p76 = scmp.ne.s32.totalorder %s71, %s73
    %p77 = scmp.eq.s32.totalorder %s16, 0
    %p78 = por %p76, %p77
    %p79 = scmp.ne.s32.totalorder %s71, %s73
    %p80 = scmp.eq.s32.totalorder %s21, 1
    %p81 = por %p79, %p80
    %p82 = scmp.ne.s32.totalorder %s73, %s74
    %p83 = scmp.eq.s32.totalorder %s21, 0
    %p84 = por %p82, %p83
    %p85 = scmp.ne.s32.totalorder %s73, %s74
    %p86 = scmp.eq.s32.totalorder %s22, 1
    %p87 = por %p85, %p86
    %p89 = scmp.ne.s32.totalorder %s74, %s88
    %p90 = scmp.eq.s32.totalorder %s22, 0
    %p91 = por %p89, %p90
    %s93 = sadd.s32 %s92, 1
    %p96 = scmp.eq.s32.totalorder %s16, 1
    %p97 = scmp.ne.s32.totalorder %s92, %s94
    %p98 = scmp.eq.s32.totalorder %s16, 0
    %p99 = por %p97, %p98
    %p100 = scmp.ne.s32.totalorder %s92, %s94
    %p101 = scmp.eq.s32.totalorder %s21, 1
    %p102 = por %p100, %p101
    %p103 = scmp.ne.s32.totalorder %s94, %s95
    %p104 = scmp.eq.s32.totalorder %s21, 0
    %p105 = por %p103, %p104
    %p106 = scmp.ne.s32.totalorder %s94, %s95
    %p107 = scmp.eq.s32.totalorder %s22, 1
    %p108 = por %p106, %p107
    %p110 = scmp.ne.s32.totalorder %s95, %s109
    %p111 = scmp.eq.s32.totalorder %s22, 0
    %p112 = por %p110, %p111
    %s114 = sadd.s32 %s113, 1
    %p117 = scmp.eq.s32.totalorder %s16, 1
    %p118 = scmp.ne.s32.totalorder %s113, %s115
    %p119 = scmp.eq.s32.totalorder %s16, 0
    %p120 = por %p118, %p119
    %p121 = scmp.ne.s32.totalorder %s113, %s115
    %p122 = scmp.eq.s32.totalorder %s21, 1
    %p123 = por %p121, %p122
    %p124 = scmp.ne.s32.totalorder %s115, %s116
    %p125 = scmp.eq.s32.totalorder %s21, 0
    %p126 = por %p124, %p125
    %p127 = scmp.ne.s32.totalorder %s115, %s116
    %p128 = scmp.eq.s32.totalorder %s22, 1
    %p129 = por %p127, %p128
    %p131 = scmp.ne.s32.totalorder %s116, %s130
    %p132 = scmp.eq.s32.totalorder %s22, 0
    %p133 = por %p131, %p132
    %s135 = sadd.s32 %s134, 1
    %p138 = scmp.eq.s32.totalorder %s16, 1
    %p139 = scmp.ne.s32.totalorder %s134, %s136
    %p140 = scmp.eq.s32.totalorder %s16, 0
    %p141 = por %p139, %p140
    %p142 = scmp.ne.s32.totalorder %s134, %s136
    %p143 = scmp.eq.s32.totalorder %s21, 1
    %p144 = por %p142, %p143
    %p145 = scmp.ne.s32.totalorder %s136, %s137
    %p146 = scmp.eq.s32.totalorder %s21, 0
    %p147 = por %p145, %p146
    %p148 = scmp.ne.s32.totalorder %s136, %s137
    %p149 = scmp.eq.s32.totalorder %s22, 1
    %p150 = por %p148, %p149
    %p152 = scmp.ne.s32.totalorder %s137, %s151
    %p153 = scmp.eq.s32.totalorder %s22, 0
    %p154 = por %p152, %p153
    %s156 = sadd.s32 %s155, 1
    %p159 = scmp.eq.s32.totalorder %s16, 1
    %p160 = scmp.ne.s32.totalorder %s155, %s157
    %p161 = scmp.eq.s32.totalorder %s16, 0
    %p162 = por %p160, %p161
    %p163 = scmp.ne.s32.totalorder %s155, %s157
    %p164 = scmp.eq.s32.totalorder %s21, 1
    %p165 = por %p163, %p164
    %p166 = scmp.ne.s32.totalorder %s157, %s158
    %p167 = scmp.eq.s32.totalorder %s21, 0
    %p168 = por %p166, %p167
    %p169 = scmp.ne.s32.totalorder %s157, %s158
    %p170 = scmp.eq.s32.totalorder %s22, 1
    %p171 = por %p169, %p170
    %p173 = scmp.ne.s32.totalorder %s158, %s172
    %p174 = scmp.eq.s32.totalorder %s22, 0
    %p175 = por %p173, %p174
    %s177 = sadd.s32 %s176, 1
    %p180 = scmp.eq.s32.totalorder %s16, 1
    %p181 = scmp.ne.s32.totalorder %s176, %s178
    %p182 = scmp.eq.s32.totalorder %s16, 0
    %p183 = por %p181, %p182
    %p184 = scmp.ne.s32.totalorder %s176, %s178
    %p185 = scmp.eq.s32.totalorder %s21, 1
    %p186 = por %p184, %p185
    %p187 = scmp.ne.s32.totalorder %s178, %s179
    %p188 = scmp.eq.s32.totalorder %s21, 0
    %p189 = por %p187, %p188
    %p190 = scmp.ne.s32.totalorder %s178, %s179
    %p191 = scmp.eq.s32.totalorder %s22, 1
    %p192 = por %p190, %p191
    %p194 = scmp.ne.s32.totalorder %s179, %s193
    %p195 = scmp.eq.s32.totalorder %s22, 0
    %p196 = por %p194, %p195
    %s198 = sadd.s32 %s197, 1
    %p201 = scmp.eq.s32.totalorder %s16, 1
    %p202 = scmp.ne.s32.totalorder %s197, %s199
    %p203 = scmp.eq.s32.totalorder %s16, 0
    %p204 = por %p202, %p203
    %p205 = scmp.ne.s32.totalorder %s197, %s199
    %p206 = scmp.eq.s32.totalorder %s21, 1
    %p207 = por %p205, %p206
    %p208 = scmp.ne.s32.totalorder %s199, %s200
    %p209 = scmp.eq.s32.totalorder %s21, 0
    %p210 = por %p208, %p209
    %p211 = scmp.ne.s32.totalorder %s199, %s200
    %p212 = scmp.eq.s32.totalorder %s22, 1
    %p213 = por %p211, %p212
    %p215 = scmp.ne.s32.totalorder %s200, %s214
    %p216 = scmp.eq.s32.totalorder %s22, 0
    %p217 = por %p215, %p216
    %s219 = sadd.s32 %s218, 1
    %p222 = scmp.eq.s32.totalorder %s16, 1
    %p223 = scmp.ne.s32.totalorder %s218, %s220
    %p224 = scmp.eq.s32.totalorder %s16, 0
    %p225 = por %p223, %p224
    %p226 = scmp.ne.s32.totalorder %s218, %s220
    %p227 = scmp.eq.s32.totalorder %s21, 1
    %p228 = por %p226, %p227
    %p229 = scmp.ne.s32.totalorder %s220, %s221
    %p230 = scmp.eq.s32.totalorder %s21, 0
    %p231 = por %p229, %p230
    %p232 = scmp.ne.s32.totalorder %s220, %s221
    %p233 = scmp.eq.s32.totalorder %s22, 1
    %p234 = por %p232, %p233
    %p236 = scmp.ne.s32.totalorder %s221, %s235
    %p237 = scmp.eq.s32.totalorder %s22, 0
    %p238 = por %p236, %p237
    %s239 = ssub.s32 %s16, %s23
    %p240 = scmp.eq.s32.totalorder %s239, 0
    %s242 = sadd.s32 %s241, 1
    %s243 = scalar_select %p240, %s241, %s242
    %p246 = pneg %p240
    %p247 = scmp.eq.s32.totalorder %s16, 1
    %p248 = por %p246, %p247
    %p249 = scmp.ne.s32.totalorder %s241, %s244
    %p250 = scmp.eq.s32.totalorder %s16, 0
    %p251 = por %p249, %p250
    %p252 = scmp.ne.s32.totalorder %s241, %s244
    %p253 = scmp.eq.s32.totalorder %s21, 1
    %p254 = por %p252, %p253
    %p255 = scmp.ne.s32.totalorder %s244, %s245
    %p256 = scmp.eq.s32.totalorder %s21, 0
    %p257 = por %p255, %p256
    %p258 = scmp.ne.s32.totalorder %s244, %s245
    %p259 = scmp.eq.s32.totalorder %s22, 1
    %p260 = por %p258, %p259
    %p262 = scmp.ne.s32.totalorder %s245, %s261
    %p263 = scmp.eq.s32.totalorder %s22, 0
    %p264 = por %p262, %p263
    %p265 = scmp.le.s32.totalorder 1, %s16
    %p266 = scmp.lt.s32.totalorder %s16, 3
    %p267 = pnand %p265, %p266
    %p268 = pneg %p267
    // Predicated region
    $region9: #{super_resolution_forward.1} parent=5 // pred_check
      _
    $region10: #{super_resolution_forward.1} parent=5 // pred_check_branch
      %270 = sbr.rel (%p267) target = $region12
    $region11: #{super_resolution_forward.1} parent=5 // pred_region
      %s271 = ssub.s32 %s16, 1
      // Predicated region
      $region13: #{super_resolution_forward.1} parent=11 // pred_check
        %p272 = pneg %p63
      $region14: #{super_resolution_forward.1} parent=11 // pred_check_branch
        %274 = sbr.rel (%p272) target = $region16
      $region15: #{super_resolution_forward.1} parent=11 // pred_region
        _
      $region16: #{super_resolution_forward.1} parent=11 // pred_fallthru
        _
      // Predicated region
      $region17: #{super_resolution_forward.1} parent=11 // pred_check
        %p275 = pneg %p84
      $region18: #{super_resolution_forward.1} parent=11 // pred_check_branch
        %277 = sbr.rel (%p275) target = $region20
      $region19: #{super_resolution_forward.1} parent=11 // pred_region
        _
      $region20: #{super_resolution_forward.1} parent=11 // pred_fallthru
        _
      // Predicated region
      $region21: #{super_resolution_forward.1} parent=11 // pred_check
        %p278 = pneg %p105
      $region22: #{super_resolution_forward.1} parent=11 // pred_check_branch
        %280 = sbr.rel (%p278) target = $region24
      $region23: #{super_resolution_forward.1} parent=11 // pred_region
        _
      $region24: #{super_resolution_forward.1} parent=11 // pred_fallthru
        _
      // Predicated region
      $region25: #{super_resolution_forward.1} parent=11 // pred_check
        %p281 = pneg %p126
      $region26: #{super_resolution_forward.1} parent=11 // pred_check_branch
        %283 = sbr.rel (%p281) target = $region28
      $region27: #{super_resolution_forward.1} parent=11 // pred_region
        _
      $region28: #{super_resolution_forward.1} parent=11 // pred_fallthru
        _
      // Predicated region
      $region29: #{super_resolution_forward.1} parent=11 // pred_check
        %p284 = pneg %p147
      $region30: #{super_resolution_forward.1} parent=11 // pred_check_branch
        %286 = sbr.rel (%p284) target = $region32
      $region31: #{super_resolution_forward.1} parent=11 // pred_region
        _
      $region32: #{super_resolution_forward.1} parent=11 // pred_fallthru
        _
      // Predicated region
      $region33: #{super_resolution_forward.1} parent=11 // pred_check
        %p287 = pneg %p168
      $region34: #{super_resolution_forward.1} parent=11 // pred_check_branch
        %289 = sbr.rel (%p287) target = $region36
      $region35: #{super_resolution_forward.1} parent=11 // pred_region
        _
      $region36: #{super_resolution_forward.1} parent=11 // pred_fallthru
        _
      // Predicated region
      $region37: #{super_resolution_forward.1} parent=11 // pred_check
        %p290 = pneg %p189
      $region38: #{super_resolution_forward.1} parent=11 // pred_check_branch
        %292 = sbr.rel (%p290) target = $region40
      $region39: #{super_resolution_forward.1} parent=11 // pred_region
        _
      $region40: #{super_resolution_forward.1} parent=11 // pred_fallthru
        _
      // Predicated region
      $region41: #{super_resolution_forward.1} parent=11 // pred_check
        %p293 = pneg %p210
      $region42: #{super_resolution_forward.1} parent=11 // pred_check_branch
        %295 = sbr.rel (%p293) target = $region44
      $region43: #{super_resolution_forward.1} parent=11 // pred_region
        _
      $region44: #{super_resolution_forward.1} parent=11 // pred_fallthru
        _
      // Predicated region
      $region45: #{super_resolution_forward.1} parent=11 // pred_check
        %p296 = pneg %p231
      $region46: #{super_resolution_forward.1} parent=11 // pred_check_branch
        %298 = sbr.rel (%p296) target = $region48
      $region47: #{super_resolution_forward.1} parent=11 // pred_region
        _
      $region48: #{super_resolution_forward.1} parent=11 // pred_fallthru
        _
    $region12: #{super_resolution_forward.1} parent=5 // pred_fallthru
      _
    %p299 = scmp.lt.s32.totalorder %s16, 2
    // Predicated region
    $region49: #{super_resolution_forward.1} parent=5 // pred_check
      %p300 = pneg %p299
    $region50: #{super_resolution_forward.1} parent=5 // pred_check_branch
      %302 = sbr.rel (%p300) target = $region52
    $region51: #{super_resolution_forward.1} parent=5 // pred_region
      // Predicated region
      $region53: #{super_resolution_forward.1} parent=51 // pred_check
        %p303 = pneg %p36
      $region54: #{super_resolution_forward.1} parent=51 // pred_check_branch
        %305 = sbr.rel (%p303) target = $region56
      $region55: #{super_resolution_forward.1} parent=51 // pred_region
        %p306 = scmp.lt.s32.totalorder %s16, 1
        %s307 = scalar_select %p306, %s16, 1
        %s308 = smul.addr %s307, 7
        %s309 = scalar_lea.vmem %s0, %s308
      $region56: #{super_resolution_forward.1} parent=51 // pred_fallthru
        _
    $region52: #{super_resolution_forward.1} parent=5 // pred_fallthru
      _
    %p310 = scmp.le.s32.totalorder 1, %s16
    %p311 = scmp.lt.s32.totalorder %s16, 3
    %p312 = pnand %p310, %p311
    %p313 = pneg %p312
    // Predicated region
    $region57: #{super_resolution_forward.1} parent=5 // pred_check
      _
    $region58: #{super_resolution_forward.1} parent=5 // pred_check_branch
      %315 = sbr.rel (%p312) target = $region60
    $region59: #{super_resolution_forward.1} parent=5 // pred_region
      %s316 = ssub.s32 %s16, 1
      %p317 = scmp.lt.s32.totalorder %s21, 1
      %s318 = scalar_select %p317, %s21, 1
      %s319 = smul.addr %s318, 7
      %s320 = scalar_lea.vmem %s0, %s319
      %p321 = pneg %p42
      %p322 = pneg %p39
      %p323 = pneg %p63
      %p324 = pneg %p60
      %p325 = pneg %p84
      %p326 = pneg %p81
      %p327 = pneg %p105
      %p328 = pneg %p102
      %p329 = pneg %p126
      %p330 = pneg %p123
      %p331 = pneg %p147
      %p332 = pneg %p144
      %p333 = pneg %p168
      %p334 = pneg %p165
      %p335 = pneg %p189
      %p336 = pneg %p186
      %p337 = pneg %p210
      %p338 = pneg %p207
      %p339 = pneg %p231
      %p340 = pneg %p228
      %p341 = pneg %p257
      %p342 = pneg %p254
      %p343 = scmp.lt.s32.totalorder %s21, 1
      %s344 = scalar_select %p343, %s21, 1
      %s345 = smul.addr %s344, 10
      %s346 = smul.addr %s345, 8
      %s347 = scalar_lea.vmem %s10, %s346
      %p348 = scmp.lt.s32.totalorder %s21, 1
      %s349 = scalar_select %p348, %s21, 1
      %s350 = smul.addr %s349, 7
      %s351 = scalar_lea.vmem %s0, %s350
      %p352 = scmp.lt.s32.totalorder %s21, 1
      %s353 = scalar_select %p352, %s21, 1
      %s354 = smul.addr %s353, 10
      %s355 = smul.addr %s354, 8
      %s356 = scalar_lea.vmem %s10, %s355
      %358 = vst [vmem:[#allocation3] sm:$0xff] 0
      %359 = vst [vmem:[#allocation3 + $0x38] sm:$0xff] 0
      %360 = vst [vmem:[#allocation3 + $0x70] sm:$0xff] 0
      %361 = vst [vmem:[#allocation3 + $0xa8] sm:$0xff] 0
      %362 = vst [vmem:[#allocation3 + $0x30] sm:$0xff] 0
      %363 = vst [vmem:[#allocation3 + $0x68] sm:$0xff] 0
      %364 = vst [vmem:[#allocation3 + $0xa0] sm:$0xff] 0
      %365 = vst [vmem:[#allocation3 + $0xd8] sm:$0xff] 0
      %366 = vst [vmem:[#allocation4] sm:$0xff] 0
      %367 = vst [vmem:[#allocation4 + $0x38] sm:$0xff] 0
      %368 = vst [vmem:[#allocation4 + $0x70] sm:$0xff] 0
      %369 = vst [vmem:[#allocation4 + $0xa8] sm:$0xff] 0
      %370 = vst [vmem:[#allocation4 + $0x30] sm:$0xff] 0
      %371 = vst [vmem:[#allocation4 + $0x68] sm:$0xff] 0
      %372 = vst [vmem:[#allocation4 + $0xa0] sm:$0xff] 0
      %373 = vst [vmem:[#allocation4 + $0xd8] sm:$0xff] 0
      %374 = vst [vmem:[#allocation5] sm:$0xff] 0
      %375 = vst [vmem:[#allocation5 + $0x38] sm:$0xff] 0
      %376 = vst [vmem:[#allocation5 + $0x30] sm:$0xff] 0
      %377 = vst [vmem:[#allocation5 + $0x68] sm:$0xff] 0
      %v378 = vld [vmem:[%s351] sm:$0x3f]
      %380 = vrot.lane.b32.xlu0 %v378, 66
      %v381 = vpop.permute.xlu0 %380
      %v382 = vrot.slane %v381, 1
      %vm383 = vcmask 539648
      %v384 = vsel %vm383, %v381, %v382
      %v386 = vlaneseq
      %vm387 = vcmp.ge.s32.totalorder %v386, 0
      %vm388 = vcmp.lt.s32.totalorder %v386, 640
      %vm389 = vmand %vm387, %vm388
      %390 = vst.msk [vmem:[#allocation2] ss:$8 sm:$0xf] %vm389, %v384
      %391 = vst.msk [vmem:[#allocation2] ss:$8 sm:$0x10] %vm389, %v384
      %v392 = vld [vmem:[%s351] sm:$0x3f]
      %394 = vrot.lane.b32.xlu0 %v392, 65
      %v395 = vpop.permute.xlu0 %394
      %v396 = vrot.slane %v395, 1
      %vm397 = vcmask 531456
      %v398 = vsel %vm397, %v395, %v396
      %s400 = scalar_lea.vmem [#allocation2], 1
      %401 = vst.msk [vmem:[%s400] ss:$8 sm:$0xf] %vm389, %v398
      %402 = vst.msk [vmem:[%s400] ss:$8 sm:$0x10] %vm389, %v398
      %v403 = vld [vmem:[%s351] sm:$0x3f]
      %405 = vrot.lane.b32.xlu0 %v403, 64
      %v406 = vpop.permute.xlu0 %405
      %v407 = vrot.slane %v406, 1
      %vm408 = vcmask 523264
      %v409 = vsel %vm408, %v406, %v407
      %s411 = scalar_lea.vmem [#allocation2], 2
      %412 = vst.msk [vmem:[%s411] ss:$8 sm:$0xf] %vm389, %v409
      %413 = vst.msk [vmem:[%s411] ss:$8 sm:$0x10] %vm389, %v409
      %v414 = vld [vmem:[%s351] sm:$0x3f]
      %416 = vrot.lane.b32.xlu0 %v414, 63
      %v417 = vpop.permute.xlu0 %416
      %v418 = vrot.slane %v417, 1
      %vm419 = vcmask 515072
      %v420 = vsel %vm419, %v417, %v418
      %s422 = scalar_lea.vmem [#allocation2], 3
      %423 = vst.msk [vmem:[%s422] ss:$8 sm:$0xf] %vm389, %v420
      %424 = vst.msk [vmem:[%s422] ss:$8 sm:$0x10] %vm389, %v420
      %v425 = vld [vmem:[%s351] sm:$0x3f]
      %427 = vrot.lane.b32.xlu0 %v425, 62
      %v428 = vpop.permute.xlu0 %427
      %v429 = vrot.slane %v428, 1
      %vm430 = vcmask 506880
      %v431 = vsel %vm430, %v428, %v429
      %s433 = scalar_lea.vmem [#allocation2], 4
      %434 = vst.msk [vmem:[%s433] ss:$8 sm:$0xf] %vm389, %v431
      %435 = vst.msk [vmem:[%s433] ss:$8 sm:$0x10] %vm389, %v431
      %v436 = vld [vmem:[%s351] sm:$0x3f]
      %438 = vrot.lane.b32.xlu0 %v436, 34
      %v439 = vpop.permute.xlu0 %438
      %v440 = vrot.slane %v439, 1
      %vm441 = vcmask 277504
      %v442 = vsel %vm441, %v439, %v440
      %s444 = scalar_lea.vmem [#allocation2], 5
      %445 = vst.msk [vmem:[%s444] ss:$8 sm:$0xf] %vm389, %v442
      %446 = vst.msk [vmem:[%s444] ss:$8 sm:$0x10] %vm389, %v442
      %v447 = vld [vmem:[%s351] sm:$0x3f]
      %449 = vrot.lane.b32.xlu0 %v447, 33
      %v450 = vpop.permute.xlu0 %449
      %v451 = vrot.slane %v450, 1
      %vm452 = vcmask 269312
      %v453 = vsel %vm452, %v450, %v451
      %s455 = scalar_lea.vmem [#allocation2], 6
      %456 = vst.msk [vmem:[%s455] ss:$8 sm:$0xf] %vm389, %v453
      %457 = vst.msk [vmem:[%s455] ss:$8 sm:$0x10] %vm389, %v453
      %v458 = vld [vmem:[%s351] sm:$0x3f]
      %460 = vrot.lane.b32.xlu0 %v458, 32
      %v461 = vpop.permute.xlu0 %460
      %v462 = vrot.slane %v461, 1
      %vm463 = vcmask 261120
      %v464 = vsel %vm463, %v461, %v462
      %s466 = scalar_lea.vmem [#allocation2], 7
      %467 = vst.msk [vmem:[%s466] ss:$8 sm:$0xf] %vm389, %v464
      %468 = vst.msk [vmem:[%s466] ss:$8 sm:$0x10] %vm389, %v464
      %v469 = vld [vmem:[%s351] sm:$0x3f]
      %471 = vrot.lane.b32.xlu0 %v469, 31
      %v472 = vpop.permute.xlu0 %471
      %v473 = vrot.slane %v472, 1
      %vm474 = vcmask 252928
      %v475 = vsel %vm474, %v472, %v473
      %s477 = scalar_lea.vmem [#allocation2], 40
      %478 = vst.msk [vmem:[%s477] ss:$8 sm:$0xf] %vm389, %v475
      %479 = vst.msk [vmem:[%s477] ss:$8 sm:$0x10] %vm389, %v475
      %v480 = vld [vmem:[%s351] sm:$0x3f]
      %482 = vrot.lane.b32.xlu0 %v480, 30
      %v483 = vpop.permute.xlu0 %482
      %v484 = vrot.slane %v483, 1
      %vm485 = vcmask 244736
      %v486 = vsel %vm485, %v483, %v484
      %s488 = scalar_lea.vmem [#allocation2], 41
      %489 = vst.msk [vmem:[%s488] ss:$8 sm:$0xf] %vm389, %v486
      %490 = vst.msk [vmem:[%s488] ss:$8 sm:$0x10] %vm389, %v486
      %v491 = vld [vmem:[%s351] sm:$0x3f]
      %493 = vrot.lane.b32.xlu0 %v491, 2
      %v494 = vpop.permute.xlu0 %493
      %v495 = vrot.slane %v494, 1
      %vm496 = vcmask 15360
      %v497 = vsel %vm496, %v494, %v495
      %s499 = scalar_lea.vmem [#allocation2], 42
      %500 = vst.msk [vmem:[%s499] ss:$8 sm:$0xf] %vm389, %v497
      %501 = vst.msk [vmem:[%s499] ss:$8 sm:$0x10] %vm389, %v497
      %v502 = vld [vmem:[%s351] sm:$0x3f]
      %504 = vrot.lane.b32.xlu0 %v502, 1
      %v505 = vpop.permute.xlu0 %504
      %v506 = vrot.slane %v505, 1
      %vm507 = vcmask 7168
      %v508 = vsel %vm507, %v505, %v506
      %s510 = scalar_lea.vmem [#allocation2], 43
      %511 = vst.msk [vmem:[%s510] ss:$8 sm:$0xf] %vm389, %v508
      %512 = vst.msk [vmem:[%s510] ss:$8 sm:$0x10] %vm389, %v508
      %v513 = vld [vmem:[%s351 + $0x1] sm:$0x1f]
      %s514 = scalar_lea.vmem [#allocation2], 44
      %515 = vst.msk [vmem:[%s514] ss:$8 sm:$0xf] %vm389, %v513
      %516 = vst.msk [vmem:[%s514] ss:$8 sm:$0x10] %vm389, %v513
      %v517 = vld [vmem:[%s351 + $0x1] sm:$0x3f]
      %519 = vrot.lane.b32.xlu0 %v517, 127
      %v520 = vpop.permute.xlu0 %519
      %v521 = vrot.slane %v520, 1
      %vm522 = vcmask 1039360
      %v523 = vsel %vm522, %v520, %v521
      %s525 = scalar_lea.vmem [#allocation2], 45
      %526 = vst.msk [vmem:[%s525] ss:$8 sm:$0xf] %vm389, %v523
      %527 = vst.msk [vmem:[%s525] ss:$8 sm:$0x10] %vm389, %v523
      %v528 = vld [vmem:[%s351 + $0x1] sm:$0x3f]
      %530 = vrot.lane.b32.xlu0 %v528, 126
      %v531 = vpop.permute.xlu0 %530
      %v532 = vrot.slane %v531, 1
      %vm533 = vcmask 1031168
      %v534 = vsel %vm533, %v531, %v532
      %s536 = scalar_lea.vmem [#allocation2], 46
      %537 = vst.msk [vmem:[%s536] ss:$8 sm:$0xf] %vm389, %v534
      %538 = vst.msk [vmem:[%s536] ss:$8 sm:$0x10] %vm389, %v534
      %v539 = vld [vmem:[%s351 + $0x1] sm:$0x3f]
      %541 = vrot.lane.b32.xlu0 %v539, 98
      %v542 = vpop.permute.xlu0 %541
      %v543 = vrot.slane %v542, 1
      %vm544 = vcmask 801792
      %v545 = vsel %vm544, %v542, %v543
      %s547 = scalar_lea.vmem [#allocation2], 47
      %548 = vst.msk [vmem:[%s547] ss:$8 sm:$0xf] %vm389, %v545
      %549 = vst.msk [vmem:[%s547] ss:$8 sm:$0x10] %vm389, %v545
      %v550 = vld [vmem:[%s351 + $0x1] sm:$0x3f]
      %552 = vrot.lane.b32.xlu0 %v550, 97
      %v553 = vpop.permute.xlu0 %552
      %v554 = vrot.slane %v553, 1
      %vm555 = vcmask 793600
      %v556 = vsel %vm555, %v553, %v554
      %s558 = scalar_lea.vmem [#allocation2], 80
      %559 = vst.msk [vmem:[%s558] ss:$8 sm:$0xf] %vm389, %v556
      %560 = vst.msk [vmem:[%s558] ss:$8 sm:$0x10] %vm389, %v556
      %v561 = vld [vmem:[%s351 + $0x1] sm:$0x3f]
      %563 = vrot.lane.b32.xlu0 %v561, 96
      %v564 = vpop.permute.xlu0 %563
      %v565 = vrot.slane %v564, 1
      %vm566 = vcmask 785408
      %v567 = vsel %vm566, %v564, %v565
      %s569 = scalar_lea.vmem [#allocation2], 81
      %570 = vst.msk [vmem:[%s569] ss:$8 sm:$0xf] %vm389, %v567
      %571 = vst.msk [vmem:[%s569] ss:$8 sm:$0x10] %vm389, %v567
      %v572 = vld [vmem:[%s351 + $0x1] sm:$0x3f]
      %574 = vrot.lane.b32.xlu0 %v572, 95
      %v575 = vpop.permute.xlu0 %574
      %v576 = vrot.slane %v575, 1
      %vm577 = vcmask 777216
      %v578 = vsel %vm577, %v575, %v576
      %s580 = scalar_lea.vmem [#allocation2], 82
      %581 = vst.msk [vmem:[%s580] ss:$8 sm:$0xf] %vm389, %v578
      %582 = vst.msk [vmem:[%s580] ss:$8 sm:$0x10] %vm389, %v578
      %v583 = vld [vmem:[%s351 + $0x1] sm:$0x3f]
      %585 = vrot.lane.b32.xlu0 %v583, 94
      %v586 = vpop.permute.xlu0 %585
      %v587 = vrot.slane %v586, 1
      %vm588 = vcmask 769024
      %v589 = vsel %vm588, %v586, %v587
      %s591 = scalar_lea.vmem [#allocation2], 83
      %592 = vst.msk [vmem:[%s591] ss:$8 sm:$0xf] %vm389, %v589
      %593 = vst.msk [vmem:[%s591] ss:$8 sm:$0x10] %vm389, %v589
      %v594 = vld [vmem:[%s351 + $0x1] sm:$0x3f]
      %596 = vrot.lane.b32.xlu0 %v594, 66
      %v597 = vpop.permute.xlu0 %596
      %v598 = vrot.slane %v597, 1
      %v599 = vsel %vm383, %v597, %v598
      %s601 = scalar_lea.vmem [#allocation2], 84
      %602 = vst.msk [vmem:[%s601] ss:$8 sm:$0xf] %vm389, %v599
      %603 = vst.msk [vmem:[%s601] ss:$8 sm:$0x10] %vm389, %v599
      %v604 = vld [vmem:[%s351 + $0x1] sm:$0x3f]
      %606 = vrot.lane.b32.xlu0 %v604, 65
      %v607 = vpop.permute.xlu0 %606
      %v608 = vrot.slane %v607, 1
      %v609 = vsel %vm397, %v607, %v608
      %s611 = scalar_lea.vmem [#allocation2], 85
      %612 = vst.msk [vmem:[%s611] ss:$8 sm:$0xf] %vm389, %v609
      %613 = vst.msk [vmem:[%s611] ss:$8 sm:$0x10] %vm389, %v609
      %v614 = vld [vmem:[%s351 + $0x1] sm:$0x3f]
      %616 = vrot.lane.b32.xlu0 %v614, 64
      %v617 = vpop.permute.xlu0 %616
      %v618 = vrot.slane %v617, 1
      %v619 = vsel %vm408, %v617, %v618
      %s621 = scalar_lea.vmem [#allocation2], 86
      %622 = vst.msk [vmem:[%s621] ss:$8 sm:$0xf] %vm389, %v619
      %623 = vst.msk [vmem:[%s621] ss:$8 sm:$0x10] %vm389, %v619
      %v624 = vld [vmem:[%s351 + $0x1] sm:$0x3f]
      %626 = vrot.lane.b32.xlu0 %v624, 63
      %v627 = vpop.permute.xlu0 %626
      %v628 = vrot.slane %v627, 1
      %v629 = vsel %vm419, %v627, %v628
      %s631 = scalar_lea.vmem [#allocation2], 87
      %632 = vst.msk [vmem:[%s631] ss:$8 sm:$0xf] %vm389, %v629
      %633 = vst.msk [vmem:[%s631] ss:$8 sm:$0x10] %vm389, %v629
      %v634 = vld [vmem:[%s351 + $0x1] sm:$0x3f]
      %636 = vrot.lane.b32.xlu0 %v634, 62
      %v637 = vpop.permute.xlu0 %636
      %v638 = vrot.slane %v637, 1
      %v639 = vsel %vm430, %v637, %v638
      %s641 = scalar_lea.vmem [#allocation2], 120
      %642 = vst.msk [vmem:[%s641] ss:$8 sm:$0xf] %vm389, %v639
      %643 = vst.msk [vmem:[%s641] ss:$8 sm:$0x10] %vm389, %v639
      %v644 = vld [vmem:[%s1] sm:$0xf]
      %v645 = vld [vmem:[%s1 + $0x4] sm:$0xf]
      %v646 = vld [vmem:[%s1 + $0x8] sm:$0xf]
      %v647 = vld [vmem:[%s1 + $0xc] sm:$0xf]
      %v648 = vld [vmem:[%s1 + $0x10] sm:$0xf]
      %v649 = vld [vmem:[%s1 + $0x14] sm:$0xf]
      %v650 = vld [vmem:[%s1 + $0x18] sm:$0xf]
      %v651 = vld [vmem:[%s1 + $0x1c] sm:$0xf]
      %v652 = vld [vmem:[#allocation2] sm:$0xff]
      %v653 = vld [vmem:[#allocation2 + $0x8] sm:$0xff]
      %v654 = vld [vmem:[#allocation2 + $0x10] sm:$0xff]
      %v655 = vld [vmem:[#allocation2 + $0x28] sm:$0xff]
      %v656 = vld [vmem:[#allocation2 + $0x30] sm:$0xff]
      %v657 = vld [vmem:[#allocation2 + $0x38] sm:$0xff]
      %v658 = vld [vmem:[#allocation2 + $0x50] sm:$0xff]
      %v659 = vld [vmem:[#allocation2 + $0x58] sm:$0xff]
      %v660 = vld [vmem:[#allocation2 + $0x60] sm:$0xff]
      %v661 = vld [vmem:[#allocation2 + $0x78] sm:$0x1]
      %v662 = vld [vmem:[#allocation2 + $0x80] sm:$0x1]
      %v663 = vld [vmem:[#allocation2 + $0x88] sm:$0x1]
      %v664 = vpack.c.bf16 %v655, %v652
      %v665 = vpack.c.bf16 %v656, %v653
      %v666 = vpack.c.bf16 %v657, %v654
      %v667 = vpack.c.bf16 %v661, %v658
      %v668 = vpack.c.bf16 %v662, %v659
      %v669 = vpack.c.bf16 %v663, %v660
      %v670 = vld [vmem:[%s2] sm:$0xff]
      %v671 = vld [vmem:[%s2 + $0x8] sm:$0xff]
      %v672 = vld [vmem:[%s2 + $0x10] sm:$0xff]
      %v673 = vld [vmem:[%s2 + $0x18] sm:$0xff]
      %v674 = vld [vmem:[%s2 + $0x20] sm:$0xff]
      %v675 = vld [vmem:[%s2 + $0x28] sm:$0xff]
      %v676 = vld [vmem:[%s2 + $0x30] sm:$0xff]
      %v677 = vld [vmem:[%s2 + $0x38] sm:$0xff]
      %679 = vset.pattern.permute.xlu0 0
      %680 = vperm.xlu0 %679, %v670
      %v681 = vpop.permute.xlu0 %680
      %684 = vset.pattern.permute.xlu0 0
      %685 = vperm.xlu0 %684, %v671
      %v686 = vpop.permute.xlu0 %685
      %689 = vset.pattern.permute.xlu0 0
      %690 = vperm.xlu0 %689, %v672
      %v691 = vpop.permute.xlu0 %690
      %694 = vset.pattern.permute.xlu0 0
      %695 = vperm.xlu0 %694, %v673
      %v696 = vpop.permute.xlu0 %695
      %699 = vset.pattern.permute.xlu0 0
      %700 = vperm.xlu0 %699, %v674
      %v701 = vpop.permute.xlu0 %700
      %704 = vset.pattern.permute.xlu0 0
      %705 = vperm.xlu0 %704, %v675
      %v706 = vpop.permute.xlu0 %705
      %709 = vset.pattern.permute.xlu0 0
      %710 = vperm.xlu0 %709, %v676
      %v711 = vpop.permute.xlu0 %710
      %714 = vset.pattern.permute.xlu0 0
      %715 = vperm.xlu0 %714, %v677
      %v716 = vpop.permute.xlu0 %715
      %v726 = vunpack.c.l.b16 %v644
      %v727 = vunpack.c.l.b16 %v645
      %v728 = vunpack.c.l.b16 %v646
      %v729 = vunpack.c.l.b16 %v647
      %v730 = vunpack.c.l.b16 %v648
      %v731 = vunpack.c.l.b16 %v649
      %v732 = vunpack.c.l.b16 %v650
      %v733 = vunpack.c.l.b16 %v651
      %v734 = vpack.c.b16 %v727, %v726
      %v735 = vpack.c.b16 %v729, %v728
      %v736 = vpack.c.b16 %v731, %v730
      %v737 = vpack.c.b16 %v733, %v732
      %vm738 = vcmask 203776
      %v740 = vsel %vm738, %v734, 0
      %v743 = vsel %vm738, %v735, 0
      %v746 = vsel %vm738, %v736, 0
      %v749 = vsel %vm738, %v737, 0
      %vm751 = vcmask 1043456
      %vm752 = vcmask 1044480
      %v753 = vsel %vm751, 4294967295, 65535
      %v754 = vsel %vm752, %v753, 0
      %v756 = vand.u32 %v667, %v754
      %v759 = vand.u32 %v668, %v754
      %v762 = vand.u32 %v669, %v754
      %764 = vmatprep.subr.bf16.mxu0 %v665
      %765 = vmatpush1.bf16.msra.mxu0 %v664
      %766 = vmatprep.subr.bf16.mxu0 %v759
      %767 = vmatpush1.bf16.msra.mxu0 %v756
      %768 = vmatprep.subr.bf16.mxu0 0
      %769 = vmatpush1.bf16.msra.mxu0 0
      %770 = vmatprep.subr.bf16.mxu0 0
      %771 = vmatpush1.bf16.msra.mxu0 0
      %772 = vmatprep.subr.bf16.mxu0 0
      %773 = vmatpush1.bf16.msra.mxu0 0
      %774 = vmatprep.subr.bf16.mxu0 0
      %775 = vmatpush1.bf16.msra.mxu0 0
      %776 = vmatprep.subr.bf16.mxu0 0
      %777 = vmatpush1.bf16.msra.mxu0 0
      %778 = vmatprep.subr.bf16.mxu0 0
      %779 = vmatpush1.bf16.msra.mxu0 0
      %780 = vmatprep.subr.bf16.mxu0 0
      %781 = vmatpush1.bf16.msra.mxu0 0
      %782 = vmatprep.subr.bf16.mxu0 0
      %783 = vmatpush1.bf16.msra.mxu0 0
      %784 = vmatprep.subr.bf16.mxu0 0
      %785 = vmatpush1.bf16.msra.mxu0 0
      %786 = vmatprep.subr.bf16.mxu0 0
      %787 = vmatpush1.bf16.msra.mxu0 0
      %788 = vmatprep.subr.bf16.mxu0 0
      %789 = vmatpush1.bf16.msra.mxu0 0
      %790 = vmatprep.subr.bf16.mxu0 0
      %791 = vmatpush1.bf16.msra.mxu0 0
      %792 = vmatprep.subr.bf16.mxu0 0
      %793 = vmatpush1.bf16.msra.mxu0 0
      %794 = vmatprep.subr.bf16.mxu0 0
      %795 = vmatpush1.bf16.msra.mxu0 0
      %796 = vmatprep.mubr.bf16.mxu0 0
      %797 = vmatmul.mubr.bf16.gmra.mrb[0].mxu0 %v740
      %v798 = vpop.f32.mrb[0].mxu0
      %v799 = vadd.f32 %v681, %v798
      %v800 = vpop.f32.mrb[0].mxu0
      %v801 = vadd.f32 %v681, %v800
      %v802 = vpop.f32.mrb[0].mxu0
      %v803 = vadd.f32 %v686, %v802
      %v804 = vpop.f32.mrb[0].mxu0
      %v805 = vadd.f32 %v686, %v804
      %806 = vmatprep.mubr.bf16.mxu0 0
      %807 = vmatmul.mubr.bf16.gmra.mrb[0].mxu0 %v743
      %v808 = vpop.f32.mrb[0].mxu0
      %v809 = vadd.f32 %v691, %v808
      %v810 = vpop.f32.mrb[0].mxu0
      %v811 = vadd.f32 %v691, %v810
      %v812 = vpop.f32.mrb[0].mxu0
      %v813 = vadd.f32 %v696, %v812
      %v814 = vpop.f32.mrb[0].mxu0
      %v815 = vadd.f32 %v696, %v814
      %816 = vmatprep.mubr.bf16.mxu0 0
      %817 = vmatmul.mubr.bf16.gmra.mrb[0].mxu0 %v746
      %v818 = vpop.f32.mrb[0].mxu0
      %v819 = vadd.f32 %v701, %v818
      %v820 = vpop.f32.mrb[0].mxu0
      %v821 = vadd.f32 %v701, %v820
      %v822 = vpop.f32.mrb[0].mxu0
      %v823 = vadd.f32 %v706, %v822
      %v824 = vpop.f32.mrb[0].mxu0
      %v825 = vadd.f32 %v706, %v824
      %826 = vmatprep.mubr.bf16.mxu0 0
      %827 = vmatmul.mubr.bf16.gmra.mrb[0].mxu0 %v749
      %v828 = vpop.f32.mrb[0].mxu0
      %v829 = vadd.f32 %v711, %v828
      %v830 = vpop.f32.mrb[0].mxu0
      %v831 = vadd.f32 %v711, %v830
      %v832 = vpop.f32.mrb[0].mxu0
      %v833 = vadd.f32 %v716, %v832
      %v834 = vpop.f32.mrb[0].mxu0
      %v835 = vadd.f32 %v716, %v834
      %836 = vdwg.mxu0
      %837 = vmatprep.subr.bf16.mxu0 0
      %838 = vmatpush1.bf16.msra.mxu0 %v666
      %839 = vmatprep.subr.bf16.mxu0 0
      %840 = vmatpush1.bf16.msra.mxu0 %v762
      %841 = vmatprep.subr.bf16.mxu0 0
      %842 = vmatpush1.bf16.msra.mxu0 0
      %843 = vmatprep.subr.bf16.mxu0 0
      %844 = vmatpush1.bf16.msra.mxu0 0
      %845 = vmatprep.subr.bf16.mxu0 0
      %846 = vmatpush1.bf16.msra.mxu0 0
      %847 = vmatprep.subr.bf16.mxu0 0
      %848 = vmatpush1.bf16.msra.mxu0 0
      %849 = vmatprep.subr.bf16.mxu0 0
      %850 = vmatpush1.bf16.msra.mxu0 0
      %851 = vmatprep.subr.bf16.mxu0 0
      %852 = vmatpush1.bf16.msra.mxu0 0
      %853 = vmatprep.subr.bf16.mxu0 0
      %854 = vmatpush1.bf16.msra.mxu0 0
      %855 = vmatprep.subr.bf16.mxu0 0
      %856 = vmatpush1.bf16.msra.mxu0 0
      %857 = vmatprep.subr.bf16.mxu0 0
      %858 = vmatpush1.bf16.msra.mxu0 0
      %859 = vmatprep.subr.bf16.mxu0 0
      %860 = vmatpush1.bf16.msra.mxu0 0
      %861 = vmatprep.subr.bf16.mxu0 0
      %862 = vmatpush1.bf16.msra.mxu0 0
      %863 = vmatprep.subr.bf16.mxu0 0
      %864 = vmatpush1.bf16.msra.mxu0 0
      %865 = vmatprep.subr.bf16.mxu0 0
      %866 = vmatpush1.bf16.msra.mxu0 0
      %867 = vmatprep.subr.bf16.mxu0 0
      %868 = vmatpush1.bf16.msra.mxu0 0
      %869 = vmatprep.mubr.bf16.mxu0 0
      %870 = vmatmul.mubr.bf16.gmra.mrb[0].mxu0 %v740
      %v871 = vpop.f32.mrb[0].mxu0
      %v872 = vadd.f32 %v681, %v871
      %v873 = vpop.f32.mrb[0].mxu0
      %v874 = vpop.f32.mrb[0].mxu0
      %v875 = vadd.f32 %v686, %v874
      %v876 = vpop.f32.mrb[0].mxu0
      %877 = vmatprep.mubr.bf16.mxu0 0
      %878 = vmatmul.mubr.bf16.gmra.mrb[0].mxu0 %v743
      %v879 = vpop.f32.mrb[0].mxu0
      %v880 = vadd.f32 %v691, %v879
      %v881 = vpop.f32.mrb[0].mxu0
      %v882 = vpop.f32.mrb[0].mxu0
      %v883 = vadd.f32 %v696, %v882
      %v884 = vpop.f32.mrb[0].mxu0
      %885 = vmatprep.mubr.bf16.mxu0 0
      %886 = vmatmul.mubr.bf16.gmra.mrb[0].mxu0 %v746
      %v887 = vpop.f32.mrb[0].mxu0
      %v888 = vadd.f32 %v701, %v887
      %v889 = vpop.f32.mrb[0].mxu0
      %v890 = vpop.f32.mrb[0].mxu0
      %v891 = vadd.f32 %v706, %v890
      %v892 = vpop.f32.mrb[0].mxu0
      %893 = vmatprep.mubr.bf16.mxu0 0
      %894 = vmatmul.mubr.bf16.gmra.mrb[0].mxu0 %v749
      %v895 = vpop.f32.mrb[0].mxu0
      %v896 = vadd.f32 %v711, %v895
      %v897 = vpop.f32.mrb[0].mxu0
      %v898 = vpop.f32.mrb[0].mxu0
      %v899 = vadd.f32 %v716, %v898
      %v900 = vpop.f32.mrb[0].mxu0
      %901 = vdwg.mxu0
      %v902 = vmax.f32 %v799, 0.0
      %v903 = vmax.f32 %v801, 0.0
      %v904 = vmax.f32 %v872, 0.0
      %v905 = vmax.f32 %v803, 0.0
      %v906 = vmax.f32 %v805, 0.0
      %v907 = vmax.f32 %v875, 0.0
      %v908 = vmax.f32 %v809, 0.0
      %v909 = vmax.f32 %v811, 0.0
      %v910 = vmax.f32 %v880, 0.0
      %v911 = vmax.f32 %v813, 0.0
      %v912 = vmax.f32 %v815, 0.0
      %v913 = vmax.f32 %v883, 0.0
      %v914 = vmax.f32 %v819, 0.0
      %v915 = vmax.f32 %v821, 0.0
      %v916 = vmax.f32 %v888, 0.0
      %v917 = vmax.f32 %v823, 0.0
      %v918 = vmax.f32 %v825, 0.0
      %v919 = vmax.f32 %v891, 0.0
      %v920 = vmax.f32 %v829, 0.0
      %v921 = vmax.f32 %v831, 0.0
      %v922 = vmax.f32 %v896, 0.0
      %v923 = vmax.f32 %v833, 0.0
      %v924 = vmax.f32 %v835, 0.0
      %v925 = vmax.f32 %v899, 0.0
      %v926 = vld [vmem:[%s9] sm:$0x7]
      %v928 = vlaneseq
      %v929 = vshrl.u32 %v928, 7
      %v930 = vsub.s32 0, %v929
      %v931 = vrot.slane %v926, %v930
      %v932 = vlaneseq
      %v933 = vshrl.u32 %v932, 7
      %v934 = vsub.s32 1, %v933
      %v935 = vrot.slane %v926, %v934
      %v936 = vlaneseq
      %v937 = vshrl.u32 %v936, 7
      %v938 = vsub.s32 2, %v937
      %v939 = vrot.slane %v926, %v938
      %v943 = vmul.f32 %v902, %v931
      %v944 = vmul.f32 %v903, %v935
      %v945 = vmul.f32 %v904, %v939
      %v946 = vmul.f32 %v905, %v931
      %v947 = vmul.f32 %v906, %v935
      %v948 = vmul.f32 %v907, %v939
      %v949 = vmul.f32 %v908, %v931
      %v950 = vmul.f32 %v909, %v935
      %v951 = vmul.f32 %v910, %v939
      %v952 = vmul.f32 %v911, %v931
      %v953 = vmul.f32 %v912, %v935
      %v954 = vmul.f32 %v913, %v939
      %v955 = vmul.f32 %v914, %v931
      %v956 = vmul.f32 %v915, %v935
      %v957 = vmul.f32 %v916, %v939
      %v958 = vmul.f32 %v917, %v931
      %v959 = vmul.f32 %v918, %v935
      %v960 = vmul.f32 %v919, %v939
      %v961 = vmul.f32 %v920, %v931
      %v962 = vmul.f32 %v921, %v935
      %v963 = vmul.f32 %v922, %v939
      %v964 = vmul.f32 %v923, %v931
      %v965 = vmul.f32 %v924, %v935
      %v966 = vmul.f32 %v925, %v939
      %v967 = vpack.c.bf16 %v946, %v943
      %v968 = vpack.c.bf16 %v947, %v944
      %v969 = vpack.c.bf16 %v948, %v945
      %v970 = vpack.c.bf16 %v952, %v949
      %v971 = vpack.c.bf16 %v953, %v950
      %v972 = vpack.c.bf16 %v954, %v951
      %v973 = vpack.c.bf16 %v958, %v955
      %v974 = vpack.c.bf16 %v959, %v956
      %v975 = vpack.c.bf16 %v960, %v957
      %v976 = vpack.c.bf16 %v964, %v961
      %v977 = vpack.c.bf16 %v965, %v962
      %v978 = vpack.c.bf16 %v966, %v963
      %979 = vst [vmem:[#allocation3 + $0x8] sm:$0xff] %v967
      %980 = vst [vmem:[#allocation3 + $0x10] sm:$0xff] %v968
      %981 = vst [vmem:[#allocation3 + $0x18] sm:$0xff] %v969
      %982 = vst [vmem:[#allocation3 + $0x40] sm:$0xff] %v970
      %983 = vst [vmem:[#allocation3 + $0x48] sm:$0xff] %v971
      %984 = vst [vmem:[#allocation3 + $0x50] sm:$0xff] %v972
      %985 = vst [vmem:[#allocation3 + $0x78] sm:$0xff] %v973
      %986 = vst [vmem:[#allocation3 + $0x80] sm:$0xff] %v974
      %987 = vst [vmem:[#allocation3 + $0x88] sm:$0xff] %v975
      %988 = vst [vmem:[#allocation3 + $0xb0] sm:$0xff] %v976
      %989 = vst [vmem:[#allocation3 + $0xb8] sm:$0xff] %v977
      %990 = vst [vmem:[#allocation3 + $0xc0] sm:$0xff] %v978
      %v991 = vld [vmem:[%s1] sm:$0xf]
      %v992 = vld [vmem:[%s1 + $0x4] sm:$0xf]
      %v993 = vld [vmem:[%s1 + $0x8] sm:$0xf]
      %v994 = vld [vmem:[%s1 + $0xc] sm:$0xf]
      %v995 = vld [vmem:[%s1 + $0x10] sm:$0xf]
      %v996 = vld [vmem:[%s1 + $0x14] sm:$0xf]
      %v997 = vld [vmem:[%s1 + $0x18] sm:$0xf]
      %v998 = vld [vmem:[%s1 + $0x1c] sm:$0xf]
      %v999 = vld [vmem:[#allocation2 + $0x18] sm:$0xff]
      %v1000 = vld [vmem:[#allocation2 + $0x20] sm:$0xff]
      %v1001 = vld [vmem:[#allocation2 + $0x40] sm:$0xff]
      %v1002 = vld [vmem:[#allocation2 + $0x48] sm:$0xff]
      %v1003 = vld [vmem:[#allocation2 + $0x68] sm:$0xff]
      %v1004 = vld [vmem:[#allocation2 + $0x70] sm:$0xff]
      %v1005 = vld [vmem:[#allocation2 + $0x90] sm:$0x1]
      %v1006 = vld [vmem:[#allocation2 + $0x98] sm:$0x1]
      %v1007 = vpack.c.bf16 %v1001, %v999
      %v1008 = vpack.c.bf16 %v1002, %v1000
      %v1009 = vpack.c.bf16 %v1005, %v1003
      %v1010 = vpack.c.bf16 %v1006, %v1004
      %v1011 = vld [vmem:[%s2] sm:$0xff]
      %v1012 = vld [vmem:[%s2 + $0x8] sm:$0xff]
      %v1013 = vld [vmem:[%s2 + $0x10] sm:$0xff]
      %v1014 = vld [vmem:[%s2 + $0x18] sm:$0xff]
      %v1015 = vld [vmem:[%s2 + $0x20] sm:$0xff]
      %v1016 = vld [vmem:[%s2 + $0x28] sm:$0xff]
      %v1017 = vld [vmem:[%s2 + $0x30] sm:$0xff]
      %v1018 = vld [vmem:[%s2 + $0x38] sm:$0xff]
      %1020 = vset.pattern.permute.xlu0 0
      %1021 = vperm.xlu0 %1020, %v1011
      %v1022 = vpop.permute.xlu0 %1021
      %1025 = vset.pattern.permute.xlu0 0
      %1026 = vperm.xlu0 %1025, %v1012
      %v1027 = vpop.permute.xlu0 %1026
      %1030 = vset.pattern.permute.xlu0 0
      %1031 = vperm.xlu0 %1030, %v1013
      %v1032 = vpop.permute.xlu0 %1031
      %1035 = vset.pattern.permute.xlu0 0
      %1036 = vperm.xlu0 %1035, %v1014
      %v1037 = vpop.permute.xlu0 %1036
      %1040 = vset.pattern.permute.xlu0 0
      %1041 = vperm.xlu0 %1040, %v1015
      %v1042 = vpop.permute.xlu0 %1041
      %1045 = vset.pattern.permute.xlu0 0
      %1046 = vperm.xlu0 %1045, %v1016
      %v1047 = vpop.permute.xlu0 %1046
      %1050 = vset.pattern.permute.xlu0 0
      %1051 = vperm.xlu0 %1050, %v1017
      %v1052 = vpop.permute.xlu0 %1051
      %1055 = vset.pattern.permute.xlu0 0
      %1056 = vperm.xlu0 %1055, %v1018
      %v1057 = vpop.permute.xlu0 %1056
      %v1067 = vunpack.c.l.b16 %v991
      %v1068 = vunpack.c.l.b16 %v992
      %v1069 = vunpack.c.l.b16 %v993
      %v1070 = vunpack.c.l.b16 %v994
      %v1071 = vunpack.c.l.b16 %v995
      %v1072 = vunpack.c.l.b16 %v996
      %v1073 = vunpack.c.l.b16 %v997
      %v1074 = vunpack.c.l.b16 %v998
      %v1075 = vpack.c.b16 %v1068, %v1067
      %v1076 = vpack.c.b16 %v1070, %v1069
      %v1077 = vpack.c.b16 %v1072, %v1071
      %v1078 = vpack.c.b16 %v1074, %v1073
      %v1080 = vsel %vm738, %v1075, 0
      %v1083 = vsel %vm738, %v1076, 0
      %v1086 = vsel %vm738, %v1077, 0
      %v1089 = vsel %vm738, %v1078, 0
      %v1092 = vand.u32 %v1009, %v754
      %v1095 = vand.u32 %v1010, %v754
      %1097 = vmatprep.subr.bf16.mxu0 %v1008
      %1098 = vmatpush1.bf16.msra.mxu0 %v1007
      %1099 = vmatprep.subr.bf16.mxu0 %v1095
      %1100 = vmatpush1.bf16.msra.mxu0 %v1092
      %1101 = vmatprep.subr.bf16.mxu0 0
      %1102 = vmatpush1.bf16.msra.mxu0 0
      %1103 = vmatprep.subr.bf16.mxu0 0
      %1104 = vmatpush1.bf16.msra.mxu0 0
      %1105 = vmatprep.subr.bf16.mxu0 0
      %1106 = vmatpush1.bf16.msra.mxu0 0
      %1107 = vmatprep.subr.bf16.mxu0 0
      %1108 = vmatpush1.bf16.msra.mxu0 0
      %1109 = vmatprep.subr.bf16.mxu0 0
      %1110 = vmatpush1.bf16.msra.mxu0 0
      %1111 = vmatprep.subr.bf16.mxu0 0
      %1112 = vmatpush1.bf16.msra.mxu0 0
      %1113 = vmatprep.subr.bf16.mxu0 0
      %1114 = vmatpush1.bf16.msra.mxu0 0
      %1115 = vmatprep.subr.bf16.mxu0 0
      %1116 = vmatpush1.bf16.msra.mxu0 0
      %1117 = vmatprep.subr.bf16.mxu0 0
      %1118 = vmatpush1.bf16.msra.mxu0 0
      %1119 = vmatprep.subr.bf16.mxu0 0
      %1120 = vmatpush1.bf16.msra.mxu0 0
      %1121 = vmatprep.subr.bf16.mxu0 0
      %1122 = vmatpush1.bf16.msra.mxu0 0
      %1123 = vmatprep.subr.bf16.mxu0 0
      %1124 = vmatpush1.bf16.msra.mxu0 0
      %1125 = vmatprep.subr.bf16.mxu0 0
      %1126 = vmatpush1.bf16.msra.mxu0 0
      %1127 = vmatprep.subr.bf16.mxu0 0
      %1128 = vmatpush1.bf16.msra.mxu0 0
      %1129 = vmatprep.mubr.bf16.mxu0 0
      %1130 = vmatmul.mubr.bf16.gmra.mrb[0].mxu0 %v1080
      %v1131 = vpop.f32.mrb[0].mxu0
      %v1132 = vadd.f32 %v1022, %v1131
      %v1133 = vpop.f32.mrb[0].mxu0
      %v1134 = vadd.f32 %v1022, %v1133
      %v1135 = vpop.f32.mrb[0].mxu0
      %v1136 = vadd.f32 %v1027, %v1135
      %v1137 = vpop.f32.mrb[0].mxu0
      %v1138 = vadd.f32 %v1027, %v1137
      %1139 = vmatprep.mubr.bf16.mxu0 0
      %1140 = vmatmul.mubr.bf16.gmra.mrb[0].mxu0 %v1083
      %v1141 = vpop.f32.mrb[0].mxu0
      %v1142 = vadd.f32 %v1032, %v1141
      %v1143 = vpop.f32.mrb[0].mxu0
      %v1144 = vadd.f32 %v1032, %v1143
      %v1145 = vpop.f32.mrb[0].mxu0
      %v1146 = vadd.f32 %v1037, %v1145
      %v1147 = vpop.f32.mrb[0].mxu0
      %v1148 = vadd.f32 %v1037, %v1147
      %1149 = vmatprep.mubr.bf16.mxu0 0
      %1150 = vmatmul.mubr.bf16.gmra.mrb[0].mxu0 %v1086
      %v1151 = vpop.f32.mrb[0].mxu0
      %v1152 = vadd.f32 %v1042, %v1151
      %v1153 = vpop.f32.mrb[0].mxu0
      %v1154 = vadd.f32 %v1042, %v1153
      %v1155 = vpop.f32.mrb[0].mxu0
      %v1156 = vadd.f32 %v1047, %v1155
      %v1157 = vpop.f32.mrb[0].mxu0
      %v1158 = vadd.f32 %v1047, %v1157
      %1159 = vmatprep.mubr.bf16.mxu0 0
      %1160 = vmatmul.mubr.bf16.gmra.mrb[0].mxu0 %v1089
      %v1161 = vpop.f32.mrb[0].mxu0
      %v1162 = vadd.f32 %v1052, %v1161
      %v1163 = vpop.f32.mrb[0].mxu0
      %v1164 = vadd.f32 %v1052, %v1163
      %v1165 = vpop.f32.mrb[0].mxu0
      %v1166 = vadd.f32 %v1057, %v1165
      %v1167 = vpop.f32.mrb[0].mxu0
      %v1168 = vadd.f32 %v1057, %v1167
      %1169 = vdwg.mxu0
      %v1170 = vmax.f32 %v1132, 0.0
      %v1171 = vmax.f32 %v1134, 0.0
      %v1172 = vmax.f32 %v1136, 0.0
      %v1173 = vmax.f32 %v1138, 0.0
      %v1174 = vmax.f32 %v1142, 0.0
      %v1175 = vmax.f32 %v1144, 0.0
      %v1176 = vmax.f32 %v1146, 0.0
      %v1177 = vmax.f32 %v1148, 0.0
      %v1178 = vmax.f32 %v1152, 0.0
      %v1179 = vmax.f32 %v1154, 0.0
      %v1180 = vmax.f32 %v1156, 0.0
      %v1181 = vmax.f32 %v1158, 0.0
      %v1182 = vmax.f32 %v1162, 0.0
      %v1183 = vmax.f32 %v1164, 0.0
      %v1184 = vmax.f32 %v1166, 0.0
      %v1185 = vmax.f32 %v1168, 0.0
      %v1186 = vld [vmem:[%s9 + $0x3] sm:$0x3]
      %v1188 = vlaneseq
      %v1189 = vshrl.u32 %v1188, 7
      %v1190 = vsub.s32 0, %v1189
      %v1191 = vrot.slane %v1186, %v1190
      %v1192 = vlaneseq
      %v1193 = vshrl.u32 %v1192, 7
      %v1194 = vsub.s32 1, %v1193
      %v1195 = vrot.slane %v1186, %v1194
      %v1198 = vmul.f32 %v1170, %v1191
      %v1199 = vmul.f32 %v1171, %v1195
      %v1200 = vmul.f32 %v1172, %v1191
      %v1201 = vmul.f32 %v1173, %v1195
      %v1202 = vmul.f32 %v1174, %v1191
      %v1203 = vmul.f32 %v1175, %v1195
      %v1204 = vmul.f32 %v1176, %v1191
      %v1205 = vmul.f32 %v1177, %v1195
      %v1206 = vmul.f32 %v1178, %v1191
      %v1207 = vmul.f32 %v1179, %v1195
      %v1208 = vmul.f32 %v1180, %v1191
      %v1209 = vmul.f32 %v1181, %v1195
      %v1210 = vmul.f32 %v1182, %v1191
      %v1211 = vmul.f32 %v1183, %v1195
      %v1212 = vmul.f32 %v1184, %v1191
      %v1213 = vmul.f32 %v1185, %v1195
      %v1214 = vpack.c.bf16 %v1200, %v1198
      %v1215 = vpack.c.bf16 %v1201, %v1199
      %v1216 = vpack.c.bf16 %v1204, %v1202
      %v1217 = vpack.c.bf16 %v1205, %v1203
      %v1218 = vpack.c.bf16 %v1208, %v1206
      %v1219 = vpack.c.bf16 %v1209, %v1207
      %v1220 = vpack.c.bf16 %v1212, %v1210
      %v1221 = vpack.c.bf16 %v1213, %v1211
      %1222 = vst [vmem:[#allocation3 + $0x20] sm:$0xff] %v1214
      %1223 = vst [vmem:[#allocation3 + $0x28] sm:$0xff] %v1215
      %1224 = vst [vmem:[#allocation3 + $0x58] sm:$0xff] %v1216
      %1225 = vst [vmem:[#allocation3 + $0x60] sm:$0xff] %v1217
      %1226 = vst [vmem:[#allocation3 + $0x90] sm:$0xff] %v1218
      %1227 = vst [vmem:[#allocation3 + $0x98] sm:$0xff] %v1219
      %1228 = vst [vmem:[#allocation3 + $0xc8] sm:$0xff] %v1220
      %1229 = vst [vmem:[#allocation3 + $0xd0] sm:$0xff] %v1221
      %v1230 = vld [vmem:[%s3] sm:$0xf]
      %v1231 = vld [vmem:[%s3 + $0x14] sm:$0xf]
      %v1232 = vld [vmem:[%s3 + $0x28] sm:$0xf]
      %v1233 = vld [vmem:[%s3 + $0x3c] sm:$0xf]
      %v1234 = vld [vmem:[%s3 + $0x50] sm:$0xf]
      %v1235 = vld [vmem:[%s3 + $0x64] sm:$0xf]
      %v1236 = vld [vmem:[%s3 + $0x78] sm:$0xf]
      %v1237 = vld [vmem:[%s3 + $0x8c] sm:$0xf]
      %v1238 = vld [vmem:[#allocation3] sm:$0xff]
      %v1239 = vld [vmem:[#allocation3 + $0x8] sm:$0xff]
      %v1240 = vld [vmem:[#allocation3 + $0x10] sm:$0xff]
      %v1241 = vld [vmem:[#allocation3 + $0x18] sm:$0xff]
      %v1242 = vld [vmem:[#allocation3 + $0x38] sm:$0xff]
      %v1243 = vld [vmem:[#allocation3 + $0x40] sm:$0xff]
      %v1244 = vld [vmem:[#allocation3 + $0x48] sm:$0xff]
      %v1245 = vld [vmem:[#allocation3 + $0x50] sm:$0xff]
      %v1246 = vld [vmem:[#allocation3 + $0x70] sm:$0xff]
      %v1247 = vld [vmem:[#allocation3 + $0x78] sm:$0xff]
      %v1248 = vld [vmem:[#allocation3 + $0x80] sm:$0xff]
      %v1249 = vld [vmem:[#allocation3 + $0x88] sm:$0xff]
      %v1250 = vld [vmem:[#allocation3 + $0xa8] sm:$0xff]
      %v1251 = vld [vmem:[#allocation3 + $0xb0] sm:$0xff]
      %v1252 = vld [vmem:[#allocation3 + $0xb8] sm:$0xff]
      %v1253 = vld [vmem:[#allocation3 + $0xc0] sm:$0xff]
      %v1262 = vunpack.c.l.b16 %v1230
      %v1263 = vunpack.c.l.b16 %v1231
      %v1264 = vunpack.c.l.b16 %v1232
      %v1265 = vunpack.c.l.b16 %v1233
      %v1266 = vunpack.c.l.b16 %v1234
      %v1267 = vunpack.c.l.b16 %v1235
      %v1268 = vunpack.c.l.b16 %v1236
      %v1269 = vunpack.c.l.b16 %v1237
      %v1270 = vpack.c.b16 %v1263, %v1262
      %v1271 = vpack.c.b16 %v1265, %v1264
      %v1272 = vpack.c.b16 %v1267, %v1266
      %v1273 = vpack.c.b16 %v1269, %v1268
      %1274 = vrot.lane.b32.xlu0 %v1270, 64
      %v1275 = vpop.permute.xlu0 %1274
      %1276 = vrot.lane.b32.xlu0 %v1271, 64
      %v1277 = vpop.permute.xlu0 %1276
      %1278 = vrot.lane.b32.xlu0 %v1272, 64
      %v1279 = vpop.permute.xlu0 %1278
      %1280 = vrot.lane.b32.xlu0 %v1273, 64
      %v1281 = vpop.permute.xlu0 %1280
      %1298 = vrot.lane.b32.xlu0 %v1238, 32
      %v1299 = vpop.permute.xlu0 %1298
      %1300 = vrot.lane.b32.xlu0 %v1239, 32
      %v1301 = vpop.permute.xlu0 %1300
      %1302 = vrot.lane.b32.xlu0 %v1240, 32
      %v1303 = vpop.permute.xlu0 %1302
      %1304 = vrot.lane.b32.xlu0 %v1241, 32
      %v1305 = vpop.permute.xlu0 %1304
      %1306 = vrot.lane.b32.xlu0 %v1242, 32
      %v1307 = vpop.permute.xlu0 %1306
      %1308 = vrot.lane.b32.xlu0 %v1243, 32
      %v1309 = vpop.permute.xlu0 %1308
      %1310 = vrot.lane.b32.xlu0 %v1244, 32
      %v1311 = vpop.permute.xlu0 %1310
      %1312 = vrot.lane.b32.xlu0 %v1245, 32
      %v1313 = vpop.permute.xlu0 %1312
      %1314 = vrot.lane.b32.xlu0 %v1246, 32
      %v1315 = vpop.permute.xlu0 %1314
      %1316 = vrot.lane.b32.xlu0 %v1247, 32
      %v1317 = vpop.permute.xlu0 %1316
      %1318 = vrot.lane.b32.xlu0 %v1248, 32
      %v1319 = vpop.permute.xlu0 %1318
      %1320 = vrot.lane.b32.xlu0 %v1249, 32
      %v1321 = vpop.permute.xlu0 %1320
      %1322 = vrot.lane.b32.xlu0 %v1250, 32
      %v1323 = vpop.permute.xlu0 %1322
      %1324 = vrot.lane.b32.xlu0 %v1251, 32
      %v1325 = vpop.permute.xlu0 %1324
      %1326 = vrot.lane.b32.xlu0 %v1252, 32
      %v1327 = vpop.permute.xlu0 %1326
      %1328 = vrot.lane.b32.xlu0 %v1253, 32
      %v1329 = vpop.permute.xlu0 %1328
      %vm1330 = vcmask 261120
      %v1331 = vsel %vm1330, %v1299, %v1301
      %v1332 = vsel %vm1330, %v1301, %v1303
      %v1333 = vsel %vm1330, %v1303, %v1305
      %v1334 = vsel %vm1330, %v1307, %v1309
      %v1335 = vsel %vm1330, %v1309, %v1311
      %v1336 = vsel %vm1330, %v1311, %v1313
      %v1337 = vsel %vm1330, %v1315, %v1317
      %v1338 = vsel %vm1330, %v1317, %v1319
      %v1339 = vsel %vm1330, %v1319, %v1321
      %v1340 = vsel %vm1330, %v1323, %v1325
      %v1341 = vsel %vm1330, %v1325, %v1327
      %v1342 = vsel %vm1330, %v1327, %v1329
      %v1356 = vsel %vm408, %v1275, 0
      %v1359 = vsel %vm408, %v1277, 0
      %v1362 = vsel %vm408, %v1279, 0
      %v1365 = vsel %vm408, %v1281, 0
      %1367 = vmatprep.subr.bf16.mxu0 %v1332
      %1368 = vmatpush1.bf16.msra.mxu0 %v1331
      %1369 = vmatprep.subr.bf16.mxu0 %v1335
      %1370 = vmatpush1.bf16.msra.mxu0 %v1334
      %1371 = vmatprep.subr.bf16.mxu0 %v1338
      %1372 = vmatpush1.bf16.msra.mxu0 %v1337
      %1373 = vmatprep.subr.bf16.mxu0 %v1341
      %1374 = vmatpush1.bf16.msra.mxu0 %v1340
      %1375 = vmatprep.subr.bf16.mxu0 0
      %1376 = vmatpush1.bf16.msra.mxu0 0
      %1377 = vmatprep.subr.bf16.mxu0 0
      %1378 = vmatpush1.bf16.msra.mxu0 0
      %1379 = vmatprep.subr.bf16.mxu0 0
      %1380 = vmatpush1.bf16.msra.mxu0 0
      %1381 = vmatprep.subr.bf16.mxu0 0
      %1382 = vmatpush1.bf16.msra.mxu0 0
      %1383 = vmatprep.subr.bf16.mxu0 0
      %1384 = vmatpush1.bf16.msra.mxu0 0
      %1385 = vmatprep.subr.bf16.mxu0 0
      %1386 = vmatpush1.bf16.msra.mxu0 0
      %1387 = vmatprep.subr.bf16.mxu0 0
      %1388 = vmatpush1.bf16.msra.mxu0 0
      %1389 = vmatprep.subr.bf16.mxu0 0
      %1390 = vmatpush1.bf16.msra.mxu0 0
      %1391 = vmatprep.subr.bf16.mxu0 0
      %1392 = vmatpush1.bf16.msra.mxu0 0
      %1393 = vmatprep.subr.bf16.mxu0 0
      %1394 = vmatpush1.bf16.msra.mxu0 0
      %1395 = vmatprep.subr.bf16.mxu0 0
      %1396 = vmatpush1.bf16.msra.mxu0 0
      %1397 = vmatprep.subr.bf16.mxu0 0
      %1398 = vmatpush1.bf16.msra.mxu0 0
      %1399 = vmatprep.mubr.bf16.mxu0 0
      %1400 = vmatmul.mubr.bf16.gmra.mrb[0].mxu0 %v1356
      %v1401 = vpop.f32.mrb[0].mxu0
      %v1402 = vadd.f32 0.0, %v1401
      %v1403 = vpop.f32.mrb[0].mxu0
      %v1404 = vadd.f32 0.0, %v1403
      %v1405 = vpop.f32.mrb[0].mxu0
      %v1406 = vadd.f32 0.0, %v1405
      %v1407 = vpop.f32.mrb[0].mxu0
      %v1408 = vadd.f32 0.0, %v1407
      %1409 = vmatprep.mubr.bf16.mxu0 0
      %1410 = vmatmul.mubr.bf16.gmra.mrb[0].mxu0 %v1359
      %v1411 = vpop.f32.mrb[0].mxu0
      %v1412 = vadd.f32 0.0, %v1411
      %v1413 = vpop.f32.mrb[0].mxu0
      %v1414 = vadd.f32 0.0, %v1413
      %v1415 = vpop.f32.mrb[0].mxu0
      %v1416 = vadd.f32 0.0, %v1415
      %v1417 = vpop.f32.mrb[0].mxu0
      %v1418 = vadd.f32 0.0, %v1417
      %1419 = vmatprep.mubr.bf16.mxu0 0
      %1420 = vmatmul.mubr.bf16.gmra.mrb[0].mxu0 %v1362
      %v1421 = vpop.f32.mrb[0].mxu0
      %v1422 = vadd.f32 0.0, %v1421
      %v1423 = vpop.f32.mrb[0].mxu0
      %v1424 = vadd.f32 0.0, %v1423
      %v1425 = vpop.f32.mrb[0].mxu0
      %v1426 = vadd.f32 0.0, %v1425
      %v1427 = vpop.f32.mrb[0].mxu0
      %v1428 = vadd.f32 0.0, %v1427
      %1429 = vmatprep.mubr.bf16.mxu0 0
      %1430 = vmatmul.mubr.bf16.gmra.mrb[0].mxu0 %v1365
      %v1431 = vpop.f32.mrb[0].mxu0
      %v1432 = vadd.f32 0.0, %v1431
      %v1433 = vpop.f32.mrb[0].mxu0
      %v1434 = vadd.f32 0.0, %v1433
      %v1435 = vpop.f32.mrb[0].mxu0
      %v1436 = vadd.f32 0.0, %v1435
      %v1437 = vpop.f32.mrb[0].mxu0
      %v1438 = vadd.f32 0.0, %v1437
      %1439 = vdwg.mxu0
      %1440 = vmatprep.subr.bf16.mxu0 0
      %1441 = vmatpush1.bf16.msra.mxu0 %v1333
      %1442 = vmatprep.subr.bf16.mxu0 0
      %1443 = vmatpush1.bf16.msra.mxu0 %v1336
      %1444 = vmatprep.subr.bf16.mxu0 0
      %1445 = vmatpush1.bf16.msra.mxu0 %v1339
      %1446 = vmatprep.subr.bf16.mxu0 0
      %1447 = vmatpush1.bf16.msra.mxu0 %v1342
      %1448 = vmatprep.subr.bf16.mxu0 0
      %1449 = vmatpush1.bf16.msra.mxu0 0
      %1450 = vmatprep.subr.bf16.mxu0 0
      %1451 = vmatpush1.bf16.msra.mxu0 0
      %1452 = vmatprep.subr.bf16.mxu0 0
      %1453 = vmatpush1.bf16.msra.mxu0 0
      %1454 = vmatprep.subr.bf16.mxu0 0
      %1455 = vmatpush1.bf16.msra.mxu0 0
      %1456 = vmatprep.subr.bf16.mxu0 0
      %1457 = vmatpush1.bf16.msra.mxu0 0
      %1458 = vmatprep.subr.bf16.mxu0 0
      %1459 = vmatpush1.bf16.msra.mxu0 0
      %1460 = vmatprep.subr.bf16.mxu0 0
      %1461 = vmatpush1.bf16.msra.mxu0 0
      %1462 = vmatprep.subr.bf16.mxu0 0
      %1463 = vmatpush1.bf16.msra.mxu0 0
      %1464 = vmatprep.subr.bf16.mxu0 0
      %1465 = vmatpush1.bf16.msra.mxu0 0
      %1466 = vmatprep.subr.bf16.mxu0 0
      %1467 = vmatpush1.bf16.msra.mxu0 0
      %1468 = vmatprep.subr.bf16.mxu0 0
      %1469 = vmatpush1.bf16.msra.mxu0 0
      %1470 = vmatprep.subr.bf16.mxu0 0
      %1471 = vmatpush1.bf16.msra.mxu0 0
      %1472 = vmatprep.mubr.bf16.mxu0 0
      %1473 = vmatmul.mubr.bf16.gmra.mrb[0].mxu0 %v1356
      %v1474 = vpop.f32.mrb[0].mxu0
      %v1475 = vadd.f32 0.0, %v1474
      %v1476 = vpop.f32.mrb[0].mxu0
      %v1477 = vpop.f32.mrb[0].mxu0
      %v1478 = vadd.f32 0.0, %v1477
      %v1479 = vpop.f32.mrb[0].mxu0
      %1480 = vmatprep.mubr.bf16.mxu0 0
      %1481 = vmatmul.mubr.bf16.gmra.mrb[0].mxu0 %v1359
      %v1482 = vpop.f32.mrb[0].mxu0
      %v1483 = vadd.f32 0.0, %v1482
      %v1484 = vpop.f32.mrb[0].mxu0
      %v1485 = vpop.f32.mrb[0].mxu0
      %v1486 = vadd.f32 0.0, %v1485
      %v1487 = vpop.f32.mrb[0].mxu0
      %1488 = vmatprep.mubr.bf16.mxu0 0
      %1489 = vmatmul.mubr.bf16.gmra.mrb[0].mxu0 %v1362
      %v1490 = vpop.f32.mrb[0].mxu0
      %v1491 = vadd.f32 0.0, %v1490
      %v1492 = vpop.f32.mrb[0].mxu0
      %v1493 = vpop.f32.mrb[0].mxu0
      %v1494 = vadd.f32 0.0, %v1493
      %v1495 = vpop.f32.mrb[0].mxu0
      %1496 = vmatprep.mubr.bf16.mxu0 0
      %1497 = vmatmul.mubr.bf16.gmra.mrb[0].mxu0 %v1365
      %v1498 = vpop.f32.mrb[0].mxu0
      %v1499 = vadd.f32 0.0, %v1498
      %v1500 = vpop.f32.mrb[0].mxu0
      %v1501 = vpop.f32.mrb[0].mxu0
      %v1502 = vadd.f32 0.0, %v1501
      %v1503 = vpop.f32.mrb[0].mxu0
      %1504 = vdwg.mxu0
      %1505 = vrot.lane.b32.xlu0 %v1238, 33
      %v1506 = vpop.permute.xlu0 %1505
      %1507 = vrot.lane.b32.xlu0 %v1239, 33
      %v1508 = vpop.permute.xlu0 %1507
      %1509 = vrot.lane.b32.xlu0 %v1240, 33
      %v1510 = vpop.permute.xlu0 %1509
      %1511 = vrot.lane.b32.xlu0 %v1241, 33
      %v1512 = vpop.permute.xlu0 %1511
      %1513 = vrot.lane.b32.xlu0 %v1242, 33
      %v1514 = vpop.permute.xlu0 %1513
      %1515 = vrot.lane.b32.xlu0 %v1243, 33
      %v1516 = vpop.permute.xlu0 %1515
      %1517 = vrot.lane.b32.xlu0 %v1244, 33
      %v1518 = vpop.permute.xlu0 %1517
      %1519 = vrot.lane.b32.xlu0 %v1245, 33
      %v1520 = vpop.permute.xlu0 %1519
      %1521 = vrot.lane.b32.xlu0 %v1246, 33
      %v1522 = vpop.permute.xlu0 %1521
      %1523 = vrot.lane.b32.xlu0 %v1247, 33
      %v1524 = vpop.permute.xlu0 %1523
      %1525 = vrot.lane.b32.xlu0 %v1248, 33
      %v1526 = vpop.permute.xlu0 %1525
      %1527 = vrot.lane.b32.xlu0 %v1249, 33
      %v1528 = vpop.permute.xlu0 %1527
      %1529 = vrot.lane.b32.xlu0 %v1250, 33
      %v1530 = vpop.permute.xlu0 %1529
      %1531 = vrot.lane.b32.xlu0 %v1251, 33
      %v1532 = vpop.permute.xlu0 %1531
      %1533 = vrot.lane.b32.xlu0 %v1252, 33
      %v1534 = vpop.permute.xlu0 %1533
      %1535 = vrot.lane.b32.xlu0 %v1253, 33
      %v1536 = vpop.permute.xlu0 %1535
      %vm1537 = vcmask 269312
      %v1538 = vsel %vm1537, %v1506, %v1508
      %v1539 = vsel %vm1537, %v1508, %v1510
      %v1540 = vsel %vm1537, %v1510, %v1512
      %v1541 = vsel %vm1537, %v1514, %v1516
      %v1542 = vsel %vm1537, %v1516, %v1518
      %v1543 = vsel %vm1537, %v1518, %v1520
      %v1544 = vsel %vm1537, %v1522, %v1524
      %v1545 = vsel %vm1537, %v1524, %v1526
      %v1546 = vsel %vm1537, %v1526, %v1528
      %v1547 = vsel %vm1537, %v1530, %v1532
      %v1548 = vsel %vm1537, %v1532, %v1534
      %v1549 = vsel %vm1537, %v1534, %v1536
      %v1563 = vsel %vm408, %v1270, 0
      %v1566 = vsel %vm408, %v1271, 0
      %v1569 = vsel %vm408, %v1272, 0
      %v1572 = vsel %vm408, %v1273, 0
      %1574 = vmatprep.subr.bf16.mxu0 %v1539
      %1575 = vmatpush1.bf16.msra.mxu0 %v1538
      %1576 = vmatprep.subr.bf16.mxu0 %v1542
      %1577 = vmatpush1.bf16.msra.mxu0 %v1541
      %1578 = vmatprep.subr.bf16.mxu0 %v1545
      %1579 = vmatpush1.bf16.msra.mxu0 %v1544
      %1580 = vmatprep.subr.bf16.mxu0 %v1548
      %1581 = vmatpush1.bf16.msra.mxu0 %v1547
      %1582 = vmatprep.subr.bf16.mxu0 0
      %1583 = vmatpush1.bf16.msra.mxu0 0
      %1584 = vmatprep.subr.bf16.mxu0 0
      %1585 = vmatpush1.bf16.msra.mxu0 0
      %1586 = vmatprep.subr.bf16.mxu0 0
      %1587 = vmatpush1.bf16.msra.mxu0 0
      %1588 = vmatprep.subr.bf16.mxu0 0
      %1589 = vmatpush1.bf16.msra.mxu0 0
      %1590 = vmatprep.subr.bf16.mxu0 0
      %1591 = vmatpush1.bf16.msra.mxu0 0
      %1592 = vmatprep.subr.bf16.mxu0 0
      %1593 = vmatpush1.bf16.msra.mxu0 0
      %1594 = vmatprep.subr.bf16.mxu0 0
      %1595 = vmatpush1.bf16.msra.mxu0 0
      %1596 = vmatprep.subr.bf16.mxu0 0
      %1597 = vmatpush1.bf16.msra.mxu0 0
      %1598 = vmatprep.subr.bf16.mxu0 0
      %1599 = vmatpush1.bf16.msra.mxu0 0
      %1600 = vmatprep.subr.bf16.mxu0 0
      %1601 = vmatpush1.bf16.msra.mxu0 0
      %1602 = vmatprep.subr.bf16.mxu0 0
      %1603 = vmatpush1.bf16.msra.mxu0 0
      %1604 = vmatprep.subr.bf16.mxu0 0
      %1605 = vmatpush1.bf16.msra.mxu0 0
      %1606 = vmatprep.mubr.bf16.mxu0 0
      %1607 = vmatmul.mubr.bf16.gmra.mrb[0].mxu0 %v1563
      %v1608 = vpop.f32.mrb[0].mxu0
      %v1609 = vadd.f32 %v1402, %v1608
      %v1610 = vpop.f32.mrb[0].mxu0
      %v1611 = vadd.f32 %v1404, %v1610
      %v1612 = vpop.f32.mrb[0].mxu0
      %v1613 = vadd.f32 %v1406, %v1612
      %v1614 = vpop.f32.mrb[0].mxu0
      %v1615 = vadd.f32 %v1408, %v1614
      %1616 = vmatprep.mubr.bf16.mxu0 0
      %1617 = vmatmul.mubr.bf16.gmra.mrb[0].mxu0 %v1566
      %v1618 = vpop.f32.mrb[0].mxu0
      %v1619 = vadd.f32 %v1412, %v1618
      %v1620 = vpop.f32.mrb[0].mxu0
      %v1621 = vadd.f32 %v1414, %v1620
      %v1622 = vpop.f32.mrb[0].mxu0
      %v1623 = vadd.f32 %v1416, %v1622
      %v1624 = vpop.f32.mrb[0].mxu0
      %v1625 = vadd.f32 %v1418, %v1624
      %1626 = vmatprep.mubr.bf16.mxu0 0
      %1627 = vmatmul.mubr.bf16.gmra.mrb[0].mxu0 %v1569
      %v1628 = vpop.f32.mrb[0].mxu0
      %v1629 = vadd.f32 %v1422, %v1628
      %v1630 = vpop.f32.mrb[0].mxu0
      %v1631 = vadd.f32 %v1424, %v1630
      %v1632 = vpop.f32.mrb[0].mxu0
      %v1633 = vadd.f32 %v1426, %v1632
      %v1634 = vpop.f32.mrb[0].mxu0
      %v1635 = vadd.f32 %v1428, %v1634
      %1636 = vmatprep.mubr.bf16.mxu0 0
      %1637 = vmatmul.mubr.bf16.gmra.mrb[0].mxu0 %v1572
      %v1638 = vpop.f32.mrb[0].mxu0
      %v1639 = vadd.f32 %v1432, %v1638
      %v1640 = vpop.f32.mrb[0].mxu0
      %v1641 = vadd.f32 %v1434, %v1640
      %v1642 = vpop.f32.mrb[0].mxu0
      %v1643 = vadd.f32 %v1436, %v1642
      %v1644 = vpop.f32.mrb[0].mxu0
      %v1645 = vadd.f32 %v1438, %v1644
      %1646 = vdwg.mxu0
      %1647 = vmatprep.subr.bf16.mxu0 0
      %1648 = vmatpush1.bf16.msra.mxu0 %v1540
      %1649 = vmatprep.subr.bf16.mxu0 0
      %1650 = vmatpush1.bf16.msra.mxu0 %v1543
      %1651 = vmatprep.subr.bf16.mxu0 0
      %1652 = vmatpush1.bf16.msra.mxu0 %v1546
      %1653 = vmatprep.subr.bf16.mxu0 0
      %1654 = vmatpush1.bf16.msra.mxu0 %v1549
      %1655 = vmatprep.subr.bf16.mxu0 0
      %1656 = vmatpush1.bf16.msra.mxu0 0
      %1657 = vmatprep.subr.bf16.mxu0 0
      %1658 = vmatpush1.bf16.msra.mxu0 0
      %1659 = vmatprep.subr.bf16.mxu0 0
      %1660 = vmatpush1.bf16.msra.mxu0 0
      %1661 = vmatprep.subr.bf16.mxu0 0
      %1662 = vmatpush1.bf16.msra.mxu0 0
      %1663 = vmatprep.subr.bf16.mxu0 0
      %1664 = vmatpush1.bf16.msra.mxu0 0
      %1665 = vmatprep.subr.bf16.mxu0 0
      %1666 = vmatpush1.bf16.msra.mxu0 0
      %1667 = vmatprep.subr.bf16.mxu0 0
      %1668 = vmatpush1.bf16.msra.mxu0 0
      %1669 = vmatprep.subr.bf16.mxu0 0
      %1670 = vmatpush1.bf16.msra.mxu0 0
      %1671 = vmatprep.subr.bf16.mxu0 0
      %1672 = vmatpush1.bf16.msra.mxu0 0
      %1673 = vmatprep.subr.bf16.mxu0 0
      %1674 = vmatpush1.bf16.msra.mxu0 0
      %1675 = vmatprep.subr.bf16.mxu0 0
      %1676 = vmatpush1.bf16.msra.mxu0 0
      %1677 = vmatprep.subr.bf16.mxu0 0
      %1678 = vmatpush1.bf16.msra.mxu0 0
      %1679 = vmatprep.mubr.bf16.mxu0 0
      %1680 = vmatmul.mubr.bf16.gmra.mrb[0].mxu0 %v1563
      %v1681 = vpop.f32.mrb[0].mxu0
      %v1682 = vadd.f32 %v1475, %v1681
      %v1683 = vpop.f32.mrb[0].mxu0
      %v1684 = vpop.f32.mrb[0].mxu0
      %v1685 = vadd.f32 %v1478, %v1684
      %v1686 = vpop.f32.mrb[0].mxu0
      %1687 = vmatprep.mubr.bf16.mxu0 0
      %1688 = vmatmul.mubr.bf16.gmra.mrb[0].mxu0 %v1566
      %v1689 = vpop.f32.mrb[0].mxu0
      %v1690 = vadd.f32 %v1483, %v1689
      %v1691 = vpop.f32.mrb[0].mxu0
      %v1692 = vpop.f32.mrb[0].mxu0
      %v1693 = vadd.f32 %v1486, %v1692
      %v1694 = vpop.f32.mrb[0].mxu0
      %1695 = vmatprep.mubr.bf16.mxu0 0
      %1696 = vmatmul.mubr.bf16.gmra.mrb[0].mxu0 %v1569
      %v1697 = vpop.f32.mrb[0].mxu0
      %v1698 = vadd.f32 %v1491, %v1697
      %v1699 = vpop.f32.mrb[0].mxu0
      %v1700 = vpop.f32.mrb[0].mxu0
      %v1701 = vadd.f32 %v1494, %v1700
      %v1702 = vpop.f32.mrb[0].mxu0
      %1703 = vmatprep.mubr.bf16.mxu0 0
      %1704 = vmatmul.mubr.bf16.gmra.mrb[0].mxu0 %v1572
      %v1705 = vpop.f32.mrb[0].mxu0
      %v1706 = vadd.f32 %v1499, %v1705
      %v1707 = vpop.f32.mrb[0].mxu0
      %v1708 = vpop.f32.mrb[0].mxu0
      %v1709 = vadd.f32 %v1502, %v1708
      %v1710 = vpop.f32.mrb[0].mxu0
      %1711 = vdwg.mxu0
      %v1712 = vld [vmem:[%s3 + $0x4] sm:$0xf]
      %v1713 = vld [vmem:[%s3 + $0x18] sm:$0xf]
      %v1714 = vld [vmem:[%s3 + $0x2c] sm:$0xf]
      %v1715 = vld [vmem:[%s3 + $0x40] sm:$0xf]
      %v1716 = vld [vmem:[%s3 + $0x54] sm:$0xf]
      %v1717 = vld [vmem:[%s3 + $0x68] sm:$0xf]
      %v1718 = vld [vmem:[%s3 + $0x7c] sm:$0xf]
      %v1719 = vld [vmem:[%s3 + $0x90] sm:$0xf]
      %v1728 = vunpack.c.l.b16 %v1712
      %v1729 = vunpack.c.l.b16 %v1713
      %v1730 = vunpack.c.l.b16 %v1714
      %v1731 = vunpack.c.l.b16 %v1715
      %v1732 = vunpack.c.l.b16 %v1716
      %v1733 = vunpack.c.l.b16 %v1717
      %v1734 = vunpack.c.l.b16 %v1718
      %v1735 = vunpack.c.l.b16 %v1719
      %v1736 = vpack.c.b16 %v1729, %v1728
      %v1737 = vpack.c.b16 %v1731, %v1730
      %v1738 = vpack.c.b16 %v1733, %v1732
      %v1739 = vpack.c.b16 %v1735, %v1734
      %1740 = vrot.lane.b32.xlu0 %v1238, 31
      %v1741 = vpop.permute.xlu0 %1740
      %1742 = vrot.lane.b32.xlu0 %v1239, 31
      %v1743 = vpop.permute.xlu0 %1742
      %1744 = vrot.lane.b32.xlu0 %v1240, 31
      %v1745 = vpop.permute.xlu0 %1744
      %1746 = vrot.lane.b32.xlu0 %v1241, 31
      %v1747 = vpop.permute.xlu0 %1746
      %1748 = vrot.lane.b32.xlu0 %v1242, 31
      %v1749 = vpop.permute.xlu0 %1748
      %1750 = vrot.lane.b32.xlu0 %v1243, 31
      %v1751 = vpop.permute.xlu0 %1750
      %1752 = vrot.lane.b32.xlu0 %v1244, 31
      %v1753 = vpop.permute.xlu0 %1752
      %1754 = vrot.lane.b32.xlu0 %v1245, 31
      %v1755 = vpop.permute.xlu0 %1754
      %1756 = vrot.lane.b32.xlu0 %v1246, 31
      %v1757 = vpop.permute.xlu0 %1756
      %1758 = vrot.lane.b32.xlu0 %v1247, 31
      %v1759 = vpop.permute.xlu0 %1758
      %1760 = vrot.lane.b32.xlu0 %v1248, 31
      %v1761 = vpop.permute.xlu0 %1760
      %1762 = vrot.lane.b32.xlu0 %v1249, 31
      %v1763 = vpop.permute.xlu0 %1762
      %1764 = vrot.lane.b32.xlu0 %v1250, 31
      %v1765 = vpop.permute.xlu0 %1764
      %1766 = vrot.lane.b32.xlu0 %v1251, 31
      %v1767 = vpop.permute.xlu0 %1766
      %1768 = vrot.lane.b32.xlu0 %v1252, 31
      %v1769 = vpop.permute.xlu0 %1768
      %1770 = vrot.lane.b32.xlu0 %v1253, 31
      %v1771 = vpop.permute.xlu0 %1770
      %vm1772 = vcmask 252928
      %v1773 = vsel %vm1772, %v1741, %v1743
      %v1774 = vsel %vm1772, %v1743, %v1745
      %v1775 = vsel %vm1772, %v1745, %v1747
      %v1776 = vsel %vm1772, %v1749, %v1751
      %v1777 = vsel %vm1772, %v1751, %v1753
      %v1778 = vsel %vm1772, %v1753, %v1755
      %v1779 = vsel %vm1772, %v1757, %v1759
      %v1780 = vsel %vm1772, %v1759, %v1761
      %v1781 = vsel %vm1772, %v1761, %v1763
      %v1782 = vsel %vm1772, %v1765, %v1767
      %v1783 = vsel %vm1772, %v1767, %v1769
      %v1784 = vsel %vm1772, %v1769, %v1771
      %v1798 = vsel %vm408, %v1736, 0
      %v1801 = vsel %vm408, %v1737, 0
      %v1804 = vsel %vm408, %v1738, 0
      %v1807 = vsel %vm408, %v1739, 0
      %1809 = vmatprep.subr.bf16.mxu0 %v1774
      %1810 = vmatpush1.bf16.msra.mxu0 %v1773
      %1811 = vmatprep.subr.bf16.mxu0 %v1777
      %1812 = vmatpush1.bf16.msra.mxu0 %v1776
      %1813 = vmatprep.subr.bf16.mxu0 %v1780
      %1814 = vmatpush1.bf16.msra.mxu0 %v1779
      %1815 = vmatprep.subr.bf16.mxu0 %v1783
      %1816 = vmatpush1.bf16.msra.mxu0 %v1782
      %1817 = vmatprep.subr.bf16.mxu0 0
      %1818 = vmatpush1.bf16.msra.mxu0 0
      %1819 = vmatprep.subr.bf16.mxu0 0
      %1820 = vmatpush1.bf16.msra.mxu0 0
      %1821 = vmatprep.subr.bf16.mxu0 0
      %1822 = vmatpush1.bf16.msra.mxu0 0
      %1823 = vmatprep.subr.bf16.mxu0 0
      %1824 = vmatpush1.bf16.msra.mxu0 0
      %1825 = vmatprep.subr.bf16.mxu0 0
      %1826 = vmatpush1.bf16.msra.mxu0 0
      %1827 = vmatprep.subr.bf16.mxu0 0
      %1828 = vmatpush1.bf16.msra.mxu0 0
      %1829 = vmatprep.subr.bf16.mxu0 0
      %1830 = vmatpush1.bf16.msra.mxu0 0
      %1831 = vmatprep.subr.bf16.mxu0 0
      %1832 = vmatpush1.bf16.msra.mxu0 0
      %1833 = vmatprep.subr.bf16.mxu0 0
      %1834 = vmatpush1.bf16.msra.mxu0 0
      %1835 = vmatprep.subr.bf16.mxu0 0
      %1836 = vmatpush1.bf16.msra.mxu0 0
      %1837 = vmatprep.subr.bf16.mxu0 0
      %1838 = vmatpush1.bf16.msra.mxu0 0
      %1839 = vmatprep.subr.bf16.mxu0 0
      %1840 = vmatpush1.bf16.msra.mxu0 0
      %1841 = vmatprep.mubr.bf16.mxu0 0
      %1842 = vmatmul.mubr.bf16.gmra.mrb[0].mxu0 %v1798
      %v1843 = vpop.f32.mrb[0].mxu0
      %v1844 = vadd.f32 0.0, %v1843
      %v1845 = vpop.f32.mrb[0].mxu0
      %v1846 = vadd.f32 0.0, %v1845
      %v1847 = vpop.f32.mrb[0].mxu0
      %v1848 = vadd.f32 0.0, %v1847
      %v1849 = vpop.f32.mrb[0].mxu0
      %v1850 = vadd.f32 0.0, %v1849
      %1851 = vmatprep.mubr.bf16.mxu0 0
      %1852 = vmatmul.mubr.bf16.gmra.mrb[0].mxu0 %v1801
      %v1853 = vpop.f32.mrb[0].mxu0
      %v1854 = vadd.f32 0.0, %v1853
      %v1855 = vpop.f32.mrb[0].mxu0
      %v1856 = vadd.f32 0.0, %v1855
      %v1857 = vpop.f32.mrb[0].mxu0
      %v1858 = vadd.f32 0.0, %v1857
      %v1859 = vpop.f32.mrb[0].mxu0
      %v1860 = vadd.f32 0.0, %v1859
      %1861 = vmatprep.mubr.bf16.mxu0 0
      %1862 = vmatmul.mubr.bf16.gmra.mrb[0].mxu0 %v1804
      %v1863 = vpop.f32.mrb[0].mxu0
      %v1864 = vadd.f32 0.0, %v1863
      %v1865 = vpop.f32.mrb[0].mxu0
      %v1866 = vadd.f32 0.0, %v1865
      %v1867 = vpop.f32.mrb[0].mxu0
      %v1868 = vadd.f32 0.0, %v1867
      %v1869 = vpop.f32.mrb[0].mxu0
      %v1870 = vadd.f32 0.0, %v1869
      %1871 = vmatprep.mubr.bf16.mxu0 0
      %1872 = vmatmul.mubr.bf16.gmra.mrb[0].mxu0 %v1807
      %v1873 = vpop.f32.mrb[0].mxu0
      %v1874 = vadd.f32 0.0, %v1873
      %v1875 = vpop.f32.mrb[0].mxu0
      %v1876 = vadd.f32 0.0, %v1875
      %v1877 = vpop.f32.mrb[0].mxu0
      %v1878 = vadd.f32 0.0, %v1877
      %v1879 = vpop.f32.mrb[0].mxu0
      %v1880 = vadd.f32 0.0, %v1879
      %1881 = vdwg.mxu0
      %1882 = vmatprep.subr.bf16.mxu0 0
      %1883 = vmatpush1.bf16.msra.mxu0 %v1775
      %1884 = vmatprep.subr.bf16.mxu0 0
      %1885 = vmatpush1.bf16.msra.mxu0 %v1778
      %1886 = vmatprep.subr.bf16.mxu0 0
      %1887 = vmatpush1.bf16.msra.mxu0 %v1781
      %1888 = vmatprep.subr.bf16.mxu0 0
      %1889 = vmatpush1.bf16.msra.mxu0 %v1784
      %1890 = vmatprep.subr.bf16.mxu0 0
      %1891 = vmatpush1.bf16.msra.mxu0 0
      %1892 = vmatprep.subr.bf16.mxu0 0
      %1893 = vmatpush1.bf16.msra.mxu0 0
      %1894 = vmatprep.subr.bf16.mxu0 0
      %1895 = vmatpush1.bf16.msra.mxu0 0
      %1896 = vmatprep.subr.bf16.mxu0 0
      %1897 = vmatpush1.bf16.msra.mxu0 0
      %1898 = vmatprep.subr.bf16.mxu0 0
      %1899 = vmatpush1.bf16.msra.mxu0 0
      %1900 = vmatprep.subr.bf16.mxu0 0
      %1901 = vmatpush1.bf16.msra.mxu0 0
      %1902 = vmatprep.subr.bf16.mxu0 0
      %1903 = vmatpush1.bf16.msra.mxu0 0
      %1904 = vmatprep.subr.bf16.mxu0 0
      %1905 = vmatpush1.bf16.msra.mxu0 0
      %1906 = vmatprep.subr.bf16.mxu0 0
      %1907 = vmatpush1.bf16.msra.mxu0 0
      %1908 = vmatprep.subr.bf16.mxu0 0
      %1909 = vmatpush1.bf16.msra.mxu0 0
      %1910 = vmatprep.subr.bf16.mxu0 0
      %1911 = vmatpush1.bf16.msra.mxu0 0
      %1912 = vmatprep.subr.bf16.mxu0 0
      %1913 = vmatpush1.bf16.msra.mxu0 0
      %1914 = vmatprep.mubr.bf16.mxu0 0
      %1915 = vmatmul.mubr.bf16.gmra.mrb[0].mxu0 %v1798
      %v1916 = vpop.f32.mrb[0].mxu0
      %v1917 = vadd.f32 0.0, %v1916
      %v1918 = vpop.f32.mrb[0].mxu0
      %v1919 = vpop.f32.mrb[0].mxu0
      %v1920 = vadd.f32 0.0, %v1919
      %v1921 = vpop.f32.mrb[0].mxu0
      %1922 = vmatprep.mubr.bf16.mxu0 0
      %1923 = vmatmul.mubr.bf16.gmra.mrb[0].mxu0 %v1801
      %v1924 = vpop.f32.mrb[0].mxu0
      %v1925 = vadd.f32 0.0, %v1924
      %v1926 = vpop.f32.mrb[0].mxu0
      %v1927 = vpop.f32.mrb[0].mxu0
      %v1928 = vadd.f32 0.0, %v1927
      %v1929 = vpop.f32.mrb[0].mxu0
      %1930 = vmatprep.mubr.bf16.mxu0 0
      %1931 = vmatmul.mubr.bf16.gmra.mrb[0].mxu0 %v1804
      %v1932 = vpop.f32.mrb[0].mxu0
      %v1933 = vadd.f32 0.0, %v1932
      %v1934 = vpop.f32.mrb[0].mxu0
      %v1935 = vpop.f32.mrb[0].mxu0
      %v1936 = vadd.f32 0.0, %v1935
      %v1937 = vpop.f32.mrb[0].mxu0
      %1938 = vmatprep.mubr.bf16.mxu0 0
      %1939 = vmatmul.mubr.bf16.gmra.mrb[0].mxu0 %v1807
      %v1940 = vpop.f32.mrb[0].mxu0
      %v1941 = vadd.f32 0.0, %v1940
      %v1942 = vpop.f32.mrb[0].mxu0
      %v1943 = vpop.f32.mrb[0].mxu0
      %v1944 = vadd.f32 0.0, %v1943
      %v1945 = vpop.f32.mrb[0].mxu0
      %1946 = vdwg.mxu0
      %v1947 = vadd.f32 %v1609, %v1844
      %v1948 = vadd.f32 %v1611, %v1846
      %v1949 = vadd.f32 %v1682, %v1917
      %v1950 = vadd.f32 %v1613, %v1848
      %v1951 = vadd.f32 %v1615, %v1850
      %v1952 = vadd.f32 %v1685, %v1920
      %v1953 = vadd.f32 %v1619, %v1854
      %v1954 = vadd.f32 %v1621, %v1856
      %v1955 = vadd.f32 %v1690, %v1925
      %v1956 = vadd.f32 %v1623, %v1858
      %v1957 = vadd.f32 %v1625, %v1860
      %v1958 = vadd.f32 %v1693, %v1928
      %v1959 = vadd.f32 %v1629, %v1864
      %v1960 = vadd.f32 %v1631, %v1866
      %v1961 = vadd.f32 %v1698, %v1933
      %v1962 = vadd.f32 %v1633, %v1868
      %v1963 = vadd.f32 %v1635, %v1870
      %v1964 = vadd.f32 %v1701, %v1936
      %v1965 = vadd.f32 %v1639, %v1874
      %v1966 = vadd.f32 %v1641, %v1876
      %v1967 = vadd.f32 %v1706, %v1941
      %v1968 = vadd.f32 %v1643, %v1878
      %v1969 = vadd.f32 %v1645, %v1880
      %v1970 = vadd.f32 %v1709, %v1944
      %1971 = vrot.lane.b32.xlu0 %v1736, 64
      %v1972 = vpop.permute.xlu0 %1971
      %1973 = vrot.lane.b32.xlu0 %v1737, 64
      %v1974 = vpop.permute.xlu0 %1973
      %1975 = vrot.lane.b32.xlu0 %v1738, 64
      %v1976 = vpop.permute.xlu0 %1975
      %1977 = vrot.lane.b32.xlu0 %v1739, 64
      %v1978 = vpop.permute.xlu0 %1977
      %1979 = vrot.lane.b32.xlu0 %v1238, 1
      %v1980 = vpop.permute.xlu0 %1979
      %1981 = vrot.lane.b32.xlu0 %v1239, 1
      %v1982 = vpop.permute.xlu0 %1981
      %1983 = vrot.lane.b32.xlu0 %v1240, 1
      %v1984 = vpop.permute.xlu0 %1983
      %1985 = vrot.lane.b32.xlu0 %v1241, 1
      %v1986 = vpop.permute.xlu0 %1985
      %1987 = vrot.lane.b32.xlu0 %v1242, 1
      %v1988 = vpop.permute.xlu0 %1987
      %1989 = vrot.lane.b32.xlu0 %v1243, 1
      %v1990 = vpop.permute.xlu0 %1989
      %1991 = vrot.lane.b32.xlu0 %v1244, 1
      %v1992 = vpop.permute.xlu0 %1991
      %1993 = vrot.lane.b32.xlu0 %v1245, 1
      %v1994 = vpop.permute.xlu0 %1993
      %1995 = vrot.lane.b32.xlu0 %v1246, 1
      %v1996 = vpop.permute.xlu0 %1995
      %1997 = vrot.lane.b32.xlu0 %v1247, 1
      %v1998 = vpop.permute.xlu0 %1997
      %1999 = vrot.lane.b32.xlu0 %v1248, 1
      %v2000 = vpop.permute.xlu0 %1999
      %2001 = vrot.lane.b32.xlu0 %v1249, 1
      %v2002 = vpop.permute.xlu0 %2001
      %2003 = vrot.lane.b32.xlu0 %v1250, 1
      %v2004 = vpop.permute.xlu0 %2003
      %2005 = vrot.lane.b32.xlu0 %v1251, 1
      %v2006 = vpop.permute.xlu0 %2005
      %2007 = vrot.lane.b32.xlu0 %v1252, 1
      %v2008 = vpop.permute.xlu0 %2007
      %2009 = vrot.lane.b32.xlu0 %v1253, 1
      %v2010 = vpop.permute.xlu0 %2009
      %vm2011 = vcmask 7168
      %v2012 = vsel %vm2011, %v1980, %v1982
      %v2013 = vsel %vm2011, %v1982, %v1984
      %v2014 = vsel %vm2011, %v1984, %v1986
      %v2015 = vsel %vm2011, %v1988, %v1990
      %v2016 = vsel %vm2011, %v1990, %v1992
      %v2017 = vsel %vm2011, %v1992, %v1994
      %v2018 = vsel %vm2011, %v1996, %v1998
      %v2019 = vsel %vm2011, %v1998, %v2000
      %v2020 = vsel %vm2011, %v2000, %v2002
      %v2021 = vsel %vm2011, %v2004, %v2006
      %v2022 = vsel %vm2011, %v2006, %v2008
      %v2023 = vsel %vm2011, %v2008, %v2010
      %v2037 = vsel %vm408, %v1972, 0
      %v2040 = vsel %vm408, %v1974, 0
      %v2043 = vsel %vm408, %v1976, 0
      %v2046 = vsel %vm408, %v1978, 0
      %2048 = vmatprep.subr.bf16.mxu0 %v2013
      %2049 = vmatpush1.bf16.msra.mxu0 %v2012
      %2050 = vmatprep.subr.bf16.mxu0 %v2016
      %2051 = vmatpush1.bf16.msra.mxu0 %v2015
      %2052 = vmatprep.subr.bf16.mxu0 %v2019
      %2053 = vmatpush1.bf16.msra.mxu0 %v2018
      %2054 = vmatprep.subr.bf16.mxu0 %v2022
      %2055 = vmatpush1.bf16.msra.mxu0 %v2021
      %2056 = vmatprep.subr.bf16.mxu0 0
      %2057 = vmatpush1.bf16.msra.mxu0 0
      %2058 = vmatprep.subr.bf16.mxu0 0
      %2059 = vmatpush1.bf16.msra.mxu0 0
      %2060 = vmatprep.subr.bf16.mxu0 0
      %2061 = vmatpush1.bf16.msra.mxu0 0
      %2062 = vmatprep.subr.bf16.mxu0 0
      %2063 = vmatpush1.bf16.msra.mxu0 0
      %2064 = vmatprep.subr.bf16.mxu0 0
      %2065 = vmatpush1.bf16.msra.mxu0 0
      %2066 = vmatprep.subr.bf16.mxu0 0
      %2067 = vmatpush1.bf16.msra.mxu0 0
      %2068 = vmatprep.subr.bf16.mxu0 0
      %2069 = vmatpush1.bf16.msra.mxu0 0
      %2070 = vmatprep.subr.bf16.mxu0 0
      %2071 = vmatpush1.bf16.msra.mxu0 0
      %2072 = vmatprep.subr.bf16.mxu0 0
      %2073 = vmatpush1.bf16.msra.mxu0 0
      %2074 = vmatprep.subr.bf16.mxu0 0
      %2075 = vmatpush1.bf16.msra.mxu0 0
      %2076 = vmatprep.subr.bf16.mxu0 0
      %2077 = vmatpush1.bf16.msra.mxu0 0
      %2078 = vmatprep.subr.bf16.mxu0 0
      %2079 = vmatpush1.bf16.msra.mxu0 0
      %2080 = vmatprep.mubr.bf16.mxu0 0
      %2081 = vmatmul.mubr.bf16.gmra.mrb[0].mxu0 %v2037
      %v2082 = vpop.f32.mrb[0].mxu0
      %v2083 = vadd.f32 0.0, %v2082
      %v2084 = vpop.f32.mrb[0].mxu0
      %v2085 = vadd.f32 0.0, %v2084
      %v2086 = vpop.f32.mrb[0].mxu0
      %v2087 = vadd.f32 0.0, %v2086
      %v2088 = vpop.f32.mrb[0].mxu0
      %v2089 = vadd.f32 0.0, %v2088
      %2090 = vmatprep.mubr.bf16.mxu0 0
      %2091 = vmatmul.mubr.bf16.gmra.mrb[0].mxu0 %v2040
      %v2092 = vpop.f32.mrb[0].mxu0
      %v2093 = vadd.f32 0.0, %v2092
      %v2094 = vpop.f32.mrb[0].mxu0
      %v2095 = vadd.f32 0.0, %v2094
      %v2096 = vpop.f32.mrb[0].mxu0
      %v2097 = vadd.f32 0.0, %v2096
      %v2098 = vpop.f32.mrb[0].mxu0
      %v2099 = vadd.f32 0.0, %v2098
      %2100 = vmatprep.mubr.bf16.mxu0 0
      %2101 = vmatmul.mubr.bf16.gmra.mrb[0].mxu0 %v2043
      %v2102 = vpop.f32.mrb[0].mxu0
      %v2103 = vadd.f32 0.0, %v2102
      %v2104 = vpop.f32.mrb[0].mxu0
      %v2105 = vadd.f32 0.0, %v2104
      %v2106 = vpop.f32.mrb[0].mxu0
      %v2107 = vadd.f32 0.0, %v2106
      %v2108 = vpop.f32.mrb[0].mxu0
      %v2109 = vadd.f32 0.0, %v2108
      %2110 = vmatprep.mubr.bf16.mxu0 0
      %2111 = vmatmul.mubr.bf16.gmra.mrb[0].mxu0 %v2046
      %v2112 = vpop.f32.mrb[0].mxu0
      %v2113 = vadd.f32 0.0, %v2112
      %v2114 = vpop.f32.mrb[0].mxu0
      %v2115 = vadd.f32 0.0, %v2114
      %v2116 = vpop.f32.mrb[0].mxu0
      %v2117 = vadd.f32 0.0, %v2116
      %v2118 = vpop.f32.mrb[0].mxu0
      %v2119 = vadd.f32 0.0, %v2118
      %2120 = vdwg.mxu0
      %2121 = vmatprep.subr.bf16.mxu0 0
      %2122 = vmatpush1.bf16.msra.mxu0 %v2014
      %2123 = vmatprep.subr.bf16.mxu0 0
      %2124 = vmatpush1.bf16.msra.mxu0 %v2017
      %2125 = vmatprep.subr.bf16.mxu0 0
      %2126 = vmatpush1.bf16.msra.mxu0 %v2020
      %2127 = vmatprep.subr.bf16.mxu0 0
      %2128 = vmatpush1.bf16.msra.mxu0 %v2023
      %2129 = vmatprep.subr.bf16.mxu0 0
      %2130 = vmatpush1.bf16.msra.mxu0 0
      %2131 = vmatprep.subr.bf16.mxu0 0
      %2132 = vmatpush1.bf16.msra.mxu0 0
      %2133 = vmatprep.subr.bf16.mxu0 0
      %2134 = vmatpush1.bf16.msra.mxu0 0
      %2135 = vmatprep.subr.bf16.mxu0 0
      %2136 = vmatpush1.bf16.msra.mxu0 0
      %2137 = vmatprep.subr.bf16.mxu0 0
      %2138 = vmatpush1.bf16.msra.mxu0 0
      %2139 = vmatprep.subr.bf16.mxu0 0
      %2140 = vmatpush1.bf16.msra.mxu0 0
      %2141 = vmatprep.subr.bf16.mxu0 0
      %2142 = vmatpush1.bf16.msra.mxu0 0
      %2143 = vmatprep.subr.bf16.mxu0 0
      %2144 = vmatpush1.bf16.msra.mxu0 0
      %2145 = vmatprep.subr.bf16.mxu0 0
      %2146 = vmatpush1.bf16.msra.mxu0 0
      %2147 = vmatprep.subr.bf16.mxu0 0
      %2148 = vmatpush1.bf16.msra.mxu0 0
      %2149 = vmatprep.subr.bf16.mxu0 0
      %2150 = vmatpush1.bf16.msra.mxu0 0
      %2151 = vmatprep.subr.bf16.mxu0 0
      %2152 = vmatpush1.bf16.msra.mxu0 0
      %2153 = vmatprep.mubr.bf16.mxu0 0
      %2154 = vmatmul.mubr.bf16.gmra.mrb[0].mxu0 %v2037
      %v2155 = vpop.f32.mrb[0].mxu0
      %v2156 = vadd.f32 0.0, %v2155
      %v2157 = vpop.f32.mrb[0].mxu0
      %v2158 = vpop.f32.mrb[0].mxu0
      %v2159 = vadd.f32 0.0, %v2158
      %v2160 = vpop.f32.mrb[0].mxu0
      %2161 = vmatprep.mubr.bf16.mxu0 0
      %2162 = vmatmul.mubr.bf16.gmra.mrb[0].mxu0 %v2040
      %v2163 = vpop.f32.mrb[0].mxu0
      %v2164 = vadd.f32 0.0, %v2163
      %v2165 = vpop.f32.mrb[0].mxu0
      %v2166 = vpop.f32.mrb[0].mxu0
      %v2167 = vadd.f32 0.0, %v2166
      %v2168 = vpop.f32.mrb[0].mxu0
      %2169 = vmatprep.mubr.bf16.mxu0 0
      %2170 = vmatmul.mubr.bf16.gmra.mrb[0].mxu0 %v2043
      %v2171 = vpop.f32.mrb[0].mxu0
      %v2172 = vadd.f32 0.0, %v2171
      %v2173 = vpop.f32.mrb[0].mxu0
      %v2174 = vpop.f32.mrb[0].mxu0
      %v2175 = vadd.f32 0.0, %v2174
      %v2176 = vpop.f32.mrb[0].mxu0
      %2177 = vmatprep.mubr.bf16.mxu0 0
      %2178 = vmatmul.mubr.bf16.gmra.mrb[0].mxu0 %v2046
      %v2179 = vpop.f32.mrb[0].mxu0
      %v2180 = vadd.f32 0.0, %v2179
      %v2181 = vpop.f32.mrb[0].mxu0
      %v2182 = vpop.f32.mrb[0].mxu0
      %v2183 = vadd.f32 0.0, %v2182
      %v2184 = vpop.f32.mrb[0].mxu0
      %2185 = vdwg.mxu0
      %v2186 = vadd.f32 %v1947, %v2083
      %v2187 = vadd.f32 %v1948, %v2085
      %v2188 = vadd.f32 %v1949, %v2156
      %v2189 = vadd.f32 %v1950, %v2087
      %v2190 = vadd.f32 %v1951, %v2089
      %v2191 = vadd.f32 %v1952, %v2159
      %v2192 = vadd.f32 %v1953, %v2093
      %v2193 = vadd.f32 %v1954, %v2095
      %v2194 = vadd.f32 %v1955, %v2164
      %v2195 = vadd.f32 %v1956, %v2097
      %v2196 = vadd.f32 %v1957, %v2099
      %v2197 = vadd.f32 %v1958, %v2167
      %v2198 = vadd.f32 %v1959, %v2103
      %v2199 = vadd.f32 %v1960, %v2105
      %v2200 = vadd.f32 %v1961, %v2172
      %v2201 = vadd.f32 %v1962, %v2107
      %v2202 = vadd.f32 %v1963, %v2109
      %v2203 = vadd.f32 %v1964, %v2175
      %v2204 = vadd.f32 %v1965, %v2113
      %v2205 = vadd.f32 %v1966, %v2115
      %v2206 = vadd.f32 %v1967, %v2180
      %v2207 = vadd.f32 %v1968, %v2117
      %v2208 = vadd.f32 %v1969, %v2119
      %v2209 = vadd.f32 %v1970, %v2183
      %v2210 = vld [vmem:[%s3 + $0x8] sm:$0xf]
      %v2211 = vld [vmem:[%s3 + $0x1c] sm:$0xf]
      %v2212 = vld [vmem:[%s3 + $0x30] sm:$0xf]
      %v2213 = vld [vmem:[%s3 + $0x44] sm:$0xf]
      %v2214 = vld [vmem:[%s3 + $0x58] sm:$0xf]
      %v2215 = vld [vmem:[%s3 + $0x6c] sm:$0xf]
      %v2216 = vld [vmem:[%s3 + $0x80] sm:$0xf]
      %v2217 = vld [vmem:[%s3 + $0x94] sm:$0xf]
      %v2226 = vunpack.c.l.b16 %v2210
      %v2227 = vunpack.c.l.b16 %v2211
      %v2228 = vunpack.c.l.b16 %v2212
      %v2229 = vunpack.c.l.b16 %v2213
      %v2230 = vunpack.c.l.b16 %v2214
      %v2231 = vunpack.c.l.b16 %v2215
      %v2232 = vunpack.c.l.b16 %v2216
      %v2233 = vunpack.c.l.b16 %v2217
      %v2234 = vpack.c.b16 %v2227, %v2226
      %v2235 = vpack.c.b16 %v2229, %v2228
      %v2236 = vpack.c.b16 %v2231, %v2230
      %v2237 = vpack.c.b16 %v2233, %v2232
      %v2239 = vsel %vm408, %v2234, 0
      %v2242 = vsel %vm408, %v2235, 0
      %v2245 = vsel %vm408, %v2236, 0
      %v2248 = vsel %vm408, %v2237, 0
      %2250 = vmatprep.subr.bf16.mxu0 %v1240
      %2251 = vmatpush1.bf16.msra.mxu0 %v1239
      %2252 = vmatprep.subr.bf16.mxu0 %v1244
      %2253 = vmatpush1.bf16.msra.mxu0 %v1243
      %2254 = vmatprep.subr.bf16.mxu0 %v1248
      %2255 = vmatpush1.bf16.msra.mxu0 %v1247
      %2256 = vmatprep.subr.bf16.mxu0 %v1252
      %2257 = vmatpush1.bf16.msra.mxu0 %v1251
      %2258 = vmatprep.subr.bf16.mxu0 0
      %2259 = vmatpush1.bf16.msra.mxu0 0
      %2260 = vmatprep.subr.bf16.mxu0 0
      %2261 = vmatpush1.bf16.msra.mxu0 0
      %2262 = vmatprep.subr.bf16.mxu0 0
      %2263 = vmatpush1.bf16.msra.mxu0 0
      %2264 = vmatprep.subr.bf16.mxu0 0
      %2265 = vmatpush1.bf16.msra.mxu0 0
      %2266 = vmatprep.subr.bf16.mxu0 0
      %2267 = vmatpush1.bf16.msra.mxu0 0
      %2268 = vmatprep.subr.bf16.mxu0 0
      %2269 = vmatpush1.bf16.msra.mxu0 0
      %2270 = vmatprep.subr.bf16.mxu0 0
      %2271 = vmatpush1.bf16.msra.mxu0 0
      %2272 = vmatprep.subr.bf16.mxu0 0
      %2273 = vmatpush1.bf16.msra.mxu0 0
      %2274 = vmatprep.subr.bf16.mxu0 0
      %2275 = vmatpush1.bf16.msra.mxu0 0
      %2276 = vmatprep.subr.bf16.mxu0 0
      %2277 = vmatpush1.bf16.msra.mxu0 0
      %2278 = vmatprep.subr.bf16.mxu0 0
      %2279 = vmatpush1.bf16.msra.mxu0 0
      %2280 = vmatprep.subr.bf16.mxu0 0
      %2281 = vmatpush1.bf16.msra.mxu0 0
      %2282 = vmatprep.mubr.bf16.mxu0 0
      %2283 = vmatmul.mubr.bf16.gmra.mrb[0].mxu0 %v2239
      %v2284 = vpop.f32.mrb[0].mxu0
      %v2285 = vadd.f32 0.0, %v2284
      %v2286 = vpop.f32.mrb[0].mxu0
      %v2287 = vadd.f32 0.0, %v2286
      %v2288 = vpop.f32.mrb[0].mxu0
      %v2289 = vadd.f32 0.0, %v2288
      %v2290 = vpop.f32.mrb[0].mxu0
      %v2291 = vadd.f32 0.0, %v2290
      %2292 = vmatprep.mubr.bf16.mxu0 0
      %2293 = vmatmul.mubr.bf16.gmra.mrb[0].mxu0 %v2242
      %v2294 = vpop.f32.mrb[0].mxu0
      %v2295 = vadd.f32 0.0, %v2294
      %v2296 = vpop.f32.mrb[0].mxu0
      %v2297 = vadd.f32 0.0, %v2296
      %v2298 = vpop.f32.mrb[0].mxu0
      %v2299 = vadd.f32 0.0, %v2298
      %v2300 = vpop.f32.mrb[0].mxu0
      %v2301 = vadd.f32 0.0, %v2300
      %2302 = vmatprep.mubr.bf16.mxu0 0
      %2303 = vmatmul.mubr.bf16.gmra.mrb[0].mxu0 %v2245
      %v2304 = vpop.f32.mrb[0].mxu0
      %v2305 = vadd.f32 0.0, %v2304
      %v2306 = vpop.f32.mrb[0].mxu0
      %v2307 = vadd.f32 0.0, %v2306
      %v2308 = vpop.f32.mrb[0].mxu0
      %v2309 = vadd.f32 0.0, %v2308
      %v2310 = vpop.f32.mrb[0].mxu0
      %v2311 = vadd.f32 0.0, %v2310
      %2312 = vmatprep.mubr.bf16.mxu0 0
      %2313 = vmatmul.mubr.bf16.gmra.mrb[0].mxu0 %v2248
      %v2314 = vpop.f32.mrb[0].mxu0
      %v2315 = vadd.f32 0.0, %v2314
      %v2316 = vpop.f32.mrb[0].mxu0
      %v2317 = vadd.f32 0.0, %v2316
      %v2318 = vpop.f32.mrb[0].mxu0
      %v2319 = vadd.f32 0.0, %v2318
      %v2320 = vpop.f32.mrb[0].mxu0
      %v2321 = vadd.f32 0.0, %v2320
      %2322 = vdwg.mxu0
      %2323 = vmatprep.subr.bf16.mxu0 0
      %2324 = vmatpush1.bf16.msra.mxu0 %v1241
      %2325 = vmatprep.subr.bf16.mxu0 0
      %2326 = vmatpush1.bf16.msra.mxu0 %v1245
      %2327 = vmatprep.subr.bf16.mxu0 0
      %2328 = vmatpush1.bf16.msra.mxu0 %v1249
      %2329 = vmatprep.subr.bf16.mxu0 0
      %2330 = vmatpush1.bf16.msra.mxu0 %v1253
      %2331 = vmatprep.subr.bf16.mxu0 0
      %2332 = vmatpush1.bf16.msra.mxu0 0
      %2333 = vmatprep.subr.bf16.mxu0 0
      %2334 = vmatpush1.bf16.msra.mxu0 0
      %2335 = vmatprep.subr.bf16.mxu0 0
      %2336 = vmatpush1.bf16.msra.mxu0 0
      %2337 = vmatprep.subr.bf16.mxu0 0
      %2338 = vmatpush1.bf16.msra.mxu0 0
      %2339 = vmatprep.subr.bf16.mxu0 0
      %2340 = vmatpush1.bf16.msra.mxu0 0
      %2341 = vmatprep.subr.bf16.mxu0 0
      %2342 = vmatpush1.bf16.msra.mxu0 0
      %2343 = vmatprep.subr.bf16.mxu0 0
      %2344 = vmatpush1.bf16.msra.mxu0 0
      %2345 = vmatprep.subr.bf16.mxu0 0
      %2346 = vmatpush1.bf16.msra.mxu0 0
      %2347 = vmatprep.subr.bf16.mxu0 0
      %2348 = vmatpush1.bf16.msra.mxu0 0
      %2349 = vmatprep.subr.bf16.mxu0 0
      %2350 = vmatpush1.bf16.msra.mxu0 0
      %2351 = vmatprep.subr.bf16.mxu0 0
      %2352 = vmatpush1.bf16.msra.mxu0 0
      %2353 = vmatprep.subr.bf16.mxu0 0
      %2354 = vmatpush1.bf16.msra.mxu0 0
      %2355 = vmatprep.mubr.bf16.mxu0 0
      %2356 = vmatmul.mubr.bf16.gmra.mrb[0].mxu0 %v2239
      %v2357 = vpop.f32.mrb[0].mxu0
      %v2358 = vadd.f32 0.0, %v2357
      %v2359 = vpop.f32.mrb[0].mxu0
      %v2360 = vpop.f32.mrb[0].mxu0
      %v2361 = vadd.f32 0.0, %v2360
      %v2362 = vpop.f32.mrb[0].mxu0
      %2363 = vmatprep.mubr.bf16.mxu0 0
      %2364 = vmatmul.mubr.bf16.gmra.mrb[0].mxu0 %v2242
      %v2365 = vpop.f32.mrb[0].mxu0
      %v2366 = vadd.f32 0.0, %v2365
      %v2367 = vpop.f32.mrb[0].mxu0
      %v2368 = vpop.f32.mrb[0].mxu0
      %v2369 = vadd.f32 0.0, %v2368
      %v2370 = vpop.f32.mrb[0].mxu0
      %2371 = vmatprep.mubr.bf16.mxu0 0
      %2372 = vmatmul.mubr.bf16.gmra.mrb[0].mxu0 %v2245
      %v2373 = vpop.f32.mrb[0].mxu0
      %v2374 = vadd.f32 0.0, %v2373
      %v2375 = vpop.f32.mrb[0].mxu0
      %v2376 = vpop.f32.mrb[0].mxu0
      %v2377 = vadd.f32 0.0, %v2376
      %v2378 = vpop.f32.mrb[0].mxu0
      %2379 = vmatprep.mubr.bf16.mxu0 0
      %2380 = vmatmul.mubr.bf16.gmra.mrb[0].mxu0 %v2248
      %v2381 = vpop.f32.mrb[0].mxu0
      %v2382 = vadd.f32 0.0, %v2381
      %v2383 = vpop.f32.mrb[0].mxu0
      %v2384 = vpop.f32.mrb[0].mxu0
      %v2385 = vadd.f32 0.0, %v2384
      %v2386 = vpop.f32.mrb[0].mxu0
      %2387 = vdwg.mxu0
      %v2388 = vadd.f32 %v2186, %v2285
      %v2389 = vadd.f32 %v2187, %v2287
      %v2390 = vadd.f32 %v2188, %v2358
      %v2391 = vadd.f32 %v2189, %v2289
      %v2392 = vadd.f32 %v2190, %v2291
      %v2393 = vadd.f32 %v2191, %v2361
      %v2394 = vadd.f32 %v2192, %v2295
      %v2395 = vadd.f32 %v2193, %v2297
      %v2396 = vadd.f32 %v2194, %v2366
      %v2397 = vadd.f32 %v2195, %v2299
      %v2398 = vadd.f32 %v2196, %v2301
      %v2399 = vadd.f32 %v2197, %v2369
      %v2400 = vadd.f32 %v2198, %v2305
      %v2401 = vadd.f32 %v2199, %v2307
      %v2402 = vadd.f32 %v2200, %v2374
      %v2403 = vadd.f32 %v2201, %v2309
      %v2404 = vadd.f32 %v2202, %v2311
      %v2405 = vadd.f32 %v2203, %v2377
      %v2406 = vadd.f32 %v2204, %v2315
      %v2407 = vadd.f32 %v2205, %v2317
      %v2408 = vadd.f32 %v2206, %v2382
      %v2409 = vadd.f32 %v2207, %v2319
      %v2410 = vadd.f32 %v2208, %v2321
      %v2411 = vadd.f32 %v2209, %v2385
      %v2412 = vld [vmem:[#allocation3 + $0x8] sm:$0xff]
      %v2413 = vld [vmem:[#allocation3 + $0x10] sm:$0xff]
      %v2414 = vld [vmem:[#allocation3 + $0x18] sm:$0xff]
      %v2415 = vld [vmem:[#allocation3 + $0x20] sm:$0xff]
      %v2416 = vld [vmem:[#allocation3 + $0x40] sm:$0xff]
      %v2417 = vld [vmem:[#allocation3 + $0x48] sm:$0xff]
      %v2418 = vld [vmem:[#allocation3 + $0x50] sm:$0xff]
      %v2419 = vld [vmem:[#allocation3 + $0x58] sm:$0xff]
      %v2420 = vld [vmem:[#allocation3 + $0x78] sm:$0xff]
      %v2421 = vld [vmem:[#allocation3 + $0x80] sm:$0xff]
      %v2422 = vld [vmem:[#allocation3 + $0x88] sm:$0xff]
      %v2423 = vld [vmem:[#allocation3 + $0x90] sm:$0xff]
      %v2424 = vld [vmem:[#allocation3 + $0xb0] sm:$0xff]
      %v2425 = vld [vmem:[#allocation3 + $0xb8] sm:$0xff]
      %v2426 = vld [vmem:[#allocation3 + $0xc0] sm:$0xff]
      %v2427 = vld [vmem:[#allocation3 + $0xc8] sm:$0xff]
      %2428 = vrot.lane.b32.xlu0 %v2234, 64
      %v2429 = vpop.permute.xlu0 %2428
      %2430 = vrot.lane.b32.xlu0 %v2235, 64
      %v2431 = vpop.permute.xlu0 %2430
      %2432 = vrot.lane.b32.xlu0 %v2236, 64
      %v2433 = vpop.permute.xlu0 %2432
      %2434 = vrot.lane.b32.xlu0 %v2237, 64
      %v2435 = vpop.permute.xlu0 %2434
      %2452 = vrot.lane.b32.xlu0 %v2412, 127
      %v2453 = vpop.permute.xlu0 %2452
      %2454 = vrot.lane.b32.xlu0 %v2413, 127
      %v2455 = vpop.permute.xlu0 %2454
      %2456 = vrot.lane.b32.xlu0 %v2414, 127
      %v2457 = vpop.permute.xlu0 %2456
      %2458 = vrot.lane.b32.xlu0 %v2415, 127
      %v2459 = vpop.permute.xlu0 %2458
      %2460 = vrot.lane.b32.xlu0 %v2416, 127
      %v2461 = vpop.permute.xlu0 %2460
      %2462 = vrot.lane.b32.xlu0 %v2417, 127
      %v2463 = vpop.permute.xlu0 %2462
      %2464 = vrot.lane.b32.xlu0 %v2418, 127
      %v2465 = vpop.permute.xlu0 %2464
      %2466 = vrot.lane.b32.xlu0 %v2419, 127
      %v2467 = vpop.permute.xlu0 %2466
      %2468 = vrot.lane.b32.xlu0 %v2420, 127
      %v2469 = vpop.permute.xlu0 %2468
      %2470 = vrot.lane.b32.xlu0 %v2421, 127
      %v2471 = vpop.permute.xlu0 %2470
      %2472 = vrot.lane.b32.xlu0 %v2422, 127
      %v2473 = vpop.permute.xlu0 %2472
      %2474 = vrot.lane.b32.xlu0 %v2423, 127
      %v2475 = vpop.permute.xlu0 %2474
      %2476 = vrot.lane.b32.xlu0 %v2424, 127
      %v2477 = vpop.permute.xlu0 %2476
      %2478 = vrot.lane.b32.xlu0 %v2425, 127
      %v2479 = vpop.permute.xlu0 %2478
      %2480 = vrot.lane.b32.xlu0 %v2426, 127
      %v2481 = vpop.permute.xlu0 %2480
      %2482 = vrot.lane.b32.xlu0 %v2427, 127
      %v2483 = vpop.permute.xlu0 %2482
      %vm2484 = vcmask 1039360
      %v2485 = vsel %vm2484, %v2453, %v2455
      %v2486 = vsel %vm2484, %v2455, %v2457
      %v2487 = vsel %vm2484, %v2457, %v2459
      %v2488 = vsel %vm2484, %v2461, %v2463
      %v2489 = vsel %vm2484, %v2463, %v2465
      %v2490 = vsel %vm2484, %v2465, %v2467
      %v2491 = vsel %vm2484, %v2469, %v2471
      %v2492 = vsel %vm2484, %v2471, %v2473
      %v2493 = vsel %vm2484, %v2473, %v2475
      %v2494 = vsel %vm2484, %v2477, %v2479
      %v2495 = vsel %vm2484, %v2479, %v2481
      %v2496 = vsel %vm2484, %v2481, %v2483
      %v2510 = vsel %vm408, %v2429, 0
      %v2513 = vsel %vm408, %v2431, 0
      %v2516 = vsel %vm408, %v2433, 0
      %v2519 = vsel %vm408, %v2435, 0
      %2521 = vmatprep.subr.bf16.mxu0 %v2486
      %2522 = vmatpush1.bf16.msra.mxu0 %v2485
      %2523 = vmatprep.subr.bf16.mxu0 %v2489
      %2524 = vmatpush1.bf16.msra.mxu0 %v2488
      %2525 = vmatprep.subr.bf16.mxu0 %v2492
      %2526 = vmatpush1.bf16.msra.mxu0 %v2491
      %2527 = vmatprep.subr.bf16.mxu0 %v2495
      %2528 = vmatpush1.bf16.msra.mxu0 %v2494
      %2529 = vmatprep.subr.bf16.mxu0 0
      %2530 = vmatpush1.bf16.msra.mxu0 0
      %2531 = vmatprep.subr.bf16.mxu0 0
      %2532 = vmatpush1.bf16.msra.mxu0 0
      %2533 = vmatprep.subr.bf16.mxu0 0
      %2534 = vmatpush1.bf16.msra.mxu0 0
      %2535 = vmatprep.subr.bf16.mxu0 0
      %2536 = vmatpush1.bf16.msra.mxu0 0
      %2537 = vmatprep.subr.bf16.mxu0 0
      %2538 = vmatpush1.bf16.msra.mxu0 0
      %2539 = vmatprep.subr.bf16.mxu0 0
      %2540 = vmatpush1.bf16.msra.mxu0 0
      %2541 = vmatprep.subr.bf16.mxu0 0
      %2542 = vmatpush1.bf16.msra.mxu0 0
      %2543 = vmatprep.subr.bf16.mxu0 0
      %2544 = vmatpush1.bf16.msra.mxu0 0
      %2545 = vmatprep.subr.bf16.mxu0 0
      %2546 = vmatpush1.bf16.msra.mxu0 0
      %2547 = vmatprep.subr.bf16.mxu0 0
      %2548 = vmatpush1.bf16.msra.mxu0 0
      %2549 = vmatprep.subr.bf16.mxu0 0
      %2550 = vmatpush1.bf16.msra.mxu0 0
      %2551 = vmatprep.subr.bf16.mxu0 0
      %2552 = vmatpush1.bf16.msra.mxu0 0
      %2553 = vmatprep.mubr.bf16.mxu0 0
      %2554 = vmatmul.mubr.bf16.gmra.mrb[0].mxu0 %v2510
      %v2555 = vpop.f32.mrb[0].mxu0
      %v2556 = vadd.f32 0.0, %v2555
      %v2557 = vpop.f32.mrb[0].mxu0
      %v2558 = vadd.f32 0.0, %v2557
      %v2559 = vpop.f32.mrb[0].mxu0
      %v2560 = vadd.f32 0.0, %v2559
      %v2561 = vpop.f32.mrb[0].mxu0
      %v2562 = vadd.f32 0.0, %v2561
      %2563 = vmatprep.mubr.bf16.mxu0 0
      %2564 = vmatmul.mubr.bf16.gmra.mrb[0].mxu0 %v2513
      %v2565 = vpop.f32.mrb[0].mxu0
      %v2566 = vadd.f32 0.0, %v2565
      %v2567 = vpop.f32.mrb[0].mxu0
      %v2568 = vadd.f32 0.0, %v2567
      %v2569 = vpop.f32.mrb[0].mxu0
      %v2570 = vadd.f32 0.0, %v2569
      %v2571 = vpop.f32.mrb[0].mxu0
      %v2572 = vadd.f32 0.0, %v2571
      %2573 = vmatprep.mubr.bf16.mxu0 0
      %2574 = vmatmul.mubr.bf16.gmra.mrb[0].mxu0 %v2516
      %v2575 = vpop.f32.mrb[0].mxu0
      %v2576 = vadd.f32 0.0, %v2575
      %v2577 = vpop.f32.mrb[0].mxu0
      %v2578 = vadd.f32 0.0, %v2577
      %v2579 = vpop.f32.mrb[0].mxu0
      %v2580 = vadd.f32 0.0, %v2579
      %v2581 = vpop.f32.mrb[0].mxu0
      %v2582 = vadd.f32 0.0, %v2581
      %2583 = vmatprep.mubr.bf16.mxu0 0
      %2584 = vmatmul.mubr.bf16.gmra.mrb[0].mxu0 %v2519
      %v2585 = vpop.f32.mrb[0].mxu0
      %v2586 = vadd.f32 0.0, %v2585
      %v2587 = vpop.f32.mrb[0].mxu0
      %v2588 = vadd.f32 0.0, %v2587
      %v2589 = vpop.f32.mrb[0].mxu0
      %v2590 = vadd.f32 0.0, %v2589
      %v2591 = vpop.f32.mrb[0].mxu0
      %v2592 = vadd.f32 0.0, %v2591
      %2593 = vdwg.mxu0
      %2594 = vmatprep.subr.bf16.mxu0 0
      %2595 = vmatpush1.bf16.msra.mxu0 %v2487
      %2596 = vmatprep.subr.bf16.mxu0 0
      %2597 = vmatpush1.bf16.msra.mxu0 %v2490
      %2598 = vmatprep.subr.bf16.mxu0 0
      %2599 = vmatpush1.bf16.msra.mxu0 %v2493
      %2600 = vmatprep.subr.bf16.mxu0 0
      %2601 = vmatpush1.bf16.msra.mxu0 %v2496
      %2602 = vmatprep.subr.bf16.mxu0 0
      %2603 = vmatpush1.bf16.msra.mxu0 0
      %2604 = vmatprep.subr.bf16.mxu0 0
      %2605 = vmatpush1.bf16.msra.mxu0 0
      %2606 = vmatprep.subr.bf16.mxu0 0
      %2607 = vmatpush1.bf16.msra.mxu0 0
      %2608 = vmatprep.subr.bf16.mxu0 0
      %2609 = vmatpush1.bf16.msra.mxu0 0
      %2610 = vmatprep.subr.bf16.mxu0 0
      %2611 = vmatpush1.bf16.msra.mxu0 0
      %2612 = vmatprep.subr.bf16.mxu0 0
      %2613 = vmatpush1.bf16.msra.mxu0 0
      %2614 = vmatprep.subr.bf16.mxu0 0
      %2615 = vmatpush1.bf16.msra.mxu0 0
      %2616 = vmatprep.subr.bf16.mxu0 0
      %2617 = vmatpush1.bf16.msra.mxu0 0
      %2618 = vmatprep.subr.bf16.mxu0 0
      %2619 = vmatpush1.bf16.msra.mxu0 0
      %2620 = vmatprep.subr.bf16.mxu0 0
      %2621 = vmatpush1.bf16.msra.mxu0 0
      %2622 = vmatprep.subr.bf16.mxu0 0
      %2623 = vmatpush1.bf16.msra.mxu0 0
      %2624 = vmatprep.subr.bf16.mxu0 0
      %2625 = vmatpush1.bf16.msra.mxu0 0
      %2626 = vmatprep.mubr.bf16.mxu0 0
      %2627 = vmatmul.mubr.bf16.gmra.mrb[0].mxu0 %v2510
      %v2628 = vpop.f32.mrb[0].mxu0
      %v2629 = vadd.f32 0.0, %v2628
      %v2630 = vpop.f32.mrb[0].mxu0
      %v2631 = vpop.f32.mrb[0].mxu0
      %v2632 = vadd.f32 0.0, %v2631
      %v2633 = vpop.f32.mrb[0].mxu0
      %2634 = vmatprep.mubr.bf16.mxu0 0
      %2635 = vmatmul.mubr.bf16.gmra.mrb[0].mxu0 %v2513
      %v2636 = vpop.f32.mrb[0].mxu0
      %v2637 = vadd.f32 0.0, %v2636
      %v2638 = vpop.f32.mrb[0].mxu0
      %v2639 = vpop.f32.mrb[0].mxu0
      %v2640 = vadd.f32 0.0, %v2639
      %v2641 = vpop.f32.mrb[0].mxu0
      %2642 = vmatprep.mubr.bf16.mxu0 0
      %2643 = vmatmul.mubr.bf16.gmra.mrb[0].mxu0 %v2516
      %v2644 = vpop.f32.mrb[0].mxu0
      %v2645 = vadd.f32 0.0, %v2644
      %v2646 = vpop.f32.mrb[0].mxu0
      %v2647 = vpop.f32.mrb[0].mxu0
      %v2648 = vadd.f32 0.0, %v2647
      %v2649 = vpop.f32.mrb[0].mxu0
      %2650 = vmatprep.mubr.bf16.mxu0 0
      %2651 = vmatmul.mubr.bf16.gmra.mrb[0].mxu0 %v2519
      %v2652 = vpop.f32.mrb[0].mxu0
      %v2653 = vadd.f32 0.0, %v2652
      %v2654 = vpop.f32.mrb[0].mxu0
      %v2655 = vpop.f32.mrb[0].mxu0
      %v2656 = vadd.f32 0.0, %v2655
      %v2657 = vpop.f32.mrb[0].mxu0
      %2658 = vdwg.mxu0
      %v2659 = vadd.f32 %v2388, %v2556
      %v2660 = vadd.f32 %v2389, %v2558
      %v2661 = vadd.f32 %v2390, %v2629
      %v2662 = vadd.f32 %v2391, %v2560
      %v2663 = vadd.f32 %v2392, %v2562
      %v2664 = vadd.f32 %v2393, %v2632
      %v2665 = vadd.f32 %v2394, %v2566
      %v2666 = vadd.f32 %v2395, %v2568
      %v2667 = vadd.f32 %v2396, %v2637
      %v2668 = vadd.f32 %v2397, %v2570
      %v2669 = vadd.f32 %v2398, %v2572
      %v2670 = vadd.f32 %v2399, %v2640
      %v2671 = vadd.f32 %v2400, %v2576
      %v2672 = vadd.f32 %v2401, %v2578
      %v2673 = vadd.f32 %v2402, %v2645
      %v2674 = vadd.f32 %v2403, %v2580
      %v2675 = vadd.f32 %v2404, %v2582
      %v2676 = vadd.f32 %v2405, %v2648
      %v2677 = vadd.f32 %v2406, %v2586
      %v2678 = vadd.f32 %v2407, %v2588
      %v2679 = vadd.f32 %v2408, %v2653
      %v2680 = vadd.f32 %v2409, %v2590
      %v2681 = vadd.f32 %v2410, %v2592
      %v2682 = vadd.f32 %v2411, %v2656
      %v2683 = vld [vmem:[%s3 + $0xc] sm:$0xf]
      %v2684 = vld [vmem:[%s3 + $0x20] sm:$0xf]
      %v2685 = vld [vmem:[%s3 + $0x34] sm:$0xf]
      %v2686 = vld [vmem:[%s3 + $0x48] sm:$0xf]
      %v2687 = vld [vmem:[%s3 + $0x5c] sm:$0xf]
      %v2688 = vld [vmem:[%s3 + $0x70] sm:$0xf]
      %v2689 = vld [vmem:[%s3 + $0x84] sm:$0xf]
      %v2690 = vld [vmem:[%s3 + $0x98] sm:$0xf]
      %v2699 = vunpack.c.l.b16 %v2683
      %v2700 = vunpack.c.l.b16 %v2684
      %v2701 = vunpack.c.l.b16 %v2685
      %v2702 = vunpack.c.l.b16 %v2686
      %v2703 = vunpack.c.l.b16 %v2687
      %v2704 = vunpack.c.l.b16 %v2688
      %v2705 = vunpack.c.l.b16 %v2689
      %v2706 = vunpack.c.l.b16 %v2690
      %v2707 = vpack.c.b16 %v2700, %v2699
      %v2708 = vpack.c.b16 %v2702, %v2701
      %v2709 = vpack.c.b16 %v2704, %v2703
      %v2710 = vpack.c.b16 %v2706, %v2705
      %2711 = vrot.lane.b32.xlu0 %v2412, 97
      %v2712 = vpop.permute.xlu0 %2711
      %2713 = vrot.lane.b32.xlu0 %v2413, 97
      %v2714 = vpop.permute.xlu0 %2713
      %2715 = vrot.lane.b32.xlu0 %v2414, 97
      %v2716 = vpop.permute.xlu0 %2715
      %2717 = vrot.lane.b32.xlu0 %v2415, 97
      %v2718 = vpop.permute.xlu0 %2717
      %2719 = vrot.lane.b32.xlu0 %v2416, 97
      %v2720 = vpop.permute.xlu0 %2719
      %2721 = vrot.lane.b32.xlu0 %v2417, 97
      %v2722 = vpop.permute.xlu0 %2721
      %2723 = vrot.lane.b32.xlu0 %v2418, 97
      %v2724 = vpop.permute.xlu0 %2723
      %2725 = vrot.lane.b32.xlu0 %v2419, 97
      %v2726 = vpop.permute.xlu0 %2725
      %2727 = vrot.lane.b32.xlu0 %v2420, 97
      %v2728 = vpop.permute.xlu0 %2727
      %2729 = vrot.lane.b32.xlu0 %v2421, 97
      %v2730 = vpop.permute.xlu0 %2729
      %2731 = vrot.lane.b32.xlu0 %v2422, 97
      %v2732 = vpop.permute.xlu0 %2731
      %2733 = vrot.lane.b32.xlu0 %v2423, 97
      %v2734 = vpop.permute.xlu0 %2733
      %2735 = vrot.lane.b32.xlu0 %v2424, 97
      %v2736 = vpop.permute.xlu0 %2735
      %2737 = vrot.lane.b32.xlu0 %v2425, 97
      %v2738 = vpop.permute.xlu0 %2737
      %2739 = vrot.lane.b32.xlu0 %v2426, 97
      %v2740 = vpop.permute.xlu0 %2739
      %2741 = vrot.lane.b32.xlu0 %v2427, 97
      %v2742 = vpop.permute.xlu0 %2741
      %vm2743 = vcmask 793600
      %v2744 = vsel %vm2743, %v2712, %v2714
      %v2745 = vsel %vm2743, %v2714, %v2716
      %v2746 = vsel %vm2743, %v2716, %v2718
      %v2747 = vsel %vm2743, %v2720, %v2722
      %v2748 = vsel %vm2743, %v2722, %v2724
      %v2749 = vsel %vm2743, %v2724, %v2726
      %v2750 = vsel %vm2743, %v2728, %v2730
      %v2751 = vsel %vm2743, %v2730, %v2732
      %v2752 = vsel %vm2743, %v2732, %v2734
      %v2753 = vsel %vm2743, %v2736, %v2738
      %v2754 = vsel %vm2743, %v2738, %v2740
      %v2755 = vsel %vm2743, %v2740, %v2742
      %v2769 = vsel %vm408, %v2707, 0
      %v2772 = vsel %vm408, %v2708, 0
      %v2775 = vsel %vm408, %v2709, 0
      %v2778 = vsel %vm408, %v2710, 0
      %2780 = vmatprep.subr.bf16.mxu0 %v2745
      %2781 = vmatpush1.bf16.msra.mxu0 %v2744
      %2782 = vmatprep.subr.bf16.mxu0 %v2748
      %2783 = vmatpush1.bf16.msra.mxu0 %v2747
      %2784 = vmatprep.subr.bf16.mxu0 %v2751
      %2785 = vmatpush1.bf16.msra.mxu0 %v2750
      %2786 = vmatprep.subr.bf16.mxu0 %v2754
      %2787 = vmatpush1.bf16.msra.mxu0 %v2753
      %2788 = vmatprep.subr.bf16.mxu0 0
      %2789 = vmatpush1.bf16.msra.mxu0 0
      %2790 = vmatprep.subr.bf16.mxu0 0
      %2791 = vmatpush1.bf16.msra.mxu0 0
      %2792 = vmatprep.subr.bf16.mxu0 0
      %2793 = vmatpush1.bf16.msra.mxu0 0
      %2794 = vmatprep.subr.bf16.mxu0 0
      %2795 = vmatpush1.bf16.msra.mxu0 0
      %2796 = vmatprep.subr.bf16.mxu0 0
      %2797 = vmatpush1.bf16.msra.mxu0 0
      %2798 = vmatprep.subr.bf16.mxu0 0
      %2799 = vmatpush1.bf16.msra.mxu0 0
      %2800 = vmatprep.subr.bf16.mxu0 0
      %2801 = vmatpush1.bf16.msra.mxu0 0
      %2802 = vmatprep.subr.bf16.mxu0 0
      %2803 = vmatpush1.bf16.msra.mxu0 0
      %2804 = vmatprep.subr.bf16.mxu0 0
      %2805 = vmatpush1.bf16.msra.mxu0 0
      %2806 = vmatprep.subr.bf16.mxu0 0
      %2807 = vmatpush1.bf16.msra.mxu0 0
      %2808 = vmatprep.subr.bf16.mxu0 0
      %2809 = vmatpush1.bf16.msra.mxu0 0
      %2810 = vmatprep.subr.bf16.mxu0 0
      %2811 = vmatpush1.bf16.msra.mxu0 0
      %2812 = vmatprep.mubr.bf16.mxu0 0
      %2813 = vmatmul.mubr.bf16.gmra.mrb[0].mxu0 %v2769
      %v2814 = vpop.f32.mrb[0].mxu0
      %v2815 = vadd.f32 0.0, %v2814
      %v2816 = vpop.f32.mrb[0].mxu0
      %v2817 = vadd.f32 0.0, %v2816
      %v2818 = vpop.f32.mrb[0].mxu0
      %v2819 = vadd.f32 0.0, %v2818
      %v2820 = vpop.f32.mrb[0].mxu0
      %v2821 = vadd.f32 0.0, %v2820
      %2822 = vmatprep.mubr.bf16.mxu0 0
      %2823 = vmatmul.mubr.bf16.gmra.mrb[0].mxu0 %v2772
      %v2824 = vpop.f32.mrb[0].mxu0
      %v2825 = vadd.f32 0.0, %v2824
      %v2826 = vpop.f32.mrb[0].mxu0
      %v2827 = vadd.f32 0.0, %v2826
      %v2828 = vpop.f32.mrb[0].mxu0
      %v2829 = vadd.f32 0.0, %v2828
      %v2830 = vpop.f32.mrb[0].mxu0
      %v2831 = vadd.f32 0.0, %v2830
      %2832 = vmatprep.mubr.bf16.mxu0 0
      %2833 = vmatmul.mubr.bf16.gmra.mrb[0].mxu0 %v2775
      %v2834 = vpop.f32.mrb[0].mxu0
      %v2835 = vadd.f32 0.0, %v2834
      %v2836 = vpop.f32.mrb[0].mxu0
      %v2837 = vadd.f32 0.0, %v2836
      %v2838 = vpop.f32.mrb[0].mxu0
      %v2839 = vadd.f32 0.0, %v2838
      %v2840 = vpop.f32.mrb[0].mxu0
      %v2841 = vadd.f32 0.0, %v2840
      %2842 = vmatprep.mubr.bf16.mxu0 0
      %2843 = vmatmul.mubr.bf16.gmra.mrb[0].mxu0 %v2778
      %v2844 = vpop.f32.mrb[0].mxu0
      %v2845 = vadd.f32 0.0, %v2844
      %v2846 = vpop.f32.mrb[0].mxu0
      %v2847 = vadd.f32 0.0, %v2846
      %v2848 = vpop.f32.mrb[0].mxu0
      %v2849 = vadd.f32 0.0, %v2848
      %v2850 = vpop.f32.mrb[0].mxu0
      %v2851 = vadd.f32 0.0, %v2850
      %2852 = vdwg.mxu0
      %2853 = vmatprep.subr.bf16.mxu0 0
      %2854 = vmatpush1.bf16.msra.mxu0 %v2746
      %2855 = vmatprep.subr.bf16.mxu0 0
      %2856 = vmatpush1.bf16.msra.mxu0 %v2749
      %2857 = vmatprep.subr.bf16.mxu0 0
      %2858 = vmatpush1.bf16.msra.mxu0 %v2752
      %2859 = vmatprep.subr.bf16.mxu0 0
      %2860 = vmatpush1.bf16.msra.mxu0 %v2755
      %2861 = vmatprep.subr.bf16.mxu0 0
      %2862 = vmatpush1.bf16.msra.mxu0 0
      %2863 = vmatprep.subr.bf16.mxu0 0
      %2864 = vmatpush1.bf16.msra.mxu0 0
      %2865 = vmatprep.subr.bf16.mxu0 0
      %2866 = vmatpush1.bf16.msra.mxu0 0
      %2867 = vmatprep.subr.bf16.mxu0 0
      %2868 = vmatpush1.bf16.msra.mxu0 0
      %2869 = vmatprep.subr.bf16.mxu0 0
      %2870 = vmatpush1.bf16.msra.mxu0 0
      %2871 = vmatprep.subr.bf16.mxu0 0
      %2872 = vmatpush1.bf16.msra.mxu0 0
      %2873 = vmatprep.subr.bf16.mxu0 0
      %2874 = vmatpush1.bf16.msra.mxu0 0
      %2875 = vmatprep.subr.bf16.mxu0 0
      %2876 = vmatpush1.bf16.msra.mxu0 0
      %2877 = vmatprep.subr.bf16.mxu0 0
      %2878 = vmatpush1.bf16.msra.mxu0 0
      %2879 = vmatprep.subr.bf16.mxu0 0
      %2880 = vmatpush1.bf16.msra.mxu0 0
      %2881 = vmatprep.subr.bf16.mxu0 0
      %2882 = vmatpush1.bf16.msra.mxu0 0
      %2883 = vmatprep.subr.bf16.mxu0 0
      %2884 = vmatpush1.bf16.msra.mxu0 0
      %2885 = vmatprep.mubr.bf16.mxu0 0
      %2886 = vmatmul.mubr.bf16.gmra.mrb[0].mxu0 %v2769
      %v2887 = vpop.f32.mrb[0].mxu0
      %v2888 = vadd.f32 0.0, %v2887
      %v2889 = vpop.f32.mrb[0].mxu0
      %v2890 = vpop.f32.mrb[0].mxu0
      %v2891 = vadd.f32 0.0, %v2890
      %v2892 = vpop.f32.mrb[0].mxu0
      %2893 = vmatprep.mubr.bf16.mxu0 0
      %2894 = vmatmul.mubr.bf16.gmra.mrb[0].mxu0 %v2772
      %v2895 = vpop.f32.mrb[0].mxu0
      %v2896 = vadd.f32 0.0, %v2895
      %v2897 = vpop.f32.mrb[0].mxu0
      %v2898 = vpop.f32.mrb[0].mxu0
      %v2899 = vadd.f32 0.0, %v2898
      %v2900 = vpop.f32.mrb[0].mxu0
      %2901 = vmatprep.mubr.bf16.mxu0 0
      %2902 = vmatmul.mubr.bf16.gmra.mrb[0].mxu0 %v2775
      %v2903 = vpop.f32.mrb[0].mxu0
      %v2904 = vadd.f32 0.0, %v2903
      %v2905 = vpop.f32.mrb[0].mxu0
      %v2906 = vpop.f32.mrb[0].mxu0
      %v2907 = vadd.f32 0.0, %v2906
      %v2908 = vpop.f32.mrb[0].mxu0
      %2909 = vmatprep.mubr.bf16.mxu0 0
      %2910 = vmatmul.mubr.bf16.gmra.mrb[0].mxu0 %v2778
      %v2911 = vpop.f32.mrb[0].mxu0
      %v2912 = vadd.f32 0.0, %v2911
      %v2913 = vpop.f32.mrb[0].mxu0
      %v2914 = vpop.f32.mrb[0].mxu0
      %v2915 = vadd.f32 0.0, %v2914
      %v2916 = vpop.f32.mrb[0].mxu0
      %2917 = vdwg.mxu0
      %v2918 = vadd.f32 %v2659, %v2815
      %v2919 = vadd.f32 %v2660, %v2817
      %v2920 = vadd.f32 %v2661, %v2888
      %v2921 = vadd.f32 %v2662, %v2819
      %v2922 = vadd.f32 %v2663, %v2821
      %v2923 = vadd.f32 %v2664, %v2891
      %v2924 = vadd.f32 %v2665, %v2825
      %v2925 = vadd.f32 %v2666, %v2827
      %v2926 = vadd.f32 %v2667, %v2896
      %v2927 = vadd.f32 %v2668, %v2829
      %v2928 = vadd.f32 %v2669, %v2831
      %v2929 = vadd.f32 %v2670, %v2899
      %v2930 = vadd.f32 %v2671, %v2835
      %v2931 = vadd.f32 %v2672, %v2837
      %v2932 = vadd.f32 %v2673, %v2904
      %v2933 = vadd.f32 %v2674, %v2839
      %v2934 = vadd.f32 %v2675, %v2841
      %v2935 = vadd.f32 %v2676, %v2907
      %v2936 = vadd.f32 %v2677, %v2845
      %v2937 = vadd.f32 %v2678, %v2847
      %v2938 = vadd.f32 %v2679, %v2912
      %v2939 = vadd.f32 %v2680, %v2849
      %v2940 = vadd.f32 %v2681, %v2851
      %v2941 = vadd.f32 %v2682, %v2915
      %2942 = vrot.lane.b32.xlu0 %v2707, 64
      %v2943 = vpop.permute.xlu0 %2942
      %2944 = vrot.lane.b32.xlu0 %v2708, 64
      %v2945 = vpop.permute.xlu0 %2944
      %2946 = vrot.lane.b32.xlu0 %v2709, 64
      %v2947 = vpop.permute.xlu0 %2946
      %2948 = vrot.lane.b32.xlu0 %v2710, 64
      %v2949 = vpop.permute.xlu0 %2948
      %2950 = vrot.lane.b32.xlu0 %v2412, 96
      %v2951 = vpop.permute.xlu0 %2950
      %2952 = vrot.lane.b32.xlu0 %v2413, 96
      %v2953 = vpop.permute.xlu0 %2952
      %2954 = vrot.lane.b32.xlu0 %v2414, 96
      %v2955 = vpop.permute.xlu0 %2954
      %2956 = vrot.lane.b32.xlu0 %v2415, 96
      %v2957 = vpop.permute.xlu0 %2956
      %2958 = vrot.lane.b32.xlu0 %v2416, 96
      %v2959 = vpop.permute.xlu0 %2958
      %2960 = vrot.lane.b32.xlu0 %v2417, 96
      %v2961 = vpop.permute.xlu0 %2960
      %2962 = vrot.lane.b32.xlu0 %v2418, 96
      %v2963 = vpop.permute.xlu0 %2962
      %2964 = vrot.lane.b32.xlu0 %v2419, 96
      %v2965 = vpop.permute.xlu0 %2964
      %2966 = vrot.lane.b32.xlu0 %v2420, 96
      %v2967 = vpop.permute.xlu0 %2966
      %2968 = vrot.lane.b32.xlu0 %v2421, 96
      %v2969 = vpop.permute.xlu0 %2968
      %2970 = vrot.lane.b32.xlu0 %v2422, 96
      %v2971 = vpop.permute.xlu0 %2970
      %2972 = vrot.lane.b32.xlu0 %v2423, 96
      %v2973 = vpop.permute.xlu0 %2972
      %2974 = vrot.lane.b32.xlu0 %v2424, 96
      %v2975 = vpop.permute.xlu0 %2974
      %2976 = vrot.lane.b32.xlu0 %v2425, 96
      %v2977 = vpop.permute.xlu0 %2976
      %2978 = vrot.lane.b32.xlu0 %v2426, 96
      %v2979 = vpop.permute.xlu0 %2978
      %2980 = vrot.lane.b32.xlu0 %v2427, 96
      %v2981 = vpop.permute.xlu0 %2980
      %vm2982 = vcmask 785408
      %v2983 = vsel %vm2982, %v2951, %v2953
      %v2984 = vsel %vm2982, %v2953, %v2955
      %v2985 = vsel %vm2982, %v2955, %v2957
      %v2986 = vsel %vm2982, %v2959, %v2961
      %v2987 = vsel %vm2982, %v2961, %v2963
      %v2988 = vsel %vm2982, %v2963, %v2965
      %v2989 = vsel %vm2982, %v2967, %v2969
      %v2990 = vsel %vm2982, %v2969, %v2971
      %v2991 = vsel %vm2982, %v2971, %v2973
      %v2992 = vsel %vm2982, %v2975, %v2977
      %v2993 = vsel %vm2982, %v2977, %v2979
      %v2994 = vsel %vm2982, %v2979, %v2981
      %v3008 = vsel %vm408, %v2943, 0
      %v3011 = vsel %vm408, %v2945, 0
      %v3014 = vsel %vm408, %v2947, 0
      %v3017 = vsel %vm408, %v2949, 0
      %3019 = vmatprep.subr.bf16.mxu0 %v2984
      %3020 = vmatpush1.bf16.msra.mxu0 %v2983
      %3021 = vmatprep.subr.bf16.mxu0 %v2987
      %3022 = vmatpush1.bf16.msra.mxu0 %v2986
      %3023 = vmatprep.subr.bf16.mxu0 %v2990
      %3024 = vmatpush1.bf16.msra.mxu0 %v2989
      %3025 = vmatprep.subr.bf16.mxu0 %v2993
      %3026 = vmatpush1.bf16.msra.mxu0 %v2992
      %3027 = vmatprep.subr.bf16.mxu0 0
      %3028 = vmatpush1.bf16.msra.mxu0 0
      %3029 = vmatprep.subr.bf16.mxu0 0
      %3030 = vmatpush1.bf16.msra.mxu0 0
      %3031 = vmatprep.subr.bf16.mxu0 0
      %3032 = vmatpush1.bf16.msra.mxu0 0
      %3033 = vmatprep.subr.bf16.mxu0 0
      %3034 = vmatpush1.bf16.msra.mxu0 0
      %3035 = vmatprep.subr.bf16.mxu0 0
      %3036 = vmatpush1.bf16.msra.mxu0 0
      %3037 = vmatprep.subr.bf16.mxu0 0
      %3038 = vmatpush1.bf16.msra.mxu0 0
      %3039 = vmatprep.subr.bf16.mxu0 0
      %3040 = vmatpush1.bf16.msra.mxu0 0
      %3041 = vmatprep.subr.bf16.mxu0 0
      %3042 = vmatpush1.bf16.msra.mxu0 0
      %3043 = vmatprep.subr.bf16.mxu0 0
      %3044 = vmatpush1.bf16.msra.mxu0 0
      %3045 = vmatprep.subr.bf16.mxu0 0
      %3046 = vmatpush1.bf16.msra.mxu0 0
      %3047 = vmatprep.subr.bf16.mxu0 0
      %3048 = vmatpush1.bf16.msra.mxu0 0
      %3049 = vmatprep.subr.bf16.mxu0 0
      %3050 = vmatpush1.bf16.msra.mxu0 0
      %3051 = vmatprep.mubr.bf16.mxu0 0
      %3052 = vmatmul.mubr.bf16.gmra.mrb[0].mxu0 %v3008
      %v3053 = vpop.f32.mrb[0].mxu0
      %v3054 = vadd.f32 0.0, %v3053
      %v3055 = vpop.f32.mrb[0].mxu0
      %v3056 = vadd.f32 0.0, %v3055
      %v3057 = vpop.f32.mrb[0].mxu0
      %v3058 = vadd.f32 0.0, %v3057
      %v3059 = vpop.f32.mrb[0].mxu0
      %v3060 = vadd.f32 0.0, %v3059
      %3061 = vmatprep.mubr.bf16.mxu0 0
      %3062 = vmatmul.mubr.bf16.gmra.mrb[0].mxu0 %v3011
      %v3063 = vpop.f32.mrb[0].mxu0
      %v3064 = vadd.f32 0.0, %v3063
      %v3065 = vpop.f32.mrb[0].mxu0
      %v3066 = vadd.f32 0.0, %v3065
      %v3067 = vpop.f32.mrb[0].mxu0
      %v3068 = vadd.f32 0.0, %v3067
      %v3069 = vpop.f32.mrb[0].mxu0
      %v3070 = vadd.f32 0.0, %v3069
      %3071 = vmatprep.mubr.bf16.mxu0 0
      %3072 = vmatmul.mubr.bf16.gmra.mrb[0].mxu0 %v3014
      %v3073 = vpop.f32.mrb[0].mxu0
      %v3074 = vadd.f32 0.0, %v3073
      %v3075 = vpop.f32.mrb[0].mxu0
      %v3076 = vadd.f32 0.0, %v3075
      %v3077 = vpop.f32.mrb[0].mxu0
      %v3078 = vadd.f32 0.0, %v3077
      %v3079 = vpop.f32.mrb[0].mxu0
      %v3080 = vadd.f32 0.0, %v3079
      %3081 = vmatprep.mubr.bf16.mxu0 0
      %3082 = vmatmul.mubr.bf16.gmra.mrb[0].mxu0 %v3017
      %v3083 = vpop.f32.mrb[0].mxu0
      %v3084 = vadd.f32 0.0, %v3083
      %v3085 = vpop.f32.mrb[0].mxu0
      %v3086 = vadd.f32 0.0, %v3085
      %v3087 = vpop.f32.mrb[0].mxu0
      %v3088 = vadd.f32 0.0, %v3087
      %v3089 = vpop.f32.mrb[0].mxu0
      %v3090 = vadd.f32 0.0, %v3089
      %3091 = vdwg.mxu0
      %3092 = vmatprep.subr.bf16.mxu0 0
      %3093 = vmatpush1.bf16.msra.mxu0 %v2985
      %3094 = vmatprep.subr.bf16.mxu0 0
      %3095 = vmatpush1.bf16.msra.mxu0 %v2988
      %3096 = vmatprep.subr.bf16.mxu0 0
      %3097 = vmatpush1.bf16.msra.mxu0 %v2991
      %3098 = vmatprep.subr.bf16.mxu0 0
      %3099 = vmatpush1.bf16.msra.mxu0 %v2994
      %3100 = vmatprep.subr.bf16.mxu0 0
      %3101 = vmatpush1.bf16.msra.mxu0 0
      %3102 = vmatprep.subr.bf16.mxu0 0
      %3103 = vmatpush1.bf16.msra.mxu0 0
      %3104 = vmatprep.subr.bf16.mxu0 0
      %3105 = vmatpush1.bf16.msra.mxu0 0
      %3106 = vmatprep.subr.bf16.mxu0 0
      %3107 = vmatpush1.bf16.msra.mxu0 0
      %3108 = vmatprep.subr.bf16.mxu0 0
      %3109 = vmatpush1.bf16.msra.mxu0 0
      %3110 = vmatprep.subr.bf16.mxu0 0
      %3111 = vmatpush1.bf16.msra.mxu0 0
      %3112 = vmatprep.subr.bf16.mxu0 0
      %3113 = vmatpush1.bf16.msra.mxu0 0
      %3114 = vmatprep.subr.bf16.mxu0 0
      %3115 = vmatpush1.bf16.msra.mxu0 0
      %3116 = vmatprep.subr.bf16.mxu0 0
      %3117 = vmatpush1.bf16.msra.mxu0 0
      %3118 = vmatprep.subr.bf16.mxu0 0
      %3119 = vmatpush1.bf16.msra.mxu0 0
      %3120 = vmatprep.subr.bf16.mxu0 0
      %3121 = vmatpush1.bf16.msra.mxu0 0
      %3122 = vmatprep.subr.bf16.mxu0 0
      %3123 = vmatpush1.bf16.msra.mxu0 0
      %3124 = vmatprep.mubr.bf16.mxu0 0
      %3125 = vmatmul.mubr.bf16.gmra.mrb[0].mxu0 %v3008
      %v3126 = vpop.f32.mrb[0].mxu0
      %v3127 = vadd.f32 0.0, %v3126
      %v3128 = vpop.f32.mrb[0].mxu0
      %v3129 = vpop.f32.mrb[0].mxu0
      %v3130 = vadd.f32 0.0, %v3129
      %v3131 = vpop.f32.mrb[0].mxu0
      %3132 = vmatprep.mubr.bf16.mxu0 0
      %3133 = vmatmul.mubr.bf16.gmra.mrb[0].mxu0 %v3011
      %v3134 = vpop.f32.mrb[0].mxu0
      %v3135 = vadd.f32 0.0, %v3134
      %v3136 = vpop.f32.mrb[0].mxu0
      %v3137 = vpop.f32.mrb[0].mxu0
      %v3138 = vadd.f32 0.0, %v3137
      %v3139 = vpop.f32.mrb[0].mxu0
      %3140 = vmatprep.mubr.bf16.mxu0 0
      %3141 = vmatmul.mubr.bf16.gmra.mrb[0].mxu0 %v3014
      %v3142 = vpop.f32.mrb[0].mxu0
      %v3143 = vadd.f32 0.0, %v3142
      %v3144 = vpop.f32.mrb[0].mxu0
      %v3145 = vpop.f32.mrb[0].mxu0
      %v3146 = vadd.f32 0.0, %v3145
      %v3147 = vpop.f32.mrb[0].mxu0
      %3148 = vmatprep.mubr.bf16.mxu0 0
      %3149 = vmatmul.mubr.bf16.gmra.mrb[0].mxu0 %v3017
      %v3150 = vpop.f32.mrb[0].mxu0
      %v3151 = vadd.f32 0.0, %v3150
      %v3152 = vpop.f32.mrb[0].mxu0
      %v3153 = vpop.f32.mrb[0].mxu0
      %v3154 = vadd.f32 0.0, %v3153
      %v3155 = vpop.f32.mrb[0].mxu0
      %3156 = vdwg.mxu0
      %v3157 = vadd.f32 %v2918, %v3054
      %v3158 = vadd.f32 %v2919, %v3056
      %v3159 = vadd.f32 %v2920, %v3127
      %v3160 = vadd.f32 %v2921, %v3058
      %v3161 = vadd.f32 %v2922, %v3060
      %v3162 = vadd.f32 %v2923, %v3130
      %v3163 = vadd.f32 %v2924, %v3064
      %v3164 = vadd.f32 %v2925, %v3066
      %v3165 = vadd.f32 %v2926, %v3135
      %v3166 = vadd.f32 %v2927, %v3068
      %v3167 = vadd.f32 %v2928, %v3070
      %v3168 = vadd.f32 %v2929, %v3138
      %v3169 = vadd.f32 %v2930, %v3074
      %v3170 = vadd.f32 %v2931, %v3076
      %v3171 = vadd.f32 %v2932, %v3143
      %v3172 = vadd.f32 %v2933, %v3078
      %v3173 = vadd.f32 %v2934, %v3080
      %v3174 = vadd.f32 %v2935, %v3146
      %v3175 = vadd.f32 %v2936, %v3084
      %v3176 = vadd.f32 %v2937, %v3086
      %v3177 = vadd.f32 %v2938, %v3151
      %v3178 = vadd.f32 %v2939, %v3088
      %v3179 = vadd.f32 %v2940, %v3090
      %v3180 = vadd.f32 %v2941, %v3154
      %v3181 = vld [vmem:[%s3 + $0x10] sm:$0xf]
      %v3182 = vld [vmem:[%s3 + $0x24] sm:$0xf]
      %v3183 = vld [vmem:[%s3 + $0x38] sm:$0xf]
      %v3184 = vld [vmem:[%s3 + $0x4c] sm:$0xf]
      %v3185 = vld [vmem:[%s3 + $0x60] sm:$0xf]
      %v3186 = vld [vmem:[%s3 + $0x74] sm:$0xf]
      %v3187 = vld [vmem:[%s3 + $0x88] sm:$0xf]
      %v3188 = vld [vmem:[%s3 + $0x9c] sm:$0xf]
      %v3197 = vunpack.c.l.b16 %v3181
      %v3198 = vunpack.c.l.b16 %v3182
      %v3199 = vunpack.c.l.b16 %v3183
      %v3200 = vunpack.c.l.b16 %v3184
      %v3201 = vunpack.c.l.b16 %v3185
      %v3202 = vunpack.c.l.b16 %v3186
      %v3203 = vunpack.c.l.b16 %v3187
      %v3204 = vunpack.c.l.b16 %v3188
      %v3205 = vpack.c.b16 %v3198, %v3197
      %v3206 = vpack.c.b16 %v3200, %v3199
      %v3207 = vpack.c.b16 %v3202, %v3201
      %v3208 = vpack.c.b16 %v3204, %v3203
      %3209 = vrot.lane.b32.xlu0 %v2412, 95
      %v3210 = vpop.permute.xlu0 %3209
      %3211 = vrot.lane.b32.xlu0 %v2413, 95
      %v3212 = vpop.permute.xlu0 %3211
      %3213 = vrot.lane.b32.xlu0 %v2414, 95
      %v3214 = vpop.permute.xlu0 %3213
      %3215 = vrot.lane.b32.xlu0 %v2415, 95
      %v3216 = vpop.permute.xlu0 %3215
      %3217 = vrot.lane.b32.xlu0 %v2416, 95
      %v3218 = vpop.permute.xlu0 %3217
      %3219 = vrot.lane.b32.xlu0 %v2417, 95
      %v3220 = vpop.permute.xlu0 %3219
      %3221 = vrot.lane.b32.xlu0 %v2418, 95
      %v3222 = vpop.permute.xlu0 %3221
      %3223 = vrot.lane.b32.xlu0 %v2419, 95
      %v3224 = vpop.permute.xlu0 %3223
      %3225 = vrot.lane.b32.xlu0 %v2420, 95
      %v3226 = vpop.permute.xlu0 %3225
      %3227 = vrot.lane.b32.xlu0 %v2421, 95
      %v3228 = vpop.permute.xlu0 %3227
      %3229 = vrot.lane.b32.xlu0 %v2422, 95
      %v3230 = vpop.permute.xlu0 %3229
      %3231 = vrot.lane.b32.xlu0 %v2423, 95
      %v3232 = vpop.permute.xlu0 %3231
      %3233 = vrot.lane.b32.xlu0 %v2424, 95
      %v3234 = vpop.permute.xlu0 %3233
      %3235 = vrot.lane.b32.xlu0 %v2425, 95
      %v3236 = vpop.permute.xlu0 %3235
      %3237 = vrot.lane.b32.xlu0 %v2426, 95
      %v3238 = vpop.permute.xlu0 %3237
      %3239 = vrot.lane.b32.xlu0 %v2427, 95
      %v3240 = vpop.permute.xlu0 %3239
      %vm3241 = vcmask 777216
      %v3242 = vsel %vm3241, %v3210, %v3212
      %v3243 = vsel %vm3241, %v3212, %v3214
      %v3244 = vsel %vm3241, %v3214, %v3216
      %v3245 = vsel %vm3241, %v3218, %v3220
      %v3246 = vsel %vm3241, %v3220, %v3222
      %v3247 = vsel %vm3241, %v3222, %v3224
      %v3248 = vsel %vm3241, %v3226, %v3228
      %v3249 = vsel %vm3241, %v3228, %v3230
      %v3250 = vsel %vm3241, %v3230, %v3232
      %v3251 = vsel %vm3241, %v3234, %v3236
      %v3252 = vsel %vm3241, %v3236, %v3238
      %v3253 = vsel %vm3241, %v3238, %v3240
      %v3267 = vsel %vm408, %v3205, 0
      %v3270 = vsel %vm408, %v3206, 0
      %v3273 = vsel %vm408, %v3207, 0
      %v3276 = vsel %vm408, %v3208, 0
      %3278 = vmatprep.subr.bf16.mxu0 %v3243
      %3279 = vmatpush1.bf16.msra.mxu0 %v3242
      %3280 = vmatprep.subr.bf16.mxu0 %v3246
      %3281 = vmatpush1.bf16.msra.mxu0 %v3245
      %3282 = vmatprep.subr.bf16.mxu0 %v3249
      %3283 = vmatpush1.bf16.msra.mxu0 %v3248
      %3284 = vmatprep.subr.bf16.mxu0 %v3252
      %3285 = vmatpush1.bf16.msra.mxu0 %v3251
      %3286 = vmatprep.subr.bf16.mxu0 0
      %3287 = vmatpush1.bf16.msra.mxu0 0
      %3288 = vmatprep.subr.bf16.mxu0 0
      %3289 = vmatpush1.bf16.msra.mxu0 0
      %3290 = vmatprep.subr.bf16.mxu0 0
      %3291 = vmatpush1.bf16.msra.mxu0 0
      %3292 = vmatprep.subr.bf16.mxu0 0
      %3293 = vmatpush1.bf16.msra.mxu0 0
      %3294 = vmatprep.subr.bf16.mxu0 0
      %3295 = vmatpush1.bf16.msra.mxu0 0
      %3296 = vmatprep.subr.bf16.mxu0 0
      %3297 = vmatpush1.bf16.msra.mxu0 0
      %3298 = vmatprep.subr.bf16.mxu0 0
      %3299 = vmatpush1.bf16.msra.mxu0 0
      %3300 = vmatprep.subr.bf16.mxu0 0
      %3301 = vmatpush1.bf16.msra.mxu0 0
      %3302 = vmatprep.subr.bf16.mxu0 0
      %3303 = vmatpush1.bf16.msra.mxu0 0
      %3304 = vmatprep.subr.bf16.mxu0 0
      %3305 = vmatpush1.bf16.msra.mxu0 0
      %3306 = vmatprep.subr.bf16.mxu0 0
      %3307 = vmatpush1.bf16.msra.mxu0 0
      %3308 = vmatprep.subr.bf16.mxu0 0
      %3309 = vmatpush1.bf16.msra.mxu0 0
      %3310 = vmatprep.mubr.bf16.mxu0 0
      %3311 = vmatmul.mubr.bf16.gmra.mrb[0].mxu0 %v3267
      %v3312 = vpop.f32.mrb[0].mxu0
      %v3313 = vadd.f32 0.0, %v3312
      %v3314 = vpop.f32.mrb[0].mxu0
      %v3315 = vadd.f32 0.0, %v3314
      %v3316 = vpop.f32.mrb[0].mxu0
      %v3317 = vadd.f32 0.0, %v3316
      %v3318 = vpop.f32.mrb[0].mxu0
      %v3319 = vadd.f32 0.0, %v3318
      %3320 = vmatprep.mubr.bf16.mxu0 0
      %3321 = vmatmul.mubr.bf16.gmra.mrb[0].mxu0 %v3270
      %v3322 = vpop.f32.mrb[0].mxu0
      %v3323 = vadd.f32 0.0, %v3322
      %v3324 = vpop.f32.mrb[0].mxu0
      %v3325 = vadd.f32 0.0, %v3324
      %v3326 = vpop.f32.mrb[0].mxu0
      %v3327 = vadd.f32 0.0, %v3326
      %v3328 = vpop.f32.mrb[0].mxu0
      %v3329 = vadd.f32 0.0, %v3328
      %3330 = vmatprep.mubr.bf16.mxu0 0
      %3331 = vmatmul.mubr.bf16.gmra.mrb[0].mxu0 %v3273
      %v3332 = vpop.f32.mrb[0].mxu0
      %v3333 = vadd.f32 0.0, %v3332
      %v3334 = vpop.f32.mrb[0].mxu0
      %v3335 = vadd.f32 0.0, %v3334
      %v3336 = vpop.f32.mrb[0].mxu0
      %v3337 = vadd.f32 0.0, %v3336
      %v3338 = vpop.f32.mrb[0].mxu0
      %v3339 = vadd.f32 0.0, %v3338
      %3340 = vmatprep.mubr.bf16.mxu0 0
      %3341 = vmatmul.mubr.bf16.gmra.mrb[0].mxu0 %v3276
      %v3342 = vpop.f32.mrb[0].mxu0
      %v3343 = vadd.f32 0.0, %v3342
      %v3344 = vpop.f32.mrb[0].mxu0
      %v3345 = vadd.f32 0.0, %v3344
      %v3346 = vpop.f32.mrb[0].mxu0
      %v3347 = vadd.f32 0.0, %v3346
      %v3348 = vpop.f32.mrb[0].mxu0
      %v3349 = vadd.f32 0.0, %v3348
      %3350 = vdwg.mxu0
      %3351 = vmatprep.subr.bf16.mxu0 0
      %3352 = vmatpush1.bf16.msra.mxu0 %v3244
      %3353 = vmatprep.subr.bf16.mxu0 0
      %3354 = vmatpush1.bf16.msra.mxu0 %v3247
      %3355 = vmatprep.subr.bf16.mxu0 0
      %3356 = vmatpush1.bf16.msra.mxu0 %v3250
      %3357 = vmatprep.subr.bf16.mxu0 0
      %3358 = vmatpush1.bf16.msra.mxu0 %v3253
      %3359 = vmatprep.subr.bf16.mxu0 0
      %3360 = vmatpush1.bf16.msra.mxu0 0
      %3361 = vmatprep.subr.bf16.mxu0 0
      %3362 = vmatpush1.bf16.msra.mxu0 0
      %3363 = vmatprep.subr.bf16.mxu0 0
      %3364 = vmatpush1.bf16.msra.mxu0 0
      %3365 = vmatprep.subr.bf16.mxu0 0
      %3366 = vmatpush1.bf16.msra.mxu0 0
      %3367 = vmatprep.subr.bf16.mxu0 0
      %3368 = vmatpush1.bf16.msra.mxu0 0
      %3369 = vmatprep.subr.bf16.mxu0 0
      %3370 = vmatpush1.bf16.msra.mxu0 0
      %3371 = vmatprep.subr.bf16.mxu0 0
      %3372 = vmatpush1.bf16.msra.mxu0 0
      %3373 = vmatprep.subr.bf16.mxu0 0
      %3374 = vmatpush1.bf16.msra.mxu0 0
      %3375 = vmatprep.subr.bf16.mxu0 0
      %3376 = vmatpush1.bf16.msra.mxu0 0
      %3377 = vmatprep.subr.bf16.mxu0 0
      %3378 = vmatpush1.bf16.msra.mxu0 0
      %3379 = vmatprep.subr.bf16.mxu0 0
      %3380 = vmatpush1.bf16.msra.mxu0 0
      %3381 = vmatprep.subr.bf16.mxu0 0
      %3382 = vmatpush1.bf16.msra.mxu0 0
      %3383 = vmatprep.mubr.bf16.mxu0 0
      %3384 = vmatmul.mubr.bf16.gmra.mrb[0].mxu0 %v3267
      %v3385 = vpop.f32.mrb[0].mxu0
      %v3386 = vadd.f32 0.0, %v3385
      %v3387 = vpop.f32.mrb[0].mxu0
      %v3388 = vpop.f32.mrb[0].mxu0
      %v3389 = vadd.f32 0.0, %v3388
      %v3390 = vpop.f32.mrb[0].mxu0
      %3391 = vmatprep.mubr.bf16.mxu0 0
      %3392 = vmatmul.mubr.bf16.gmra.mrb[0].mxu0 %v3270
      %v3393 = vpop.f32.mrb[0].mxu0
      %v3394 = vadd.f32 0.0, %v3393
      %v3395 = vpop.f32.mrb[0].mxu0
      %v3396 = vpop.f32.mrb[0].mxu0
      %v3397 = vadd.f32 0.0, %v3396
      %v3398 = vpop.f32.mrb[0].mxu0
      %3399 = vmatprep.mubr.bf16.mxu0 0
      %3400 = vmatmul.mubr.bf16.gmra.mrb[0].mxu0 %v3273
      %v3401 = vpop.f32.mrb[0].mxu0
      %v3402 = vadd.f32 0.0, %v3401
      %v3403 = vpop.f32.mrb[0].mxu0
      %v3404 = vpop.f32.mrb[0].mxu0
      %v3405 = vadd.f32 0.0, %v3404
      %v3406 = vpop.f32.mrb[0].mxu0
      %3407 = vmatprep.mubr.bf16.mxu0 0
      %3408 = vmatmul.mubr.bf16.gmra.mrb[0].mxu0 %v3276
      %v3409 = vpop.f32.mrb[0].mxu0
      %v3410 = vadd.f32 0.0, %v3409
      %v3411 = vpop.f32.mrb[0].mxu0
      %v3412 = vpop.f32.mrb[0].mxu0
      %v3413 = vadd.f32 0.0, %v3412
      %v3414 = vpop.f32.mrb[0].mxu0
      %3415 = vdwg.mxu0
      %v3416 = vadd.f32 %v3157, %v3313
      %v3417 = vadd.f32 %v3158, %v3315
      %v3418 = vadd.f32 %v3159, %v3386
      %v3419 = vadd.f32 %v3160, %v3317
      %v3420 = vadd.f32 %v3161, %v3319
      %v3421 = vadd.f32 %v3162, %v3389
      %v3422 = vadd.f32 %v3163, %v3323
      %v3423 = vadd.f32 %v3164, %v3325
      %v3424 = vadd.f32 %v3165, %v3394
      %v3425 = vadd.f32 %v3166, %v3327
      %v3426 = vadd.f32 %v3167, %v3329
      %v3427 = vadd.f32 %v3168, %v3397
      %v3428 = vadd.f32 %v3169, %v3333
      %v3429 = vadd.f32 %v3170, %v3335
      %v3430 = vadd.f32 %v3171, %v3402
      %v3431 = vadd.f32 %v3172, %v3337
      %v3432 = vadd.f32 %v3173, %v3339
      %v3433 = vadd.f32 %v3174, %v3405
      %v3434 = vadd.f32 %v3175, %v3343
      %v3435 = vadd.f32 %v3176, %v3345
      %v3436 = vadd.f32 %v3177, %v3410
      %v3437 = vadd.f32 %v3178, %v3347
      %v3438 = vadd.f32 %v3179, %v3349
      %v3439 = vadd.f32 %v3180, %v3413
      %v3440 = vld [vmem:[%s4] sm:$0xff]
      %v3441 = vld [vmem:[%s4 + $0x8] sm:$0xff]
      %v3442 = vld [vmem:[%s4 + $0x10] sm:$0xff]
      %v3443 = vld [vmem:[%s4 + $0x18] sm:$0xff]
      %v3444 = vld [vmem:[%s4 + $0x20] sm:$0xff]
      %v3445 = vld [vmem:[%s4 + $0x28] sm:$0xff]
      %v3446 = vld [vmem:[%s4 + $0x30] sm:$0xff]
      %v3447 = vld [vmem:[%s4 + $0x38] sm:$0xff]
      %3449 = vset.pattern.permute.xlu0 0
      %3450 = vperm.xlu0 %3449, %v3440
      %v3451 = vpop.permute.xlu0 %3450
      %3454 = vset.pattern.permute.xlu0 0
      %3455 = vperm.xlu0 %3454, %v3441
      %v3456 = vpop.permute.xlu0 %3455
      %3459 = vset.pattern.permute.xlu0 0
      %3460 = vperm.xlu0 %3459, %v3442
      %v3461 = vpop.permute.xlu0 %3460
      %3464 = vset.pattern.permute.xlu0 0
      %3465 = vperm.xlu0 %3464, %v3443
      %v3466 = vpop.permute.xlu0 %3465
      %3469 = vset.pattern.permute.xlu0 0
      %3470 = vperm.xlu0 %3469, %v3444
      %v3471 = vpop.permute.xlu0 %3470
      %3474 = vset.pattern.permute.xlu0 0
      %3475 = vperm.xlu0 %3474, %v3445
      %v3476 = vpop.permute.xlu0 %3475
      %3479 = vset.pattern.permute.xlu0 0
      %3480 = vperm.xlu0 %3479, %v3446
      %v3481 = vpop.permute.xlu0 %3480
      %3484 = vset.pattern.permute.xlu0 0
      %3485 = vperm.xlu0 %3484, %v3447
      %v3486 = vpop.permute.xlu0 %3485
      %v3488 = vadd.f32 %v3416, %v3451
      %v3489 = vadd.f32 %v3417, %v3451
      %v3490 = vadd.f32 %v3418, %v3451
      %v3491 = vadd.f32 %v3419, %v3456
      %v3492 = vadd.f32 %v3420, %v3456
      %v3493 = vadd.f32 %v3421, %v3456
      %v3494 = vadd.f32 %v3422, %v3461
      %v3495 = vadd.f32 %v3423, %v3461
      %v3496 = vadd.f32 %v3424, %v3461
      %v3497 = vadd.f32 %v3425, %v3466
      %v3498 = vadd.f32 %v3426, %v3466
      %v3499 = vadd.f32 %v3427, %v3466
      %v3500 = vadd.f32 %v3428, %v3471
      %v3501 = vadd.f32 %v3429, %v3471
      %v3502 = vadd.f32 %v3430, %v3471
      %v3503 = vadd.f32 %v3431, %v3476
      %v3504 = vadd.f32 %v3432, %v3476
      %v3505 = vadd.f32 %v3433, %v3476
      %v3506 = vadd.f32 %v3434, %v3481
      %v3507 = vadd.f32 %v3435, %v3481
      %v3508 = vadd.f32 %v3436, %v3481
      %v3509 = vadd.f32 %v3437, %v3486
      %v3510 = vadd.f32 %v3438, %v3486
      %v3511 = vadd.f32 %v3439, %v3486
      %v3512 = vmax.f32 %v3488, 0.0
      %v3513 = vmax.f32 %v3489, 0.0
      %v3514 = vmax.f32 %v3490, 0.0
      %v3515 = vmax.f32 %v3491, 0.0
      %v3516 = vmax.f32 %v3492, 0.0
      %v3517 = vmax.f32 %v3493, 0.0
      %v3518 = vmax.f32 %v3494, 0.0
      %v3519 = vmax.f32 %v3495, 0.0
      %v3520 = vmax.f32 %v3496, 0.0
      %v3521 = vmax.f32 %v3497, 0.0
      %v3522 = vmax.f32 %v3498, 0.0
      %v3523 = vmax.f32 %v3499, 0.0
      %v3524 = vmax.f32 %v3500, 0.0
      %v3525 = vmax.f32 %v3501, 0.0
      %v3526 = vmax.f32 %v3502, 0.0
      %v3527 = vmax.f32 %v3503, 0.0
      %v3528 = vmax.f32 %v3504, 0.0
      %v3529 = vmax.f32 %v3505, 0.0
      %v3530 = vmax.f32 %v3506, 0.0
      %v3531 = vmax.f32 %v3507, 0.0
      %v3532 = vmax.f32 %v3508, 0.0
      %v3533 = vmax.f32 %v3509, 0.0
      %v3534 = vmax.f32 %v3510, 0.0
      %v3535 = vmax.f32 %v3511, 0.0
      %v3536 = vld [vmem:[%s9] sm:$0x7]
      %v3538 = vlaneseq
      %v3539 = vshrl.u32 %v3538, 7
      %v3540 = vsub.s32 0, %v3539
      %v3541 = vrot.slane %v3536, %v3540
      %v3542 = vlaneseq
      %v3543 = vshrl.u32 %v3542, 7
      %v3544 = vsub.s32 1, %v3543
      %v3545 = vrot.slane %v3536, %v3544
      %v3546 = vlaneseq
      %v3547 = vshrl.u32 %v3546, 7
      %v3548 = vsub.s32 2, %v3547
      %v3549 = vrot.slane %v3536, %v3548
      %v3553 = vmul.f32 %v3512, %v3541
      %v3554 = vmul.f32 %v3513, %v3545
      %v3555 = vmul.f32 %v3514, %v3549
      %v3556 = vmul.f32 %v3515, %v3541
      %v3557 = vmul.f32 %v3516, %v3545
      %v3558 = vmul.f32 %v3517, %v3549
      %v3559 = vmul.f32 %v3518, %v3541
      %v3560 = vmul.f32 %v3519, %v3545
      %v3561 = vmul.f32 %v3520, %v3549
      %v3562 = vmul.f32 %v3521, %v3541
      %v3563 = vmul.f32 %v3522, %v3545
      %v3564 = vmul.f32 %v3523, %v3549
      %v3565 = vmul.f32 %v3524, %v3541
      %v3566 = vmul.f32 %v3525, %v3545
      %v3567 = vmul.f32 %v3526, %v3549
      %v3568 = vmul.f32 %v3527, %v3541
      %v3569 = vmul.f32 %v3528, %v3545
      %v3570 = vmul.f32 %v3529, %v3549
      %v3571 = vmul.f32 %v3530, %v3541
      %v3572 = vmul.f32 %v3531, %v3545
      %v3573 = vmul.f32 %v3532, %v3549
      %v3574 = vmul.f32 %v3533, %v3541
      %v3575 = vmul.f32 %v3534, %v3545
      %v3576 = vmul.f32 %v3535, %v3549
      %v3577 = vpack.c.bf16 %v3556, %v3553
      %v3578 = vpack.c.bf16 %v3557, %v3554
      %v3579 = vpack.c.bf16 %v3558, %v3555
      %v3580 = vpack.c.bf16 %v3562, %v3559
      %v3581 = vpack.c.bf16 %v3563, %v3560
      %v3582 = vpack.c.bf16 %v3564, %v3561
      %v3583 = vpack.c.bf16 %v3568, %v3565
      %v3584 = vpack.c.bf16 %v3569, %v3566
      %v3585 = vpack.c.bf16 %v3570, %v3567
      %v3586 = vpack.c.bf16 %v3574, %v3571
      %v3587 = vpack.c.bf16 %v3575, %v3572
      %v3588 = vpack.c.bf16 %v3576, %v3573
      %3589 = vst [vmem:[#allocation4 + $0x8] sm:$0xff] %v3577
      %3590 = vst [vmem:[#allocation4 + $0x10] sm:$0xff] %v3578
      %3591 = vst [vmem:[#allocation4 + $0x18] sm:$0xff] %v3579
      %3592 = vst [vmem:[#allocation4 + $0x40] sm:$0xff] %v3580
      %3593 = vst [vmem:[#allocation4 + $0x48] sm:$0xff] %v3581
      %3594 = vst [vmem:[#allocation4 + $0x50] sm:$0xff] %v3582
      %3595 = vst [vmem:[#allocation4 + $0x78] sm:$0xff] %v3583
      %3596 = vst [vmem:[#allocation4 + $0x80] sm:$0xff] %v3584
      %3597 = vst [vmem:[#allocation4 + $0x88] sm:$0xff] %v3585
      %3598 = vst [vmem:[#allocation4 + $0xb0] sm:$0xff] %v3586
      %3599 = vst [vmem:[#allocation4 + $0xb8] sm:$0xff] %v3587
      %3600 = vst [vmem:[#allocation4 + $0xc0] sm:$0xff] %v3588
      %v3601 = vld [vmem:[%s3] sm:$0xf]
      %v3602 = vld [vmem:[%s3 + $0x14] sm:$0xf]
      %v3603 = vld [vmem:[%s3 + $0x28] sm:$0xf]
      %v3604 = vld [vmem:[%s3 + $0x3c] sm:$0xf]
      %v3605 = vld [vmem:[%s3 + $0x50] sm:$0xf]
      %v3606 = vld [vmem:[%s3 + $0x64] sm:$0xf]
      %v3607 = vld [vmem:[%s3 + $0x78] sm:$0xf]
      %v3608 = vld [vmem:[%s3 + $0x8c] sm:$0xf]
      %v3609 = vld [vmem:[#allocation3 + $0x18] sm:$0xff]
      %v3610 = vld [vmem:[#allocation3 + $0x20] sm:$0xff]
      %v3611 = vld [vmem:[#allocation3 + $0x28] sm:$0xff]
      %v3612 = vld [vmem:[#allocation3 + $0x50] sm:$0xff]
      %v3613 = vld [vmem:[#allocation3 + $0x58] sm:$0xff]
      %v3614 = vld [vmem:[#allocation3 + $0x60] sm:$0xff]
      %v3615 = vld [vmem:[#allocation3 + $0x88] sm:$0xff]
      %v3616 = vld [vmem:[#allocation3 + $0x90] sm:$0xff]
      %v3617 = vld [vmem:[#allocation3 + $0x98] sm:$0xff]
      %v3618 = vld [vmem:[#allocation3 + $0xc0] sm:$0xff]
      %v3619 = vld [vmem:[#allocation3 + $0xc8] sm:$0xff]
      %v3620 = vld [vmem:[#allocation3 + $0xd0] sm:$0xff]
      %v3629 = vunpack.c.l.b16 %v3601
      %v3630 = vunpack.c.l.b16 %v3602
      %v3631 = vunpack.c.l.b16 %v3603
      %v3632 = vunpack.c.l.b16 %v3604
      %v3633 = vunpack.c.l.b16 %v3605
      %v3634 = vunpack.c.l.b16 %v3606
      %v3635 = vunpack.c.l.b16 %v3607
      %v3636 = vunpack.c.l.b16 %v3608
      %v3637 = vpack.c.b16 %v3630, %v3629
      %v3638 = vpack.c.b16 %v3632, %v3631
      %v3639 = vpack.c.b16 %v3634, %v3633
      %v3640 = vpack.c.b16 %v3636, %v3635
      %3641 = vrot.lane.b32.xlu0 %v3637, 64
      %v3642 = vpop.permute.xlu0 %3641
      %3643 = vrot.lane.b32.xlu0 %v3638, 64
      %v3644 = vpop.permute.xlu0 %3643
      %3645 = vrot.lane.b32.xlu0 %v3639, 64
      %v3646 = vpop.permute.xlu0 %3645
      %3647 = vrot.lane.b32.xlu0 %v3640, 64
      %v3648 = vpop.permute.xlu0 %3647
      %3661 = vrot.lane.b32.xlu0 %v3609, 32
      %v3662 = vpop.permute.xlu0 %3661
      %3663 = vrot.lane.b32.xlu0 %v3610, 32
      %v3664 = vpop.permute.xlu0 %3663
      %3665 = vrot.lane.b32.xlu0 %v3611, 32
      %v3666 = vpop.permute.xlu0 %3665
      %3667 = vrot.lane.b32.xlu0 %v3612, 32
      %v3668 = vpop.permute.xlu0 %3667
      %3669 = vrot.lane.b32.xlu0 %v3613, 32
      %v3670 = vpop.permute.xlu0 %3669
      %3671 = vrot.lane.b32.xlu0 %v3614, 32
      %v3672 = vpop.permute.xlu0 %3671
      %3673 = vrot.lane.b32.xlu0 %v3615, 32
      %v3674 = vpop.permute.xlu0 %3673
      %3675 = vrot.lane.b32.xlu0 %v3616, 32
      %v3676 = vpop.permute.xlu0 %3675
      %3677 = vrot.lane.b32.xlu0 %v3617, 32
      %v3678 = vpop.permute.xlu0 %3677
      %3679 = vrot.lane.b32.xlu0 %v3618, 32
      %v3680 = vpop.permute.xlu0 %3679
      %3681 = vrot.lane.b32.xlu0 %v3619, 32
      %v3682 = vpop.permute.xlu0 %3681
      %3683 = vrot.lane.b32.xlu0 %v3620, 32
      %v3684 = vpop.permute.xlu0 %3683
      %v3685 = vsel %vm1330, %v3662, %v3664
      %v3686 = vsel %vm1330, %v3664, %v3666
      %v3687 = vsel %vm1330, %v3668, %v3670
      %v3688 = vsel %vm1330, %v3670, %v3672
      %v3689 = vsel %vm1330, %v3674, %v3676
      %v3690 = vsel %vm1330, %v3676, %v3678
      %v3691 = vsel %vm1330, %v3680, %v3682
      %v3692 = vsel %vm1330, %v3682, %v3684
      %v3702 = vsel %vm408, %v3642, 0
      %v3705 = vsel %vm408, %v3644, 0
      %v3708 = vsel %vm408, %v3646, 0
      %v3711 = vsel %vm408, %v3648, 0
      %3713 = vmatprep.subr.bf16.mxu0 %v3686
      %3714 = vmatpush1.bf16.msra.mxu0 %v3685
      %3715 = vmatprep.subr.bf16.mxu0 %v3688
      %3716 = vmatpush1.bf16.msra.mxu0 %v3687
      %3717 = vmatprep.subr.bf16.mxu0 %v3690
      %3718 = vmatpush1.bf16.msra.mxu0 %v3689
      %3719 = vmatprep.subr.bf16.mxu0 %v3692
      %3720 = vmatpush1.bf16.msra.mxu0 %v3691
      %3721 = vmatprep.subr.bf16.mxu0 0
      %3722 = vmatpush1.bf16.msra.mxu0 0
      %3723 = vmatprep.subr.bf16.mxu0 0
      %3724 = vmatpush1.bf16.msra.mxu0 0
      %3725 = vmatprep.subr.bf16.mxu0 0
      %3726 = vmatpush1.bf16.msra.mxu0 0
      %3727 = vmatprep.subr.bf16.mxu0 0
      %3728 = vmatpush1.bf16.msra.mxu0 0
      %3729 = vmatprep.subr.bf16.mxu0 0
      %3730 = vmatpush1.bf16.msra.mxu0 0
      %3731 = vmatprep.subr.bf16.mxu0 0
      %3732 = vmatpush1.bf16.msra.mxu0 0
      %3733 = vmatprep.subr.bf16.mxu0 0
      %3734 = vmatpush1.bf16.msra.mxu0 0
      %3735 = vmatprep.subr.bf16.mxu0 0
      %3736 = vmatpush1.bf16.msra.mxu0 0
      %3737 = vmatprep.subr.bf16.mxu0 0
      %3738 = vmatpush1.bf16.msra.mxu0 0
      %3739 = vmatprep.subr.bf16.mxu0 0
      %3740 = vmatpush1.bf16.msra.mxu0 0
      %3741 = vmatprep.subr.bf16.mxu0 0
      %3742 = vmatpush1.bf16.msra.mxu0 0
      %3743 = vmatprep.subr.bf16.mxu0 0
      %3744 = vmatpush1.bf16.msra.mxu0 0
      %3745 = vmatprep.mubr.bf16.mxu0 0
      %3746 = vmatmul.mubr.bf16.gmra.mrb[0].mxu0 %v3702
      %v3747 = vpop.f32.mrb[0].mxu0
      %v3748 = vadd.f32 0.0, %v3747
      %v3749 = vpop.f32.mrb[0].mxu0
      %v3750 = vadd.f32 0.0, %v3749
      %v3751 = vpop.f32.mrb[0].mxu0
      %v3752 = vadd.f32 0.0, %v3751
      %v3753 = vpop.f32.mrb[0].mxu0
      %v3754 = vadd.f32 0.0, %v3753
      %3755 = vmatprep.mubr.bf16.mxu0 0
      %3756 = vmatmul.mubr.bf16.gmra.mrb[0].mxu0 %v3705
      %v3757 = vpop.f32.mrb[0].mxu0
      %v3758 = vadd.f32 0.0, %v3757
      %v3759 = vpop.f32.mrb[0].mxu0
      %v3760 = vadd.f32 0.0, %v3759
      %v3761 = vpop.f32.mrb[0].mxu0
      %v3762 = vadd.f32 0.0, %v3761
      %v3763 = vpop.f32.mrb[0].mxu0
      %v3764 = vadd.f32 0.0, %v3763
      %3765 = vmatprep.mubr.bf16.mxu0 0
      %3766 = vmatmul.mubr.bf16.gmra.mrb[0].mxu0 %v3708
      %v3767 = vpop.f32.mrb[0].mxu0
      %v3768 = vadd.f32 0.0, %v3767
      %v3769 = vpop.f32.mrb[0].mxu0
      %v3770 = vadd.f32 0.0, %v3769
      %v3771 = vpop.f32.mrb[0].mxu0
      %v3772 = vadd.f32 0.0, %v3771
      %v3773 = vpop.f32.mrb[0].mxu0
      %v3774 = vadd.f32 0.0, %v3773
      %3775 = vmatprep.mubr.bf16.mxu0 0
      %3776 = vmatmul.mubr.bf16.gmra.mrb[0].mxu0 %v3711
      %v3777 = vpop.f32.mrb[0].mxu0
      %v3778 = vadd.f32 0.0, %v3777
      %v3779 = vpop.f32.mrb[0].mxu0
      %v3780 = vadd.f32 0.0, %v3779
      %v3781 = vpop.f32.mrb[0].mxu0
      %v3782 = vadd.f32 0.0, %v3781
      %v3783 = vpop.f32.mrb[0].mxu0
      %v3784 = vadd.f32 0.0, %v3783
      %3785 = vdwg.mxu0
      %3786 = vrot.lane.b32.xlu0 %v3609, 33
      %v3787 = vpop.permute.xlu0 %3786
      %3788 = vrot.lane.b32.xlu0 %v3610, 33
      %v3789 = vpop.permute.xlu0 %3788
      %3790 = vrot.lane.b32.xlu0 %v3611, 33
      %v3791 = vpop.permute.xlu0 %3790
      %3792 = vrot.lane.b32.xlu0 %v3612, 33
      %v3793 = vpop.permute.xlu0 %3792
      %3794 = vrot.lane.b32.xlu0 %v3613, 33
      %v3795 = vpop.permute.xlu0 %3794
      %3796 = vrot.lane.b32.xlu0 %v3614, 33
      %v3797 = vpop.permute.xlu0 %3796
      %3798 = vrot.lane.b32.xlu0 %v3615, 33
      %v3799 = vpop.permute.xlu0 %3798
      %3800 = vrot.lane.b32.xlu0 %v3616, 33
      %v3801 = vpop.permute.xlu0 %3800
      %3802 = vrot.lane.b32.xlu0 %v3617, 33
      %v3803 = vpop.permute.xlu0 %3802
      %3804 = vrot.lane.b32.xlu0 %v3618, 33
      %v3805 = vpop.permute.xlu0 %3804
      %3806 = vrot.lane.b32.xlu0 %v3619, 33
      %v3807 = vpop.permute.xlu0 %3806
      %3808 = vrot.lane.b32.xlu0 %v3620, 33
      %v3809 = vpop.permute.xlu0 %3808
      %v3810 = vsel %vm1537, %v3787, %v3789
      %v3811 = vsel %vm1537, %v3789, %v3791
      %v3812 = vsel %vm1537, %v3793, %v3795
      %v3813 = vsel %vm1537, %v3795, %v3797
      %v3814 = vsel %vm1537, %v3799, %v3801
      %v3815 = vsel %vm1537, %v3801, %v3803
      %v3816 = vsel %vm1537, %v3805, %v3807
      %v3817 = vsel %vm1537, %v3807, %v3809
      %v3827 = vsel %vm408, %v3637, 0
      %v3830 = vsel %vm408, %v3638, 0
      %v3833 = vsel %vm408, %v3639, 0
      %v3836 = vsel %vm408, %v3640, 0
      %3838 = vmatprep.subr.bf16.mxu0 %v3811
      %3839 = vmatpush1.bf16.msra.mxu0 %v3810
      %3840 = vmatprep.subr.bf16.mxu0 %v3813
      %3841 = vmatpush1.bf16.msra.mxu0 %v3812
      %3842 = vmatprep.subr.bf16.mxu0 %v3815
      %3843 = vmatpush1.bf16.msra.mxu0 %v3814
      %3844 = vmatprep.subr.bf16.mxu0 %v3817
      %3845 = vmatpush1.bf16.msra.mxu0 %v3816
      %3846 = vmatprep.subr.bf16.mxu0 0
      %3847 = vmatpush1.bf16.msra.mxu0 0
      %3848 = vmatprep.subr.bf16.mxu0 0
      %3849 = vmatpush1.bf16.msra.mxu0 0
      %3850 = vmatprep.subr.bf16.mxu0 0
      %3851 = vmatpush1.bf16.msra.mxu0 0
      %3852 = vmatprep.subr.bf16.mxu0 0
      %3853 = vmatpush1.bf16.msra.mxu0 0
      %3854 = vmatprep.subr.bf16.mxu0 0
      %3855 = vmatpush1.bf16.msra.mxu0 0
      %3856 = vmatprep.subr.bf16.mxu0 0
      %3857 = vmatpush1.bf16.msra.mxu0 0
      %3858 = vmatprep.subr.bf16.mxu0 0
      %3859 = vmatpush1.bf16.msra.mxu0 0
      %3860 = vmatprep.subr.bf16.mxu0 0
      %3861 = vmatpush1.bf16.msra.mxu0 0
      %3862 = vmatprep.subr.bf16.mxu0 0
      %3863 = vmatpush1.bf16.msra.mxu0 0
      %3864 = vmatprep.subr.bf16.mxu0 0
      %3865 = vmatpush1.bf16.msra.mxu0 0
      %3866 = vmatprep.subr.bf16.mxu0 0
      %3867 = vmatpush1.bf16.msra.mxu0 0
      %3868 = vmatprep.subr.bf16.mxu0 0
      %3869 = vmatpush1.bf16.msra.mxu0 0
      %3870 = vmatprep.mubr.bf16.mxu0 0
      %3871 = vmatmul.mubr.bf16.gmra.mrb[0].mxu0 %v3827
      %v3872 = vpop.f32.mrb[0].mxu0
      %v3873 = vadd.f32 %v3748, %v3872
      %v3874 = vpop.f32.mrb[0].mxu0
      %v3875 = vadd.f32 %v3750, %v3874
      %v3876 = vpop.f32.mrb[0].mxu0
      %v3877 = vadd.f32 %v3752, %v3876
      %v3878 = vpop.f32.mrb[0].mxu0
      %v3879 = vadd.f32 %v3754, %v3878
      %3880 = vmatprep.mubr.bf16.mxu0 0
      %3881 = vmatmul.mubr.bf16.gmra.mrb[0].mxu0 %v3830
      %v3882 = vpop.f32.mrb[0].mxu0
      %v3883 = vadd.f32 %v3758, %v3882
      %v3884 = vpop.f32.mrb[0].mxu0
      %v3885 = vadd.f32 %v3760, %v3884
      %v3886 = vpop.f32.mrb[0].mxu0
      %v3887 = vadd.f32 %v3762, %v3886
      %v3888 = vpop.f32.mrb[0].mxu0
      %v3889 = vadd.f32 %v3764, %v3888
      %3890 = vmatprep.mubr.bf16.mxu0 0
      %3891 = vmatmul.mubr.bf16.gmra.mrb[0].mxu0 %v3833
      %v3892 = vpop.f32.mrb[0].mxu0
      %v3893 = vadd.f32 %v3768, %v3892
      %v3894 = vpop.f32.mrb[0].mxu0
      %v3895 = vadd.f32 %v3770, %v3894
      %v3896 = vpop.f32.mrb[0].mxu0
      %v3897 = vadd.f32 %v3772, %v3896
      %v3898 = vpop.f32.mrb[0].mxu0
      %v3899 = vadd.f32 %v3774, %v3898
      %3900 = vmatprep.mubr.bf16.mxu0 0
      %3901 = vmatmul.mubr.bf16.gmra.mrb[0].mxu0 %v3836
      %v3902 = vpop.f32.mrb[0].mxu0
      %v3903 = vadd.f32 %v3778, %v3902
      %v3904 = vpop.f32.mrb[0].mxu0
      %v3905 = vadd.f32 %v3780, %v3904
      %v3906 = vpop.f32.mrb[0].mxu0
      %v3907 = vadd.f32 %v3782, %v3906
      %v3908 = vpop.f32.mrb[0].mxu0
      %v3909 = vadd.f32 %v3784, %v3908
      %3910 = vdwg.mxu0
      %v3911 = vld [vmem:[%s3 + $0x4] sm:$0xf]
      %v3912 = vld [vmem:[%s3 + $0x18] sm:$0xf]
      %v3913 = vld [vmem:[%s3 + $0x2c] sm:$0xf]
      %v3914 = vld [vmem:[%s3 + $0x40] sm:$0xf]
      %v3915 = vld [vmem:[%s3 + $0x54] sm:$0xf]
      %v3916 = vld [vmem:[%s3 + $0x68] sm:$0xf]
      %v3917 = vld [vmem:[%s3 + $0x7c] sm:$0xf]
      %v3918 = vld [vmem:[%s3 + $0x90] sm:$0xf]
      %v3927 = vunpack.c.l.b16 %v3911
      %v3928 = vunpack.c.l.b16 %v3912
      %v3929 = vunpack.c.l.b16 %v3913
      %v3930 = vunpack.c.l.b16 %v3914
      %v3931 = vunpack.c.l.b16 %v3915
      %v3932 = vunpack.c.l.b16 %v3916
      %v3933 = vunpack.c.l.b16 %v3917
      %v3934 = vunpack.c.l.b16 %v3918
      %v3935 = vpack.c.b16 %v3928, %v3927
      %v3936 = vpack.c.b16 %v3930, %v3929
      %v3937 = vpack.c.b16 %v3932, %v3931
      %v3938 = vpack.c.b16 %v3934, %v3933
      %3939 = vrot.lane.b32.xlu0 %v3609, 31
      %v3940 = vpop.permute.xlu0 %3939
      %3941 = vrot.lane.b32.xlu0 %v3610, 31
      %v3942 = vpop.permute.xlu0 %3941
      %3943 = vrot.lane.b32.xlu0 %v3611, 31
      %v3944 = vpop.permute.xlu0 %3943
      %3945 = vrot.lane.b32.xlu0 %v3612, 31
      %v3946 = vpop.permute.xlu0 %3945
      %3947 = vrot.lane.b32.xlu0 %v3613, 31
      %v3948 = vpop.permute.xlu0 %3947
      %3949 = vrot.lane.b32.xlu0 %v3614, 31
      %v3950 = vpop.permute.xlu0 %3949
      %3951 = vrot.lane.b32.xlu0 %v3615, 31
      %v3952 = vpop.permute.xlu0 %3951
      %3953 = vrot.lane.b32.xlu0 %v3616, 31
      %v3954 = vpop.permute.xlu0 %3953
      %3955 = vrot.lane.b32.xlu0 %v3617, 31
      %v3956 = vpop.permute.xlu0 %3955
      %3957 = vrot.lane.b32.xlu0 %v3618, 31
      %v3958 = vpop.permute.xlu0 %3957
      %3959 = vrot.lane.b32.xlu0 %v3619, 31
      %v3960 = vpop.permute.xlu0 %3959
      %3961 = vrot.lane.b32.xlu0 %v3620, 31
      %v3962 = vpop.permute.xlu0 %3961
      %v3963 = vsel %vm1772, %v3940, %v3942
      %v3964 = vsel %vm1772, %v3942, %v3944
      %v3965 = vsel %vm1772, %v3946, %v3948
      %v3966 = vsel %vm1772, %v3948, %v3950
      %v3967 = vsel %vm1772, %v3952, %v3954
      %v3968 = vsel %vm1772, %v3954, %v3956
      %v3969 = vsel %vm1772, %v3958, %v3960
      %v3970 = vsel %vm1772, %v3960, %v3962
      %v3980 = vsel %vm408, %v3935, 0
      %v3983 = vsel %vm408, %v3936, 0
      %v3986 = vsel %vm408, %v3937, 0
      %v3989 = vsel %vm408, %v3938, 0
      %3991 = vmatprep.subr.bf16.mxu0 %v3964
      %3992 = vmatpush1.bf16.msra.mxu0 %v3963
      %3993 = vmatprep.subr.bf16.mxu0 %v3966
      %3994 = vmatpush1.bf16.msra.mxu0 %v3965
      %3995 = vmatprep.subr.bf16.mxu0 %v3968
      %3996 = vmatpush1.bf16.msra.mxu0 %v3967
      %3997 = vmatprep.subr.bf16.mxu0 %v3970
      %3998 = vmatpush1.bf16.msra.mxu0 %v3969
      %3999 = vmatprep.subr.bf16.mxu0 0
      %4000 = vmatpush1.bf16.msra.mxu0 0
      %4001 = vmatprep.subr.bf16.mxu0 0
      %4002 = vmatpush1.bf16.msra.mxu0 0
      %4003 = vmatprep.subr.bf16.mxu0 0
      %4004 = vmatpush1.bf16.msra.mxu0 0
      %4005 = vmatprep.subr.bf16.mxu0 0
      %4006 = vmatpush1.bf16.msra.mxu0 0
      %4007 = vmatprep.subr.bf16.mxu0 0
      %4008 = vmatpush1.bf16.msra.mxu0 0
      %4009 = vmatprep.subr.bf16.mxu0 0
      %4010 = vmatpush1.bf16.msra.mxu0 0
      %4011 = vmatprep.subr.bf16.mxu0 0
      %4012 = vmatpush1.bf16.msra.mxu0 0
      %4013 = vmatprep.subr.bf16.mxu0 0
      %4014 = vmatpush1.bf16.msra.mxu0 0
      %4015 = vmatprep.subr.bf16.mxu0 0
      %4016 = vmatpush1.bf16.msra.mxu0 0
      %4017 = vmatprep.subr.bf16.mxu0 0
      %4018 = vmatpush1.bf16.msra.mxu0 0
      %4019 = vmatprep.subr.bf16.mxu0 0
      %4020 = vmatpush1.bf16.msra.mxu0 0
      %4021 = vmatprep.subr.bf16.mxu0 0
      %4022 = vmatpush1.bf16.msra.mxu0 0
      %4023 = vmatprep.mubr.bf16.mxu0 0
      %4024 = vmatmul.mubr.bf16.gmra.mrb[0].mxu0 %v3980
      %v4025 = vpop.f32.mrb[0].mxu0
      %v4026 = vadd.f32 0.0, %v4025
      %v4027 = vpop.f32.mrb[0].mxu0
      %v4028 = vadd.f32 0.0, %v4027
      %v4029 = vpop.f32.mrb[0].mxu0
      %v4030 = vadd.f32 0.0, %v4029
      %v4031 = vpop.f32.mrb[0].mxu0
      %v4032 = vadd.f32 0.0, %v4031
      %4033 = vmatprep.mubr.bf16.mxu0 0
      %4034 = vmatmul.mubr.bf16.gmra.mrb[0].mxu0 %v3983
      %v4035 = vpop.f32.mrb[0].mxu0
      %v4036 = vadd.f32 0.0, %v4035
      %v4037 = vpop.f32.mrb[0].mxu0
      %v4038 = vadd.f32 0.0, %v4037
      %v4039 = vpop.f32.mrb[0].mxu0
      %v4040 = vadd.f32 0.0, %v4039
      %v4041 = vpop.f32.mrb[0].mxu0
      %v4042 = vadd.f32 0.0, %v4041
      %4043 = vmatprep.mubr.bf16.mxu0 0
      %4044 = vmatmul.mubr.bf16.gmra.mrb[0].mxu0 %v3986
      %v4045 = vpop.f32.mrb[0].mxu0
      %v4046 = vadd.f32 0.0, %v4045
      %v4047 = vpop.f32.mrb[0].mxu0
      %v4048 = vadd.f32 0.0, %v4047
      %v4049 = vpop.f32.mrb[0].mxu0
      %v4050 = vadd.f32 0.0, %v4049
      %v4051 = vpop.f32.mrb[0].mxu0
      %v4052 = vadd.f32 0.0, %v4051
      %4053 = vmatprep.mubr.bf16.mxu0 0
      %4054 = vmatmul.mubr.bf16.gmra.mrb[0].mxu0 %v3989
      %v4055 = vpop.f32.mrb[0].mxu0
      %v4056 = vadd.f32 0.0, %v4055
      %v4057 = vpop.f32.mrb[0].mxu0
      %v4058 = vadd.f32 0.0, %v4057
      %v4059 = vpop.f32.mrb[0].mxu0
      %v4060 = vadd.f32 0.0, %v4059
      %v4061 = vpop.f32.mrb[0].mxu0
      %v4062 = vadd.f32 0.0, %v4061
      %4063 = vdwg.mxu0
      %v4064 = vadd.f32 %v3873, %v4026
      %v4065 = vadd.f32 %v3875, %v4028
      %v4066 = vadd.f32 %v3877, %v4030
      %v4067 = vadd.f32 %v3879, %v4032
      %v4068 = vadd.f32 %v3883, %v4036
      %v4069 = vadd.f32 %v3885, %v4038
      %v4070 = vadd.f32 %v3887, %v4040
      %v4071 = vadd.f32 %v3889, %v4042
      %v4072 = vadd.f32 %v3893, %v4046
      %v4073 = vadd.f32 %v3895, %v4048
      %v4074 = vadd.f32 %v3897, %v4050
      %v4075 = vadd.f32 %v3899, %v4052
      %v4076 = vadd.f32 %v3903, %v4056
      %v4077 = vadd.f32 %v3905, %v4058
      %v4078 = vadd.f32 %v3907, %v4060
      %v4079 = vadd.f32 %v3909, %v4062
      %4080 = vrot.lane.b32.xlu0 %v3935, 64
      %v4081 = vpop.permute.xlu0 %4080
      %4082 = vrot.lane.b32.xlu0 %v3936, 64
      %v4083 = vpop.permute.xlu0 %4082
      %4084 = vrot.lane.b32.xlu0 %v3937, 64
      %v4085 = vpop.permute.xlu0 %4084
      %4086 = vrot.lane.b32.xlu0 %v3938, 64
      %v4087 = vpop.permute.xlu0 %4086
      %4088 = vrot.lane.b32.xlu0 %v3609, 1
      %v4089 = vpop.permute.xlu0 %4088
      %4090 = vrot.lane.b32.xlu0 %v3610, 1
      %v4091 = vpop.permute.xlu0 %4090
      %4092 = vrot.lane.b32.xlu0 %v3611, 1
      %v4093 = vpop.permute.xlu0 %4092
      %4094 = vrot.lane.b32.xlu0 %v3612, 1
      %v4095 = vpop.permute.xlu0 %4094
      %4096 = vrot.lane.b32.xlu0 %v3613, 1
      %v4097 = vpop.permute.xlu0 %4096
      %4098 = vrot.lane.b32.xlu0 %v3614, 1
      %v4099 = vpop.permute.xlu0 %4098
      %4100 = vrot.lane.b32.xlu0 %v3615, 1
      %v4101 = vpop.permute.xlu0 %4100
      %4102 = vrot.lane.b32.xlu0 %v3616, 1
      %v4103 = vpop.permute.xlu0 %4102
      %4104 = vrot.lane.b32.xlu0 %v3617, 1
      %v4105 = vpop.permute.xlu0 %4104
      %4106 = vrot.lane.b32.xlu0 %v3618, 1
      %v4107 = vpop.permute.xlu0 %4106
      %4108 = vrot.lane.b32.xlu0 %v3619, 1
      %v4109 = vpop.permute.xlu0 %4108
      %4110 = vrot.lane.b32.xlu0 %v3620, 1
      %v4111 = vpop.permute.xlu0 %4110
      %v4112 = vsel %vm2011, %v4089, %v4091
      %v4113 = vsel %vm2011, %v4091, %v4093
      %v4114 = vsel %vm2011, %v4095, %v4097
      %v4115 = vsel %vm2011, %v4097, %v4099
      %v4116 = vsel %vm2011, %v4101, %v4103
      %v4117 = vsel %vm2011, %v4103, %v4105
      %v4118 = vsel %vm2011, %v4107, %v4109
      %v4119 = vsel %vm2011, %v4109, %v4111
      %v4129 = vsel %vm408, %v4081, 0
      %v4132 = vsel %vm408, %v4083, 0
      %v4135 = vsel %vm408, %v4085, 0
      %v4138 = vsel %vm408, %v4087, 0
      %4140 = vmatprep.subr.bf16.mxu0 %v4113
      %4141 = vmatpush1.bf16.msra.mxu0 %v4112
      %4142 = vmatprep.subr.bf16.mxu0 %v4115
      %4143 = vmatpush1.bf16.msra.mxu0 %v4114
      %4144 = vmatprep.subr.bf16.mxu0 %v4117
      %4145 = vmatpush1.bf16.msra.mxu0 %v4116
      %4146 = vmatprep.subr.bf16.mxu0 %v4119
      %4147 = vmatpush1.bf16.msra.mxu0 %v4118
      %4148 = vmatprep.subr.bf16.mxu0 0
      %4149 = vmatpush1.bf16.msra.mxu0 0
      %4150 = vmatprep.subr.bf16.mxu0 0
      %4151 = vmatpush1.bf16.msra.mxu0 0
      %4152 = vmatprep.subr.bf16.mxu0 0
      %4153 = vmatpush1.bf16.msra.mxu0 0
      %4154 = vmatprep.subr.bf16.mxu0 0
      %4155 = vmatpush1.bf16.msra.mxu0 0
      %4156 = vmatprep.subr.bf16.mxu0 0
      %4157 = vmatpush1.bf16.msra.mxu0 0
      %4158 = vmatprep.subr.bf16.mxu0 0
      %4159 = vmatpush1.bf16.msra.mxu0 0
      %4160 = vmatprep.subr.bf16.mxu0 0
      %4161 = vmatpush1.bf16.msra.mxu0 0
      %4162 = vmatprep.subr.bf16.mxu0 0
      %4163 = vmatpush1.bf16.msra.mxu0 0
      %4164 = vmatprep.subr.bf16.mxu0 0
      %4165 = vmatpush1.bf16.msra.mxu0 0
      %4166 = vmatprep.subr.bf16.mxu0 0
      %4167 = vmatpush1.bf16.msra.mxu0 0
      %4168 = vmatprep.subr.bf16.mxu0 0
      %4169 = vmatpush1.bf16.msra.mxu0 0
      %4170 = vmatprep.subr.bf16.mxu0 0
      %4171 = vmatpush1.bf16.msra.mxu0 0
      %4172 = vmatprep.mubr.bf16.mxu0 0
      %4173 = vmatmul.mubr.bf16.gmra.mrb[0].mxu0 %v4129
      %v4174 = vpop.f32.mrb[0].mxu0
      %v4175 = vadd.f32 0.0, %v4174
      %v4176 = vpop.f32.mrb[0].mxu0
      %v4177 = vadd.f32 0.0, %v4176
      %v4178 = vpop.f32.mrb[0].mxu0
      %v4179 = vadd.f32 0.0, %v4178
      %v4180 = vpop.f32.mrb[0].mxu0
      %v4181 = vadd.f32 0.0, %v4180
      %4182 = vmatprep.mubr.bf16.mxu0 0
      %4183 = vmatmul.mubr.bf16.gmra.mrb[0].mxu0 %v4132
      %v4184 = vpop.f32.mrb[0].mxu0
      %v4185 = vadd.f32 0.0, %v4184
      %v4186 = vpop.f32.mrb[0].mxu0
      %v4187 = vadd.f32 0.0, %v4186
      %v4188 = vpop.f32.mrb[0].mxu0
      %v4189 = vadd.f32 0.0, %v4188
      %v4190 = vpop.f32.mrb[0].mxu0
      %v4191 = vadd.f32 0.0, %v4190
      %4192 = vmatprep.mubr.bf16.mxu0 0
      %4193 = vmatmul.mubr.bf16.gmra.mrb[0].mxu0 %v4135
      %v4194 = vpop.f32.mrb[0].mxu0
      %v4195 = vadd.f32 0.0, %v4194
      %v4196 = vpop.f32.mrb[0].mxu0
      %v4197 = vadd.f32 0.0, %v4196
      %v4198 = vpop.f32.mrb[0].mxu0
      %v4199 = vadd.f32 0.0, %v4198
      %v4200 = vpop.f32.mrb[0].mxu0
      %v4201 = vadd.f32 0.0, %v4200
      %4202 = vmatprep.mubr.bf16.mxu0 0
      %4203 = vmatmul.mubr.bf16.gmra.mrb[0].mxu0 %v4138
      %v4204 = vpop.f32.mrb[0].mxu0
      %v4205 = vadd.f32 0.0, %v4204
      %v4206 = vpop.f32.mrb[0].mxu0
      %v4207 = vadd.f32 0.0, %v4206
      %v4208 = vpop.f32.mrb[0].mxu0
      %v4209 = vadd.f32 0.0, %v4208
      %v4210 = vpop.f32.mrb[0].mxu0
      %v4211 = vadd.f32 0.0, %v4210
      %4212 = vdwg.mxu0
      %v4213 = vadd.f32 %v4064, %v4175
      %v4214 = vadd.f32 %v4065, %v4177
      %v4215 = vadd.f32 %v4066, %v4179
      %v4216 = vadd.f32 %v4067, %v4181
      %v4217 = vadd.f32 %v4068, %v4185
      %v4218 = vadd.f32 %v4069, %v4187
      %v4219 = vadd.f32 %v4070, %v4189
      %v4220 = vadd.f32 %v4071, %v4191
      %v4221 = vadd.f32 %v4072, %v4195
      %v4222 = vadd.f32 %v4073, %v4197
      %v4223 = vadd.f32 %v4074, %v4199
      %v4224 = vadd.f32 %v4075, %v4201
      %v4225 = vadd.f32 %v4076, %v4205
      %v4226 = vadd.f32 %v4077, %v4207
      %v4227 = vadd.f32 %v4078, %v4209
      %v4228 = vadd.f32 %v4079, %v4211
      %v4229 = vld [vmem:[%s3 + $0x8] sm:$0xf]
      %v4230 = vld [vmem:[%s3 + $0x1c] sm:$0xf]
      %v4231 = vld [vmem:[%s3 + $0x30] sm:$0xf]
      %v4232 = vld [vmem:[%s3 + $0x44] sm:$0xf]
      %v4233 = vld [vmem:[%s3 + $0x58] sm:$0xf]
      %v4234 = vld [vmem:[%s3 + $0x6c] sm:$0xf]
      %v4235 = vld [vmem:[%s3 + $0x80] sm:$0xf]
      %v4236 = vld [vmem:[%s3 + $0x94] sm:$0xf]
      %v4245 = vunpack.c.l.b16 %v4229
      %v4246 = vunpack.c.l.b16 %v4230
      %v4247 = vunpack.c.l.b16 %v4231
      %v4248 = vunpack.c.l.b16 %v4232
      %v4249 = vunpack.c.l.b16 %v4233
      %v4250 = vunpack.c.l.b16 %v4234
      %v4251 = vunpack.c.l.b16 %v4235
      %v4252 = vunpack.c.l.b16 %v4236
      %v4253 = vpack.c.b16 %v4246, %v4245
      %v4254 = vpack.c.b16 %v4248, %v4247
      %v4255 = vpack.c.b16 %v4250, %v4249
      %v4256 = vpack.c.b16 %v4252, %v4251
      %v4258 = vsel %vm408, %v4253, 0
      %v4261 = vsel %vm408, %v4254, 0
      %v4264 = vsel %vm408, %v4255, 0
      %v4267 = vsel %vm408, %v4256, 0
      %4269 = vmatprep.subr.bf16.mxu0 %v3611
      %4270 = vmatpush1.bf16.msra.mxu0 %v3610
      %4271 = vmatprep.subr.bf16.mxu0 %v3614
      %4272 = vmatpush1.bf16.msra.mxu0 %v3613
      %4273 = vmatprep.subr.bf16.mxu0 %v3617
      %4274 = vmatpush1.bf16.msra.mxu0 %v3616
      %4275 = vmatprep.subr.bf16.mxu0 %v3620
      %4276 = vmatpush1.bf16.msra.mxu0 %v3619
      %4277 = vmatprep.subr.bf16.mxu0 0
      %4278 = vmatpush1.bf16.msra.mxu0 0
      %4279 = vmatprep.subr.bf16.mxu0 0
      %4280 = vmatpush1.bf16.msra.mxu0 0
      %4281 = vmatprep.subr.bf16.mxu0 0
      %4282 = vmatpush1.bf16.msra.mxu0 0
      %4283 = vmatprep.subr.bf16.mxu0 0
      %4284 = vmatpush1.bf16.msra.mxu0 0
      %4285 = vmatprep.subr.bf16.mxu0 0
      %4286 = vmatpush1.bf16.msra.mxu0 0
      %4287 = vmatprep.subr.bf16.mxu0 0
      %4288 = vmatpush1.bf16.msra.mxu0 0
      %4289 = vmatprep.subr.bf16.mxu0 0
      %4290 = vmatpush1.bf16.msra.mxu0 0
      %4291 = vmatprep.subr.bf16.mxu0 0
      %4292 = vmatpush1.bf16.msra.mxu0 0
      %4293 = vmatprep.subr.bf16.mxu0 0
      %4294 = vmatpush1.bf16.msra.mxu0 0
      %4295 = vmatprep.subr.bf16.mxu0 0
      %4296 = vmatpush1.bf16.msra.mxu0 0
      %4297 = vmatprep.subr.bf16.mxu0 0
      %4298 = vmatpush1.bf16.msra.mxu0 0
      %4299 = vmatprep.subr.bf16.mxu0 0
      %4300 = vmatpush1.bf16.msra.mxu0 0
      %4301 = vmatprep.mubr.bf16.mxu0 0
      %4302 = vmatmul.mubr.bf16.gmra.mrb[0].mxu0 %v4258
      %v4303 = vpop.f32.mrb[0].mxu0
      %v4304 = vadd.f32 0.0, %v4303
      %v4305 = vpop.f32.mrb[0].mxu0
      %v4306 = vadd.f32 0.0, %v4305
      %v4307 = vpop.f32.mrb[0].mxu0
      %v4308 = vadd.f32 0.0, %v4307
      %v4309 = vpop.f32.mrb[0].mxu0
      %v4310 = vadd.f32 0.0, %v4309
      %4311 = vmatprep.mubr.bf16.mxu0 0
      %4312 = vmatmul.mubr.bf16.gmra.mrb[0].mxu0 %v4261
      %v4313 = vpop.f32.mrb[0].mxu0
      %v4314 = vadd.f32 0.0, %v4313
      %v4315 = vpop.f32.mrb[0].mxu0
      %v4316 = vadd.f32 0.0, %v4315
      %v4317 = vpop.f32.mrb[0].mxu0
      %v4318 = vadd.f32 0.0, %v4317
      %v4319 = vpop.f32.mrb[0].mxu0
      %v4320 = vadd.f32 0.0, %v4319
      %4321 = vmatprep.mubr.bf16.mxu0 0
      %4322 = vmatmul.mubr.bf16.gmra.mrb[0].mxu0 %v4264
      %v4323 = vpop.f32.mrb[0].mxu0
      %v4324 = vadd.f32 0.0, %v4323
      %v4325 = vpop.f32.mrb[0].mxu0
      %v4326 = vadd.f32 0.0, %v4325
      %v4327 = vpop.f32.mrb[0].mxu0
      %v4328 = vadd.f32 0.0, %v4327
      %v4329 = vpop.f32.mrb[0].mxu0
      %v4330 = vadd.f32 0.0, %v4329
      %4331 = vmatprep.mubr.bf16.mxu0 0
      %4332 = vmatmul.mubr.bf16.gmra.mrb[0].mxu0 %v4267
      %v4333 = vpop.f32.mrb[0].mxu0
      %v4334 = vadd.f32 0.0, %v4333
      %v4335 = vpop.f32.mrb[0].mxu0
      %v4336 = vadd.f32 0.0, %v4335
      %v4337 = vpop.f32.mrb[0].mxu0
      %v4338 = vadd.f32 0.0, %v4337
      %v4339 = vpop.f32.mrb[0].mxu0
      %v4340 = vadd.f32 0.0, %v4339
      %4341 = vdwg.mxu0
      %v4342 = vadd.f32 %v4213, %v4304
      %v4343 = vadd.f32 %v4214, %v4306
      %v4344 = vadd.f32 %v4215, %v4308
      %v4345 = vadd.f32 %v4216, %v4310
      %v4346 = vadd.f32 %v4217, %v4314
      %v4347 = vadd.f32 %v4218, %v4316
      %v4348 = vadd.f32 %v4219, %v4318
      %v4349 = vadd.f32 %v4220, %v4320
      %v4350 = vadd.f32 %v4221, %v4324
      %v4351 = vadd.f32 %v4222, %v4326
      %v4352 = vadd.f32 %v4223, %v4328
      %v4353 = vadd.f32 %v4224, %v4330
      %v4354 = vadd.f32 %v4225, %v4334
      %v4355 = vadd.f32 %v4226, %v4336
      %v4356 = vadd.f32 %v4227, %v4338
      %v4357 = vadd.f32 %v4228, %v4340
      %v4358 = vld [vmem:[#allocation3 + $0x20] sm:$0xff]
      %v4359 = vld [vmem:[#allocation3 + $0x28] sm:$0xff]
      %v4360 = vld [vmem:[#allocation3 + $0x30] sm:$0xff]
      %v4361 = vld [vmem:[#allocation3 + $0x58] sm:$0xff]
      %v4362 = vld [vmem:[#allocation3 + $0x60] sm:$0xff]
      %v4363 = vld [vmem:[#allocation3 + $0x68] sm:$0xff]
      %v4364 = vld [vmem:[#allocation3 + $0x90] sm:$0xff]
      %v4365 = vld [vmem:[#allocation3 + $0x98] sm:$0xff]
      %v4366 = vld [vmem:[#allocation3 + $0xa0] sm:$0xff]
      %v4367 = vld [vmem:[#allocation3 + $0xc8] sm:$0xff]
      %v4368 = vld [vmem:[#allocation3 + $0xd0] sm:$0xff]
      %v4369 = vld [vmem:[#allocation3 + $0xd8] sm:$0xff]
      %4370 = vrot.lane.b32.xlu0 %v4253, 64
      %v4371 = vpop.permute.xlu0 %4370
      %4372 = vrot.lane.b32.xlu0 %v4254, 64
      %v4373 = vpop.permute.xlu0 %4372
      %4374 = vrot.lane.b32.xlu0 %v4255, 64
      %v4375 = vpop.permute.xlu0 %4374
      %4376 = vrot.lane.b32.xlu0 %v4256, 64
      %v4377 = vpop.permute.xlu0 %4376
      %4390 = vrot.lane.b32.xlu0 %v4358, 127
      %v4391 = vpop.permute.xlu0 %4390
      %4392 = vrot.lane.b32.xlu0 %v4359, 127
      %v4393 = vpop.permute.xlu0 %4392
      %4394 = vrot.lane.b32.xlu0 %v4360, 127
      %v4395 = vpop.permute.xlu0 %4394
      %4396 = vrot.lane.b32.xlu0 %v4361, 127
      %v4397 = vpop.permute.xlu0 %4396
      %4398 = vrot.lane.b32.xlu0 %v4362, 127
      %v4399 = vpop.permute.xlu0 %4398
      %4400 = vrot.lane.b32.xlu0 %v4363, 127
      %v4401 = vpop.permute.xlu0 %4400
      %4402 = vrot.lane.b32.xlu0 %v4364, 127
      %v4403 = vpop.permute.xlu0 %4402
      %4404 = vrot.lane.b32.xlu0 %v4365, 127
      %v4405 = vpop.permute.xlu0 %4404
      %4406 = vrot.lane.b32.xlu0 %v4366, 127
      %v4407 = vpop.permute.xlu0 %4406
      %4408 = vrot.lane.b32.xlu0 %v4367, 127
      %v4409 = vpop.permute.xlu0 %4408
      %4410 = vrot.lane.b32.xlu0 %v4368, 127
      %v4411 = vpop.permute.xlu0 %4410
      %4412 = vrot.lane.b32.xlu0 %v4369, 127
      %v4413 = vpop.permute.xlu0 %4412
      %v4414 = vsel %vm2484, %v4391, %v4393
      %v4415 = vsel %vm2484, %v4393, %v4395
      %v4416 = vsel %vm2484, %v4397, %v4399
      %v4417 = vsel %vm2484, %v4399, %v4401
      %v4418 = vsel %vm2484, %v4403, %v4405
      %v4419 = vsel %vm2484, %v4405, %v4407
      %v4420 = vsel %vm2484, %v4409, %v4411
      %v4421 = vsel %vm2484, %v4411, %v4413
      %v4431 = vsel %vm408, %v4371, 0
      %v4434 = vsel %vm408, %v4373, 0
      %v4437 = vsel %vm408, %v4375, 0
      %v4440 = vsel %vm408, %v4377, 0
      %4442 = vmatprep.subr.bf16.mxu0 %v4415
      %4443 = vmatpush1.bf16.msra.mxu0 %v4414
      %4444 = vmatprep.subr.bf16.mxu0 %v4417
      %4445 = vmatpush1.bf16.msra.mxu0 %v4416
      %4446 = vmatprep.subr.bf16.mxu0 %v4419
      %4447 = vmatpush1.bf16.msra.mxu0 %v4418
      %4448 = vmatprep.subr.bf16.mxu0 %v4421
      %4449 = vmatpush1.bf16.msra.mxu0 %v4420
      %4450 = vmatprep.subr.bf16.mxu0 0
      %4451 = vmatpush1.bf16.msra.mxu0 0
      %4452 = vmatprep.subr.bf16.mxu0 0
      %4453 = vmatpush1.bf16.msra.mxu0 0
      %4454 = vmatprep.subr.bf16.mxu0 0
      %4455 = vmatpush1.bf16.msra.mxu0 0
      %4456 = vmatprep.subr.bf16.mxu0 0
      %4457 = vmatpush1.bf16.msra.mxu0 0
      %4458 = vmatprep.subr.bf16.mxu0 0
      %4459 = vmatpush1.bf16.msra.mxu0 0
      %4460 = vmatprep.subr.bf16.mxu0 0
      %4461 = vmatpush1.bf16.msra.mxu0 0
      %4462 = vmatprep.subr.bf16.mxu0 0
      %4463 = vmatpush1.bf16.msra.mxu0 0
      %4464 = vmatprep.subr.bf16.mxu0 0
      %4465 = vmatpush1.bf16.msra.mxu0 0
      %4466 = vmatprep.subr.bf16.mxu0 0
      %4467 = vmatpush1.bf16.msra.mxu0 0
      %4468 = vmatprep.subr.bf16.mxu0 0
      %4469 = vmatpush1.bf16.msra.mxu0 0
      %4470 = vmatprep.subr.bf16.mxu0 0
      %4471 = vmatpush1.bf16.msra.mxu0 0
      %4472 = vmatprep.subr.bf16.mxu0 0
      %4473 = vmatpush1.bf16.msra.mxu0 0
      %4474 = vmatprep.mubr.bf16.mxu0 0
      %4475 = vmatmul.mubr.bf16.gmra.mrb[0].mxu0 %v4431
      %v4476 = vpop.f32.mrb[0].mxu0
      %v4477 = vadd.f32 0.0, %v4476
      %v4478 = vpop.f32.mrb[0].mxu0
      %v4479 = vadd.f32 0.0, %v4478
      %v4480 = vpop.f32.mrb[0].mxu0
      %v4481 = vadd.f32 0.0, %v4480
      %v4482 = vpop.f32.mrb[0].mxu0
      %v4483 = vadd.f32 0.0, %v4482
      %4484 = vmatprep.mubr.bf16.mxu0 0
      %4485 = vmatmul.mubr.bf16.gmra.mrb[0].mxu0 %v4434
      %v4486 = vpop.f32.mrb[0].mxu0
      %v4487 = vadd.f32 0.0, %v4486
      %v4488 = vpop.f32.mrb[0].mxu0
      %v4489 = vadd.f32 0.0, %v4488
      %v4490 = vpop.f32.mrb[0].mxu0
      %v4491 = vadd.f32 0.0, %v4490
      %v4492 = vpop.f32.mrb[0].mxu0
      %v4493 = vadd.f32 0.0, %v4492
      %4494 = vmatprep.mubr.bf16.mxu0 0
      %4495 = vmatmul.mubr.bf16.gmra.mrb[0].mxu0 %v4437
      %v4496 = vpop.f32.mrb[0].mxu0
      %v4497 = vadd.f32 0.0, %v4496
      %v4498 = vpop.f32.mrb[0].mxu0
      %v4499 = vadd.f32 0.0, %v4498
      %v4500 = vpop.f32.mrb[0].mxu0
      %v4501 = vadd.f32 0.0, %v4500
      %v4502 = vpop.f32.mrb[0].mxu0
      %v4503 = vadd.f32 0.0, %v4502
      %4504 = vmatprep.mubr.bf16.mxu0 0
      %4505 = vmatmul.mubr.bf16.gmra.mrb[0].mxu0 %v4440
      %v4506 = vpop.f32.mrb[0].mxu0
      %v4507 = vadd.f32 0.0, %v4506
      %v4508 = vpop.f32.mrb[0].mxu0
      %v4509 = vadd.f32 0.0, %v4508
      %v4510 = vpop.f32.mrb[0].mxu0
      %v4511 = vadd.f32 0.0, %v4510
      %v4512 = vpop.f32.mrb[0].mxu0
      %v4513 = vadd.f32 0.0, %v4512
      %4514 = vdwg.mxu0
      %v4515 = vadd.f32 %v4342, %v4477
      %v4516 = vadd.f32 %v4343, %v4479
      %v4517 = vadd.f32 %v4344, %v4481
      %v4518 = vadd.f32 %v4345, %v4483
      %v4519 = vadd.f32 %v4346, %v4487
      %v4520 = vadd.f32 %v4347, %v4489
      %v4521 = vadd.f32 %v4348, %v4491
      %v4522 = vadd.f32 %v4349, %v4493
      %v4523 = vadd.f32 %v4350, %v4497
      %v4524 = vadd.f32 %v4351, %v4499
      %v4525 = vadd.f32 %v4352, %v4501
      %v4526 = vadd.f32 %v4353, %v4503
      %v4527 = vadd.f32 %v4354, %v4507
      %v4528 = vadd.f32 %v4355, %v4509
      %v4529 = vadd.f32 %v4356, %v4511
      %v4530 = vadd.f32 %v4357, %v4513
      %v4531 = vld [vmem:[%s3 + $0xc] sm:$0xf]
      %v4532 = vld [vmem:[%s3 + $0x20] sm:$0xf]
      %v4533 = vld [vmem:[%s3 + $0x34] sm:$0xf]
      %v4534 = vld [vmem:[%s3 + $0x48] sm:$0xf]
      %v4535 = vld [vmem:[%s3 + $0x5c] sm:$0xf]
      %v4536 = vld [vmem:[%s3 + $0x70] sm:$0xf]
      %v4537 = vld [vmem:[%s3 + $0x84] sm:$0xf]
      %v4538 = vld [vmem:[%s3 + $0x98] sm:$0xf]
      %v4547 = vunpack.c.l.b16 %v4531
      %v4548 = vunpack.c.l.b16 %v4532
      %v4549 = vunpack.c.l.b16 %v4533
      %v4550 = vunpack.c.l.b16 %v4534
      %v4551 = vunpack.c.l.b16 %v4535
      %v4552 = vunpack.c.l.b16 %v4536
      %v4553 = vunpack.c.l.b16 %v4537
      %v4554 = vunpack.c.l.b16 %v4538
      %v4555 = vpack.c.b16 %v4548, %v4547
      %v4556 = vpack.c.b16 %v4550, %v4549
      %v4557 = vpack.c.b16 %v4552, %v4551
      %v4558 = vpack.c.b16 %v4554, %v4553
      %4559 = vrot.lane.b32.xlu0 %v4358, 97
      %v4560 = vpop.permute.xlu0 %4559
      %4561 = vrot.lane.b32.xlu0 %v4359, 97
      %v4562 = vpop.permute.xlu0 %4561
      %4563 = vrot.lane.b32.xlu0 %v4360, 97
      %v4564 = vpop.permute.xlu0 %4563
      %4565 = vrot.lane.b32.xlu0 %v4361, 97
      %v4566 = vpop.permute.xlu0 %4565
      %4567 = vrot.lane.b32.xlu0 %v4362, 97
      %v4568 = vpop.permute.xlu0 %4567
      %4569 = vrot.lane.b32.xlu0 %v4363, 97
      %v4570 = vpop.permute.xlu0 %4569
      %4571 = vrot.lane.b32.xlu0 %v4364, 97
      %v4572 = vpop.permute.xlu0 %4571
      %4573 = vrot.lane.b32.xlu0 %v4365, 97
      %v4574 = vpop.permute.xlu0 %4573
      %4575 = vrot.lane.b32.xlu0 %v4366, 97
      %v4576 = vpop.permute.xlu0 %4575
      %4577 = vrot.lane.b32.xlu0 %v4367, 97
      %v4578 = vpop.permute.xlu0 %4577
      %4579 = vrot.lane.b32.xlu0 %v4368, 97
      %v4580 = vpop.permute.xlu0 %4579
      %4581 = vrot.lane.b32.xlu0 %v4369, 97
      %v4582 = vpop.permute.xlu0 %4581
      %v4583 = vsel %vm2743, %v4560, %v4562
      %v4584 = vsel %vm2743, %v4562, %v4564
      %v4585 = vsel %vm2743, %v4566, %v4568
      %v4586 = vsel %vm2743, %v4568, %v4570
      %v4587 = vsel %vm2743, %v4572, %v4574
      %v4588 = vsel %vm2743, %v4574, %v4576
      %v4589 = vsel %vm2743, %v4578, %v4580
      %v4590 = vsel %vm2743, %v4580, %v4582
      %v4600 = vsel %vm408, %v4555, 0
      %v4603 = vsel %vm408, %v4556, 0
      %v4606 = vsel %vm408, %v4557, 0
      %v4609 = vsel %vm408, %v4558, 0
      %4611 = vmatprep.subr.bf16.mxu0 %v4584
      %4612 = vmatpush1.bf16.msra.mxu0 %v4583
      %4613 = vmatprep.subr.bf16.mxu0 %v4586
      %4614 = vmatpush1.bf16.msra.mxu0 %v4585
      %4615 = vmatprep.subr.bf16.mxu0 %v4588
      %4616 = vmatpush1.bf16.msra.mxu0 %v4587
      %4617 = vmatprep.subr.bf16.mxu0 %v4590
      %4618 = vmatpush1.bf16.msra.mxu0 %v4589
      %4619 = vmatprep.subr.bf16.mxu0 0
      %4620 = vmatpush1.bf16.msra.mxu0 0
      %4621 = vmatprep.subr.bf16.mxu0 0
      %4622 = vmatpush1.bf16.msra.mxu0 0
      %4623 = vmatprep.subr.bf16.mxu0 0
      %4624 = vmatpush1.bf16.msra.mxu0 0
      %4625 = vmatprep.subr.bf16.mxu0 0
      %4626 = vmatpush1.bf16.msra.mxu0 0
      %4627 = vmatprep.subr.bf16.mxu0 0
      %4628 = vmatpush1.bf16.msra.mxu0 0
      %4629 = vmatprep.subr.bf16.mxu0 0
      %4630 = vmatpush1.bf16.msra.mxu0 0
      %4631 = vmatprep.subr.bf16.mxu0 0
      %4632 = vmatpush1.bf16.msra.mxu0 0
      %4633 = vmatprep.subr.bf16.mxu0 0
      %4634 = vmatpush1.bf16.msra.mxu0 0
      %4635 = vmatprep.subr.bf16.mxu0 0
      %4636 = vmatpush1.bf16.msra.mxu0 0
      %4637 = vmatprep.subr.bf16.mxu0 0
      %4638 = vmatpush1.bf16.msra.mxu0 0
      %4639 = vmatprep.subr.bf16.mxu0 0
      %4640 = vmatpush1.bf16.msra.mxu0 0
      %4641 = vmatprep.subr.bf16.mxu0 0
      %4642 = vmatpush1.bf16.msra.mxu0 0
      %4643 = vmatprep.mubr.bf16.mxu0 0
      %4644 = vmatmul.mubr.bf16.gmra.mrb[0].mxu0 %v4600
      %v4645 = vpop.f32.mrb[0].mxu0
      %v4646 = vadd.f32 0.0, %v4645
      %v4647 = vpop.f32.mrb[0].mxu0
      %v4648 = vadd.f32 0.0, %v4647
      %v4649 = vpop.f32.mrb[0].mxu0
      %v4650 = vadd.f32 0.0, %v4649
      %v4651 = vpop.f32.mrb[0].mxu0
      %v4652 = vadd.f32 0.0, %v4651
      %4653 = vmatprep.mubr.bf16.mxu0 0
      %4654 = vmatmul.mubr.bf16.gmra.mrb[0].mxu0 %v4603
      %v4655 = vpop.f32.mrb[0].mxu0
      %v4656 = vadd.f32 0.0, %v4655
      %v4657 = vpop.f32.mrb[0].mxu0
      %v4658 = vadd.f32 0.0, %v4657
      %v4659 = vpop.f32.mrb[0].mxu0
      %v4660 = vadd.f32 0.0, %v4659
      %v4661 = vpop.f32.mrb[0].mxu0
      %v4662 = vadd.f32 0.0, %v4661
      %4663 = vmatprep.mubr.bf16.mxu0 0
      %4664 = vmatmul.mubr.bf16.gmra.mrb[0].mxu0 %v4606
      %v4665 = vpop.f32.mrb[0].mxu0
      %v4666 = vadd.f32 0.0, %v4665
      %v4667 = vpop.f32.mrb[0].mxu0
      %v4668 = vadd.f32 0.0, %v4667
      %v4669 = vpop.f32.mrb[0].mxu0
      %v4670 = vadd.f32 0.0, %v4669
      %v4671 = vpop.f32.mrb[0].mxu0
      %v4672 = vadd.f32 0.0, %v4671
      %4673 = vmatprep.mubr.bf16.mxu0 0
      %4674 = vmatmul.mubr.bf16.gmra.mrb[0].mxu0 %v4609
      %v4675 = vpop.f32.mrb[0].mxu0
      %v4676 = vadd.f32 0.0, %v4675
      %v4677 = vpop.f32.mrb[0].mxu0
      %v4678 = vadd.f32 0.0, %v4677
      %v4679 = vpop.f32.mrb[0].mxu0
      %v4680 = vadd.f32 0.0, %v4679
      %v4681 = vpop.f32.mrb[0].mxu0
      %v4682 = vadd.f32 0.0, %v4681
      %4683 = vdwg.mxu0
      %v4684 = vadd.f32 %v4515, %v4646
      %v4685 = vadd.f32 %v4516, %v4648
      %v4686 = vadd.f32 %v4517, %v4650
      %v4687 = vadd.f32 %v4518, %v4652
      %v4688 = vadd.f32 %v4519, %v4656
      %v4689 = vadd.f32 %v4520, %v4658
      %v4690 = vadd.f32 %v4521, %v4660
      %v4691 = vadd.f32 %v4522, %v4662
      %v4692 = vadd.f32 %v4523, %v4666
      %v4693 = vadd.f32 %v4524, %v4668
      %v4694 = vadd.f32 %v4525, %v4670
      %v4695 = vadd.f32 %v4526, %v4672
      %v4696 = vadd.f32 %v4527, %v4676
      %v4697 = vadd.f32 %v4528, %v4678
      %v4698 = vadd.f32 %v4529, %v4680
      %v4699 = vadd.f32 %v4530, %v4682
      %4700 = vrot.lane.b32.xlu0 %v4555, 64
      %v4701 = vpop.permute.xlu0 %4700
      %4702 = vrot.lane.b32.xlu0 %v4556, 64
      %v4703 = vpop.permute.xlu0 %4702
      %4704 = vrot.lane.b32.xlu0 %v4557, 64
      %v4705 = vpop.permute.xlu0 %4704
      %4706 = vrot.lane.b32.xlu0 %v4558, 64
      %v4707 = vpop.permute.xlu0 %4706
      %4708 = vrot.lane.b32.xlu0 %v4358, 96
      %v4709 = vpop.permute.xlu0 %4708
      %4710 = vrot.lane.b32.xlu0 %v4359, 96
      %v4711 = vpop.permute.xlu0 %4710
      %4712 = vrot.lane.b32.xlu0 %v4360, 96
      %v4713 = vpop.permute.xlu0 %4712
      %4714 = vrot.lane.b32.xlu0 %v4361, 96
      %v4715 = vpop.permute.xlu0 %4714
      %4716 = vrot.lane.b32.xlu0 %v4362, 96
      %v4717 = vpop.permute.xlu0 %4716
      %4718 = vrot.lane.b32.xlu0 %v4363, 96
      %v4719 = vpop.permute.xlu0 %4718
      %4720 = vrot.lane.b32.xlu0 %v4364, 96
      %v4721 = vpop.permute.xlu0 %4720
      %4722 = vrot.lane.b32.xlu0 %v4365, 96
      %v4723 = vpop.permute.xlu0 %4722
      %4724 = vrot.lane.b32.xlu0 %v4366, 96
      %v4725 = vpop.permute.xlu0 %4724
      %4726 = vrot.lane.b32.xlu0 %v4367, 96
      %v4727 = vpop.permute.xlu0 %4726
      %4728 = vrot.lane.b32.xlu0 %v4368, 96
      %v4729 = vpop.permute.xlu0 %4728
      %4730 = vrot.lane.b32.xlu0 %v4369, 96
      %v4731 = vpop.permute.xlu0 %4730
      %v4732 = vsel %vm2982, %v4709, %v4711
      %v4733 = vsel %vm2982, %v4711, %v4713
      %v4734 = vsel %vm2982, %v4715, %v4717
      %v4735 = vsel %vm2982, %v4717, %v4719
      %v4736 = vsel %vm2982, %v4721, %v4723
      %v4737 = vsel %vm2982, %v4723, %v4725
      %v4738 = vsel %vm2982, %v4727, %v4729
      %v4739 = vsel %vm2982, %v4729, %v4731
      %v4749 = vsel %vm408, %v4701, 0
      %v4752 = vsel %vm408, %v4703, 0
      %v4755 = vsel %vm408, %v4705, 0
      %v4758 = vsel %vm408, %v4707, 0
      %4760 = vmatprep.subr.bf16.mxu0 %v4733
      %4761 = vmatpush1.bf16.msra.mxu0 %v4732
      %4762 = vmatprep.subr.bf16.mxu0 %v4735
      %4763 = vmatpush1.bf16.msra.mxu0 %v4734
      %4764 = vmatprep.subr.bf16.mxu0 %v4737
      %4765 = vmatpush1.bf16.msra.mxu0 %v4736
      %4766 = vmatprep.subr.bf16.mxu0 %v4739
      %4767 = vmatpush1.bf16.msra.mxu0 %v4738
      %4768 = vmatprep.subr.bf16.mxu0 0
      %4769 = vmatpush1.bf16.msra.mxu0 0
      %4770 = vmatprep.subr.bf16.mxu0 0
      %4771 = vmatpush1.bf16.msra.mxu0 0
      %4772 = vmatprep.subr.bf16.mxu0 0
      %4773 = vmatpush1.bf16.msra.mxu0 0
      %4774 = vmatprep.subr.bf16.mxu0 0
      %4775 = vmatpush1.bf16.msra.mxu0 0
      %4776 = vmatprep.subr.bf16.mxu0 0
      %4777 = vmatpush1.bf16.msra.mxu0 0
      %4778 = vmatprep.subr.bf16.mxu0 0
      %4779 = vmatpush1.bf16.msra.mxu0 0
      %4780 = vmatprep.subr.bf16.mxu0 0
      %4781 = vmatpush1.bf16.msra.mxu0 0
      %4782 = vmatprep.subr.bf16.mxu0 0
      %4783 = vmatpush1.bf16.msra.mxu0 0
      %4784 = vmatprep.subr.bf16.mxu0 0
      %4785 = vmatpush1.bf16.msra.mxu0 0
      %4786 = vmatprep.subr.bf16.mxu0 0
      %4787 = vmatpush1.bf16.msra.mxu0 0
      %4788 = vmatprep.subr.bf16.mxu0 0
      %4789 = vmatpush1.bf16.msra.mxu0 0
      %4790 = vmatprep.subr.bf16.mxu0 0
      %4791 = vmatpush1.bf16.msra.mxu0 0
      %4792 = vmatprep.mubr.bf16.mxu0 0
      %4793 = vmatmul.mubr.bf16.gmra.mrb[0].mxu0 %v4749
      %v4794 = vpop.f32.mrb[0].mxu0
      %v4795 = vadd.f32 0.0, %v4794
      %v4796 = vpop.f32.mrb[0].mxu0
      %v4797 = vadd.f32 0.0, %v4796
      %v4798 = vpop.f32.mrb[0].mxu0
      %v4799 = vadd.f32 0.0, %v4798
      %v4800 = vpop.f32.mrb[0].mxu0
      %v4801 = vadd.f32 0.0, %v4800
      %4802 = vmatprep.mubr.bf16.mxu0 0
      %4803 = vmatmul.mubr.bf16.gmra.mrb[0].mxu0 %v4752
      %v4804 = vpop.f32.mrb[0].mxu0
      %v4805 = vadd.f32 0.0, %v4804
      %v4806 = vpop.f32.mrb[0].mxu0
      %v4807 = vadd.f32 0.0, %v4806
      %v4808 = vpop.f32.mrb[0].mxu0
      %v4809 = vadd.f32 0.0, %v4808
      %v4810 = vpop.f32.mrb[0].mxu0
      %v4811 = vadd.f32 0.0, %v4810
      %4812 = vmatprep.mubr.bf16.mxu0 0
      %4813 = vmatmul.mubr.bf16.gmra.mrb[0].mxu0 %v4755
      %v4814 = vpop.f32.mrb[0].mxu0
      %v4815 = vadd.f32 0.0, %v4814
      %v4816 = vpop.f32.mrb[0].mxu0
      %v4817 = vadd.f32 0.0, %v4816
      %v4818 = vpop.f32.mrb[0].mxu0
      %v4819 = vadd.f32 0.0, %v4818
      %v4820 = vpop.f32.mrb[0].mxu0
      %v4821 = vadd.f32 0.0, %v4820
      %4822 = vmatprep.mubr.bf16.mxu0 0
      %4823 = vmatmul.mubr.bf16.gmra.mrb[0].mxu0 %v4758
      %v4824 = vpop.f32.mrb[0].mxu0
      %v4825 = vadd.f32 0.0, %v4824
      %v4826 = vpop.f32.mrb[0].mxu0
      %v4827 = vadd.f32 0.0, %v4826
      %v4828 = vpop.f32.mrb[0].mxu0
      %v4829 = vadd.f32 0.0, %v4828
      %v4830 = vpop.f32.mrb[0].mxu0
      %v4831 = vadd.f32 0.0, %v4830
      %4832 = vdwg.mxu0
      %v4833 = vadd.f32 %v4684, %v4795
      %v4834 = vadd.f32 %v4685, %v4797
      %v4835 = vadd.f32 %v4686, %v4799
      %v4836 = vadd.f32 %v4687, %v4801
      %v4837 = vadd.f32 %v4688, %v4805
      %v4838 = vadd.f32 %v4689, %v4807
      %v4839 = vadd.f32 %v4690, %v4809
      %v4840 = vadd.f32 %v4691, %v4811
      %v4841 = vadd.f32 %v4692, %v4815
      %v4842 = vadd.f32 %v4693, %v4817
      %v4843 = vadd.f32 %v4694, %v4819
      %v4844 = vadd.f32 %v4695, %v4821
      %v4845 = vadd.f32 %v4696, %v4825
      %v4846 = vadd.f32 %v4697, %v4827
      %v4847 = vadd.f32 %v4698, %v4829
      %v4848 = vadd.f32 %v4699, %v4831
      %v4849 = vld [vmem:[%s3 + $0x10] sm:$0xf]
      %v4850 = vld [vmem:[%s3 + $0x24] sm:$0xf]
      %v4851 = vld [vmem:[%s3 + $0x38] sm:$0xf]
      %v4852 = vld [vmem:[%s3 + $0x4c] sm:$0xf]
      %v4853 = vld [vmem:[%s3 + $0x60] sm:$0xf]
      %v4854 = vld [vmem:[%s3 + $0x74] sm:$0xf]
      %v4855 = vld [vmem:[%s3 + $0x88] sm:$0xf]
      %v4856 = vld [vmem:[%s3 + $0x9c] sm:$0xf]
      %v4865 = vunpack.c.l.b16 %v4849
      %v4866 = vunpack.c.l.b16 %v4850
      %v4867 = vunpack.c.l.b16 %v4851
      %v4868 = vunpack.c.l.b16 %v4852
      %v4869 = vunpack.c.l.b16 %v4853
      %v4870 = vunpack.c.l.b16 %v4854
      %v4871 = vunpack.c.l.b16 %v4855
      %v4872 = vunpack.c.l.b16 %v4856
      %v4873 = vpack.c.b16 %v4866, %v4865
      %v4874 = vpack.c.b16 %v4868, %v4867
      %v4875 = vpack.c.b16 %v4870, %v4869
      %v4876 = vpack.c.b16 %v4872, %v4871
      %4877 = vrot.lane.b32.xlu0 %v4358, 95
      %v4878 = vpop.permute.xlu0 %4877
      %4879 = vrot.lane.b32.xlu0 %v4359, 95
      %v4880 = vpop.permute.xlu0 %4879
      %4881 = vrot.lane.b32.xlu0 %v4360, 95
      %v4882 = vpop.permute.xlu0 %4881
      %4883 = vrot.lane.b32.xlu0 %v4361, 95
      %v4884 = vpop.permute.xlu0 %4883
      %4885 = vrot.lane.b32.xlu0 %v4362, 95
      %v4886 = vpop.permute.xlu0 %4885
      %4887 = vrot.lane.b32.xlu0 %v4363, 95
      %v4888 = vpop.permute.xlu0 %4887
      %4889 = vrot.lane.b32.xlu0 %v4364, 95
      %v4890 = vpop.permute.xlu0 %4889
      %4891 = vrot.lane.b32.xlu0 %v4365, 95
      %v4892 = vpop.permute.xlu0 %4891
      %4893 = vrot.lane.b32.xlu0 %v4366, 95
      %v4894 = vpop.permute.xlu0 %4893
      %4895 = vrot.lane.b32.xlu0 %v4367, 95
      %v4896 = vpop.permute.xlu0 %4895
      %4897 = vrot.lane.b32.xlu0 %v4368, 95
      %v4898 = vpop.permute.xlu0 %4897
      %4899 = vrot.lane.b32.xlu0 %v4369, 95
      %v4900 = vpop.permute.xlu0 %4899
      %v4901 = vsel %vm3241, %v4878, %v4880
      %v4902 = vsel %vm3241, %v4880, %v4882
      %v4903 = vsel %vm3241, %v4884, %v4886
      %v4904 = vsel %vm3241, %v4886, %v4888
      %v4905 = vsel %vm3241, %v4890, %v4892
      %v4906 = vsel %vm3241, %v4892, %v4894
      %v4907 = vsel %vm3241, %v4896, %v4898
      %v4908 = vsel %vm3241, %v4898, %v4900
      %v4918 = vsel %vm408, %v4873, 0
      %v4921 = vsel %vm408, %v4874, 0
      %v4924 = vsel %vm408, %v4875, 0
      %v4927 = vsel %vm408, %v4876, 0
      %4929 = vmatprep.subr.bf16.mxu0 %v4902
      %4930 = vmatpush1.bf16.msra.mxu0 %v4901
      %4931 = vmatprep.subr.bf16.mxu0 %v4904
      %4932 = vmatpush1.bf16.msra.mxu0 %v4903
      %4933 = vmatprep.subr.bf16.mxu0 %v4906
      %4934 = vmatpush1.bf16.msra.mxu0 %v4905
      %4935 = vmatprep.subr.bf16.mxu0 %v4908
      %4936 = vmatpush1.bf16.msra.mxu0 %v4907
      %4937 = vmatprep.subr.bf16.mxu0 0
      %4938 = vmatpush1.bf16.msra.mxu0 0
      %4939 = vmatprep.subr.bf16.mxu0 0
      %4940 = vmatpush1.bf16.msra.mxu0 0
      %4941 = vmatprep.subr.bf16.mxu0 0
      %4942 = vmatpush1.bf16.msra.mxu0 0
      %4943 = vmatprep.subr.bf16.mxu0 0
      %4944 = vmatpush1.bf16.msra.mxu0 0
      %4945 = vmatprep.subr.bf16.mxu0 0
      %4946 = vmatpush1.bf16.msra.mxu0 0
      %4947 = vmatprep.subr.bf16.mxu0 0
      %4948 = vmatpush1.bf16.msra.mxu0 0
      %4949 = vmatprep.subr.bf16.mxu0 0
      %4950 = vmatpush1.bf16.msra.mxu0 0
      %4951 = vmatprep.subr.bf16.mxu0 0
      %4952 = vmatpush1.bf16.msra.mxu0 0
      %4953 = vmatprep.subr.bf16.mxu0 0
      %4954 = vmatpush1.bf16.msra.mxu0 0
      %4955 = vmatprep.subr.bf16.mxu0 0
      %4956 = vmatpush1.bf16.msra.mxu0 0
      %4957 = vmatprep.subr.bf16.mxu0 0
      %4958 = vmatpush1.bf16.msra.mxu0 0
      %4959 = vmatprep.subr.bf16.mxu0 0
      %4960 = vmatpush1.bf16.msra.mxu0 0
      %4961 = vmatprep.mubr.bf16.mxu0 0
      %4962 = vmatmul.mubr.bf16.gmra.mrb[0].mxu0 %v4918
      %v4963 = vpop.f32.mrb[0].mxu0
      %v4964 = vadd.f32 0.0, %v4963
      %v4965 = vpop.f32.mrb[0].mxu0
      %v4966 = vadd.f32 0.0, %v4965
      %v4967 = vpop.f32.mrb[0].mxu0
      %v4968 = vadd.f32 0.0, %v4967
      %v4969 = vpop.f32.mrb[0].mxu0
      %v4970 = vadd.f32 0.0, %v4969
      %4971 = vmatprep.mubr.bf16.mxu0 0
      %4972 = vmatmul.mubr.bf16.gmra.mrb[0].mxu0 %v4921
      %v4973 = vpop.f32.mrb[0].mxu0
      %v4974 = vadd.f32 0.0, %v4973
      %v4975 = vpop.f32.mrb[0].mxu0
      %v4976 = vadd.f32 0.0, %v4975
      %v4977 = vpop.f32.mrb[0].mxu0
      %v4978 = vadd.f32 0.0, %v4977
      %v4979 = vpop.f32.mrb[0].mxu0
      %v4980 = vadd.f32 0.0, %v4979
      %4981 = vmatprep.mubr.bf16.mxu0 0
      %4982 = vmatmul.mubr.bf16.gmra.mrb[0].mxu0 %v4924
      %v4983 = vpop.f32.mrb[0].mxu0
      %v4984 = vadd.f32 0.0, %v4983
      %v4985 = vpop.f32.mrb[0].mxu0
      %v4986 = vadd.f32 0.0, %v4985
      %v4987 = vpop.f32.mrb[0].mxu0
      %v4988 = vadd.f32 0.0, %v4987
      %v4989 = vpop.f32.mrb[0].mxu0
      %v4990 = vadd.f32 0.0, %v4989
      %4991 = vmatprep.mubr.bf16.mxu0 0
      %4992 = vmatmul.mubr.bf16.gmra.mrb[0].mxu0 %v4927
      %v4993 = vpop.f32.mrb[0].mxu0
      %v4994 = vadd.f32 0.0, %v4993
      %v4995 = vpop.f32.mrb[0].mxu0
      %v4996 = vadd.f32 0.0, %v4995
      %v4997 = vpop.f32.mrb[0].mxu0
      %v4998 = vadd.f32 0.0, %v4997
      %v4999 = vpop.f32.mrb[0].mxu0
      %v5000 = vadd.f32 0.0, %v4999
      %5001 = vdwg.mxu0
      %v5002 = vadd.f32 %v4833, %v4964
      %v5003 = vadd.f32 %v4834, %v4966
      %v5004 = vadd.f32 %v4835, %v4968
      %v5005 = vadd.f32 %v4836, %v4970
      %v5006 = vadd.f32 %v4837, %v4974
      %v5007 = vadd.f32 %v4838, %v4976
      %v5008 = vadd.f32 %v4839, %v4978
      %v5009 = vadd.f32 %v4840, %v4980
      %v5010 = vadd.f32 %v4841, %v4984
      %v5011 = vadd.f32 %v4842, %v4986
      %v5012 = vadd.f32 %v4843, %v4988
      %v5013 = vadd.f32 %v4844, %v4990
      %v5014 = vadd.f32 %v4845, %v4994
      %v5015 = vadd.f32 %v4846, %v4996
      %v5016 = vadd.f32 %v4847, %v4998
      %v5017 = vadd.f32 %v4848, %v5000
      %v5018 = vld [vmem:[%s4] sm:$0xff]
      %v5019 = vld [vmem:[%s4 + $0x8] sm:$0xff]
      %v5020 = vld [vmem:[%s4 + $0x10] sm:$0xff]
      %v5021 = vld [vmem:[%s4 + $0x18] sm:$0xff]
      %v5022 = vld [vmem:[%s4 + $0x20] sm:$0xff]
      %v5023 = vld [vmem:[%s4 + $0x28] sm:$0xff]
      %v5024 = vld [vmem:[%s4 + $0x30] sm:$0xff]
      %v5025 = vld [vmem:[%s4 + $0x38] sm:$0xff]
      %5027 = vset.pattern.permute.xlu0 0
      %5028 = vperm.xlu0 %5027, %v5018
      %v5029 = vpop.permute.xlu0 %5028
      %5032 = vset.pattern.permute.xlu0 0
      %5033 = vperm.xlu0 %5032, %v5019
      %v5034 = vpop.permute.xlu0 %5033
      %5037 = vset.pattern.permute.xlu0 0
      %5038 = vperm.xlu0 %5037, %v5020
      %v5039 = vpop.permute.xlu0 %5038
      %5042 = vset.pattern.permute.xlu0 0
      %5043 = vperm.xlu0 %5042, %v5021
      %v5044 = vpop.permute.xlu0 %5043
      %5047 = vset.pattern.permute.xlu0 0
      %5048 = vperm.xlu0 %5047, %v5022
      %v5049 = vpop.permute.xlu0 %5048
      %5052 = vset.pattern.permute.xlu0 0
      %5053 = vperm.xlu0 %5052, %v5023
      %v5054 = vpop.permute.xlu0 %5053
      %5057 = vset.pattern.permute.xlu0 0
      %5058 = vperm.xlu0 %5057, %v5024
      %v5059 = vpop.permute.xlu0 %5058
      %5062 = vset.pattern.permute.xlu0 0
      %5063 = vperm.xlu0 %5062, %v5025
      %v5064 = vpop.permute.xlu0 %5063
      %v5066 = vadd.f32 %v5002, %v5029
      %v5067 = vadd.f32 %v5003, %v5029
      %v5068 = vadd.f32 %v5004, %v5034
      %v5069 = vadd.f32 %v5005, %v5034
      %v5070 = vadd.f32 %v5006, %v5039
      %v5071 = vadd.f32 %v5007, %v5039
      %v5072 = vadd.f32 %v5008, %v5044
      %v5073 = vadd.f32 %v5009, %v5044
      %v5074 = vadd.f32 %v5010, %v5049
      %v5075 = vadd.f32 %v5011, %v5049
      %v5076 = vadd.f32 %v5012, %v5054
      %v5077 = vadd.f32 %v5013, %v5054
      %v5078 = vadd.f32 %v5014, %v5059
      %v5079 = vadd.f32 %v5015, %v5059
      %v5080 = vadd.f32 %v5016, %v5064
      %v5081 = vadd.f32 %v5017, %v5064
      %v5082 = vmax.f32 %v5066, 0.0
      %v5083 = vmax.f32 %v5067, 0.0
      %v5084 = vmax.f32 %v5068, 0.0
      %v5085 = vmax.f32 %v5069, 0.0
      %v5086 = vmax.f32 %v5070, 0.0
      %v5087 = vmax.f32 %v5071, 0.0
      %v5088 = vmax.f32 %v5072, 0.0
      %v5089 = vmax.f32 %v5073, 0.0
      %v5090 = vmax.f32 %v5074, 0.0
      %v5091 = vmax.f32 %v5075, 0.0
      %v5092 = vmax.f32 %v5076, 0.0
      %v5093 = vmax.f32 %v5077, 0.0
      %v5094 = vmax.f32 %v5078, 0.0
      %v5095 = vmax.f32 %v5079, 0.0
      %v5096 = vmax.f32 %v5080, 0.0
      %v5097 = vmax.f32 %v5081, 0.0
      %v5098 = vld [vmem:[%s9 + $0x3] sm:$0x3]
      %v5100 = vlaneseq
      %v5101 = vshrl.u32 %v5100, 7
      %v5102 = vsub.s32 0, %v5101
      %v5103 = vrot.slane %v5098, %v5102
      %v5104 = vlaneseq
      %v5105 = vshrl.u32 %v5104, 7
      %v5106 = vsub.s32 1, %v5105
      %v5107 = vrot.slane %v5098, %v5106
      %v5110 = vmul.f32 %v5082, %v5103
      %v5111 = vmul.f32 %v5083, %v5107
      %v5112 = vmul.f32 %v5084, %v5103
      %v5113 = vmul.f32 %v5085, %v5107
      %v5114 = vmul.f32 %v5086, %v5103
      %v5115 = vmul.f32 %v5087, %v5107
      %v5116 = vmul.f32 %v5088, %v5103
      %v5117 = vmul.f32 %v5089, %v5107
      %v5118 = vmul.f32 %v5090, %v5103
      %v5119 = vmul.f32 %v5091, %v5107
      %v5120 = vmul.f32 %v5092, %v5103
      %v5121 = vmul.f32 %v5093, %v5107
      %v5122 = vmul.f32 %v5094, %v5103
      %v5123 = vmul.f32 %v5095, %v5107
      %v5124 = vmul.f32 %v5096, %v5103
      %v5125 = vmul.f32 %v5097, %v5107
      %v5126 = vpack.c.bf16 %v5112, %v5110
      %v5127 = vpack.c.bf16 %v5113, %v5111
      %v5128 = vpack.c.bf16 %v5116, %v5114
      %v5129 = vpack.c.bf16 %v5117, %v5115
      %v5130 = vpack.c.bf16 %v5120, %v5118
      %v5131 = vpack.c.bf16 %v5121, %v5119
      %v5132 = vpack.c.bf16 %v5124, %v5122
      %v5133 = vpack.c.bf16 %v5125, %v5123
      %5134 = vst [vmem:[#allocation4 + $0x20] sm:$0xff] %v5126
      %5135 = vst [vmem:[#allocation4 + $0x28] sm:$0xff] %v5127
      %5136 = vst [vmem:[#allocation4 + $0x58] sm:$0xff] %v5128
      %5137 = vst [vmem:[#allocation4 + $0x60] sm:$0xff] %v5129
      %5138 = vst [vmem:[#allocation4 + $0x90] sm:$0xff] %v5130
      %5139 = vst [vmem:[#allocation4 + $0x98] sm:$0xff] %v5131
      %5140 = vst [vmem:[#allocation4 + $0xc8] sm:$0xff] %v5132
      %5141 = vst [vmem:[#allocation4 + $0xd0] sm:$0xff] %v5133
      %v5142 = vld [vmem:[%s5] sm:$0xf]
      %v5143 = vld [vmem:[%s5 + $0x14] sm:$0xf]
      %v5144 = vld [vmem:[%s5 + $0x28] sm:$0xf]
      %v5145 = vld [vmem:[%s5 + $0x3c] sm:$0xf]
      %v5146 = vld [vmem:[#allocation4] sm:$0xff]
      %v5147 = vld [vmem:[#allocation4 + $0x8] sm:$0xff]
      %v5148 = vld [vmem:[#allocation4 + $0x10] sm:$0xff]
      %v5149 = vld [vmem:[#allocation4 + $0x18] sm:$0xff]
      %v5150 = vld [vmem:[#allocation4 + $0x38] sm:$0xff]
      %v5151 = vld [vmem:[#allocation4 + $0x40] sm:$0xff]
      %v5152 = vld [vmem:[#allocation4 + $0x48] sm:$0xff]
      %v5153 = vld [vmem:[#allocation4 + $0x50] sm:$0xff]
      %v5154 = vld [vmem:[#allocation4 + $0x70] sm:$0xff]
      %v5155 = vld [vmem:[#allocation4 + $0x78] sm:$0xff]
      %v5156 = vld [vmem:[#allocation4 + $0x80] sm:$0xff]
      %v5157 = vld [vmem:[#allocation4 + $0x88] sm:$0xff]
      %v5158 = vld [vmem:[#allocation4 + $0xa8] sm:$0xff]
      %v5159 = vld [vmem:[#allocation4 + $0xb0] sm:$0xff]
      %v5160 = vld [vmem:[#allocation4 + $0xb8] sm:$0xff]
      %v5161 = vld [vmem:[#allocation4 + $0xc0] sm:$0xff]
      %v5166 = vunpack.c.l.b16 %v5142
      %v5167 = vunpack.c.l.b16 %v5143
      %v5168 = vunpack.c.l.b16 %v5144
      %v5169 = vunpack.c.l.b16 %v5145
      %v5170 = vpack.c.b16 %v5167, %v5166
      %v5171 = vpack.c.b16 %v5169, %v5168
      %5172 = vrot.lane.b32.xlu0 %v5170, 64
      %v5173 = vpop.permute.xlu0 %5172
      %5174 = vrot.lane.b32.xlu0 %v5171, 64
      %v5175 = vpop.permute.xlu0 %5174
      %5192 = vrot.lane.b32.xlu0 %v5146, 32
      %v5193 = vpop.permute.xlu0 %5192
      %5194 = vrot.lane.b32.xlu0 %v5147, 32
      %v5195 = vpop.permute.xlu0 %5194
      %5196 = vrot.lane.b32.xlu0 %v5148, 32
      %v5197 = vpop.permute.xlu0 %5196
      %5198 = vrot.lane.b32.xlu0 %v5149, 32
      %v5199 = vpop.permute.xlu0 %5198
      %5200 = vrot.lane.b32.xlu0 %v5150, 32
      %v5201 = vpop.permute.xlu0 %5200
      %5202 = vrot.lane.b32.xlu0 %v5151, 32
      %v5203 = vpop.permute.xlu0 %5202
      %5204 = vrot.lane.b32.xlu0 %v5152, 32
      %v5205 = vpop.permute.xlu0 %5204
      %5206 = vrot.lane.b32.xlu0 %v5153, 32
      %v5207 = vpop.permute.xlu0 %5206
      %5208 = vrot.lane.b32.xlu0 %v5154, 32
      %v5209 = vpop.permute.xlu0 %5208
      %5210 = vrot.lane.b32.xlu0 %v5155, 32
      %v5211 = vpop.permute.xlu0 %5210
      %5212 = vrot.lane.b32.xlu0 %v5156, 32
      %v5213 = vpop.permute.xlu0 %5212
      %5214 = vrot.lane.b32.xlu0 %v5157, 32
      %v5215 = vpop.permute.xlu0 %5214
      %5216 = vrot.lane.b32.xlu0 %v5158, 32
      %v5217 = vpop.permute.xlu0 %5216
      %5218 = vrot.lane.b32.xlu0 %v5159, 32
      %v5219 = vpop.permute.xlu0 %5218
      %5220 = vrot.lane.b32.xlu0 %v5160, 32
      %v5221 = vpop.permute.xlu0 %5220
      %5222 = vrot.lane.b32.xlu0 %v5161, 32
      %v5223 = vpop.permute.xlu0 %5222
      %v5224 = vsel %vm1330, %v5193, %v5195
      %v5225 = vsel %vm1330, %v5195, %v5197
      %v5226 = vsel %vm1330, %v5197, %v5199
      %v5227 = vsel %vm1330, %v5201, %v5203
      %v5228 = vsel %vm1330, %v5203, %v5205
      %v5229 = vsel %vm1330, %v5205, %v5207
      %v5230 = vsel %vm1330, %v5209, %v5211
      %v5231 = vsel %vm1330, %v5211, %v5213
      %v5232 = vsel %vm1330, %v5213, %v5215
      %v5233 = vsel %vm1330, %v5217, %v5219
      %v5234 = vsel %vm1330, %v5219, %v5221
      %v5235 = vsel %vm1330, %v5221, %v5223
      %v5249 = vsel %vm408, %v5173, 0
      %v5252 = vsel %vm408, %v5175, 0
      %5254 = vmatprep.subr.bf16.mxu0 %v5225
      %5255 = vmatpush1.bf16.msra.mxu0 %v5224
      %5256 = vmatprep.subr.bf16.mxu0 %v5228
      %5257 = vmatpush1.bf16.msra.mxu0 %v5227
      %5258 = vmatprep.subr.bf16.mxu0 %v5231
      %5259 = vmatpush1.bf16.msra.mxu0 %v5230
      %5260 = vmatprep.subr.bf16.mxu0 %v5234
      %5261 = vmatpush1.bf16.msra.mxu0 %v5233
      %5262 = vmatprep.subr.bf16.mxu0 0
      %5263 = vmatpush1.bf16.msra.mxu0 0
      %5264 = vmatprep.subr.bf16.mxu0 0
      %5265 = vmatpush1.bf16.msra.mxu0 0
      %5266 = vmatprep.subr.bf16.mxu0 0
      %5267 = vmatpush1.bf16.msra.mxu0 0
      %5268 = vmatprep.subr.bf16.mxu0 0
      %5269 = vmatpush1.bf16.msra.mxu0 0
      %5270 = vmatprep.subr.bf16.mxu0 0
      %5271 = vmatpush1.bf16.msra.mxu0 0
      %5272 = vmatprep.subr.bf16.mxu0 0
      %5273 = vmatpush1.bf16.msra.mxu0 0
      %5274 = vmatprep.subr.bf16.mxu0 0
      %5275 = vmatpush1.bf16.msra.mxu0 0
      %5276 = vmatprep.subr.bf16.mxu0 0
      %5277 = vmatpush1.bf16.msra.mxu0 0
      %5278 = vmatprep.subr.bf16.mxu0 0
      %5279 = vmatpush1.bf16.msra.mxu0 0
      %5280 = vmatprep.subr.bf16.mxu0 0
      %5281 = vmatpush1.bf16.msra.mxu0 0
      %5282 = vmatprep.subr.bf16.mxu0 0
      %5283 = vmatpush1.bf16.msra.mxu0 0
      %5284 = vmatprep.subr.bf16.mxu0 0
      %5285 = vmatpush1.bf16.msra.mxu0 0
      %5286 = vmatprep.mubr.bf16.mxu0 0
      %5287 = vmatmul.mubr.bf16.gmra.mrb[0].mxu0 %v5249
      %v5288 = vpop.f32.mrb[0].mxu0
      %v5289 = vadd.f32 0.0, %v5288
      %v5290 = vpop.f32.mrb[0].mxu0
      %v5291 = vadd.f32 0.0, %v5290
      %v5292 = vpop.f32.mrb[0].mxu0
      %v5293 = vadd.f32 0.0, %v5292
      %v5294 = vpop.f32.mrb[0].mxu0
      %v5295 = vadd.f32 0.0, %v5294
      %5296 = vmatprep.mubr.bf16.mxu0 0
      %5297 = vmatmul.mubr.bf16.gmra.mrb[0].mxu0 %v5252
      %v5298 = vpop.f32.mrb[0].mxu0
      %v5299 = vadd.f32 0.0, %v5298
      %v5300 = vpop.f32.mrb[0].mxu0
      %v5301 = vadd.f32 0.0, %v5300
      %v5302 = vpop.f32.mrb[0].mxu0
      %v5303 = vadd.f32 0.0, %v5302
      %v5304 = vpop.f32.mrb[0].mxu0
      %v5305 = vadd.f32 0.0, %v5304
      %5306 = vdwg.mxu0
      %5307 = vmatprep.subr.bf16.mxu0 0
      %5308 = vmatpush1.bf16.msra.mxu0 %v5226
      %5309 = vmatprep.subr.bf16.mxu0 0
      %5310 = vmatpush1.bf16.msra.mxu0 %v5229
      %5311 = vmatprep.subr.bf16.mxu0 0
      %5312 = vmatpush1.bf16.msra.mxu0 %v5232
      %5313 = vmatprep.subr.bf16.mxu0 0
      %5314 = vmatpush1.bf16.msra.mxu0 %v5235
      %5315 = vmatprep.subr.bf16.mxu0 0
      %5316 = vmatpush1.bf16.msra.mxu0 0
      %5317 = vmatprep.subr.bf16.mxu0 0
      %5318 = vmatpush1.bf16.msra.mxu0 0
      %5319 = vmatprep.subr.bf16.mxu0 0
      %5320 = vmatpush1.bf16.msra.mxu0 0
      %5321 = vmatprep.subr.bf16.mxu0 0
      %5322 = vmatpush1.bf16.msra.mxu0 0
      %5323 = vmatprep.subr.bf16.mxu0 0
      %5324 = vmatpush1.bf16.msra.mxu0 0
      %5325 = vmatprep.subr.bf16.mxu0 0
      %5326 = vmatpush1.bf16.msra.mxu0 0
      %5327 = vmatprep.subr.bf16.mxu0 0
      %5328 = vmatpush1.bf16.msra.mxu0 0
      %5329 = vmatprep.subr.bf16.mxu0 0
      %5330 = vmatpush1.bf16.msra.mxu0 0
      %5331 = vmatprep.subr.bf16.mxu0 0
      %5332 = vmatpush1.bf16.msra.mxu0 0
      %5333 = vmatprep.subr.bf16.mxu0 0
      %5334 = vmatpush1.bf16.msra.mxu0 0
      %5335 = vmatprep.subr.bf16.mxu0 0
      %5336 = vmatpush1.bf16.msra.mxu0 0
      %5337 = vmatprep.subr.bf16.mxu0 0
      %5338 = vmatpush1.bf16.msra.mxu0 0
      %5339 = vmatprep.mubr.bf16.mxu0 0
      %5340 = vmatmul.mubr.bf16.gmra.mrb[0].mxu0 %v5249
      %v5341 = vpop.f32.mrb[0].mxu0
      %v5342 = vadd.f32 0.0, %v5341
      %v5343 = vpop.f32.mrb[0].mxu0
      %v5344 = vpop.f32.mrb[0].mxu0
      %v5345 = vadd.f32 0.0, %v5344
      %v5346 = vpop.f32.mrb[0].mxu0
      %5347 = vmatprep.mubr.bf16.mxu0 0
      %5348 = vmatmul.mubr.bf16.gmra.mrb[0].mxu0 %v5252
      %v5349 = vpop.f32.mrb[0].mxu0
      %v5350 = vadd.f32 0.0, %v5349
      %v5351 = vpop.f32.mrb[0].mxu0
      %v5352 = vpop.f32.mrb[0].mxu0
      %v5353 = vadd.f32 0.0, %v5352
      %v5354 = vpop.f32.mrb[0].mxu0
      %5355 = vdwg.mxu0
      %5356 = vrot.lane.b32.xlu0 %v5146, 33
      %v5357 = vpop.permute.xlu0 %5356
      %5358 = vrot.lane.b32.xlu0 %v5147, 33
      %v5359 = vpop.permute.xlu0 %5358
      %5360 = vrot.lane.b32.xlu0 %v5148, 33
      %v5361 = vpop.permute.xlu0 %5360
      %5362 = vrot.lane.b32.xlu0 %v5149, 33
      %v5363 = vpop.permute.xlu0 %5362
      %5364 = vrot.lane.b32.xlu0 %v5150, 33
      %v5365 = vpop.permute.xlu0 %5364
      %5366 = vrot.lane.b32.xlu0 %v5151, 33
      %v5367 = vpop.permute.xlu0 %5366
      %5368 = vrot.lane.b32.xlu0 %v5152, 33
      %v5369 = vpop.permute.xlu0 %5368
      %5370 = vrot.lane.b32.xlu0 %v5153, 33
      %v5371 = vpop.permute.xlu0 %5370
      %5372 = vrot.lane.b32.xlu0 %v5154, 33
      %v5373 = vpop.permute.xlu0 %5372
      %5374 = vrot.lane.b32.xlu0 %v5155, 33
      %v5375 = vpop.permute.xlu0 %5374
      %5376 = vrot.lane.b32.xlu0 %v5156, 33
      %v5377 = vpop.permute.xlu0 %5376
      %5378 = vrot.lane.b32.xlu0 %v5157, 33
      %v5379 = vpop.permute.xlu0 %5378
      %5380 = vrot.lane.b32.xlu0 %v5158, 33
      %v5381 = vpop.permute.xlu0 %5380
      %5382 = vrot.lane.b32.xlu0 %v5159, 33
      %v5383 = vpop.permute.xlu0 %5382
      %5384 = vrot.lane.b32.xlu0 %v5160, 33
      %v5385 = vpop.permute.xlu0 %5384
      %5386 = vrot.lane.b32.xlu0 %v5161, 33
      %v5387 = vpop.permute.xlu0 %5386
      %v5388 = vsel %vm1537, %v5357, %v5359
      %v5389 = vsel %vm1537, %v5359, %v5361
      %v5390 = vsel %vm1537, %v5361, %v5363
      %v5391 = vsel %vm1537, %v5365, %v5367
      %v5392 = vsel %vm1537, %v5367, %v5369
      %v5393 = vsel %vm1537, %v5369, %v5371
      %v5394 = vsel %vm1537, %v5373, %v5375
      %v5395 = vsel %vm1537, %v5375, %v5377
      %v5396 = vsel %vm1537, %v5377, %v5379
      %v5397 = vsel %vm1537, %v5381, %v5383
      %v5398 = vsel %vm1537, %v5383, %v5385
      %v5399 = vsel %vm1537, %v5385, %v5387
      %v5413 = vsel %vm408, %v5170, 0
      %v5416 = vsel %vm408, %v5171, 0
      %5418 = vmatprep.subr.bf16.mxu0 %v5389
      %5419 = vmatpush1.bf16.msra.mxu0 %v5388
      %5420 = vmatprep.subr.bf16.mxu0 %v5392
      %5421 = vmatpush1.bf16.msra.mxu0 %v5391
      %5422 = vmatprep.subr.bf16.mxu0 %v5395
      %5423 = vmatpush1.bf16.msra.mxu0 %v5394
      %5424 = vmatprep.subr.bf16.mxu0 %v5398
      %5425 = vmatpush1.bf16.msra.mxu0 %v5397
      %5426 = vmatprep.subr.bf16.mxu0 0
      %5427 = vmatpush1.bf16.msra.mxu0 0
      %5428 = vmatprep.subr.bf16.mxu0 0
      %5429 = vmatpush1.bf16.msra.mxu0 0
      %5430 = vmatprep.subr.bf16.mxu0 0
      %5431 = vmatpush1.bf16.msra.mxu0 0
      %5432 = vmatprep.subr.bf16.mxu0 0
      %5433 = vmatpush1.bf16.msra.mxu0 0
      %5434 = vmatprep.subr.bf16.mxu0 0
      %5435 = vmatpush1.bf16.msra.mxu0 0
      %5436 = vmatprep.subr.bf16.mxu0 0
      %5437 = vmatpush1.bf16.msra.mxu0 0
      %5438 = vmatprep.subr.bf16.mxu0 0
      %5439 = vmatpush1.bf16.msra.mxu0 0
      %5440 = vmatprep.subr.bf16.mxu0 0
      %5441 = vmatpush1.bf16.msra.mxu0 0
      %5442 = vmatprep.subr.bf16.mxu0 0
      %5443 = vmatpush1.bf16.msra.mxu0 0
      %5444 = vmatprep.subr.bf16.mxu0 0
      %5445 = vmatpush1.bf16.msra.mxu0 0
      %5446 = vmatprep.subr.bf16.mxu0 0
      %5447 = vmatpush1.bf16.msra.mxu0 0
      %5448 = vmatprep.subr.bf16.mxu0 0
      %5449 = vmatpush1.bf16.msra.mxu0 0
      %5450 = vmatprep.mubr.bf16.mxu0 0
      %5451 = vmatmul.mubr.bf16.gmra.mrb[0].mxu0 %v5413
      %v5452 = vpop.f32.mrb[0].mxu0
      %v5453 = vadd.f32 %v5289, %v5452
      %v5454 = vpop.f32.mrb[0].mxu0
      %v5455 = vadd.f32 %v5291, %v5454
      %v5456 = vpop.f32.mrb[0].mxu0
      %v5457 = vadd.f32 %v5293, %v5456
      %v5458 = vpop.f32.mrb[0].mxu0
      %v5459 = vadd.f32 %v5295, %v5458
      %5460 = vmatprep.mubr.bf16.mxu0 0
      %5461 = vmatmul.mubr.bf16.gmra.mrb[0].mxu0 %v5416
      %v5462 = vpop.f32.mrb[0].mxu0
      %v5463 = vadd.f32 %v5299, %v5462
      %v5464 = vpop.f32.mrb[0].mxu0
      %v5465 = vadd.f32 %v5301, %v5464
      %v5466 = vpop.f32.mrb[0].mxu0
      %v5467 = vadd.f32 %v5303, %v5466
      %v5468 = vpop.f32.mrb[0].mxu0
      %v5469 = vadd.f32 %v5305, %v5468
      %5470 = vdwg.mxu0
      %5471 = vmatprep.subr.bf16.mxu0 0
      %5472 = vmatpush1.bf16.msra.mxu0 %v5390
      %5473 = vmatprep.subr.bf16.mxu0 0
      %5474 = vmatpush1.bf16.msra.mxu0 %v5393
      %5475 = vmatprep.subr.bf16.mxu0 0
      %5476 = vmatpush1.bf16.msra.mxu0 %v5396
      %5477 = vmatprep.subr.bf16.mxu0 0
      %5478 = vmatpush1.bf16.msra.mxu0 %v5399
      %5479 = vmatprep.subr.bf16.mxu0 0
      %5480 = vmatpush1.bf16.msra.mxu0 0
      %5481 = vmatprep.subr.bf16.mxu0 0
      %5482 = vmatpush1.bf16.msra.mxu0 0
      %5483 = vmatprep.subr.bf16.mxu0 0
      %5484 = vmatpush1.bf16.msra.mxu0 0
      %5485 = vmatprep.subr.bf16.mxu0 0
      %5486 = vmatpush1.bf16.msra.mxu0 0
      %5487 = vmatprep.subr.bf16.mxu0 0
      %5488 = vmatpush1.bf16.msra.mxu0 0
      %5489 = vmatprep.subr.bf16.mxu0 0
      %5490 = vmatpush1.bf16.msra.mxu0 0
      %5491 = vmatprep.subr.bf16.mxu0 0
      %5492 = vmatpush1.bf16.msra.mxu0 0
      %5493 = vmatprep.subr.bf16.mxu0 0
      %5494 = vmatpush1.bf16.msra.mxu0 0
      %5495 = vmatprep.subr.bf16.mxu0 0
      %5496 = vmatpush1.bf16.msra.mxu0 0
      %5497 = vmatprep.subr.bf16.mxu0 0
      %5498 = vmatpush1.bf16.msra.mxu0 0
      %5499 = vmatprep.subr.bf16.mxu0 0
      %5500 = vmatpush1.bf16.msra.mxu0 0
      %5501 = vmatprep.subr.bf16.mxu0 0
      %5502 = vmatpush1.bf16.msra.mxu0 0
      %5503 = vmatprep.mubr.bf16.mxu0 0
      %5504 = vmatmul.mubr.bf16.gmra.mrb[0].mxu0 %v5413
      %v5505 = vpop.f32.mrb[0].mxu0
      %v5506 = vadd.f32 %v5342, %v5505
      %v5507 = vpop.f32.mrb[0].mxu0
      %v5508 = vpop.f32.mrb[0].mxu0
      %v5509 = vadd.f32 %v5345, %v5508
      %v5510 = vpop.f32.mrb[0].mxu0
      %5511 = vmatprep.mubr.bf16.mxu0 0
      %5512 = vmatmul.mubr.bf16.gmra.mrb[0].mxu0 %v5416
      %v5513 = vpop.f32.mrb[0].mxu0
      %v5514 = vadd.f32 %v5350, %v5513
      %v5515 = vpop.f32.mrb[0].mxu0
      %v5516 = vpop.f32.mrb[0].mxu0
      %v5517 = vadd.f32 %v5353, %v5516
      %v5518 = vpop.f32.mrb[0].mxu0
      %5519 = vdwg.mxu0
      %v5520 = vld [vmem:[%s5 + $0x4] sm:$0xf]
      %v5521 = vld [vmem:[%s5 + $0x18] sm:$0xf]
      %v5522 = vld [vmem:[%s5 + $0x2c] sm:$0xf]
      %v5523 = vld [vmem:[%s5 + $0x40] sm:$0xf]
      %v5528 = vunpack.c.l.b16 %v5520
      %v5529 = vunpack.c.l.b16 %v5521
      %v5530 = vunpack.c.l.b16 %v5522
      %v5531 = vunpack.c.l.b16 %v5523
      %v5532 = vpack.c.b16 %v5529, %v5528
      %v5533 = vpack.c.b16 %v5531, %v5530
      %5534 = vrot.lane.b32.xlu0 %v5146, 31
      %v5535 = vpop.permute.xlu0 %5534
      %5536 = vrot.lane.b32.xlu0 %v5147, 31
      %v5537 = vpop.permute.xlu0 %5536
      %5538 = vrot.lane.b32.xlu0 %v5148, 31
      %v5539 = vpop.permute.xlu0 %5538
      %5540 = vrot.lane.b32.xlu0 %v5149, 31
      %v5541 = vpop.permute.xlu0 %5540
      %5542 = vrot.lane.b32.xlu0 %v5150, 31
      %v5543 = vpop.permute.xlu0 %5542
      %5544 = vrot.lane.b32.xlu0 %v5151, 31
      %v5545 = vpop.permute.xlu0 %5544
      %5546 = vrot.lane.b32.xlu0 %v5152, 31
      %v5547 = vpop.permute.xlu0 %5546
      %5548 = vrot.lane.b32.xlu0 %v5153, 31
      %v5549 = vpop.permute.xlu0 %5548
      %5550 = vrot.lane.b32.xlu0 %v5154, 31
      %v5551 = vpop.permute.xlu0 %5550
      %5552 = vrot.lane.b32.xlu0 %v5155, 31
      %v5553 = vpop.permute.xlu0 %5552
      %5554 = vrot.lane.b32.xlu0 %v5156, 31
      %v5555 = vpop.permute.xlu0 %5554
      %5556 = vrot.lane.b32.xlu0 %v5157, 31
      %v5557 = vpop.permute.xlu0 %5556
      %5558 = vrot.lane.b32.xlu0 %v5158, 31
      %v5559 = vpop.permute.xlu0 %5558
      %5560 = vrot.lane.b32.xlu0 %v5159, 31
      %v5561 = vpop.permute.xlu0 %5560
      %5562 = vrot.lane.b32.xlu0 %v5160, 31
      %v5563 = vpop.permute.xlu0 %5562
      %5564 = vrot.lane.b32.xlu0 %v5161, 31
      %v5565 = vpop.permute.xlu0 %5564
      %v5566 = vsel %vm1772, %v5535, %v5537
      %v5567 = vsel %vm1772, %v5537, %v5539
      %v5568 = vsel %vm1772, %v5539, %v5541
      %v5569 = vsel %vm1772, %v5543, %v5545
      %v5570 = vsel %vm1772, %v5545, %v5547
      %v5571 = vsel %vm1772, %v5547, %v5549
      %v5572 = vsel %vm1772, %v5551, %v5553
      %v5573 = vsel %vm1772, %v5553, %v5555
      %v5574 = vsel %vm1772, %v5555, %v5557
      %v5575 = vsel %vm1772, %v5559, %v5561
      %v5576 = vsel %vm1772, %v5561, %v5563
      %v5577 = vsel %vm1772, %v5563, %v5565
      %v5591 = vsel %vm408, %v5532, 0
      %v5594 = vsel %vm408, %v5533, 0
      %5596 = vmatprep.subr.bf16.mxu0 %v5567
      %5597 = vmatpush1.bf16.msra.mxu0 %v5566
      %5598 = vmatprep.subr.bf16.mxu0 %v5570
      %5599 = vmatpush1.bf16.msra.mxu0 %v5569
      %5600 = vmatprep.subr.bf16.mxu0 %v5573
      %5601 = vmatpush1.bf16.msra.mxu0 %v5572
      %5602 = vmatprep.subr.bf16.mxu0 %v5576
      %5603 = vmatpush1.bf16.msra.mxu0 %v5575
      %5604 = vmatprep.subr.bf16.mxu0 0
      %5605 = vmatpush1.bf16.msra.mxu0 0
      %5606 = vmatprep.subr.bf16.mxu0 0
      %5607 = vmatpush1.bf16.msra.mxu0 0
      %5608 = vmatprep.subr.bf16.mxu0 0
      %5609 = vmatpush1.bf16.msra.mxu0 0
      %5610 = vmatprep.subr.bf16.mxu0 0
      %5611 = vmatpush1.bf16.msra.mxu0 0
      %5612 = vmatprep.subr.bf16.mxu0 0
      %5613 = vmatpush1.bf16.msra.mxu0 0
      %5614 = vmatprep.subr.bf16.mxu0 0
      %5615 = vmatpush1.bf16.msra.mxu0 0
      %5616 = vmatprep.subr.bf16.mxu0 0
      %5617 = vmatpush1.bf16.msra.mxu0 0
      %5618 = vmatprep.subr.bf16.mxu0 0
      %5619 = vmatpush1.bf16.msra.mxu0 0
      %5620 = vmatprep.subr.bf16.mxu0 0
      %5621 = vmatpush1.bf16.msra.mxu0 0
      %5622 = vmatprep.subr.bf16.mxu0 0
      %5623 = vmatpush1.bf16.msra.mxu0 0
      %5624 = vmatprep.subr.bf16.mxu0 0
      %5625 = vmatpush1.bf16.msra.mxu0 0
      %5626 = vmatprep.subr.bf16.mxu0 0
      %5627 = vmatpush1.bf16.msra.mxu0 0
      %5628 = vmatprep.mubr.bf16.mxu0 0
      %5629 = vmatmul.mubr.bf16.gmra.mrb[0].mxu0 %v5591
      %v5630 = vpop.f32.mrb[0].mxu0
      %v5631 = vadd.f32 0.0, %v5630
      %v5632 = vpop.f32.mrb[0].mxu0
      %v5633 = vadd.f32 0.0, %v5632
      %v5634 = vpop.f32.mrb[0].mxu0
      %v5635 = vadd.f32 0.0, %v5634
      %v5636 = vpop.f32.mrb[0].mxu0
      %v5637 = vadd.f32 0.0, %v5636
      %5638 = vmatprep.mubr.bf16.mxu0 0
      %5639 = vmatmul.mubr.bf16.gmra.mrb[0].mxu0 %v5594
      %v5640 = vpop.f32.mrb[0].mxu0
      %v5641 = vadd.f32 0.0, %v5640
      %v5642 = vpop.f32.mrb[0].mxu0
      %v5643 = vadd.f32 0.0, %v5642
      %v5644 = vpop.f32.mrb[0].mxu0
      %v5645 = vadd.f32 0.0, %v5644
      %v5646 = vpop.f32.mrb[0].mxu0
      %v5647 = vadd.f32 0.0, %v5646
      %5648 = vdwg.mxu0
      %5649 = vmatprep.subr.bf16.mxu0 0
      %5650 = vmatpush1.bf16.msra.mxu0 %v5568
      %5651 = vmatprep.subr.bf16.mxu0 0
      %5652 = vmatpush1.bf16.msra.mxu0 %v5571
      %5653 = vmatprep.subr.bf16.mxu0 0
      %5654 = vmatpush1.bf16.msra.mxu0 %v5574
      %5655 = vmatprep.subr.bf16.mxu0 0
      %5656 = vmatpush1.bf16.msra.mxu0 %v5577
      %5657 = vmatprep.subr.bf16.mxu0 0
      %5658 = vmatpush1.bf16.msra.mxu0 0
      %5659 = vmatprep.subr.bf16.mxu0 0
      %5660 = vmatpush1.bf16.msra.mxu0 0
      %5661 = vmatprep.subr.bf16.mxu0 0
      %5662 = vmatpush1.bf16.msra.mxu0 0
      %5663 = vmatprep.subr.bf16.mxu0 0
      %5664 = vmatpush1.bf16.msra.mxu0 0
      %5665 = vmatprep.subr.bf16.mxu0 0
      %5666 = vmatpush1.bf16.msra.mxu0 0
      %5667 = vmatprep.subr.bf16.mxu0 0
      %5668 = vmatpush1.bf16.msra.mxu0 0
      %5669 = vmatprep.subr.bf16.mxu0 0
      %5670 = vmatpush1.bf16.msra.mxu0 0
      %5671 = vmatprep.subr.bf16.mxu0 0
      %5672 = vmatpush1.bf16.msra.mxu0 0
      %5673 = vmatprep.subr.bf16.mxu0 0
      %5674 = vmatpush1.bf16.msra.mxu0 0
      %5675 = vmatprep.subr.bf16.mxu0 0
      %5676 = vmatpush1.bf16.msra.mxu0 0
      %5677 = vmatprep.subr.bf16.mxu0 0
      %5678 = vmatpush1.bf16.msra.mxu0 0
      %5679 = vmatprep.subr.bf16.mxu0 0
      %5680 = vmatpush1.bf16.msra.mxu0 0
      %5681 = vmatprep.mubr.bf16.mxu0 0
      %5682 = vmatmul.mubr.bf16.gmra.mrb[0].mxu0 %v5591
      %v5683 = vpop.f32.mrb[0].mxu0
      %v5684 = vadd.f32 0.0, %v5683
      %v5685 = vpop.f32.mrb[0].mxu0
      %v5686 = vpop.f32.mrb[0].mxu0
      %v5687 = vadd.f32 0.0, %v5686
      %v5688 = vpop.f32.mrb[0].mxu0
      %5689 = vmatprep.mubr.bf16.mxu0 0
      %5690 = vmatmul.mubr.bf16.gmra.mrb[0].mxu0 %v5594
      %v5691 = vpop.f32.mrb[0].mxu0
      %v5692 = vadd.f32 0.0, %v5691
      %v5693 = vpop.f32.mrb[0].mxu0
      %v5694 = vpop.f32.mrb[0].mxu0
      %v5695 = vadd.f32 0.0, %v5694
      %v5696 = vpop.f32.mrb[0].mxu0
      %5697 = vdwg.mxu0
      %v5698 = vadd.f32 %v5453, %v5631
      %v5699 = vadd.f32 %v5455, %v5633
      %v5700 = vadd.f32 %v5506, %v5684
      %v5701 = vadd.f32 %v5457, %v5635
      %v5702 = vadd.f32 %v5459, %v5637
      %v5703 = vadd.f32 %v5509, %v5687
      %v5704 = vadd.f32 %v5463, %v5641
      %v5705 = vadd.f32 %v5465, %v5643
      %v5706 = vadd.f32 %v5514, %v5692
      %v5707 = vadd.f32 %v5467, %v5645
      %v5708 = vadd.f32 %v5469, %v5647
      %v5709 = vadd.f32 %v5517, %v5695
      %5710 = vrot.lane.b32.xlu0 %v5532, 64
      %v5711 = vpop.permute.xlu0 %5710
      %5712 = vrot.lane.b32.xlu0 %v5533, 64
      %v5713 = vpop.permute.xlu0 %5712
      %5714 = vrot.lane.b32.xlu0 %v5146, 1
      %v5715 = vpop.permute.xlu0 %5714
      %5716 = vrot.lane.b32.xlu0 %v5147, 1
      %v5717 = vpop.permute.xlu0 %5716
      %5718 = vrot.lane.b32.xlu0 %v5148, 1
      %v5719 = vpop.permute.xlu0 %5718
      %5720 = vrot.lane.b32.xlu0 %v5149, 1
      %v5721 = vpop.permute.xlu0 %5720
      %5722 = vrot.lane.b32.xlu0 %v5150, 1
      %v5723 = vpop.permute.xlu0 %5722
      %5724 = vrot.lane.b32.xlu0 %v5151, 1
      %v5725 = vpop.permute.xlu0 %5724
      %5726 = vrot.lane.b32.xlu0 %v5152, 1
      %v5727 = vpop.permute.xlu0 %5726
      %5728 = vrot.lane.b32.xlu0 %v5153, 1
      %v5729 = vpop.permute.xlu0 %5728
      %5730 = vrot.lane.b32.xlu0 %v5154, 1
      %v5731 = vpop.permute.xlu0 %5730
      %5732 = vrot.lane.b32.xlu0 %v5155, 1
      %v5733 = vpop.permute.xlu0 %5732
      %5734 = vrot.lane.b32.xlu0 %v5156, 1
      %v5735 = vpop.permute.xlu0 %5734
      %5736 = vrot.lane.b32.xlu0 %v5157, 1
      %v5737 = vpop.permute.xlu0 %5736
      %5738 = vrot.lane.b32.xlu0 %v5158, 1
      %v5739 = vpop.permute.xlu0 %5738
      %5740 = vrot.lane.b32.xlu0 %v5159, 1
      %v5741 = vpop.permute.xlu0 %5740
      %5742 = vrot.lane.b32.xlu0 %v5160, 1
      %v5743 = vpop.permute.xlu0 %5742
      %5744 = vrot.lane.b32.xlu0 %v5161, 1
      %v5745 = vpop.permute.xlu0 %5744
      %v5746 = vsel %vm2011, %v5715, %v5717
      %v5747 = vsel %vm2011, %v5717, %v5719
      %v5748 = vsel %vm2011, %v5719, %v5721
      %v5749 = vsel %vm2011, %v5723, %v5725
      %v5750 = vsel %vm2011, %v5725, %v5727
      %v5751 = vsel %vm2011, %v5727, %v5729
      %v5752 = vsel %vm2011, %v5731, %v5733
      %v5753 = vsel %vm2011, %v5733, %v5735
      %v5754 = vsel %vm2011, %v5735, %v5737
      %v5755 = vsel %vm2011, %v5739, %v5741
      %v5756 = vsel %vm2011, %v5741, %v5743
      %v5757 = vsel %vm2011, %v5743, %v5745
      %v5771 = vsel %vm408, %v5711, 0
      %v5774 = vsel %vm408, %v5713, 0
      %5776 = vmatprep.subr.bf16.mxu0 %v5747
      %5777 = vmatpush1.bf16.msra.mxu0 %v5746
      %5778 = vmatprep.subr.bf16.mxu0 %v5750
      %5779 = vmatpush1.bf16.msra.mxu0 %v5749
      %5780 = vmatprep.subr.bf16.mxu0 %v5753
      %5781 = vmatpush1.bf16.msra.mxu0 %v5752
      %5782 = vmatprep.subr.bf16.mxu0 %v5756
      %5783 = vmatpush1.bf16.msra.mxu0 %v5755
      %5784 = vmatprep.subr.bf16.mxu0 0
      %5785 = vmatpush1.bf16.msra.mxu0 0
      %5786 = vmatprep.subr.bf16.mxu0 0
      %5787 = vmatpush1.bf16.msra.mxu0 0
      %5788 = vmatprep.subr.bf16.mxu0 0
      %5789 = vmatpush1.bf16.msra.mxu0 0
      %5790 = vmatprep.subr.bf16.mxu0 0
      %5791 = vmatpush1.bf16.msra.mxu0 0
      %5792 = vmatprep.subr.bf16.mxu0 0
      %5793 = vmatpush1.bf16.msra.mxu0 0
      %5794 = vmatprep.subr.bf16.mxu0 0
      %5795 = vmatpush1.bf16.msra.mxu0 0
      %5796 = vmatprep.subr.bf16.mxu0 0
      %5797 = vmatpush1.bf16.msra.mxu0 0
      %5798 = vmatprep.subr.bf16.mxu0 0
      %5799 = vmatpush1.bf16.msra.mxu0 0
      %5800 = vmatprep.subr.bf16.mxu0 0
      %5801 = vmatpush1.bf16.msra.mxu0 0
      %5802 = vmatprep.subr.bf16.mxu0 0
      %5803 = vmatpush1.bf16.msra.mxu0 0
      %5804 = vmatprep.subr.bf16.mxu0 0
      %5805 = vmatpush1.bf16.msra.mxu0 0
      %5806 = vmatprep.subr.bf16.mxu0 0
      %5807 = vmatpush1.bf16.msra.mxu0 0
      %5808 = vmatprep.mubr.bf16.mxu0 0
      %5809 = vmatmul.mubr.bf16.gmra.mrb[0].mxu0 %v5771
      %v5810 = vpop.f32.mrb[0].mxu0
      %v5811 = vadd.f32 0.0, %v5810
      %v5812 = vpop.f32.mrb[0].mxu0
      %v5813 = vadd.f32 0.0, %v5812
      %v5814 = vpop.f32.mrb[0].mxu0
      %v5815 = vadd.f32 0.0, %v5814
      %v5816 = vpop.f32.mrb[0].mxu0
      %v5817 = vadd.f32 0.0, %v5816
      %5818 = vmatprep.mubr.bf16.mxu0 0
      %5819 = vmatmul.mubr.bf16.gmra.mrb[0].mxu0 %v5774
      %v5820 = vpop.f32.mrb[0].mxu0
      %v5821 = vadd.f32 0.0, %v5820
      %v5822 = vpop.f32.mrb[0].mxu0
      %v5823 = vadd.f32 0.0, %v5822
      %v5824 = vpop.f32.mrb[0].mxu0
      %v5825 = vadd.f32 0.0, %v5824
      %v5826 = vpop.f32.mrb[0].mxu0
      %v5827 = vadd.f32 0.0, %v5826
      %5828 = vdwg.mxu0
      %5829 = vmatprep.subr.bf16.mxu0 0
      %5830 = vmatpush1.bf16.msra.mxu0 %v5748
      %5831 = vmatprep.subr.bf16.mxu0 0
      %5832 = vmatpush1.bf16.msra.mxu0 %v5751
      %5833 = vmatprep.subr.bf16.mxu0 0
      %5834 = vmatpush1.bf16.msra.mxu0 %v5754
      %5835 = vmatprep.subr.bf16.mxu0 0
      %5836 = vmatpush1.bf16.msra.mxu0 %v5757
      %5837 = vmatprep.subr.bf16.mxu0 0
      %5838 = vmatpush1.bf16.msra.mxu0 0
      %5839 = vmatprep.subr.bf16.mxu0 0
      %5840 = vmatpush1.bf16.msra.mxu0 0
      %5841 = vmatprep.subr.bf16.mxu0 0
      %5842 = vmatpush1.bf16.msra.mxu0 0
      %5843 = vmatprep.subr.bf16.mxu0 0
      %5844 = vmatpush1.bf16.msra.mxu0 0
      %5845 = vmatprep.subr.bf16.mxu0 0
      %5846 = vmatpush1.bf16.msra.mxu0 0
      %5847 = vmatprep.subr.bf16.mxu0 0
      %5848 = vmatpush1.bf16.msra.mxu0 0
      %5849 = vmatprep.subr.bf16.mxu0 0
      %5850 = vmatpush1.bf16.msra.mxu0 0
      %5851 = vmatprep.subr.bf16.mxu0 0
      %5852 = vmatpush1.bf16.msra.mxu0 0
      %5853 = vmatprep.subr.bf16.mxu0 0
      %5854 = vmatpush1.bf16.msra.mxu0 0
      %5855 = vmatprep.subr.bf16.mxu0 0
      %5856 = vmatpush1.bf16.msra.mxu0 0
      %5857 = vmatprep.subr.bf16.mxu0 0
      %5858 = vmatpush1.bf16.msra.mxu0 0
      %5859 = vmatprep.subr.bf16.mxu0 0
      %5860 = vmatpush1.bf16.msra.mxu0 0
      %5861 = vmatprep.mubr.bf16.mxu0 0
      %5862 = vmatmul.mubr.bf16.gmra.mrb[0].mxu0 %v5771
      %v5863 = vpop.f32.mrb[0].mxu0
      %v5864 = vadd.f32 0.0, %v5863
      %v5865 = vpop.f32.mrb[0].mxu0
      %v5866 = vpop.f32.mrb[0].mxu0
      %v5867 = vadd.f32 0.0, %v5866
      %v5868 = vpop.f32.mrb[0].mxu0
      %5869 = vmatprep.mubr.bf16.mxu0 0
      %5870 = vmatmul.mubr.bf16.gmra.mrb[0].mxu0 %v5774
      %v5871 = vpop.f32.mrb[0].mxu0
      %v5872 = vadd.f32 0.0, %v5871
      %v5873 = vpop.f32.mrb[0].mxu0
      %v5874 = vpop.f32.mrb[0].mxu0
      %v5875 = vadd.f32 0.0, %v5874
      %v5876 = vpop.f32.mrb[0].mxu0
      %5877 = vdwg.mxu0
      %v5878 = vadd.f32 %v5698, %v5811
      %v5879 = vadd.f32 %v5699, %v5813
      %v5880 = vadd.f32 %v5700, %v5864
      %v5881 = vadd.f32 %v5701, %v5815
      %v5882 = vadd.f32 %v5702, %v5817
      %v5883 = vadd.f32 %v5703, %v5867
      %v5884 = vadd.f32 %v5704, %v5821
      %v5885 = vadd.f32 %v5705, %v5823
      %v5886 = vadd.f32 %v5706, %v5872
      %v5887 = vadd.f32 %v5707, %v5825
      %v5888 = vadd.f32 %v5708, %v5827
      %v5889 = vadd.f32 %v5709, %v5875
      %v5890 = vld [vmem:[%s5 + $0x8] sm:$0xf]
      %v5891 = vld [vmem:[%s5 + $0x1c] sm:$0xf]
      %v5892 = vld [vmem:[%s5 + $0x30] sm:$0xf]
      %v5893 = vld [vmem:[%s5 + $0x44] sm:$0xf]
      %v5898 = vunpack.c.l.b16 %v5890
      %v5899 = vunpack.c.l.b16 %v5891
      %v5900 = vunpack.c.l.b16 %v5892
      %v5901 = vunpack.c.l.b16 %v5893
      %v5902 = vpack.c.b16 %v5899, %v5898
      %v5903 = vpack.c.b16 %v5901, %v5900
      %v5905 = vsel %vm408, %v5902, 0
      %v5908 = vsel %vm408, %v5903, 0
      %5910 = vmatprep.subr.bf16.mxu0 %v5148
      %5911 = vmatpush1.bf16.msra.mxu0 %v5147
      %5912 = vmatprep.subr.bf16.mxu0 %v5152
      %5913 = vmatpush1.bf16.msra.mxu0 %v5151
      %5914 = vmatprep.subr.bf16.mxu0 %v5156
      %5915 = vmatpush1.bf16.msra.mxu0 %v5155
      %5916 = vmatprep.subr.bf16.mxu0 %v5160
      %5917 = vmatpush1.bf16.msra.mxu0 %v5159
      %5918 = vmatprep.subr.bf16.mxu0 0
      %5919 = vmatpush1.bf16.msra.mxu0 0
      %5920 = vmatprep.subr.bf16.mxu0 0
      %5921 = vmatpush1.bf16.msra.mxu0 0
      %5922 = vmatprep.subr.bf16.mxu0 0
      %5923 = vmatpush1.bf16.msra.mxu0 0
      %5924 = vmatprep.subr.bf16.mxu0 0
      %5925 = vmatpush1.bf16.msra.mxu0 0
      %5926 = vmatprep.subr.bf16.mxu0 0
      %5927 = vmatpush1.bf16.msra.mxu0 0
      %5928 = vmatprep.subr.bf16.mxu0 0
      %5929 = vmatpush1.bf16.msra.mxu0 0
      %5930 = vmatprep.subr.bf16.mxu0 0
      %5931 = vmatpush1.bf16.msra.mxu0 0
      %5932 = vmatprep.subr.bf16.mxu0 0
      %5933 = vmatpush1.bf16.msra.mxu0 0
      %5934 = vmatprep.subr.bf16.mxu0 0
      %5935 = vmatpush1.bf16.msra.mxu0 0
      %5936 = vmatprep.subr.bf16.mxu0 0
      %5937 = vmatpush1.bf16.msra.mxu0 0
      %5938 = vmatprep.subr.bf16.mxu0 0
      %5939 = vmatpush1.bf16.msra.mxu0 0
      %5940 = vmatprep.subr.bf16.mxu0 0
      %5941 = vmatpush1.bf16.msra.mxu0 0
      %5942 = vmatprep.mubr.bf16.mxu0 0
      %5943 = vmatmul.mubr.bf16.gmra.mrb[0].mxu0 %v5905
      %v5944 = vpop.f32.mrb[0].mxu0
      %v5945 = vadd.f32 0.0, %v5944
      %v5946 = vpop.f32.mrb[0].mxu0
      %v5947 = vadd.f32 0.0, %v5946
      %v5948 = vpop.f32.mrb[0].mxu0
      %v5949 = vadd.f32 0.0, %v5948
      %v5950 = vpop.f32.mrb[0].mxu0
      %v5951 = vadd.f32 0.0, %v5950
      %5952 = vmatprep.mubr.bf16.mxu0 0
      %5953 = vmatmul.mubr.bf16.gmra.mrb[0].mxu0 %v5908
      %v5954 = vpop.f32.mrb[0].mxu0
      %v5955 = vadd.f32 0.0, %v5954
      %v5956 = vpop.f32.mrb[0].mxu0
      %v5957 = vadd.f32 0.0, %v5956
      %v5958 = vpop.f32.mrb[0].mxu0
      %v5959 = vadd.f32 0.0, %v5958
      %v5960 = vpop.f32.mrb[0].mxu0
      %v5961 = vadd.f32 0.0, %v5960
      %5962 = vdwg.mxu0
      %5963 = vmatprep.subr.bf16.mxu0 0
      %5964 = vmatpush1.bf16.msra.mxu0 %v5149
      %5965 = vmatprep.subr.bf16.mxu0 0
      %5966 = vmatpush1.bf16.msra.mxu0 %v5153
      %5967 = vmatprep.subr.bf16.mxu0 0
      %5968 = vmatpush1.bf16.msra.mxu0 %v5157
      %5969 = vmatprep.subr.bf16.mxu0 0
      %5970 = vmatpush1.bf16.msra.mxu0 %v5161
      %5971 = vmatprep.subr.bf16.mxu0 0
      %5972 = vmatpush1.bf16.msra.mxu0 0
      %5973 = vmatprep.subr.bf16.mxu0 0
      %5974 = vmatpush1.bf16.msra.mxu0 0
      %5975 = vmatprep.subr.bf16.mxu0 0
      %5976 = vmatpush1.bf16.msra.mxu0 0
      %5977 = vmatprep.subr.bf16.mxu0 0
      %5978 = vmatpush1.bf16.msra.mxu0 0
      %5979 = vmatprep.subr.bf16.mxu0 0
      %5980 = vmatpush1.bf16.msra.mxu0 0
      %5981 = vmatprep.subr.bf16.mxu0 0
      %5982 = vmatpush1.bf16.msra.mxu0 0
      %5983 = vmatprep.subr.bf16.mxu0 0
      %5984 = vmatpush1.bf16.msra.mxu0 0
      %5985 = vmatprep.subr.bf16.mxu0 0
      %5986 = vmatpush1.bf16.msra.mxu0 0
      %5987 = vmatprep.subr.bf16.mxu0 0
      %5988 = vmatpush1.bf16.msra.mxu0 0
      %5989 = vmatprep.subr.bf16.mxu0 0
      %5990 = vmatpush1.bf16.msra.mxu0 0
      %5991 = vmatprep.subr.bf16.mxu0 0
      %5992 = vmatpush1.bf16.msra.mxu0 0
      %5993 = vmatprep.subr.bf16.mxu0 0
      %5994 = vmatpush1.bf16.msra.mxu0 0
      %5995 = vmatprep.mubr.bf16.mxu0 0
      %5996 = vmatmul.mubr.bf16.gmra.mrb[0].mxu0 %v5905
      %v5997 = vpop.f32.mrb[0].mxu0
      %v5998 = vadd.f32 0.0, %v5997
      %v5999 = vpop.f32.mrb[0].mxu0
      %v6000 = vpop.f32.mrb[0].mxu0
      %v6001 = vadd.f32 0.0, %v6000
      %v6002 = vpop.f32.mrb[0].mxu0
      %6003 = vmatprep.mubr.bf16.mxu0 0
      %6004 = vmatmul.mubr.bf16.gmra.mrb[0].mxu0 %v5908
      %v6005 = vpop.f32.mrb[0].mxu0
      %v6006 = vadd.f32 0.0, %v6005
      %v6007 = vpop.f32.mrb[0].mxu0
      %v6008 = vpop.f32.mrb[0].mxu0
      %v6009 = vadd.f32 0.0, %v6008
      %v6010 = vpop.f32.mrb[0].mxu0
      %6011 = vdwg.mxu0
      %v6012 = vadd.f32 %v5878, %v5945
      %v6013 = vadd.f32 %v5879, %v5947
      %v6014 = vadd.f32 %v5880, %v5998
      %v6015 = vadd.f32 %v5881, %v5949
      %v6016 = vadd.f32 %v5882, %v5951
      %v6017 = vadd.f32 %v5883, %v6001
      %v6018 = vadd.f32 %v5884, %v5955
      %v6019 = vadd.f32 %v5885, %v5957
      %v6020 = vadd.f32 %v5886, %v6006
      %v6021 = vadd.f32 %v5887, %v5959
      %v6022 = vadd.f32 %v5888, %v5961
      %v6023 = vadd.f32 %v5889, %v6009
      %v6024 = vld [vmem:[#allocation4 + $0x8] sm:$0xff]
      %v6025 = vld [vmem:[#allocation4 + $0x10] sm:$0xff]
      %v6026 = vld [vmem:[#allocation4 + $0x18] sm:$0xff]
      %v6027 = vld [vmem:[#allocation4 + $0x20] sm:$0xff]
      %v6028 = vld [vmem:[#allocation4 + $0x40] sm:$0xff]
      %v6029 = vld [vmem:[#allocation4 + $0x48] sm:$0xff]
      %v6030 = vld [vmem:[#allocation4 + $0x50] sm:$0xff]
      %v6031 = vld [vmem:[#allocation4 + $0x58] sm:$0xff]
      %v6032 = vld [vmem:[#allocation4 + $0x78] sm:$0xff]
      %v6033 = vld [vmem:[#allocation4 + $0x80] sm:$0xff]
      %v6034 = vld [vmem:[#allocation4 + $0x88] sm:$0xff]
      %v6035 = vld [vmem:[#allocation4 + $0x90] sm:$0xff]
      %v6036 = vld [vmem:[#allocation4 + $0xb0] sm:$0xff]
      %v6037 = vld [vmem:[#allocation4 + $0xb8] sm:$0xff]
      %v6038 = vld [vmem:[#allocation4 + $0xc0] sm:$0xff]
      %v6039 = vld [vmem:[#allocation4 + $0xc8] sm:$0xff]
      %6040 = vrot.lane.b32.xlu0 %v5902, 64
      %v6041 = vpop.permute.xlu0 %6040
      %6042 = vrot.lane.b32.xlu0 %v5903, 64
      %v6043 = vpop.permute.xlu0 %6042
      %6060 = vrot.lane.b32.xlu0 %v6024, 127
      %v6061 = vpop.permute.xlu0 %6060
      %6062 = vrot.lane.b32.xlu0 %v6025, 127
      %v6063 = vpop.permute.xlu0 %6062
      %6064 = vrot.lane.b32.xlu0 %v6026, 127
      %v6065 = vpop.permute.xlu0 %6064
      %6066 = vrot.lane.b32.xlu0 %v6027, 127
      %v6067 = vpop.permute.xlu0 %6066
      %6068 = vrot.lane.b32.xlu0 %v6028, 127
      %v6069 = vpop.permute.xlu0 %6068
      %6070 = vrot.lane.b32.xlu0 %v6029, 127
      %v6071 = vpop.permute.xlu0 %6070
      %6072 = vrot.lane.b32.xlu0 %v6030, 127
      %v6073 = vpop.permute.xlu0 %6072
      %6074 = vrot.lane.b32.xlu0 %v6031, 127
      %v6075 = vpop.permute.xlu0 %6074
      %6076 = vrot.lane.b32.xlu0 %v6032, 127
      %v6077 = vpop.permute.xlu0 %6076
      %6078 = vrot.lane.b32.xlu0 %v6033, 127
      %v6079 = vpop.permute.xlu0 %6078
      %6080 = vrot.lane.b32.xlu0 %v6034, 127
      %v6081 = vpop.permute.xlu0 %6080
      %6082 = vrot.lane.b32.xlu0 %v6035, 127
      %v6083 = vpop.permute.xlu0 %6082
      %6084 = vrot.lane.b32.xlu0 %v6036, 127
      %v6085 = vpop.permute.xlu0 %6084
      %6086 = vrot.lane.b32.xlu0 %v6037, 127
      %v6087 = vpop.permute.xlu0 %6086
      %6088 = vrot.lane.b32.xlu0 %v6038, 127
      %v6089 = vpop.permute.xlu0 %6088
      %6090 = vrot.lane.b32.xlu0 %v6039, 127
      %v6091 = vpop.permute.xlu0 %6090
      %v6092 = vsel %vm2484, %v6061, %v6063
      %v6093 = vsel %vm2484, %v6063, %v6065
      %v6094 = vsel %vm2484, %v6065, %v6067
      %v6095 = vsel %vm2484, %v6069, %v6071
      %v6096 = vsel %vm2484, %v6071, %v6073
      %v6097 = vsel %vm2484, %v6073, %v6075
      %v6098 = vsel %vm2484, %v6077, %v6079
      %v6099 = vsel %vm2484, %v6079, %v6081
      %v6100 = vsel %vm2484, %v6081, %v6083
      %v6101 = vsel %vm2484, %v6085, %v6087
      %v6102 = vsel %vm2484, %v6087, %v6089
      %v6103 = vsel %vm2484, %v6089, %v6091
      %v6117 = vsel %vm408, %v6041, 0
      %v6120 = vsel %vm408, %v6043, 0
      %6122 = vmatprep.subr.bf16.mxu0 %v6093
      %6123 = vmatpush1.bf16.msra.mxu0 %v6092
      %6124 = vmatprep.subr.bf16.mxu0 %v6096
      %6125 = vmatpush1.bf16.msra.mxu0 %v6095
      %6126 = vmatprep.subr.bf16.mxu0 %v6099
      %6127 = vmatpush1.bf16.msra.mxu0 %v6098
      %6128 = vmatprep.subr.bf16.mxu0 %v6102
      %6129 = vmatpush1.bf16.msra.mxu0 %v6101
      %6130 = vmatprep.subr.bf16.mxu0 0
      %6131 = vmatpush1.bf16.msra.mxu0 0
      %6132 = vmatprep.subr.bf16.mxu0 0
      %6133 = vmatpush1.bf16.msra.mxu0 0
      %6134 = vmatprep.subr.bf16.mxu0 0
      %6135 = vmatpush1.bf16.msra.mxu0 0
      %6136 = vmatprep.subr.bf16.mxu0 0
      %6137 = vmatpush1.bf16.msra.mxu0 0
      %6138 = vmatprep.subr.bf16.mxu0 0
      %6139 = vmatpush1.bf16.msra.mxu0 0
      %6140 = vmatprep.subr.bf16.mxu0 0
      %6141 = vmatpush1.bf16.msra.mxu0 0
      %6142 = vmatprep.subr.bf16.mxu0 0
      %6143 = vmatpush1.bf16.msra.mxu0 0
      %6144 = vmatprep.subr.bf16.mxu0 0
      %6145 = vmatpush1.bf16.msra.mxu0 0
      %6146 = vmatprep.subr.bf16.mxu0 0
      %6147 = vmatpush1.bf16.msra.mxu0 0
      %6148 = vmatprep.subr.bf16.mxu0 0
      %6149 = vmatpush1.bf16.msra.mxu0 0
      %6150 = vmatprep.subr.bf16.mxu0 0
      %6151 = vmatpush1.bf16.msra.mxu0 0
      %6152 = vmatprep.subr.bf16.mxu0 0
      %6153 = vmatpush1.bf16.msra.mxu0 0
      %6154 = vmatprep.mubr.bf16.mxu0 0
      %6155 = vmatmul.mubr.bf16.gmra.mrb[0].mxu0 %v6117
      %v6156 = vpop.f32.mrb[0].mxu0
      %v6157 = vadd.f32 0.0, %v6156
      %v6158 = vpop.f32.mrb[0].mxu0
      %v6159 = vadd.f32 0.0, %v6158
      %v6160 = vpop.f32.mrb[0].mxu0
      %v6161 = vadd.f32 0.0, %v6160
      %v6162 = vpop.f32.mrb[0].mxu0
      %v6163 = vadd.f32 0.0, %v6162
      %6164 = vmatprep.mubr.bf16.mxu0 0
      %6165 = vmatmul.mubr.bf16.gmra.mrb[0].mxu0 %v6120
      %v6166 = vpop.f32.mrb[0].mxu0
      %v6167 = vadd.f32 0.0, %v6166
      %v6168 = vpop.f32.mrb[0].mxu0
      %v6169 = vadd.f32 0.0, %v6168
      %v6170 = vpop.f32.mrb[0].mxu0
      %v6171 = vadd.f32 0.0, %v6170
      %v6172 = vpop.f32.mrb[0].mxu0
      %v6173 = vadd.f32 0.0, %v6172
      %6174 = vdwg.mxu0
      %6175 = vmatprep.subr.bf16.mxu0 0
      %6176 = vmatpush1.bf16.msra.mxu0 %v6094
      %6177 = vmatprep.subr.bf16.mxu0 0
      %6178 = vmatpush1.bf16.msra.mxu0 %v6097
      %6179 = vmatprep.subr.bf16.mxu0 0
      %6180 = vmatpush1.bf16.msra.mxu0 %v6100
      %6181 = vmatprep.subr.bf16.mxu0 0
      %6182 = vmatpush1.bf16.msra.mxu0 %v6103
      %6183 = vmatprep.subr.bf16.mxu0 0
      %6184 = vmatpush1.bf16.msra.mxu0 0
      %6185 = vmatprep.subr.bf16.mxu0 0
      %6186 = vmatpush1.bf16.msra.mxu0 0
      %6187 = vmatprep.subr.bf16.mxu0 0
      %6188 = vmatpush1.bf16.msra.mxu0 0
      %6189 = vmatprep.subr.bf16.mxu0 0
      %6190 = vmatpush1.bf16.msra.mxu0 0
      %6191 = vmatprep.subr.bf16.mxu0 0
      %6192 = vmatpush1.bf16.msra.mxu0 0
      %6193 = vmatprep.subr.bf16.mxu0 0
      %6194 = vmatpush1.bf16.msra.mxu0 0
      %6195 = vmatprep.subr.bf16.mxu0 0
      %6196 = vmatpush1.bf16.msra.mxu0 0
      %6197 = vmatprep.subr.bf16.mxu0 0
      %6198 = vmatpush1.bf16.msra.mxu0 0
      %6199 = vmatprep.subr.bf16.mxu0 0
      %6200 = vmatpush1.bf16.msra.mxu0 0
      %6201 = vmatprep.subr.bf16.mxu0 0
      %6202 = vmatpush1.bf16.msra.mxu0 0
      %6203 = vmatprep.subr.bf16.mxu0 0
      %6204 = vmatpush1.bf16.msra.mxu0 0
      %6205 = vmatprep.subr.bf16.mxu0 0
      %6206 = vmatpush1.bf16.msra.mxu0 0
      %6207 = vmatprep.mubr.bf16.mxu0 0
      %6208 = vmatmul.mubr.bf16.gmra.mrb[0].mxu0 %v6117
      %v6209 = vpop.f32.mrb[0].mxu0
      %v6210 = vadd.f32 0.0, %v6209
      %v6211 = vpop.f32.mrb[0].mxu0
      %v6212 = vpop.f32.mrb[0].mxu0
      %v6213 = vadd.f32 0.0, %v6212
      %v6214 = vpop.f32.mrb[0].mxu0
      %6215 = vmatprep.mubr.bf16.mxu0 0
      %6216 = vmatmul.mubr.bf16.gmra.mrb[0].mxu0 %v6120
      %v6217 = vpop.f32.mrb[0].mxu0
      %v6218 = vadd.f32 0.0, %v6217
      %v6219 = vpop.f32.mrb[0].mxu0
      %v6220 = vpop.f32.mrb[0].mxu0
      %v6221 = vadd.f32 0.0, %v6220
      %v6222 = vpop.f32.mrb[0].mxu0
      %6223 = vdwg.mxu0
      %v6224 = vadd.f32 %v6012, %v6157
      %v6225 = vadd.f32 %v6013, %v6159
      %v6226 = vadd.f32 %v6014, %v6210
      %v6227 = vadd.f32 %v6015, %v6161
      %v6228 = vadd.f32 %v6016, %v6163
      %v6229 = vadd.f32 %v6017, %v6213
      %v6230 = vadd.f32 %v6018, %v6167
      %v6231 = vadd.f32 %v6019, %v6169
      %v6232 = vadd.f32 %v6020, %v6218
      %v6233 = vadd.f32 %v6021, %v6171
      %v6234 = vadd.f32 %v6022, %v6173
      %v6235 = vadd.f32 %v6023, %v6221
      %v6236 = vld [vmem:[%s5 + $0xc] sm:$0xf]
      %v6237 = vld [vmem:[%s5 + $0x20] sm:$0xf]
      %v6238 = vld [vmem:[%s5 + $0x34] sm:$0xf]
      %v6239 = vld [vmem:[%s5 + $0x48] sm:$0xf]
      %v6244 = vunpack.c.l.b16 %v6236
      %v6245 = vunpack.c.l.b16 %v6237
      %v6246 = vunpack.c.l.b16 %v6238
      %v6247 = vunpack.c.l.b16 %v6239
      %v6248 = vpack.c.b16 %v6245, %v6244
      %v6249 = vpack.c.b16 %v6247, %v6246
      %6250 = vrot.lane.b32.xlu0 %v6024, 97
      %v6251 = vpop.permute.xlu0 %6250
      %6252 = vrot.lane.b32.xlu0 %v6025, 97
      %v6253 = vpop.permute.xlu0 %6252
      %6254 = vrot.lane.b32.xlu0 %v6026, 97
      %v6255 = vpop.permute.xlu0 %6254
      %6256 = vrot.lane.b32.xlu0 %v6027, 97
      %v6257 = vpop.permute.xlu0 %6256
      %6258 = vrot.lane.b32.xlu0 %v6028, 97
      %v6259 = vpop.permute.xlu0 %6258
      %6260 = vrot.lane.b32.xlu0 %v6029, 97
      %v6261 = vpop.permute.xlu0 %6260
      %6262 = vrot.lane.b32.xlu0 %v6030, 97
      %v6263 = vpop.permute.xlu0 %6262
      %6264 = vrot.lane.b32.xlu0 %v6031, 97
      %v6265 = vpop.permute.xlu0 %6264
      %6266 = vrot.lane.b32.xlu0 %v6032, 97
      %v6267 = vpop.permute.xlu0 %6266
      %6268 = vrot.lane.b32.xlu0 %v6033, 97
      %v6269 = vpop.permute.xlu0 %6268
      %6270 = vrot.lane.b32.xlu0 %v6034, 97
      %v6271 = vpop.permute.xlu0 %6270
      %6272 = vrot.lane.b32.xlu0 %v6035, 97
      %v6273 = vpop.permute.xlu0 %6272
      %6274 = vrot.lane.b32.xlu0 %v6036, 97
      %v6275 = vpop.permute.xlu0 %6274
      %6276 = vrot.lane.b32.xlu0 %v6037, 97
      %v6277 = vpop.permute.xlu0 %6276
      %6278 = vrot.lane.b32.xlu0 %v6038, 97
      %v6279 = vpop.permute.xlu0 %6278
      %6280 = vrot.lane.b32.xlu0 %v6039, 97
      %v6281 = vpop.permute.xlu0 %6280
      %v6282 = vsel %vm2743, %v6251, %v6253
      %v6283 = vsel %vm2743, %v6253, %v6255
      %v6284 = vsel %vm2743, %v6255, %v6257
      %v6285 = vsel %vm2743, %v6259, %v6261
      %v6286 = vsel %vm2743, %v6261, %v6263
      %v6287 = vsel %vm2743, %v6263, %v6265
      %v6288 = vsel %vm2743, %v6267, %v6269
      %v6289 = vsel %vm2743, %v6269, %v6271
      %v6290 = vsel %vm2743, %v6271, %v6273
      %v6291 = vsel %vm2743, %v6275, %v6277
      %v6292 = vsel %vm2743, %v6277, %v6279
      %v6293 = vsel %vm2743, %v6279, %v6281
      %v6307 = vsel %vm408, %v6248, 0
      %v6310 = vsel %vm408, %v6249, 0
      %6312 = vmatprep.subr.bf16.mxu0 %v6283
      %6313 = vmatpush1.bf16.msra.mxu0 %v6282
      %6314 = vmatprep.subr.bf16.mxu0 %v6286
      %6315 = vmatpush1.bf16.msra.mxu0 %v6285
      %6316 = vmatprep.subr.bf16.mxu0 %v6289
      %6317 = vmatpush1.bf16.msra.mxu0 %v6288
      %6318 = vmatprep.subr.bf16.mxu0 %v6292
      %6319 = vmatpush1.bf16.msra.mxu0 %v6291
      %6320 = vmatprep.subr.bf16.mxu0 0
      %6321 = vmatpush1.bf16.msra.mxu0 0
      %6322 = vmatprep.subr.bf16.mxu0 0
      %6323 = vmatpush1.bf16.msra.mxu0 0
      %6324 = vmatprep.subr.bf16.mxu0 0
      %6325 = vmatpush1.bf16.msra.mxu0 0
      %6326 = vmatprep.subr.bf16.mxu0 0
      %6327 = vmatpush1.bf16.msra.mxu0 0
      %6328 = vmatprep.subr.bf16.mxu0 0
      %6329 = vmatpush1.bf16.msra.mxu0 0
      %6330 = vmatprep.subr.bf16.mxu0 0
      %6331 = vmatpush1.bf16.msra.mxu0 0
      %6332 = vmatprep.subr.bf16.mxu0 0
      %6333 = vmatpush1.bf16.msra.mxu0 0
      %6334 = vmatprep.subr.bf16.mxu0 0
      %6335 = vmatpush1.bf16.msra.mxu0 0
      %6336 = vmatprep.subr.bf16.mxu0 0
      %6337 = vmatpush1.bf16.msra.mxu0 0
      %6338 = vmatprep.subr.bf16.mxu0 0
      %6339 = vmatpush1.bf16.msra.mxu0 0
      %6340 = vmatprep.subr.bf16.mxu0 0
      %6341 = vmatpush1.bf16.msra.mxu0 0
      %6342 = vmatprep.subr.bf16.mxu0 0
      %6343 = vmatpush1.bf16.msra.mxu0 0
      %6344 = vmatprep.mubr.bf16.mxu0 0
      %6345 = vmatmul.mubr.bf16.gmra.mrb[0].mxu0 %v6307
      %v6346 = vpop.f32.mrb[0].mxu0
      %v6347 = vadd.f32 0.0, %v6346
      %v6348 = vpop.f32.mrb[0].mxu0
      %v6349 = vadd.f32 0.0, %v6348
      %v6350 = vpop.f32.mrb[0].mxu0
      %v6351 = vadd.f32 0.0, %v6350
      %v6352 = vpop.f32.mrb[0].mxu0
      %v6353 = vadd.f32 0.0, %v6352
      %6354 = vmatprep.mubr.bf16.mxu0 0
      %6355 = vmatmul.mubr.bf16.gmra.mrb[0].mxu0 %v6310
      %v6356 = vpop.f32.mrb[0].mxu0
      %v6357 = vadd.f32 0.0, %v6356
      %v6358 = vpop.f32.mrb[0].mxu0
      %v6359 = vadd.f32 0.0, %v6358
      %v6360 = vpop.f32.mrb[0].mxu0
      %v6361 = vadd.f32 0.0, %v6360
      %v6362 = vpop.f32.mrb[0].mxu0
      %v6363 = vadd.f32 0.0, %v6362
      %6364 = vdwg.mxu0
      %6365 = vmatprep.subr.bf16.mxu0 0
      %6366 = vmatpush1.bf16.msra.mxu0 %v6284
      %6367 = vmatprep.subr.bf16.mxu0 0
      %6368 = vmatpush1.bf16.msra.mxu0 %v6287
      %6369 = vmatprep.subr.bf16.mxu0 0
      %6370 = vmatpush1.bf16.msra.mxu0 %v6290
      %6371 = vmatprep.subr.bf16.mxu0 0
      %6372 = vmatpush1.bf16.msra.mxu0 %v6293
      %6373 = vmatprep.subr.bf16.mxu0 0
      %6374 = vmatpush1.bf16.msra.mxu0 0
      %6375 = vmatprep.subr.bf16.mxu0 0
      %6376 = vmatpush1.bf16.msra.mxu0 0
      %6377 = vmatprep.subr.bf16.mxu0 0
      %6378 = vmatpush1.bf16.msra.mxu0 0
      %6379 = vmatprep.subr.bf16.mxu0 0
      %6380 = vmatpush1.bf16.msra.mxu0 0
      %6381 = vmatprep.subr.bf16.mxu0 0
      %6382 = vmatpush1.bf16.msra.mxu0 0
      %6383 = vmatprep.subr.bf16.mxu0 0
      %6384 = vmatpush1.bf16.msra.mxu0 0
      %6385 = vmatprep.subr.bf16.mxu0 0
      %6386 = vmatpush1.bf16.msra.mxu0 0
      %6387 = vmatprep.subr.bf16.mxu0 0
      %6388 = vmatpush1.bf16.msra.mxu0 0
      %6389 = vmatprep.subr.bf16.mxu0 0
      %6390 = vmatpush1.bf16.msra.mxu0 0
      %6391 = vmatprep.subr.bf16.mxu0 0
      %6392 = vmatpush1.bf16.msra.mxu0 0
      %6393 = vmatprep.subr.bf16.mxu0 0
      %6394 = vmatpush1.bf16.msra.mxu0 0
      %6395 = vmatprep.subr.bf16.mxu0 0
      %6396 = vmatpush1.bf16.msra.mxu0 0
      %6397 = vmatprep.mubr.bf16.mxu0 0
      %6398 = vmatmul.mubr.bf16.gmra.mrb[0].mxu0 %v6307
      %v6399 = vpop.f32.mrb[0].mxu0
      %v6400 = vadd.f32 0.0, %v6399
      %v6401 = vpop.f32.mrb[0].mxu0
      %v6402 = vpop.f32.mrb[0].mxu0
      %v6403 = vadd.f32 0.0, %v6402
      %v6404 = vpop.f32.mrb[0].mxu0
      %6405 = vmatprep.mubr.bf16.mxu0 0
      %6406 = vmatmul.mubr.bf16.gmra.mrb[0].mxu0 %v6310
      %v6407 = vpop.f32.mrb[0].mxu0
      %v6408 = vadd.f32 0.0, %v6407
      %v6409 = vpop.f32.mrb[0].mxu0
      %v6410 = vpop.f32.mrb[0].mxu0
      %v6411 = vadd.f32 0.0, %v6410
      %v6412 = vpop.f32.mrb[0].mxu0
      %6413 = vdwg.mxu0
      %v6414 = vadd.f32 %v6224, %v6347
      %v6415 = vadd.f32 %v6225, %v6349
      %v6416 = vadd.f32 %v6226, %v6400
      %v6417 = vadd.f32 %v6227, %v6351
      %v6418 = vadd.f32 %v6228, %v6353
      %v6419 = vadd.f32 %v6229, %v6403
      %v6420 = vadd.f32 %v6230, %v6357
      %v6421 = vadd.f32 %v6231, %v6359
      %v6422 = vadd.f32 %v6232, %v6408
      %v6423 = vadd.f32 %v6233, %v6361
      %v6424 = vadd.f32 %v6234, %v6363
      %v6425 = vadd.f32 %v6235, %v6411
      %6426 = vrot.lane.b32.xlu0 %v6248, 64
      %v6427 = vpop.permute.xlu0 %6426
      %6428 = vrot.lane.b32.xlu0 %v6249, 64
      %v6429 = vpop.permute.xlu0 %6428
      %6430 = vrot.lane.b32.xlu0 %v6024, 96
      %v6431 = vpop.permute.xlu0 %6430
      %6432 = vrot.lane.b32.xlu0 %v6025, 96
      %v6433 = vpop.permute.xlu0 %6432
      %6434 = vrot.lane.b32.xlu0 %v6026, 96
      %v6435 = vpop.permute.xlu0 %6434
      %6436 = vrot.lane.b32.xlu0 %v6027, 96
      %v6437 = vpop.permute.xlu0 %6436
      %6438 = vrot.lane.b32.xlu0 %v6028, 96
      %v6439 = vpop.permute.xlu0 %6438
      %6440 = vrot.lane.b32.xlu0 %v6029, 96
      %v6441 = vpop.permute.xlu0 %6440
      %6442 = vrot.lane.b32.xlu0 %v6030, 96
      %v6443 = vpop.permute.xlu0 %6442
      %6444 = vrot.lane.b32.xlu0 %v6031, 96
      %v6445 = vpop.permute.xlu0 %6444
      %6446 = vrot.lane.b32.xlu0 %v6032, 96
      %v6447 = vpop.permute.xlu0 %6446
      %6448 = vrot.lane.b32.xlu0 %v6033, 96
      %v6449 = vpop.permute.xlu0 %6448
      %6450 = vrot.lane.b32.xlu0 %v6034, 96
      %v6451 = vpop.permute.xlu0 %6450
      %6452 = vrot.lane.b32.xlu0 %v6035, 96
      %v6453 = vpop.permute.xlu0 %6452
      %6454 = vrot.lane.b32.xlu0 %v6036, 96
      %v6455 = vpop.permute.xlu0 %6454
      %6456 = vrot.lane.b32.xlu0 %v6037, 96
      %v6457 = vpop.permute.xlu0 %6456
      %6458 = vrot.lane.b32.xlu0 %v6038, 96
      %v6459 = vpop.permute.xlu0 %6458
      %6460 = vrot.lane.b32.xlu0 %v6039, 96
      %v6461 = vpop.permute.xlu0 %6460
      %v6462 = vsel %vm2982, %v6431, %v6433
      %v6463 = vsel %vm2982, %v6433, %v6435
      %v6464 = vsel %vm2982, %v6435, %v6437
      %v6465 = vsel %vm2982, %v6439, %v6441
      %v6466 = vsel %vm2982, %v6441, %v6443
      %v6467 = vsel %vm2982, %v6443, %v6445
      %v6468 = vsel %vm2982, %v6447, %v6449
      %v6469 = vsel %vm2982, %v6449, %v6451
      %v6470 = vsel %vm2982, %v6451, %v6453
      %v6471 = vsel %vm2982, %v6455, %v6457
      %v6472 = vsel %vm2982, %v6457, %v6459
      %v6473 = vsel %vm2982, %v6459, %v6461
      %v6487 = vsel %vm408, %v6427, 0
      %v6490 = vsel %vm408, %v6429, 0
      %6492 = vmatprep.subr.bf16.mxu0 %v6463
      %6493 = vmatpush1.bf16.msra.mxu0 %v6462
      %6494 = vmatprep.subr.bf16.mxu0 %v6466
      %6495 = vmatpush1.bf16.msra.mxu0 %v6465
      %6496 = vmatprep.subr.bf16.mxu0 %v6469
      %6497 = vmatpush1.bf16.msra.mxu0 %v6468
      %6498 = vmatprep.subr.bf16.mxu0 %v6472
      %6499 = vmatpush1.bf16.msra.mxu0 %v6471
      %6500 = vmatprep.subr.bf16.mxu0 0
      %6501 = vmatpush1.bf16.msra.mxu0 0
      %6502 = vmatprep.subr.bf16.mxu0 0
      %6503 = vmatpush1.bf16.msra.mxu0 0
      %6504 = vmatprep.subr.bf16.mxu0 0
      %6505 = vmatpush1.bf16.msra.mxu0 0
      %6506 = vmatprep.subr.bf16.mxu0 0
      %6507 = vmatpush1.bf16.msra.mxu0 0
      %6508 = vmatprep.subr.bf16.mxu0 0
      %6509 = vmatpush1.bf16.msra.mxu0 0
      %6510 = vmatprep.subr.bf16.mxu0 0
      %6511 = vmatpush1.bf16.msra.mxu0 0
      %6512 = vmatprep.subr.bf16.mxu0 0
      %6513 = vmatpush1.bf16.msra.mxu0 0
      %6514 = vmatprep.subr.bf16.mxu0 0
      %6515 = vmatpush1.bf16.msra.mxu0 0
      %6516 = vmatprep.subr.bf16.mxu0 0
      %6517 = vmatpush1.bf16.msra.mxu0 0
      %6518 = vmatprep.subr.bf16.mxu0 0
      %6519 = vmatpush1.bf16.msra.mxu0 0
      %6520 = vmatprep.subr.bf16.mxu0 0
      %6521 = vmatpush1.bf16.msra.mxu0 0
      %6522 = vmatprep.subr.bf16.mxu0 0
      %6523 = vmatpush1.bf16.msra.mxu0 0
      %6524 = vmatprep.mubr.bf16.mxu0 0
      %6525 = vmatmul.mubr.bf16.gmra.mrb[0].mxu0 %v6487
      %v6526 = vpop.f32.mrb[0].mxu0
      %v6527 = vadd.f32 0.0, %v6526
      %v6528 = vpop.f32.mrb[0].mxu0
      %v6529 = vadd.f32 0.0, %v6528
      %v6530 = vpop.f32.mrb[0].mxu0
      %v6531 = vadd.f32 0.0, %v6530
      %v6532 = vpop.f32.mrb[0].mxu0
      %v6533 = vadd.f32 0.0, %v6532
      %6534 = vmatprep.mubr.bf16.mxu0 0
      %6535 = vmatmul.mubr.bf16.gmra.mrb[0].mxu0 %v6490
      %v6536 = vpop.f32.mrb[0].mxu0
      %v6537 = vadd.f32 0.0, %v6536
      %v6538 = vpop.f32.mrb[0].mxu0
      %v6539 = vadd.f32 0.0, %v6538
      %v6540 = vpop.f32.mrb[0].mxu0
      %v6541 = vadd.f32 0.0, %v6540
      %v6542 = vpop.f32.mrb[0].mxu0
      %v6543 = vadd.f32 0.0, %v6542
      %6544 = vdwg.mxu0
      %6545 = vmatprep.subr.bf16.mxu0 0
      %6546 = vmatpush1.bf16.msra.mxu0 %v6464
      %6547 = vmatprep.subr.bf16.mxu0 0
      %6548 = vmatpush1.bf16.msra.mxu0 %v6467
      %6549 = vmatprep.subr.bf16.mxu0 0
      %6550 = vmatpush1.bf16.msra.mxu0 %v6470
      %6551 = vmatprep.subr.bf16.mxu0 0
      %6552 = vmatpush1.bf16.msra.mxu0 %v6473
      %6553 = vmatprep.subr.bf16.mxu0 0
      %6554 = vmatpush1.bf16.msra.mxu0 0
      %6555 = vmatprep.subr.bf16.mxu0 0
      %6556 = vmatpush1.bf16.msra.mxu0 0
      %6557 = vmatprep.subr.bf16.mxu0 0
      %6558 = vmatpush1.bf16.msra.mxu0 0
      %6559 = vmatprep.subr.bf16.mxu0 0
      %6560 = vmatpush1.bf16.msra.mxu0 0
      %6561 = vmatprep.subr.bf16.mxu0 0
      %6562 = vmatpush1.bf16.msra.mxu0 0
      %6563 = vmatprep.subr.bf16.mxu0 0
      %6564 = vmatpush1.bf16.msra.mxu0 0
      %6565 = vmatprep.subr.bf16.mxu0 0
      %6566 = vmatpush1.bf16.msra.mxu0 0
      %6567 = vmatprep.subr.bf16.mxu0 0
      %6568 = vmatpush1.bf16.msra.mxu0 0
      %6569 = vmatprep.subr.bf16.mxu0 0
      %6570 = vmatpush1.bf16.msra.mxu0 0
      %6571 = vmatprep.subr.bf16.mxu0 0
      %6572 = vmatpush1.bf16.msra.mxu0 0
      %6573 = vmatprep.subr.bf16.mxu0 0
      %6574 = vmatpush1.bf16.msra.mxu0 0
      %6575 = vmatprep.subr.bf16.mxu0 0
      %6576 = vmatpush1.bf16.msra.mxu0 0
      %6577 = vmatprep.mubr.bf16.mxu0 0
      %6578 = vmatmul.mubr.bf16.gmra.mrb[0].mxu0 %v6487
      %v6579 = vpop.f32.mrb[0].mxu0
      %v6580 = vadd.f32 0.0, %v6579
      %v6581 = vpop.f32.mrb[0].mxu0
      %v6582 = vpop.f32.mrb[0].mxu0
      %v6583 = vadd.f32 0.0, %v6582
      %v6584 = vpop.f32.mrb[0].mxu0
      %6585 = vmatprep.mubr.bf16.mxu0 0
      %6586 = vmatmul.mubr.bf16.gmra.mrb[0].mxu0 %v6490
      %v6587 = vpop.f32.mrb[0].mxu0
      %v6588 = vadd.f32 0.0, %v6587
      %v6589 = vpop.f32.mrb[0].mxu0
      %v6590 = vpop.f32.mrb[0].mxu0
      %v6591 = vadd.f32 0.0, %v6590
      %v6592 = vpop.f32.mrb[0].mxu0
      %6593 = vdwg.mxu0
      %v6594 = vadd.f32 %v6414, %v6527
      %v6595 = vadd.f32 %v6415, %v6529
      %v6596 = vadd.f32 %v6416, %v6580
      %v6597 = vadd.f32 %v6417, %v6531
      %v6598 = vadd.f32 %v6418, %v6533
      %v6599 = vadd.f32 %v6419, %v6583
      %v6600 = vadd.f32 %v6420, %v6537
      %v6601 = vadd.f32 %v6421, %v6539
      %v6602 = vadd.f32 %v6422, %v6588
      %v6603 = vadd.f32 %v6423, %v6541
      %v6604 = vadd.f32 %v6424, %v6543
      %v6605 = vadd.f32 %v6425, %v6591
      %v6606 = vld [vmem:[%s5 + $0x10] sm:$0xf]
      %v6607 = vld [vmem:[%s5 + $0x24] sm:$0xf]
      %v6608 = vld [vmem:[%s5 + $0x38] sm:$0xf]
      %v6609 = vld [vmem:[%s5 + $0x4c] sm:$0xf]
      %v6614 = vunpack.c.l.b16 %v6606
      %v6615 = vunpack.c.l.b16 %v6607
      %v6616 = vunpack.c.l.b16 %v6608
      %v6617 = vunpack.c.l.b16 %v6609
      %v6618 = vpack.c.b16 %v6615, %v6614
      %v6619 = vpack.c.b16 %v6617, %v6616
      %6620 = vrot.lane.b32.xlu0 %v6024, 95
      %v6621 = vpop.permute.xlu0 %6620
      %6622 = vrot.lane.b32.xlu0 %v6025, 95
      %v6623 = vpop.permute.xlu0 %6622
      %6624 = vrot.lane.b32.xlu0 %v6026, 95
      %v6625 = vpop.permute.xlu0 %6624
      %6626 = vrot.lane.b32.xlu0 %v6027, 95
      %v6627 = vpop.permute.xlu0 %6626
      %6628 = vrot.lane.b32.xlu0 %v6028, 95
      %v6629 = vpop.permute.xlu0 %6628
      %6630 = vrot.lane.b32.xlu0 %v6029, 95
      %v6631 = vpop.permute.xlu0 %6630
      %6632 = vrot.lane.b32.xlu0 %v6030, 95
      %v6633 = vpop.permute.xlu0 %6632
      %6634 = vrot.lane.b32.xlu0 %v6031, 95
      %v6635 = vpop.permute.xlu0 %6634
      %6636 = vrot.lane.b32.xlu0 %v6032, 95
      %v6637 = vpop.permute.xlu0 %6636
      %6638 = vrot.lane.b32.xlu0 %v6033, 95
      %v6639 = vpop.permute.xlu0 %6638
      %6640 = vrot.lane.b32.xlu0 %v6034, 95
      %v6641 = vpop.permute.xlu0 %6640
      %6642 = vrot.lane.b32.xlu0 %v6035, 95
      %v6643 = vpop.permute.xlu0 %6642
      %6644 = vrot.lane.b32.xlu0 %v6036, 95
      %v6645 = vpop.permute.xlu0 %6644
      %6646 = vrot.lane.b32.xlu0 %v6037, 95
      %v6647 = vpop.permute.xlu0 %6646
      %6648 = vrot.lane.b32.xlu0 %v6038, 95
      %v6649 = vpop.permute.xlu0 %6648
      %6650 = vrot.lane.b32.xlu0 %v6039, 95
      %v6651 = vpop.permute.xlu0 %6650
      %v6652 = vsel %vm3241, %v6621, %v6623
      %v6653 = vsel %vm3241, %v6623, %v6625
      %v6654 = vsel %vm3241, %v6625, %v6627
      %v6655 = vsel %vm3241, %v6629, %v6631
      %v6656 = vsel %vm3241, %v6631, %v6633
      %v6657 = vsel %vm3241, %v6633, %v6635
      %v6658 = vsel %vm3241, %v6637, %v6639
      %v6659 = vsel %vm3241, %v6639, %v6641
      %v6660 = vsel %vm3241, %v6641, %v6643
      %v6661 = vsel %vm3241, %v6645, %v6647
      %v6662 = vsel %vm3241, %v6647, %v6649
      %v6663 = vsel %vm3241, %v6649, %v6651
      %v6677 = vsel %vm408, %v6618, 0
      %v6680 = vsel %vm408, %v6619, 0
      %6682 = vmatprep.subr.bf16.mxu0 %v6653
      %6683 = vmatpush1.bf16.msra.mxu0 %v6652
      %6684 = vmatprep.subr.bf16.mxu0 %v6656
      %6685 = vmatpush1.bf16.msra.mxu0 %v6655
      %6686 = vmatprep.subr.bf16.mxu0 %v6659
      %6687 = vmatpush1.bf16.msra.mxu0 %v6658
      %6688 = vmatprep.subr.bf16.mxu0 %v6662
      %6689 = vmatpush1.bf16.msra.mxu0 %v6661
      %6690 = vmatprep.subr.bf16.mxu0 0
      %6691 = vmatpush1.bf16.msra.mxu0 0
      %6692 = vmatprep.subr.bf16.mxu0 0
      %6693 = vmatpush1.bf16.msra.mxu0 0
      %6694 = vmatprep.subr.bf16.mxu0 0
      %6695 = vmatpush1.bf16.msra.mxu0 0
      %6696 = vmatprep.subr.bf16.mxu0 0
      %6697 = vmatpush1.bf16.msra.mxu0 0
      %6698 = vmatprep.subr.bf16.mxu0 0
      %6699 = vmatpush1.bf16.msra.mxu0 0
      %6700 = vmatprep.subr.bf16.mxu0 0
      %6701 = vmatpush1.bf16.msra.mxu0 0
      %6702 = vmatprep.subr.bf16.mxu0 0
      %6703 = vmatpush1.bf16.msra.mxu0 0
      %6704 = vmatprep.subr.bf16.mxu0 0
      %6705 = vmatpush1.bf16.msra.mxu0 0
      %6706 = vmatprep.subr.bf16.mxu0 0
      %6707 = vmatpush1.bf16.msra.mxu0 0
      %6708 = vmatprep.subr.bf16.mxu0 0
      %6709 = vmatpush1.bf16.msra.mxu0 0
      %6710 = vmatprep.subr.bf16.mxu0 0
      %6711 = vmatpush1.bf16.msra.mxu0 0
      %6712 = vmatprep.subr.bf16.mxu0 0
      %6713 = vmatpush1.bf16.msra.mxu0 0
      %6714 = vmatprep.mubr.bf16.mxu0 0
      %6715 = vmatmul.mubr.bf16.gmra.mrb[0].mxu0 %v6677
      %v6716 = vpop.f32.mrb[0].mxu0
      %v6717 = vadd.f32 0.0, %v6716
      %v6718 = vpop.f32.mrb[0].mxu0
      %v6719 = vadd.f32 0.0, %v6718
      %v6720 = vpop.f32.mrb[0].mxu0
      %v6721 = vadd.f32 0.0, %v6720
      %v6722 = vpop.f32.mrb[0].mxu0
      %v6723 = vadd.f32 0.0, %v6722
      %6724 = vmatprep.mubr.bf16.mxu0 0
      %6725 = vmatmul.mubr.bf16.gmra.mrb[0].mxu0 %v6680
      %v6726 = vpop.f32.mrb[0].mxu0
      %v6727 = vadd.f32 0.0, %v6726
      %v6728 = vpop.f32.mrb[0].mxu0
      %v6729 = vadd.f32 0.0, %v6728
      %v6730 = vpop.f32.mrb[0].mxu0
      %v6731 = vadd.f32 0.0, %v6730
      %v6732 = vpop.f32.mrb[0].mxu0
      %v6733 = vadd.f32 0.0, %v6732
      %6734 = vdwg.mxu0
      %6735 = vmatprep.subr.bf16.mxu0 0
      %6736 = vmatpush1.bf16.msra.mxu0 %v6654
      %6737 = vmatprep.subr.bf16.mxu0 0
      %6738 = vmatpush1.bf16.msra.mxu0 %v6657
      %6739 = vmatprep.subr.bf16.mxu0 0
      %6740 = vmatpush1.bf16.msra.mxu0 %v6660
      %6741 = vmatprep.subr.bf16.mxu0 0
      %6742 = vmatpush1.bf16.msra.mxu0 %v6663
      %6743 = vmatprep.subr.bf16.mxu0 0
      %6744 = vmatpush1.bf16.msra.mxu0 0
      %6745 = vmatprep.subr.bf16.mxu0 0
      %6746 = vmatpush1.bf16.msra.mxu0 0
      %6747 = vmatprep.subr.bf16.mxu0 0
      %6748 = vmatpush1.bf16.msra.mxu0 0
      %6749 = vmatprep.subr.bf16.mxu0 0
      %6750 = vmatpush1.bf16.msra.mxu0 0
      %6751 = vmatprep.subr.bf16.mxu0 0
      %6752 = vmatpush1.bf16.msra.mxu0 0
      %6753 = vmatprep.subr.bf16.mxu0 0
      %6754 = vmatpush1.bf16.msra.mxu0 0
      %6755 = vmatprep.subr.bf16.mxu0 0
      %6756 = vmatpush1.bf16.msra.mxu0 0
      %6757 = vmatprep.subr.bf16.mxu0 0
      %6758 = vmatpush1.bf16.msra.mxu0 0
      %6759 = vmatprep.subr.bf16.mxu0 0
      %6760 = vmatpush1.bf16.msra.mxu0 0
      %6761 = vmatprep.subr.bf16.mxu0 0
      %6762 = vmatpush1.bf16.msra.mxu0 0
      %6763 = vmatprep.subr.bf16.mxu0 0
      %6764 = vmatpush1.bf16.msra.mxu0 0
      %6765 = vmatprep.subr.bf16.mxu0 0
      %6766 = vmatpush1.bf16.msra.mxu0 0
      %6767 = vmatprep.mubr.bf16.mxu0 0
      %6768 = vmatmul.mubr.bf16.gmra.mrb[0].mxu0 %v6677
      %v6769 = vpop.f32.mrb[0].mxu0
      %v6770 = vadd.f32 0.0, %v6769
      %v6771 = vpop.f32.mrb[0].mxu0
      %v6772 = vpop.f32.mrb[0].mxu0
      %v6773 = vadd.f32 0.0, %v6772
      %v6774 = vpop.f32.mrb[0].mxu0
      %6775 = vmatprep.mubr.bf16.mxu0 0
      %6776 = vmatmul.mubr.bf16.gmra.mrb[0].mxu0 %v6680
      %v6777 = vpop.f32.mrb[0].mxu0
      %v6778 = vadd.f32 0.0, %v6777
      %v6779 = vpop.f32.mrb[0].mxu0
      %v6780 = vpop.f32.mrb[0].mxu0
      %v6781 = vadd.f32 0.0, %v6780
      %v6782 = vpop.f32.mrb[0].mxu0
      %6783 = vdwg.mxu0
      %v6784 = vadd.f32 %v6594, %v6717
      %v6785 = vadd.f32 %v6595, %v6719
      %v6786 = vadd.f32 %v6596, %v6770
      %v6787 = vadd.f32 %v6597, %v6721
      %v6788 = vadd.f32 %v6598, %v6723
      %v6789 = vadd.f32 %v6599, %v6773
      %v6790 = vadd.f32 %v6600, %v6727
      %v6791 = vadd.f32 %v6601, %v6729
      %v6792 = vadd.f32 %v6602, %v6778
      %v6793 = vadd.f32 %v6603, %v6731
      %v6794 = vadd.f32 %v6604, %v6733
      %v6795 = vadd.f32 %v6605, %v6781
      %v6796 = vld [vmem:[%s6] sm:$0xff]
      %v6797 = vld [vmem:[%s6 + $0x8] sm:$0xff]
      %v6798 = vld [vmem:[%s6 + $0x10] sm:$0xff]
      %v6799 = vld [vmem:[%s6 + $0x18] sm:$0xff]
      %6801 = vset.pattern.permute.xlu0 0
      %6802 = vperm.xlu0 %6801, %v6796
      %v6803 = vpop.permute.xlu0 %6802
      %6806 = vset.pattern.permute.xlu0 0
      %6807 = vperm.xlu0 %6806, %v6797
      %v6808 = vpop.permute.xlu0 %6807
      %6811 = vset.pattern.permute.xlu0 0
      %6812 = vperm.xlu0 %6811, %v6798
      %v6813 = vpop.permute.xlu0 %6812
      %6816 = vset.pattern.permute.xlu0 0
      %6817 = vperm.xlu0 %6816, %v6799
      %v6818 = vpop.permute.xlu0 %6817
      %v6820 = vadd.f32 %v6784, %v6803
      %v6821 = vadd.f32 %v6785, %v6803
      %v6822 = vadd.f32 %v6786, %v6803
      %v6823 = vadd.f32 %v6787, %v6808
      %v6824 = vadd.f32 %v6788, %v6808
      %v6825 = vadd.f32 %v6789, %v6808
      %v6826 = vadd.f32 %v6790, %v6813
      %v6827 = vadd.f32 %v6791, %v6813
      %v6828 = vadd.f32 %v6792, %v6813
      %v6829 = vadd.f32 %v6793, %v6818
      %v6830 = vadd.f32 %v6794, %v6818
      %v6831 = vadd.f32 %v6795, %v6818
      %v6832 = vmax.f32 %v6820, 0.0
      %v6833 = vmax.f32 %v6821, 0.0
      %v6834 = vmax.f32 %v6822, 0.0
      %v6835 = vmax.f32 %v6823, 0.0
      %v6836 = vmax.f32 %v6824, 0.0
      %v6837 = vmax.f32 %v6825, 0.0
      %v6838 = vmax.f32 %v6826, 0.0
      %v6839 = vmax.f32 %v6827, 0.0
      %v6840 = vmax.f32 %v6828, 0.0
      %v6841 = vmax.f32 %v6829, 0.0
      %v6842 = vmax.f32 %v6830, 0.0
      %v6843 = vmax.f32 %v6831, 0.0
      %v6844 = vld [vmem:[%s9] sm:$0x7]
      %v6846 = vlaneseq
      %v6847 = vshrl.u32 %v6846, 7
      %v6848 = vsub.s32 0, %v6847
      %v6849 = vrot.slane %v6844, %v6848
      %v6850 = vlaneseq
      %v6851 = vshrl.u32 %v6850, 7
      %v6852 = vsub.s32 1, %v6851
      %v6853 = vrot.slane %v6844, %v6852
      %v6854 = vlaneseq
      %v6855 = vshrl.u32 %v6854, 7
      %v6856 = vsub.s32 2, %v6855
      %v6857 = vrot.slane %v6844, %v6856
      %v6861 = vmul.f32 %v6832, %v6849
      %v6862 = vmul.f32 %v6833, %v6853
      %v6863 = vmul.f32 %v6834, %v6857
      %v6864 = vmul.f32 %v6835, %v6849
      %v6865 = vmul.f32 %v6836, %v6853
      %v6866 = vmul.f32 %v6837, %v6857
      %v6867 = vmul.f32 %v6838, %v6849
      %v6868 = vmul.f32 %v6839, %v6853
      %v6869 = vmul.f32 %v6840, %v6857
      %v6870 = vmul.f32 %v6841, %v6849
      %v6871 = vmul.f32 %v6842, %v6853
      %v6872 = vmul.f32 %v6843, %v6857
      %v6873 = vpack.c.bf16 %v6864, %v6861
      %v6874 = vpack.c.bf16 %v6865, %v6862
      %v6875 = vpack.c.bf16 %v6866, %v6863
      %v6876 = vpack.c.bf16 %v6870, %v6867
      %v6877 = vpack.c.bf16 %v6871, %v6868
      %v6878 = vpack.c.bf16 %v6872, %v6869
      %6879 = vst [vmem:[#allocation5 + $0x8] sm:$0xff] %v6873
      %6880 = vst [vmem:[#allocation5 + $0x10] sm:$0xff] %v6874
      %6881 = vst [vmem:[#allocation5 + $0x18] sm:$0xff] %v6875
      %6882 = vst [vmem:[#allocation5 + $0x40] sm:$0xff] %v6876
      %6883 = vst [vmem:[#allocation5 + $0x48] sm:$0xff] %v6877
      %6884 = vst [vmem:[#allocation5 + $0x50] sm:$0xff] %v6878
      %v6885 = vld [vmem:[%s5] sm:$0xf]
      %v6886 = vld [vmem:[%s5 + $0x14] sm:$0xf]
      %v6887 = vld [vmem:[%s5 + $0x28] sm:$0xf]
      %v6888 = vld [vmem:[%s5 + $0x3c] sm:$0xf]
      %v6889 = vld [vmem:[#allocation4 + $0x18] sm:$0xff]
      %v6890 = vld [vmem:[#allocation4 + $0x20] sm:$0xff]
      %v6891 = vld [vmem:[#allocation4 + $0x28] sm:$0xff]
      %v6892 = vld [vmem:[#allocation4 + $0x50] sm:$0xff]
      %v6893 = vld [vmem:[#allocation4 + $0x58] sm:$0xff]
      %v6894 = vld [vmem:[#allocation4 + $0x60] sm:$0xff]
      %v6895 = vld [vmem:[#allocation4 + $0x88] sm:$0xff]
      %v6896 = vld [vmem:[#allocation4 + $0x90] sm:$0xff]
      %v6897 = vld [vmem:[#allocation4 + $0x98] sm:$0xff]
      %v6898 = vld [vmem:[#allocation4 + $0xc0] sm:$0xff]
      %v6899 = vld [vmem:[#allocation4 + $0xc8] sm:$0xff]
      %v6900 = vld [vmem:[#allocation4 + $0xd0] sm:$0xff]
      %v6905 = vunpack.c.l.b16 %v6885
      %v6906 = vunpack.c.l.b16 %v6886
      %v6907 = vunpack.c.l.b16 %v6887
      %v6908 = vunpack.c.l.b16 %v6888
      %v6909 = vpack.c.b16 %v6906, %v6905
      %v6910 = vpack.c.b16 %v6908, %v6907
      %6911 = vrot.lane.b32.xlu0 %v6909, 64
      %v6912 = vpop.permute.xlu0 %6911
      %6913 = vrot.lane.b32.xlu0 %v6910, 64
      %v6914 = vpop.permute.xlu0 %6913
      %6927 = vrot.lane.b32.xlu0 %v6889, 32
      %v6928 = vpop.permute.xlu0 %6927
      %6929 = vrot.lane.b32.xlu0 %v6890, 32
      %v6930 = vpop.permute.xlu0 %6929
      %6931 = vrot.lane.b32.xlu0 %v6891, 32
      %v6932 = vpop.permute.xlu0 %6931
      %6933 = vrot.lane.b32.xlu0 %v6892, 32
      %v6934 = vpop.permute.xlu0 %6933
      %6935 = vrot.lane.b32.xlu0 %v6893, 32
      %v6936 = vpop.permute.xlu0 %6935
      %6937 = vrot.lane.b32.xlu0 %v6894, 32
      %v6938 = vpop.permute.xlu0 %6937
      %6939 = vrot.lane.b32.xlu0 %v6895, 32
      %v6940 = vpop.permute.xlu0 %6939
      %6941 = vrot.lane.b32.xlu0 %v6896, 32
      %v6942 = vpop.permute.xlu0 %6941
      %6943 = vrot.lane.b32.xlu0 %v6897, 32
      %v6944 = vpop.permute.xlu0 %6943
      %6945 = vrot.lane.b32.xlu0 %v6898, 32
      %v6946 = vpop.permute.xlu0 %6945
      %6947 = vrot.lane.b32.xlu0 %v6899, 32
      %v6948 = vpop.permute.xlu0 %6947
      %6949 = vrot.lane.b32.xlu0 %v6900, 32
      %v6950 = vpop.permute.xlu0 %6949
      %v6951 = vsel %vm1330, %v6928, %v6930
      %v6952 = vsel %vm1330, %v6930, %v6932
      %v6953 = vsel %vm1330, %v6934, %v6936
      %v6954 = vsel %vm1330, %v6936, %v6938
      %v6955 = vsel %vm1330, %v6940, %v6942
      %v6956 = vsel %vm1330, %v6942, %v6944
      %v6957 = vsel %vm1330, %v6946, %v6948
      %v6958 = vsel %vm1330, %v6948, %v6950
      %v6968 = vsel %vm408, %v6912, 0
      %v6971 = vsel %vm408, %v6914, 0
      %6973 = vmatprep.subr.bf16.mxu0 %v6952
      %6974 = vmatpush1.bf16.msra.mxu0 %v6951
      %6975 = vmatprep.subr.bf16.mxu0 %v6954
      %6976 = vmatpush1.bf16.msra.mxu0 %v6953
      %6977 = vmatprep.subr.bf16.mxu0 %v6956
      %6978 = vmatpush1.bf16.msra.mxu0 %v6955
      %6979 = vmatprep.subr.bf16.mxu0 %v6958
      %6980 = vmatpush1.bf16.msra.mxu0 %v6957
      %6981 = vmatprep.subr.bf16.mxu0 0
      %6982 = vmatpush1.bf16.msra.mxu0 0
      %6983 = vmatprep.subr.bf16.mxu0 0
      %6984 = vmatpush1.bf16.msra.mxu0 0
      %6985 = vmatprep.subr.bf16.mxu0 0
      %6986 = vmatpush1.bf16.msra.mxu0 0
      %6987 = vmatprep.subr.bf16.mxu0 0
      %6988 = vmatpush1.bf16.msra.mxu0 0
      %6989 = vmatprep.subr.bf16.mxu0 0
      %6990 = vmatpush1.bf16.msra.mxu0 0
      %6991 = vmatprep.subr.bf16.mxu0 0
      %6992 = vmatpush1.bf16.msra.mxu0 0
      %6993 = vmatprep.subr.bf16.mxu0 0
      %6994 = vmatpush1.bf16.msra.mxu0 0
      %6995 = vmatprep.subr.bf16.mxu0 0
      %6996 = vmatpush1.bf16.msra.mxu0 0
      %6997 = vmatprep.subr.bf16.mxu0 0
      %6998 = vmatpush1.bf16.msra.mxu0 0
      %6999 = vmatprep.subr.bf16.mxu0 0
      %7000 = vmatpush1.bf16.msra.mxu0 0
      %7001 = vmatprep.subr.bf16.mxu0 0
      %7002 = vmatpush1.bf16.msra.mxu0 0
      %7003 = vmatprep.subr.bf16.mxu0 0
      %7004 = vmatpush1.bf16.msra.mxu0 0
      %7005 = vmatprep.mubr.bf16.mxu0 0
      %7006 = vmatmul.mubr.bf16.gmra.mrb[0].mxu0 %v6968
      %v7007 = vpop.f32.mrb[0].mxu0
      %v7008 = vadd.f32 0.0, %v7007
      %v7009 = vpop.f32.mrb[0].mxu0
      %v7010 = vadd.f32 0.0, %v7009
      %v7011 = vpop.f32.mrb[0].mxu0
      %v7012 = vadd.f32 0.0, %v7011
      %v7013 = vpop.f32.mrb[0].mxu0
      %v7014 = vadd.f32 0.0, %v7013
      %7015 = vmatprep.mubr.bf16.mxu0 0
      %7016 = vmatmul.mubr.bf16.gmra.mrb[0].mxu0 %v6971
      %v7017 = vpop.f32.mrb[0].mxu0
      %v7018 = vadd.f32 0.0, %v7017
      %v7019 = vpop.f32.mrb[0].mxu0
      %v7020 = vadd.f32 0.0, %v7019
      %v7021 = vpop.f32.mrb[0].mxu0
      %v7022 = vadd.f32 0.0, %v7021
      %v7023 = vpop.f32.mrb[0].mxu0
      %v7024 = vadd.f32 0.0, %v7023
      %7025 = vdwg.mxu0
      %7026 = vrot.lane.b32.xlu0 %v6889, 33
      %v7027 = vpop.permute.xlu0 %7026
      %7028 = vrot.lane.b32.xlu0 %v6890, 33
      %v7029 = vpop.permute.xlu0 %7028
      %7030 = vrot.lane.b32.xlu0 %v6891, 33
      %v7031 = vpop.permute.xlu0 %7030
      %7032 = vrot.lane.b32.xlu0 %v6892, 33
      %v7033 = vpop.permute.xlu0 %7032
      %7034 = vrot.lane.b32.xlu0 %v6893, 33
      %v7035 = vpop.permute.xlu0 %7034
      %7036 = vrot.lane.b32.xlu0 %v6894, 33
      %v7037 = vpop.permute.xlu0 %7036
      %7038 = vrot.lane.b32.xlu0 %v6895, 33
      %v7039 = vpop.permute.xlu0 %7038
      %7040 = vrot.lane.b32.xlu0 %v6896, 33
      %v7041 = vpop.permute.xlu0 %7040
      %7042 = vrot.lane.b32.xlu0 %v6897, 33
      %v7043 = vpop.permute.xlu0 %7042
      %7044 = vrot.lane.b32.xlu0 %v6898, 33
      %v7045 = vpop.permute.xlu0 %7044
      %7046 = vrot.lane.b32.xlu0 %v6899, 33
      %v7047 = vpop.permute.xlu0 %7046
      %7048 = vrot.lane.b32.xlu0 %v6900, 33
      %v7049 = vpop.permute.xlu0 %7048
      %v7050 = vsel %vm1537, %v7027, %v7029
      %v7051 = vsel %vm1537, %v7029, %v7031
      %v7052 = vsel %vm1537, %v7033, %v7035
      %v7053 = vsel %vm1537, %v7035, %v7037
      %v7054 = vsel %vm1537, %v7039, %v7041
      %v7055 = vsel %vm1537, %v7041, %v7043
      %v7056 = vsel %vm1537, %v7045, %v7047
      %v7057 = vsel %vm1537, %v7047, %v7049
      %v7067 = vsel %vm408, %v6909, 0
      %v7070 = vsel %vm408, %v6910, 0
      %7072 = vmatprep.subr.bf16.mxu0 %v7051
      %7073 = vmatpush1.bf16.msra.mxu0 %v7050
      %7074 = vmatprep.subr.bf16.mxu0 %v7053
      %7075 = vmatpush1.bf16.msra.mxu0 %v7052
      %7076 = vmatprep.subr.bf16.mxu0 %v7055
      %7077 = vmatpush1.bf16.msra.mxu0 %v7054
      %7078 = vmatprep.subr.bf16.mxu0 %v7057
      %7079 = vmatpush1.bf16.msra.mxu0 %v7056
      %7080 = vmatprep.subr.bf16.mxu0 0
      %7081 = vmatpush1.bf16.msra.mxu0 0
      %7082 = vmatprep.subr.bf16.mxu0 0
      %7083 = vmatpush1.bf16.msra.mxu0 0
      %7084 = vmatprep.subr.bf16.mxu0 0
      %7085 = vmatpush1.bf16.msra.mxu0 0
      %7086 = vmatprep.subr.bf16.mxu0 0
      %7087 = vmatpush1.bf16.msra.mxu0 0
      %7088 = vmatprep.subr.bf16.mxu0 0
      %7089 = vmatpush1.bf16.msra.mxu0 0
      %7090 = vmatprep.subr.bf16.mxu0 0
      %7091 = vmatpush1.bf16.msra.mxu0 0
      %7092 = vmatprep.subr.bf16.mxu0 0
      %7093 = vmatpush1.bf16.msra.mxu0 0
      %7094 = vmatprep.subr.bf16.mxu0 0
      %7095 = vmatpush1.bf16.msra.mxu0 0
      %7096 = vmatprep.subr.bf16.mxu0 0
      %7097 = vmatpush1.bf16.msra.mxu0 0
      %7098 = vmatprep.subr.bf16.mxu0 0
      %7099 = vmatpush1.bf16.msra.mxu0 0
      %7100 = vmatprep.subr.bf16.mxu0 0
      %7101 = vmatpush1.bf16.msra.mxu0 0
      %7102 = vmatprep.subr.bf16.mxu0 0
      %7103 = vmatpush1.bf16.msra.mxu0 0
      %7104 = vmatprep.mubr.bf16.mxu0 0
      %7105 = vmatmul.mubr.bf16.gmra.mrb[0].mxu0 %v7067
      %v7106 = vpop.f32.mrb[0].mxu0
      %v7107 = vadd.f32 %v7008, %v7106
      %v7108 = vpop.f32.mrb[0].mxu0
      %v7109 = vadd.f32 %v7010, %v7108
      %v7110 = vpop.f32.mrb[0].mxu0
      %v7111 = vadd.f32 %v7012, %v7110
      %v7112 = vpop.f32.mrb[0].mxu0
      %v7113 = vadd.f32 %v7014, %v7112
      %7114 = vmatprep.mubr.bf16.mxu0 0
      %7115 = vmatmul.mubr.bf16.gmra.mrb[0].mxu0 %v7070
      %v7116 = vpop.f32.mrb[0].mxu0
      %v7117 = vadd.f32 %v7018, %v7116
      %v7118 = vpop.f32.mrb[0].mxu0
      %v7119 = vadd.f32 %v7020, %v7118
      %v7120 = vpop.f32.mrb[0].mxu0
      %v7121 = vadd.f32 %v7022, %v7120
      %v7122 = vpop.f32.mrb[0].mxu0
      %v7123 = vadd.f32 %v7024, %v7122
      %7124 = vdwg.mxu0
      %v7125 = vld [vmem:[%s5 + $0x4] sm:$0xf]
      %v7126 = vld [vmem:[%s5 + $0x18] sm:$0xf]
      %v7127 = vld [vmem:[%s5 + $0x2c] sm:$0xf]
      %v7128 = vld [vmem:[%s5 + $0x40] sm:$0xf]
      %v7133 = vunpack.c.l.b16 %v7125
      %v7134 = vunpack.c.l.b16 %v7126
      %v7135 = vunpack.c.l.b16 %v7127
      %v7136 = vunpack.c.l.b16 %v7128
      %v7137 = vpack.c.b16 %v7134, %v7133
      %v7138 = vpack.c.b16 %v7136, %v7135
      %7139 = vrot.lane.b32.xlu0 %v6889, 31
      %v7140 = vpop.permute.xlu0 %7139
      %7141 = vrot.lane.b32.xlu0 %v6890, 31
      %v7142 = vpop.permute.xlu0 %7141
      %7143 = vrot.lane.b32.xlu0 %v6891, 31
      %v7144 = vpop.permute.xlu0 %7143
      %7145 = vrot.lane.b32.xlu0 %v6892, 31
      %v7146 = vpop.permute.xlu0 %7145
      %7147 = vrot.lane.b32.xlu0 %v6893, 31
      %v7148 = vpop.permute.xlu0 %7147
      %7149 = vrot.lane.b32.xlu0 %v6894, 31
      %v7150 = vpop.permute.xlu0 %7149
      %7151 = vrot.lane.b32.xlu0 %v6895, 31
      %v7152 = vpop.permute.xlu0 %7151
      %7153 = vrot.lane.b32.xlu0 %v6896, 31
      %v7154 = vpop.permute.xlu0 %7153
      %7155 = vrot.lane.b32.xlu0 %v6897, 31
      %v7156 = vpop.permute.xlu0 %7155
      %7157 = vrot.lane.b32.xlu0 %v6898, 31
      %v7158 = vpop.permute.xlu0 %7157
      %7159 = vrot.lane.b32.xlu0 %v6899, 31
      %v7160 = vpop.permute.xlu0 %7159
      %7161 = vrot.lane.b32.xlu0 %v6900, 31
      %v7162 = vpop.permute.xlu0 %7161
      %v7163 = vsel %vm1772, %v7140, %v7142
      %v7164 = vsel %vm1772, %v7142, %v7144
      %v7165 = vsel %vm1772, %v7146, %v7148
      %v7166 = vsel %vm1772, %v7148, %v7150
      %v7167 = vsel %vm1772, %v7152, %v7154
      %v7168 = vsel %vm1772, %v7154, %v7156
      %v7169 = vsel %vm1772, %v7158, %v7160
      %v7170 = vsel %vm1772, %v7160, %v7162
      %v7180 = vsel %vm408, %v7137, 0
      %v7183 = vsel %vm408, %v7138, 0
      %7185 = vmatprep.subr.bf16.mxu0 %v7164
      %7186 = vmatpush1.bf16.msra.mxu0 %v7163
      %7187 = vmatprep.subr.bf16.mxu0 %v7166
      %7188 = vmatpush1.bf16.msra.mxu0 %v7165
      %7189 = vmatprep.subr.bf16.mxu0 %v7168
      %7190 = vmatpush1.bf16.msra.mxu0 %v7167
      %7191 = vmatprep.subr.bf16.mxu0 %v7170
      %7192 = vmatpush1.bf16.msra.mxu0 %v7169
      %7193 = vmatprep.subr.bf16.mxu0 0
      %7194 = vmatpush1.bf16.msra.mxu0 0
      %7195 = vmatprep.subr.bf16.mxu0 0
      %7196 = vmatpush1.bf16.msra.mxu0 0
      %7197 = vmatprep.subr.bf16.mxu0 0
      %7198 = vmatpush1.bf16.msra.mxu0 0
      %7199 = vmatprep.subr.bf16.mxu0 0
      %7200 = vmatpush1.bf16.msra.mxu0 0
      %7201 = vmatprep.subr.bf16.mxu0 0
      %7202 = vmatpush1.bf16.msra.mxu0 0
      %7203 = vmatprep.subr.bf16.mxu0 0
      %7204 = vmatpush1.bf16.msra.mxu0 0
      %7205 = vmatprep.subr.bf16.mxu0 0
      %7206 = vmatpush1.bf16.msra.mxu0 0
      %7207 = vmatprep.subr.bf16.mxu0 0
      %7208 = vmatpush1.bf16.msra.mxu0 0
      %7209 = vmatprep.subr.bf16.mxu0 0
      %7210 = vmatpush1.bf16.msra.mxu0 0
      %7211 = vmatprep.subr.bf16.mxu0 0
      %7212 = vmatpush1.bf16.msra.mxu0 0
      %7213 = vmatprep.subr.bf16.mxu0 0
      %7214 = vmatpush1.bf16.msra.mxu0 0
      %7215 = vmatprep.subr.bf16.mxu0 0
      %7216 = vmatpush1.bf16.msra.mxu0 0
      %7217 = vmatprep.mubr.bf16.mxu0 0
      %7218 = vmatmul.mubr.bf16.gmra.mrb[0].mxu0 %v7180
      %v7219 = vpop.f32.mrb[0].mxu0
      %v7220 = vadd.f32 0.0, %v7219
      %v7221 = vpop.f32.mrb[0].mxu0
      %v7222 = vadd.f32 0.0, %v7221
      %v7223 = vpop.f32.mrb[0].mxu0
      %v7224 = vadd.f32 0.0, %v7223
      %v7225 = vpop.f32.mrb[0].mxu0
      %v7226 = vadd.f32 0.0, %v7225
      %7227 = vmatprep.mubr.bf16.mxu0 0
      %7228 = vmatmul.mubr.bf16.gmra.mrb[0].mxu0 %v7183
      %v7229 = vpop.f32.mrb[0].mxu0
      %v7230 = vadd.f32 0.0, %v7229
      %v7231 = vpop.f32.mrb[0].mxu0
      %v7232 = vadd.f32 0.0, %v7231
      %v7233 = vpop.f32.mrb[0].mxu0
      %v7234 = vadd.f32 0.0, %v7233
      %v7235 = vpop.f32.mrb[0].mxu0
      %v7236 = vadd.f32 0.0, %v7235
      %7237 = vdwg.mxu0
      %v7238 = vadd.f32 %v7107, %v7220
      %v7239 = vadd.f32 %v7109, %v7222
      %v7240 = vadd.f32 %v7111, %v7224
      %v7241 = vadd.f32 %v7113, %v7226
      %v7242 = vadd.f32 %v7117, %v7230
      %v7243 = vadd.f32 %v7119, %v7232
      %v7244 = vadd.f32 %v7121, %v7234
      %v7245 = vadd.f32 %v7123, %v7236
      %7246 = vrot.lane.b32.xlu0 %v7137, 64
      %v7247 = vpop.permute.xlu0 %7246
      %7248 = vrot.lane.b32.xlu0 %v7138, 64
      %v7249 = vpop.permute.xlu0 %7248
      %7250 = vrot.lane.b32.xlu0 %v6889, 1
      %v7251 = vpop.permute.xlu0 %7250
      %7252 = vrot.lane.b32.xlu0 %v6890, 1
      %v7253 = vpop.permute.xlu0 %7252
      %7254 = vrot.lane.b32.xlu0 %v6891, 1
      %v7255 = vpop.permute.xlu0 %7254
      %7256 = vrot.lane.b32.xlu0 %v6892, 1
      %v7257 = vpop.permute.xlu0 %7256
      %7258 = vrot.lane.b32.xlu0 %v6893, 1
      %v7259 = vpop.permute.xlu0 %7258
      %7260 = vrot.lane.b32.xlu0 %v6894, 1
      %v7261 = vpop.permute.xlu0 %7260
      %7262 = vrot.lane.b32.xlu0 %v6895, 1
      %v7263 = vpop.permute.xlu0 %7262
      %7264 = vrot.lane.b32.xlu0 %v6896, 1
      %v7265 = vpop.permute.xlu0 %7264
      %7266 = vrot.lane.b32.xlu0 %v6897, 1
      %v7267 = vpop.permute.xlu0 %7266
      %7268 = vrot.lane.b32.xlu0 %v6898, 1
      %v7269 = vpop.permute.xlu0 %7268
      %7270 = vrot.lane.b32.xlu0 %v6899, 1
      %v7271 = vpop.permute.xlu0 %7270
      %7272 = vrot.lane.b32.xlu0 %v6900, 1
      %v7273 = vpop.permute.xlu0 %7272
      %v7274 = vsel %vm2011, %v7251, %v7253
      %v7275 = vsel %vm2011, %v7253, %v7255
      %v7276 = vsel %vm2011, %v7257, %v7259
      %v7277 = vsel %vm2011, %v7259, %v7261
      %v7278 = vsel %vm2011, %v7263, %v7265
      %v7279 = vsel %vm2011, %v7265, %v7267
      %v7280 = vsel %vm2011, %v7269, %v7271
      %v7281 = vsel %vm2011, %v7271, %v7273
      %v7291 = vsel %vm408, %v7247, 0
      %v7294 = vsel %vm408, %v7249, 0
      %7296 = vmatprep.subr.bf16.mxu0 %v7275
      %7297 = vmatpush1.bf16.msra.mxu0 %v7274
      %7298 = vmatprep.subr.bf16.mxu0 %v7277
      %7299 = vmatpush1.bf16.msra.mxu0 %v7276
      %7300 = vmatprep.subr.bf16.mxu0 %v7279
      %7301 = vmatpush1.bf16.msra.mxu0 %v7278
      %7302 = vmatprep.subr.bf16.mxu0 %v7281
      %7303 = vmatpush1.bf16.msra.mxu0 %v7280
      %7304 = vmatprep.subr.bf16.mxu0 0
      %7305 = vmatpush1.bf16.msra.mxu0 0
      %7306 = vmatprep.subr.bf16.mxu0 0
      %7307 = vmatpush1.bf16.msra.mxu0 0
      %7308 = vmatprep.subr.bf16.mxu0 0
      %7309 = vmatpush1.bf16.msra.mxu0 0
      %7310 = vmatprep.subr.bf16.mxu0 0
      %7311 = vmatpush1.bf16.msra.mxu0 0
      %7312 = vmatprep.subr.bf16.mxu0 0
      %7313 = vmatpush1.bf16.msra.mxu0 0
      %7314 = vmatprep.subr.bf16.mxu0 0
      %7315 = vmatpush1.bf16.msra.mxu0 0
      %7316 = vmatprep.subr.bf16.mxu0 0
      %7317 = vmatpush1.bf16.msra.mxu0 0
      %7318 = vmatprep.subr.bf16.mxu0 0
      %7319 = vmatpush1.bf16.msra.mxu0 0
      %7320 = vmatprep.subr.bf16.mxu0 0
      %7321 = vmatpush1.bf16.msra.mxu0 0
      %7322 = vmatprep.subr.bf16.mxu0 0
      %7323 = vmatpush1.bf16.msra.mxu0 0
      %7324 = vmatprep.subr.bf16.mxu0 0
      %7325 = vmatpush1.bf16.msra.mxu0 0
      %7326 = vmatprep.subr.bf16.mxu0 0
      %7327 = vmatpush1.bf16.msra.mxu0 0
      %7328 = vmatprep.mubr.bf16.mxu0 0
      %7329 = vmatmul.mubr.bf16.gmra.mrb[0].mxu0 %v7291
      %v7330 = vpop.f32.mrb[0].mxu0
      %v7331 = vadd.f32 0.0, %v7330
      %v7332 = vpop.f32.mrb[0].mxu0
      %v7333 = vadd.f32 0.0, %v7332
      %v7334 = vpop.f32.mrb[0].mxu0
      %v7335 = vadd.f32 0.0, %v7334
      %v7336 = vpop.f32.mrb[0].mxu0
      %v7337 = vadd.f32 0.0, %v7336
      %7338 = vmatprep.mubr.bf16.mxu0 0
      %7339 = vmatmul.mubr.bf16.gmra.mrb[0].mxu0 %v7294
      %v7340 = vpop.f32.mrb[0].mxu0
      %v7341 = vadd.f32 0.0, %v7340
      %v7342 = vpop.f32.mrb[0].mxu0
      %v7343 = vadd.f32 0.0, %v7342
      %v7344 = vpop.f32.mrb[0].mxu0
      %v7345 = vadd.f32 0.0, %v7344
      %v7346 = vpop.f32.mrb[0].mxu0
      %v7347 = vadd.f32 0.0, %v7346
      %7348 = vdwg.mxu0
      %v7349 = vadd.f32 %v7238, %v7331
      %v7350 = vadd.f32 %v7239, %v7333
      %v7351 = vadd.f32 %v7240, %v7335
      %v7352 = vadd.f32 %v7241, %v7337
      %v7353 = vadd.f32 %v7242, %v7341
      %v7354 = vadd.f32 %v7243, %v7343
      %v7355 = vadd.f32 %v7244, %v7345
      %v7356 = vadd.f32 %v7245, %v7347
      %v7357 = vld [vmem:[%s5 + $0x8] sm:$0xf]
      %v7358 = vld [vmem:[%s5 + $0x1c] sm:$0xf]
      %v7359 = vld [vmem:[%s5 + $0x30] sm:$0xf]
      %v7360 = vld [vmem:[%s5 + $0x44] sm:$0xf]
      %v7365 = vunpack.c.l.b16 %v7357
      %v7366 = vunpack.c.l.b16 %v7358
      %v7367 = vunpack.c.l.b16 %v7359
      %v7368 = vunpack.c.l.b16 %v7360
      %v7369 = vpack.c.b16 %v7366, %v7365
      %v7370 = vpack.c.b16 %v7368, %v7367
      %v7372 = vsel %vm408, %v7369, 0
      %v7375 = vsel %vm408, %v7370, 0
      %7377 = vmatprep.subr.bf16.mxu0 %v6891
      %7378 = vmatpush1.bf16.msra.mxu0 %v6890
      %7379 = vmatprep.subr.bf16.mxu0 %v6894
      %7380 = vmatpush1.bf16.msra.mxu0 %v6893
      %7381 = vmatprep.subr.bf16.mxu0 %v6897
      %7382 = vmatpush1.bf16.msra.mxu0 %v6896
      %7383 = vmatprep.subr.bf16.mxu0 %v6900
      %7384 = vmatpush1.bf16.msra.mxu0 %v6899
      %7385 = vmatprep.subr.bf16.mxu0 0
      %7386 = vmatpush1.bf16.msra.mxu0 0
      %7387 = vmatprep.subr.bf16.mxu0 0
      %7388 = vmatpush1.bf16.msra.mxu0 0
      %7389 = vmatprep.subr.bf16.mxu0 0
      %7390 = vmatpush1.bf16.msra.mxu0 0
      %7391 = vmatprep.subr.bf16.mxu0 0
      %7392 = vmatpush1.bf16.msra.mxu0 0
      %7393 = vmatprep.subr.bf16.mxu0 0
      %7394 = vmatpush1.bf16.msra.mxu0 0
      %7395 = vmatprep.subr.bf16.mxu0 0
      %7396 = vmatpush1.bf16.msra.mxu0 0
      %7397 = vmatprep.subr.bf16.mxu0 0
      %7398 = vmatpush1.bf16.msra.mxu0 0
      %7399 = vmatprep.subr.bf16.mxu0 0
      %7400 = vmatpush1.bf16.msra.mxu0 0
      %7401 = vmatprep.subr.bf16.mxu0 0
      %7402 = vmatpush1.bf16.msra.mxu0 0
      %7403 = vmatprep.subr.bf16.mxu0 0
      %7404 = vmatpush1.bf16.msra.mxu0 0
      %7405 = vmatprep.subr.bf16.mxu0 0
      %7406 = vmatpush1.bf16.msra.mxu0 0
      %7407 = vmatprep.subr.bf16.mxu0 0
      %7408 = vmatpush1.bf16.msra.mxu0 0
      %7409 = vmatprep.mubr.bf16.mxu0 0
      %7410 = vmatmul.mubr.bf16.gmra.mrb[0].mxu0 %v7372
      %v7411 = vpop.f32.mrb[0].mxu0
      %v7412 = vadd.f32 0.0, %v7411
      %v7413 = vpop.f32.mrb[0].mxu0
      %v7414 = vadd.f32 0.0, %v7413
      %v7415 = vpop.f32.mrb[0].mxu0
      %v7416 = vadd.f32 0.0, %v7415
      %v7417 = vpop.f32.mrb[0].mxu0
      %v7418 = vadd.f32 0.0, %v7417
      %7419 = vmatprep.mubr.bf16.mxu0 0
      %7420 = vmatmul.mubr.bf16.gmra.mrb[0].mxu0 %v7375
      %v7421 = vpop.f32.mrb[0].mxu0
      %v7422 = vadd.f32 0.0, %v7421
      %v7423 = vpop.f32.mrb[0].mxu0
      %v7424 = vadd.f32 0.0, %v7423
      %v7425 = vpop.f32.mrb[0].mxu0
      %v7426 = vadd.f32 0.0, %v7425
      %v7427 = vpop.f32.mrb[0].mxu0
      %v7428 = vadd.f32 0.0, %v7427
      %7429 = vdwg.mxu0
      %v7430 = vadd.f32 %v7349, %v7412
      %v7431 = vadd.f32 %v7350, %v7414
      %v7432 = vadd.f32 %v7351, %v7416
      %v7433 = vadd.f32 %v7352, %v7418
      %v7434 = vadd.f32 %v7353, %v7422
      %v7435 = vadd.f32 %v7354, %v7424
      %v7436 = vadd.f32 %v7355, %v7426
      %v7437 = vadd.f32 %v7356, %v7428
      %v7438 = vld [vmem:[#allocation4 + $0x20] sm:$0xff]
      %v7439 = vld [vmem:[#allocation4 + $0x28] sm:$0xff]
      %v7440 = vld [vmem:[#allocation4 + $0x30] sm:$0xff]
      %v7441 = vld [vmem:[#allocation4 + $0x58] sm:$0xff]
      %v7442 = vld [vmem:[#allocation4 + $0x60] sm:$0xff]
      %v7443 = vld [vmem:[#allocation4 + $0x68] sm:$0xff]
      %v7444 = vld [vmem:[#allocation4 + $0x90] sm:$0xff]
      %v7445 = vld [vmem:[#allocation4 + $0x98] sm:$0xff]
      %v7446 = vld [vmem:[#allocation4 + $0xa0] sm:$0xff]
      %v7447 = vld [vmem:[#allocation4 + $0xc8] sm:$0xff]
      %v7448 = vld [vmem:[#allocation4 + $0xd0] sm:$0xff]
      %v7449 = vld [vmem:[#allocation4 + $0xd8] sm:$0xff]
      %7450 = vrot.lane.b32.xlu0 %v7369, 64
      %v7451 = vpop.permute.xlu0 %7450
      %7452 = vrot.lane.b32.xlu0 %v7370, 64
      %v7453 = vpop.permute.xlu0 %7452
      %7466 = vrot.lane.b32.xlu0 %v7438, 127
      %v7467 = vpop.permute.xlu0 %7466
      %7468 = vrot.lane.b32.xlu0 %v7439, 127
      %v7469 = vpop.permute.xlu0 %7468
      %7470 = vrot.lane.b32.xlu0 %v7440, 127
      %v7471 = vpop.permute.xlu0 %7470
      %7472 = vrot.lane.b32.xlu0 %v7441, 127
      %v7473 = vpop.permute.xlu0 %7472
      %7474 = vrot.lane.b32.xlu0 %v7442, 127
      %v7475 = vpop.permute.xlu0 %7474
      %7476 = vrot.lane.b32.xlu0 %v7443, 127
      %v7477 = vpop.permute.xlu0 %7476
      %7478 = vrot.lane.b32.xlu0 %v7444, 127
      %v7479 = vpop.permute.xlu0 %7478
      %7480 = vrot.lane.b32.xlu0 %v7445, 127
      %v7481 = vpop.permute.xlu0 %7480
      %7482 = vrot.lane.b32.xlu0 %v7446, 127
      %v7483 = vpop.permute.xlu0 %7482
      %7484 = vrot.lane.b32.xlu0 %v7447, 127
      %v7485 = vpop.permute.xlu0 %7484
      %7486 = vrot.lane.b32.xlu0 %v7448, 127
      %v7487 = vpop.permute.xlu0 %7486
      %7488 = vrot.lane.b32.xlu0 %v7449, 127
      %v7489 = vpop.permute.xlu0 %7488
      %v7490 = vsel %vm2484, %v7467, %v7469
      %v7491 = vsel %vm2484, %v7469, %v7471
      %v7492 = vsel %vm2484, %v7473, %v7475
      %v7493 = vsel %vm2484, %v7475, %v7477
      %v7494 = vsel %vm2484, %v7479, %v7481
      %v7495 = vsel %vm2484, %v7481, %v7483
      %v7496 = vsel %vm2484, %v7485, %v7487
      %v7497 = vsel %vm2484, %v7487, %v7489
      %v7507 = vsel %vm408, %v7451, 0
      %v7510 = vsel %vm408, %v7453, 0
      %7512 = vmatprep.subr.bf16.mxu0 %v7491
      %7513 = vmatpush1.bf16.msra.mxu0 %v7490
      %7514 = vmatprep.subr.bf16.mxu0 %v7493
      %7515 = vmatpush1.bf16.msra.mxu0 %v7492
      %7516 = vmatprep.subr.bf16.mxu0 %v7495
      %7517 = vmatpush1.bf16.msra.mxu0 %v7494
      %7518 = vmatprep.subr.bf16.mxu0 %v7497
      %7519 = vmatpush1.bf16.msra.mxu0 %v7496
      %7520 = vmatprep.subr.bf16.mxu0 0
      %7521 = vmatpush1.bf16.msra.mxu0 0
      %7522 = vmatprep.subr.bf16.mxu0 0
      %7523 = vmatpush1.bf16.msra.mxu0 0
      %7524 = vmatprep.subr.bf16.mxu0 0
      %7525 = vmatpush1.bf16.msra.mxu0 0
      %7526 = vmatprep.subr.bf16.mxu0 0
      %7527 = vmatpush1.bf16.msra.mxu0 0
      %7528 = vmatprep.subr.bf16.mxu0 0
      %7529 = vmatpush1.bf16.msra.mxu0 0
      %7530 = vmatprep.subr.bf16.mxu0 0
      %7531 = vmatpush1.bf16.msra.mxu0 0
      %7532 = vmatprep.subr.bf16.mxu0 0
      %7533 = vmatpush1.bf16.msra.mxu0 0
      %7534 = vmatprep.subr.bf16.mxu0 0
      %7535 = vmatpush1.bf16.msra.mxu0 0
      %7536 = vmatprep.subr.bf16.mxu0 0
      %7537 = vmatpush1.bf16.msra.mxu0 0
      %7538 = vmatprep.subr.bf16.mxu0 0
      %7539 = vmatpush1.bf16.msra.mxu0 0
      %7540 = vmatprep.subr.bf16.mxu0 0
      %7541 = vmatpush1.bf16.msra.mxu0 0
      %7542 = vmatprep.subr.bf16.mxu0 0
      %7543 = vmatpush1.bf16.msra.mxu0 0
      %7544 = vmatprep.mubr.bf16.mxu0 0
      %7545 = vmatmul.mubr.bf16.gmra.mrb[0].mxu0 %v7507
      %v7546 = vpop.f32.mrb[0].mxu0
      %v7547 = vadd.f32 0.0, %v7546
      %v7548 = vpop.f32.mrb[0].mxu0
      %v7549 = vadd.f32 0.0, %v7548
      %v7550 = vpop.f32.mrb[0].mxu0
      %v7551 = vadd.f32 0.0, %v7550
      %v7552 = vpop.f32.mrb[0].mxu0
      %v7553 = vadd.f32 0.0, %v7552
      %7554 = vmatprep.mubr.bf16.mxu0 0
      %7555 = vmatmul.mubr.bf16.gmra.mrb[0].mxu0 %v7510
      %v7556 = vpop.f32.mrb[0].mxu0
      %v7557 = vadd.f32 0.0, %v7556
      %v7558 = vpop.f32.mrb[0].mxu0
      %v7559 = vadd.f32 0.0, %v7558
      %v7560 = vpop.f32.mrb[0].mxu0
      %v7561 = vadd.f32 0.0, %v7560
      %v7562 = vpop.f32.mrb[0].mxu0
      %v7563 = vadd.f32 0.0, %v7562
      %7564 = vdwg.mxu0
      %v7565 = vadd.f32 %v7430, %v7547
      %v7566 = vadd.f32 %v7431, %v7549
      %v7567 = vadd.f32 %v7432, %v7551
      %v7568 = vadd.f32 %v7433, %v7553
      %v7569 = vadd.f32 %v7434, %v7557
      %v7570 = vadd.f32 %v7435, %v7559
      %v7571 = vadd.f32 %v7436, %v7561
      %v7572 = vadd.f32 %v7437, %v7563
      %v7573 = vld [vmem:[%s5 + $0xc] sm:$0xf]
      %v7574 = vld [vmem:[%s5 + $0x20] sm:$0xf]
      %v7575 = vld [vmem:[%s5 + $0x34] sm:$0xf]
      %v7576 = vld [vmem:[%s5 + $0x48] sm:$0xf]
      %v7581 = vunpack.c.l.b16 %v7573
      %v7582 = vunpack.c.l.b16 %v7574
      %v7583 = vunpack.c.l.b16 %v7575
      %v7584 = vunpack.c.l.b16 %v7576
      %v7585 = vpack.c.b16 %v7582, %v7581
      %v7586 = vpack.c.b16 %v7584, %v7583
      %7587 = vrot.lane.b32.xlu0 %v7438, 97
      %v7588 = vpop.permute.xlu0 %7587
      %7589 = vrot.lane.b32.xlu0 %v7439, 97
      %v7590 = vpop.permute.xlu0 %7589
      %7591 = vrot.lane.b32.xlu0 %v7440, 97
      %v7592 = vpop.permute.xlu0 %7591
      %7593 = vrot.lane.b32.xlu0 %v7441, 97
      %v7594 = vpop.permute.xlu0 %7593
      %7595 = vrot.lane.b32.xlu0 %v7442, 97
      %v7596 = vpop.permute.xlu0 %7595
      %7597 = vrot.lane.b32.xlu0 %v7443, 97
      %v7598 = vpop.permute.xlu0 %7597
      %7599 = vrot.lane.b32.xlu0 %v7444, 97
      %v7600 = vpop.permute.xlu0 %7599
      %7601 = vrot.lane.b32.xlu0 %v7445, 97
      %v7602 = vpop.permute.xlu0 %7601
      %7603 = vrot.lane.b32.xlu0 %v7446, 97
      %v7604 = vpop.permute.xlu0 %7603
      %7605 = vrot.lane.b32.xlu0 %v7447, 97
      %v7606 = vpop.permute.xlu0 %7605
      %7607 = vrot.lane.b32.xlu0 %v7448, 97
      %v7608 = vpop.permute.xlu0 %7607
      %7609 = vrot.lane.b32.xlu0 %v7449, 97
      %v7610 = vpop.permute.xlu0 %7609
      %v7611 = vsel %vm2743, %v7588, %v7590
      %v7612 = vsel %vm2743, %v7590, %v7592
      %v7613 = vsel %vm2743, %v7594, %v7596
      %v7614 = vsel %vm2743, %v7596, %v7598
      %v7615 = vsel %vm2743, %v7600, %v7602
      %v7616 = vsel %vm2743, %v7602, %v7604
      %v7617 = vsel %vm2743, %v7606, %v7608
      %v7618 = vsel %vm2743, %v7608, %v7610
      %v7628 = vsel %vm408, %v7585, 0
      %v7631 = vsel %vm408, %v7586, 0
      %7633 = vmatprep.subr.bf16.mxu0 %v7612
      %7634 = vmatpush1.bf16.msra.mxu0 %v7611
      %7635 = vmatprep.subr.bf16.mxu0 %v7614
      %7636 = vmatpush1.bf16.msra.mxu0 %v7613
      %7637 = vmatprep.subr.bf16.mxu0 %v7616
      %7638 = vmatpush1.bf16.msra.mxu0 %v7615
      %7639 = vmatprep.subr.bf16.mxu0 %v7618
      %7640 = vmatpush1.bf16.msra.mxu0 %v7617
      %7641 = vmatprep.subr.bf16.mxu0 0
      %7642 = vmatpush1.bf16.msra.mxu0 0
      %7643 = vmatprep.subr.bf16.mxu0 0
      %7644 = vmatpush1.bf16.msra.mxu0 0
      %7645 = vmatprep.subr.bf16.mxu0 0
      %7646 = vmatpush1.bf16.msra.mxu0 0
      %7647 = vmatprep.subr.bf16.mxu0 0
      %7648 = vmatpush1.bf16.msra.mxu0 0
      %7649 = vmatprep.subr.bf16.mxu0 0
      %7650 = vmatpush1.bf16.msra.mxu0 0
      %7651 = vmatprep.subr.bf16.mxu0 0
      %7652 = vmatpush1.bf16.msra.mxu0 0
      %7653 = vmatprep.subr.bf16.mxu0 0
      %7654 = vmatpush1.bf16.msra.mxu0 0
      %7655 = vmatprep.subr.bf16.mxu0 0
      %7656 = vmatpush1.bf16.msra.mxu0 0
      %7657 = vmatprep.subr.bf16.mxu0 0
      %7658 = vmatpush1.bf16.msra.mxu0 0
      %7659 = vmatprep.subr.bf16.mxu0 0
      %7660 = vmatpush1.bf16.msra.mxu0 0
      %7661 = vmatprep.subr.bf16.mxu0 0
      %7662 = vmatpush1.bf16.msra.mxu0 0
      %7663 = vmatprep.subr.bf16.mxu0 0
      %7664 = vmatpush1.bf16.msra.mxu0 0
      %7665 = vmatprep.mubr.bf16.mxu0 0
      %7666 = vmatmul.mubr.bf16.gmra.mrb[0].mxu0 %v7628
      %v7667 = vpop.f32.mrb[0].mxu0
      %v7668 = vadd.f32 0.0, %v7667
      %v7669 = vpop.f32.mrb[0].mxu0
      %v7670 = vadd.f32 0.0, %v7669
      %v7671 = vpop.f32.mrb[0].mxu0
      %v7672 = vadd.f32 0.0, %v7671
      %v7673 = vpop.f32.mrb[0].mxu0
      %v7674 = vadd.f32 0.0, %v7673
      %7675 = vmatprep.mubr.bf16.mxu0 0
      %7676 = vmatmul.mubr.bf16.gmra.mrb[0].mxu0 %v7631
      %v7677 = vpop.f32.mrb[0].mxu0
      %v7678 = vadd.f32 0.0, %v7677
      %v7679 = vpop.f32.mrb[0].mxu0
      %v7680 = vadd.f32 0.0, %v7679
      %v7681 = vpop.f32.mrb[0].mxu0
      %v7682 = vadd.f32 0.0, %v7681
      %v7683 = vpop.f32.mrb[0].mxu0
      %v7684 = vadd.f32 0.0, %v7683
      %7685 = vdwg.mxu0
      %v7686 = vadd.f32 %v7565, %v7668
      %v7687 = vadd.f32 %v7566, %v7670
      %v7688 = vadd.f32 %v7567, %v7672
      %v7689 = vadd.f32 %v7568, %v7674
      %v7690 = vadd.f32 %v7569, %v7678
      %v7691 = vadd.f32 %v7570, %v7680
      %v7692 = vadd.f32 %v7571, %v7682
      %v7693 = vadd.f32 %v7572, %v7684
      %7694 = vrot.lane.b32.xlu0 %v7585, 64
      %v7695 = vpop.permute.xlu0 %7694
      %7696 = vrot.lane.b32.xlu0 %v7586, 64
      %v7697 = vpop.permute.xlu0 %7696
      %7698 = vrot.lane.b32.xlu0 %v7438, 96
      %v7699 = vpop.permute.xlu0 %7698
      %7700 = vrot.lane.b32.xlu0 %v7439, 96
      %v7701 = vpop.permute.xlu0 %7700
      %7702 = vrot.lane.b32.xlu0 %v7440, 96
      %v7703 = vpop.permute.xlu0 %7702
      %7704 = vrot.lane.b32.xlu0 %v7441, 96
      %v7705 = vpop.permute.xlu0 %7704
      %7706 = vrot.lane.b32.xlu0 %v7442, 96
      %v7707 = vpop.permute.xlu0 %7706
      %7708 = vrot.lane.b32.xlu0 %v7443, 96
      %v7709 = vpop.permute.xlu0 %7708
      %7710 = vrot.lane.b32.xlu0 %v7444, 96
      %v7711 = vpop.permute.xlu0 %7710
      %7712 = vrot.lane.b32.xlu0 %v7445, 96
      %v7713 = vpop.permute.xlu0 %7712
      %7714 = vrot.lane.b32.xlu0 %v7446, 96
      %v7715 = vpop.permute.xlu0 %7714
      %7716 = vrot.lane.b32.xlu0 %v7447, 96
      %v7717 = vpop.permute.xlu0 %7716
      %7718 = vrot.lane.b32.xlu0 %v7448, 96
      %v7719 = vpop.permute.xlu0 %7718
      %7720 = vrot.lane.b32.xlu0 %v7449, 96
      %v7721 = vpop.permute.xlu0 %7720
      %v7722 = vsel %vm2982, %v7699, %v7701
      %v7723 = vsel %vm2982, %v7701, %v7703
      %v7724 = vsel %vm2982, %v7705, %v7707
      %v7725 = vsel %vm2982, %v7707, %v7709
      %v7726 = vsel %vm2982, %v7711, %v7713
      %v7727 = vsel %vm2982, %v7713, %v7715
      %v7728 = vsel %vm2982, %v7717, %v7719
      %v7729 = vsel %vm2982, %v7719, %v7721
      %v7739 = vsel %vm408, %v7695, 0
      %v7742 = vsel %vm408, %v7697, 0
      %7744 = vmatprep.subr.bf16.mxu0 %v7723
      %7745 = vmatpush1.bf16.msra.mxu0 %v7722
      %7746 = vmatprep.subr.bf16.mxu0 %v7725
      %7747 = vmatpush1.bf16.msra.mxu0 %v7724
      %7748 = vmatprep.subr.bf16.mxu0 %v7727
      %7749 = vmatpush1.bf16.msra.mxu0 %v7726
      %7750 = vmatprep.subr.bf16.mxu0 %v7729
      %7751 = vmatpush1.bf16.msra.mxu0 %v7728
      %7752 = vmatprep.subr.bf16.mxu0 0
      %7753 = vmatpush1.bf16.msra.mxu0 0
      %7754 = vmatprep.subr.bf16.mxu0 0
      %7755 = vmatpush1.bf16.msra.mxu0 0
      %7756 = vmatprep.subr.bf16.mxu0 0
      %7757 = vmatpush1.bf16.msra.mxu0 0
      %7758 = vmatprep.subr.bf16.mxu0 0
      %7759 = vmatpush1.bf16.msra.mxu0 0
      %7760 = vmatprep.subr.bf16.mxu0 0
      %7761 = vmatpush1.bf16.msra.mxu0 0
      %7762 = vmatprep.subr.bf16.mxu0 0
      %7763 = vmatpush1.bf16.msra.mxu0 0
      %7764 = vmatprep.subr.bf16.mxu0 0
      %7765 = vmatpush1.bf16.msra.mxu0 0
      %7766 = vmatprep.subr.bf16.mxu0 0
      %7767 = vmatpush1.bf16.msra.mxu0 0
      %7768 = vmatprep.subr.bf16.mxu0 0
      %7769 = vmatpush1.bf16.msra.mxu0 0
      %7770 = vmatprep.subr.bf16.mxu0 0
      %7771 = vmatpush1.bf16.msra.mxu0 0
      %7772 = vmatprep.subr.bf16.mxu0 0
      %7773 = vmatpush1.bf16.msra.mxu0 0
      %7774 = vmatprep.subr.bf16.mxu0 0
      %7775 = vmatpush1.bf16.msra.mxu0 0
      %7776 = vmatprep.mubr.bf16.mxu0 0
      %7777 = vmatmul.mubr.bf16.gmra.mrb[0].mxu0 %v7739
      %v7778 = vpop.f32.mrb[0].mxu0
      %v7779 = vadd.f32 0.0, %v7778
      %v7780 = vpop.f32.mrb[0].mxu0
      %v7781 = vadd.f32 0.0, %v7780
      %v7782 = vpop.f32.mrb[0].mxu0
      %v7783 = vadd.f32 0.0, %v7782
      %v7784 = vpop.f32.mrb[0].mxu0
      %v7785 = vadd.f32 0.0, %v7784
      %7786 = vmatprep.mubr.bf16.mxu0 0
      %7787 = vmatmul.mubr.bf16.gmra.mrb[0].mxu0 %v7742
      %v7788 = vpop.f32.mrb[0].mxu0
      %v7789 = vadd.f32 0.0, %v7788
      %v7790 = vpop.f32.mrb[0].mxu0
      %v7791 = vadd.f32 0.0, %v7790
      %v7792 = vpop.f32.mrb[0].mxu0
      %v7793 = vadd.f32 0.0, %v7792
      %v7794 = vpop.f32.mrb[0].mxu0
      %v7795 = vadd.f32 0.0, %v7794
      %7796 = vdwg.mxu0
      %v7797 = vadd.f32 %v7686, %v7779
      %v7798 = vadd.f32 %v7687, %v7781
      %v7799 = vadd.f32 %v7688, %v7783
      %v7800 = vadd.f32 %v7689, %v7785
      %v7801 = vadd.f32 %v7690, %v7789
      %v7802 = vadd.f32 %v7691, %v7791
      %v7803 = vadd.f32 %v7692, %v7793
      %v7804 = vadd.f32 %v7693, %v7795
      %v7805 = vld [vmem:[%s5 + $0x10] sm:$0xf]
      %v7806 = vld [vmem:[%s5 + $0x24] sm:$0xf]
      %v7807 = vld [vmem:[%s5 + $0x38] sm:$0xf]
      %v7808 = vld [vmem:[%s5 + $0x4c] sm:$0xf]
      %v7813 = vunpack.c.l.b16 %v7805
      %v7814 = vunpack.c.l.b16 %v7806
      %v7815 = vunpack.c.l.b16 %v7807
      %v7816 = vunpack.c.l.b16 %v7808
      %v7817 = vpack.c.b16 %v7814, %v7813
      %v7818 = vpack.c.b16 %v7816, %v7815
      %7819 = vrot.lane.b32.xlu0 %v7438, 95
      %v7820 = vpop.permute.xlu0 %7819
      %7821 = vrot.lane.b32.xlu0 %v7439, 95
      %v7822 = vpop.permute.xlu0 %7821
      %7823 = vrot.lane.b32.xlu0 %v7440, 95
      %v7824 = vpop.permute.xlu0 %7823
      %7825 = vrot.lane.b32.xlu0 %v7441, 95
      %v7826 = vpop.permute.xlu0 %7825
      %7827 = vrot.lane.b32.xlu0 %v7442, 95
      %v7828 = vpop.permute.xlu0 %7827
      %7829 = vrot.lane.b32.xlu0 %v7443, 95
      %v7830 = vpop.permute.xlu0 %7829
      %7831 = vrot.lane.b32.xlu0 %v7444, 95
      %v7832 = vpop.permute.xlu0 %7831
      %7833 = vrot.lane.b32.xlu0 %v7445, 95
      %v7834 = vpop.permute.xlu0 %7833
      %7835 = vrot.lane.b32.xlu0 %v7446, 95
      %v7836 = vpop.permute.xlu0 %7835
      %7837 = vrot.lane.b32.xlu0 %v7447, 95
      %v7838 = vpop.permute.xlu0 %7837
      %7839 = vrot.lane.b32.xlu0 %v7448, 95
      %v7840 = vpop.permute.xlu0 %7839
      %7841 = vrot.lane.b32.xlu0 %v7449, 95
      %v7842 = vpop.permute.xlu0 %7841
      %v7843 = vsel %vm3241, %v7820, %v7822
      %v7844 = vsel %vm3241, %v7822, %v7824
      %v7845 = vsel %vm3241, %v7826, %v7828
      %v7846 = vsel %vm3241, %v7828, %v7830
      %v7847 = vsel %vm3241, %v7832, %v7834
      %v7848 = vsel %vm3241, %v7834, %v7836
      %v7849 = vsel %vm3241, %v7838, %v7840
      %v7850 = vsel %vm3241, %v7840, %v7842
      %v7860 = vsel %vm408, %v7817, 0
      %v7863 = vsel %vm408, %v7818, 0
      %7865 = vmatprep.subr.bf16.mxu0 %v7844
      %7866 = vmatpush1.bf16.msra.mxu0 %v7843
      %7867 = vmatprep.subr.bf16.mxu0 %v7846
      %7868 = vmatpush1.bf16.msra.mxu0 %v7845
      %7869 = vmatprep.subr.bf16.mxu0 %v7848
      %7870 = vmatpush1.bf16.msra.mxu0 %v7847
      %7871 = vmatprep.subr.bf16.mxu0 %v7850
      %7872 = vmatpush1.bf16.msra.mxu0 %v7849
      %7873 = vmatprep.subr.bf16.mxu0 0
      %7874 = vmatpush1.bf16.msra.mxu0 0
      %7875 = vmatprep.subr.bf16.mxu0 0
      %7876 = vmatpush1.bf16.msra.mxu0 0
      %7877 = vmatprep.subr.bf16.mxu0 0
      %7878 = vmatpush1.bf16.msra.mxu0 0
      %7879 = vmatprep.subr.bf16.mxu0 0
      %7880 = vmatpush1.bf16.msra.mxu0 0
      %7881 = vmatprep.subr.bf16.mxu0 0
      %7882 = vmatpush1.bf16.msra.mxu0 0
      %7883 = vmatprep.subr.bf16.mxu0 0
      %7884 = vmatpush1.bf16.msra.mxu0 0
      %7885 = vmatprep.subr.bf16.mxu0 0
      %7886 = vmatpush1.bf16.msra.mxu0 0
      %7887 = vmatprep.subr.bf16.mxu0 0
      %7888 = vmatpush1.bf16.msra.mxu0 0
      %7889 = vmatprep.subr.bf16.mxu0 0
      %7890 = vmatpush1.bf16.msra.mxu0 0
      %7891 = vmatprep.subr.bf16.mxu0 0
      %7892 = vmatpush1.bf16.msra.mxu0 0
      %7893 = vmatprep.subr.bf16.mxu0 0
      %7894 = vmatpush1.bf16.msra.mxu0 0
      %7895 = vmatprep.subr.bf16.mxu0 0
      %7896 = vmatpush1.bf16.msra.mxu0 0
      %7897 = vmatprep.mubr.bf16.mxu0 0
      %7898 = vmatmul.mubr.bf16.gmra.mrb[0].mxu0 %v7860
      %v7899 = vpop.f32.mrb[0].mxu0
      %v7900 = vadd.f32 0.0, %v7899
      %v7901 = vpop.f32.mrb[0].mxu0
      %v7902 = vadd.f32 0.0, %v7901
      %v7903 = vpop.f32.mrb[0].mxu0
      %v7904 = vadd.f32 0.0, %v7903
      %v7905 = vpop.f32.mrb[0].mxu0
      %v7906 = vadd.f32 0.0, %v7905
      %7907 = vmatprep.mubr.bf16.mxu0 0
      %7908 = vmatmul.mubr.bf16.gmra.mrb[0].mxu0 %v7863
      %v7909 = vpop.f32.mrb[0].mxu0
      %v7910 = vadd.f32 0.0, %v7909
      %v7911 = vpop.f32.mrb[0].mxu0
      %v7912 = vadd.f32 0.0, %v7911
      %v7913 = vpop.f32.mrb[0].mxu0
      %v7914 = vadd.f32 0.0, %v7913
      %v7915 = vpop.f32.mrb[0].mxu0
      %v7916 = vadd.f32 0.0, %v7915
      %7917 = vdwg.mxu0
      %v7918 = vadd.f32 %v7797, %v7900
      %v7919 = vadd.f32 %v7798, %v7902
      %v7920 = vadd.f32 %v7799, %v7904
      %v7921 = vadd.f32 %v7800, %v7906
      %v7922 = vadd.f32 %v7801, %v7910
      %v7923 = vadd.f32 %v7802, %v7912
      %v7924 = vadd.f32 %v7803, %v7914
      %v7925 = vadd.f32 %v7804, %v7916
      %v7926 = vld [vmem:[%s6] sm:$0xff]
      %v7927 = vld [vmem:[%s6 + $0x8] sm:$0xff]
      %v7928 = vld [vmem:[%s6 + $0x10] sm:$0xff]
      %v7929 = vld [vmem:[%s6 + $0x18] sm:$0xff]
      %7931 = vset.pattern.permute.xlu0 0
      %7932 = vperm.xlu0 %7931, %v7926
      %v7933 = vpop.permute.xlu0 %7932
      %7936 = vset.pattern.permute.xlu0 0
      %7937 = vperm.xlu0 %7936, %v7927
      %v7938 = vpop.permute.xlu0 %7937
      %7941 = vset.pattern.permute.xlu0 0
      %7942 = vperm.xlu0 %7941, %v7928
      %v7943 = vpop.permute.xlu0 %7942
      %7946 = vset.pattern.permute.xlu0 0
      %7947 = vperm.xlu0 %7946, %v7929
      %v7948 = vpop.permute.xlu0 %7947
      %v7950 = vadd.f32 %v7918, %v7933
      %v7951 = vadd.f32 %v7919, %v7933
      %v7952 = vadd.f32 %v7920, %v7938
      %v7953 = vadd.f32 %v7921, %v7938
      %v7954 = vadd.f32 %v7922, %v7943
      %v7955 = vadd.f32 %v7923, %v7943
      %v7956 = vadd.f32 %v7924, %v7948
      %v7957 = vadd.f32 %v7925, %v7948
      %v7958 = vmax.f32 %v7950, 0.0
      %v7959 = vmax.f32 %v7951, 0.0
      %v7960 = vmax.f32 %v7952, 0.0
      %v7961 = vmax.f32 %v7953, 0.0
      %v7962 = vmax.f32 %v7954, 0.0
      %v7963 = vmax.f32 %v7955, 0.0
      %v7964 = vmax.f32 %v7956, 0.0
      %v7965 = vmax.f32 %v7957, 0.0
      %v7966 = vld [vmem:[%s9 + $0x3] sm:$0x3]
      %v7968 = vlaneseq
      %v7969 = vshrl.u32 %v7968, 7
      %v7970 = vsub.s32 0, %v7969
      %v7971 = vrot.slane %v7966, %v7970
      %v7972 = vlaneseq
      %v7973 = vshrl.u32 %v7972, 7
      %v7974 = vsub.s32 1, %v7973
      %v7975 = vrot.slane %v7966, %v7974
      %v7978 = vmul.f32 %v7958, %v7971
      %v7979 = vmul.f32 %v7959, %v7975
      %v7980 = vmul.f32 %v7960, %v7971
      %v7981 = vmul.f32 %v7961, %v7975
      %v7982 = vmul.f32 %v7962, %v7971
      %v7983 = vmul.f32 %v7963, %v7975
      %v7984 = vmul.f32 %v7964, %v7971
      %v7985 = vmul.f32 %v7965, %v7975
      %v7986 = vpack.c.bf16 %v7980, %v7978
      %v7987 = vpack.c.bf16 %v7981, %v7979
      %v7988 = vpack.c.bf16 %v7984, %v7982
      %v7989 = vpack.c.bf16 %v7985, %v7983
      %7990 = vst [vmem:[#allocation5 + $0x20] sm:$0xff] %v7986
      %7991 = vst [vmem:[#allocation5 + $0x28] sm:$0xff] %v7987
      %7992 = vst [vmem:[#allocation5 + $0x58] sm:$0xff] %v7988
      %7993 = vst [vmem:[#allocation5 + $0x60] sm:$0xff] %v7989
      %v7994 = vld [vmem:[%s7] sm:$0xf]
      %v7995 = vld [vmem:[%s7 + $0xc] sm:$0xf]
      %v7996 = vld [vmem:[#allocation5] sm:$0xff]
      %v7997 = vld [vmem:[#allocation5 + $0x8] sm:$0xff]
      %v7998 = vld [vmem:[#allocation5 + $0x10] sm:$0xff]
      %v7999 = vld [vmem:[#allocation5 + $0x18] sm:$0xff]
      %v8000 = vld [vmem:[#allocation5 + $0x38] sm:$0xff]
      %v8001 = vld [vmem:[#allocation5 + $0x40] sm:$0xff]
      %v8002 = vld [vmem:[#allocation5 + $0x48] sm:$0xff]
      %v8003 = vld [vmem:[#allocation5 + $0x50] sm:$0xff]
      %v8006 = vunpack.c.l.b16 %v7994
      %v8007 = vunpack.c.l.b16 %v7995
      %v8008 = vpack.c.b16 %v8007, %v8006
      %8009 = vrot.lane.b32.xlu0 %v8008, 96
      %v8010 = vpop.permute.xlu0 %8009
      %8019 = vrot.lane.b32.xlu0 %v7996, 32
      %v8020 = vpop.permute.xlu0 %8019
      %8021 = vrot.lane.b32.xlu0 %v7997, 32
      %v8022 = vpop.permute.xlu0 %8021
      %8023 = vrot.lane.b32.xlu0 %v7998, 32
      %v8024 = vpop.permute.xlu0 %8023
      %8025 = vrot.lane.b32.xlu0 %v7999, 32
      %v8026 = vpop.permute.xlu0 %8025
      %8027 = vrot.lane.b32.xlu0 %v8000, 32
      %v8028 = vpop.permute.xlu0 %8027
      %8029 = vrot.lane.b32.xlu0 %v8001, 32
      %v8030 = vpop.permute.xlu0 %8029
      %8031 = vrot.lane.b32.xlu0 %v8002, 32
      %v8032 = vpop.permute.xlu0 %8031
      %8033 = vrot.lane.b32.xlu0 %v8003, 32
      %v8034 = vpop.permute.xlu0 %8033
      %v8035 = vsel %vm1330, %v8020, %v8022
      %v8036 = vsel %vm1330, %v8022, %v8024
      %v8037 = vsel %vm1330, %v8024, %v8026
      %v8038 = vsel %vm1330, %v8028, %v8030
      %v8039 = vsel %vm1330, %v8030, %v8032
      %v8040 = vsel %vm1330, %v8032, %v8034
      %v8048 = vsel %vm463, %v8010, 0
      %8050 = vmatprep.subr.bf16.mxu0 %v8036
      %8051 = vmatpush1.bf16.msra.mxu0 %v8035
      %8052 = vmatprep.subr.bf16.mxu0 %v8039
      %8053 = vmatpush1.bf16.msra.mxu0 %v8038
      %8054 = vmatprep.subr.bf16.mxu0 0
      %8055 = vmatpush1.bf16.msra.mxu0 0
      %8056 = vmatprep.subr.bf16.mxu0 0
      %8057 = vmatpush1.bf16.msra.mxu0 0
      %8058 = vmatprep.subr.bf16.mxu0 0
      %8059 = vmatpush1.bf16.msra.mxu0 0
      %8060 = vmatprep.subr.bf16.mxu0 0
      %8061 = vmatpush1.bf16.msra.mxu0 0
      %8062 = vmatprep.subr.bf16.mxu0 0
      %8063 = vmatpush1.bf16.msra.mxu0 0
      %8064 = vmatprep.subr.bf16.mxu0 0
      %8065 = vmatpush1.bf16.msra.mxu0 0
      %8066 = vmatprep.subr.bf16.mxu0 0
      %8067 = vmatpush1.bf16.msra.mxu0 0
      %8068 = vmatprep.subr.bf16.mxu0 0
      %8069 = vmatpush1.bf16.msra.mxu0 0
      %8070 = vmatprep.subr.bf16.mxu0 0
      %8071 = vmatpush1.bf16.msra.mxu0 0
      %8072 = vmatprep.subr.bf16.mxu0 0
      %8073 = vmatpush1.bf16.msra.mxu0 0
      %8074 = vmatprep.subr.bf16.mxu0 0
      %8075 = vmatpush1.bf16.msra.mxu0 0
      %8076 = vmatprep.subr.bf16.mxu0 0
      %8077 = vmatpush1.bf16.msra.mxu0 0
      %8078 = vmatprep.subr.bf16.mxu0 0
      %8079 = vmatpush1.bf16.msra.mxu0 0
      %8080 = vmatprep.subr.bf16.mxu0 0
      %8081 = vmatpush1.bf16.msra.mxu0 0
      %8082 = vmatprep.mubr.bf16.mxu0 0
      %8083 = vmatmul.mubr.bf16.gmra.mrb[0].mxu0 %v8048
      %v8084 = vpop.f32.mrb[0].mxu0
      %v8085 = vadd.f32 0.0, %v8084
      %v8086 = vpop.f32.mrb[0].mxu0
      %v8087 = vadd.f32 0.0, %v8086
      %v8088 = vpop.f32.mrb[0].mxu0
      %v8089 = vadd.f32 0.0, %v8088
      %v8090 = vpop.f32.mrb[0].mxu0
      %v8091 = vadd.f32 0.0, %v8090
      %8092 = vdwg.mxu0
      %8093 = vmatprep.subr.bf16.mxu0 0
      %8094 = vmatpush1.bf16.msra.mxu0 %v8037
      %8095 = vmatprep.subr.bf16.mxu0 0
      %8096 = vmatpush1.bf16.msra.mxu0 %v8040
      %8097 = vmatprep.subr.bf16.mxu0 0
      %8098 = vmatpush1.bf16.msra.mxu0 0
      %8099 = vmatprep.subr.bf16.mxu0 0
      %8100 = vmatpush1.bf16.msra.mxu0 0
      %8101 = vmatprep.subr.bf16.mxu0 0
      %8102 = vmatpush1.bf16.msra.mxu0 0
      %8103 = vmatprep.subr.bf16.mxu0 0
      %8104 = vmatpush1.bf16.msra.mxu0 0
      %8105 = vmatprep.subr.bf16.mxu0 0
      %8106 = vmatpush1.bf16.msra.mxu0 0
      %8107 = vmatprep.subr.bf16.mxu0 0
      %8108 = vmatpush1.bf16.msra.mxu0 0
      %8109 = vmatprep.subr.bf16.mxu0 0
      %8110 = vmatpush1.bf16.msra.mxu0 0
      %8111 = vmatprep.subr.bf16.mxu0 0
      %8112 = vmatpush1.bf16.msra.mxu0 0
      %8113 = vmatprep.subr.bf16.mxu0 0
      %8114 = vmatpush1.bf16.msra.mxu0 0
      %8115 = vmatprep.subr.bf16.mxu0 0
      %8116 = vmatpush1.bf16.msra.mxu0 0
      %8117 = vmatprep.subr.bf16.mxu0 0
      %8118 = vmatpush1.bf16.msra.mxu0 0
      %8119 = vmatprep.subr.bf16.mxu0 0
      %8120 = vmatpush1.bf16.msra.mxu0 0
      %8121 = vmatprep.subr.bf16.mxu0 0
      %8122 = vmatpush1.bf16.msra.mxu0 0
      %8123 = vmatprep.subr.bf16.mxu0 0
      %8124 = vmatpush1.bf16.msra.mxu0 0
      %8125 = vmatprep.mubr.bf16.mxu0 0
      %8126 = vmatmul.mubr.bf16.gmra.mrb[0].mxu0 %v8048
      %v8127 = vpop.f32.mrb[0].mxu0
      %v8128 = vadd.f32 0.0, %v8127
      %v8129 = vpop.f32.mrb[0].mxu0
      %v8130 = vpop.f32.mrb[0].mxu0
      %v8131 = vadd.f32 0.0, %v8130
      %v8132 = vpop.f32.mrb[0].mxu0
      %8133 = vdwg.mxu0
      %8134 = vrot.lane.b32.xlu0 %v7996, 33
      %v8135 = vpop.permute.xlu0 %8134
      %8136 = vrot.lane.b32.xlu0 %v7997, 33
      %v8137 = vpop.permute.xlu0 %8136
      %8138 = vrot.lane.b32.xlu0 %v7998, 33
      %v8139 = vpop.permute.xlu0 %8138
      %8140 = vrot.lane.b32.xlu0 %v7999, 33
      %v8141 = vpop.permute.xlu0 %8140
      %8142 = vrot.lane.b32.xlu0 %v8000, 33
      %v8143 = vpop.permute.xlu0 %8142
      %8144 = vrot.lane.b32.xlu0 %v8001, 33
      %v8145 = vpop.permute.xlu0 %8144
      %8146 = vrot.lane.b32.xlu0 %v8002, 33
      %v8147 = vpop.permute.xlu0 %8146
      %8148 = vrot.lane.b32.xlu0 %v8003, 33
      %v8149 = vpop.permute.xlu0 %8148
      %v8150 = vsel %vm1537, %v8135, %v8137
      %v8151 = vsel %vm1537, %v8137, %v8139
      %v8152 = vsel %vm1537, %v8139, %v8141
      %v8153 = vsel %vm1537, %v8143, %v8145
      %v8154 = vsel %vm1537, %v8145, %v8147
      %v8155 = vsel %vm1537, %v8147, %v8149
      %v8163 = vsel %vm463, %v8008, 0
      %8165 = vmatprep.subr.bf16.mxu0 %v8151
      %8166 = vmatpush1.bf16.msra.mxu0 %v8150
      %8167 = vmatprep.subr.bf16.mxu0 %v8154
      %8168 = vmatpush1.bf16.msra.mxu0 %v8153
      %8169 = vmatprep.subr.bf16.mxu0 0
      %8170 = vmatpush1.bf16.msra.mxu0 0
      %8171 = vmatprep.subr.bf16.mxu0 0
      %8172 = vmatpush1.bf16.msra.mxu0 0
      %8173 = vmatprep.subr.bf16.mxu0 0
      %8174 = vmatpush1.bf16.msra.mxu0 0
      %8175 = vmatprep.subr.bf16.mxu0 0
      %8176 = vmatpush1.bf16.msra.mxu0 0
      %8177 = vmatprep.subr.bf16.mxu0 0
      %8178 = vmatpush1.bf16.msra.mxu0 0
      %8179 = vmatprep.subr.bf16.mxu0 0
      %8180 = vmatpush1.bf16.msra.mxu0 0
      %8181 = vmatprep.subr.bf16.mxu0 0
      %8182 = vmatpush1.bf16.msra.mxu0 0
      %8183 = vmatprep.subr.bf16.mxu0 0
      %8184 = vmatpush1.bf16.msra.mxu0 0
      %8185 = vmatprep.subr.bf16.mxu0 0
      %8186 = vmatpush1.bf16.msra.mxu0 0
      %8187 = vmatprep.subr.bf16.mxu0 0
      %8188 = vmatpush1.bf16.msra.mxu0 0
      %8189 = vmatprep.subr.bf16.mxu0 0
      %8190 = vmatpush1.bf16.msra.mxu0 0
      %8191 = vmatprep.subr.bf16.mxu0 0
      %8192 = vmatpush1.bf16.msra.mxu0 0
      %8193 = vmatprep.subr.bf16.mxu0 0
      %8194 = vmatpush1.bf16.msra.mxu0 0
      %8195 = vmatprep.subr.bf16.mxu0 0
      %8196 = vmatpush1.bf16.msra.mxu0 0
      %8197 = vmatprep.mubr.bf16.mxu0 0
      %8198 = vmatmul.mubr.bf16.gmra.mrb[0].mxu0 %v8163
      %v8199 = vpop.f32.mrb[0].mxu0
      %v8200 = vadd.f32 %v8085, %v8199
      %v8201 = vpop.f32.mrb[0].mxu0
      %v8202 = vadd.f32 %v8087, %v8201
      %v8203 = vpop.f32.mrb[0].mxu0
      %v8204 = vadd.f32 %v8089, %v8203
      %v8205 = vpop.f32.mrb[0].mxu0
      %v8206 = vadd.f32 %v8091, %v8205
      %8207 = vdwg.mxu0
      %8208 = vmatprep.subr.bf16.mxu0 0
      %8209 = vmatpush1.bf16.msra.mxu0 %v8152
      %8210 = vmatprep.subr.bf16.mxu0 0
      %8211 = vmatpush1.bf16.msra.mxu0 %v8155
      %8212 = vmatprep.subr.bf16.mxu0 0
      %8213 = vmatpush1.bf16.msra.mxu0 0
      %8214 = vmatprep.subr.bf16.mxu0 0
      %8215 = vmatpush1.bf16.msra.mxu0 0
      %8216 = vmatprep.subr.bf16.mxu0 0
      %8217 = vmatpush1.bf16.msra.mxu0 0
      %8218 = vmatprep.subr.bf16.mxu0 0
      %8219 = vmatpush1.bf16.msra.mxu0 0
      %8220 = vmatprep.subr.bf16.mxu0 0
      %8221 = vmatpush1.bf16.msra.mxu0 0
      %8222 = vmatprep.subr.bf16.mxu0 0
      %8223 = vmatpush1.bf16.msra.mxu0 0
      %8224 = vmatprep.subr.bf16.mxu0 0
      %8225 = vmatpush1.bf16.msra.mxu0 0
      %8226 = vmatprep.subr.bf16.mxu0 0
      %8227 = vmatpush1.bf16.msra.mxu0 0
      %8228 = vmatprep.subr.bf16.mxu0 0
      %8229 = vmatpush1.bf16.msra.mxu0 0
      %8230 = vmatprep.subr.bf16.mxu0 0
      %8231 = vmatpush1.bf16.msra.mxu0 0
      %8232 = vmatprep.subr.bf16.mxu0 0
      %8233 = vmatpush1.bf16.msra.mxu0 0
      %8234 = vmatprep.subr.bf16.mxu0 0
      %8235 = vmatpush1.bf16.msra.mxu0 0
      %8236 = vmatprep.subr.bf16.mxu0 0
      %8237 = vmatpush1.bf16.msra.mxu0 0
      %8238 = vmatprep.subr.bf16.mxu0 0
      %8239 = vmatpush1.bf16.msra.mxu0 0
      %8240 = vmatprep.mubr.bf16.mxu0 0
      %8241 = vmatmul.mubr.bf16.gmra.mrb[0].mxu0 %v8163
      %v8242 = vpop.f32.mrb[0].mxu0
      %v8243 = vadd.f32 %v8128, %v8242
      %v8244 = vpop.f32.mrb[0].mxu0
      %v8245 = vpop.f32.mrb[0].mxu0
      %v8246 = vadd.f32 %v8131, %v8245
      %v8247 = vpop.f32.mrb[0].mxu0
      %8248 = vdwg.mxu0
      %8249 = vrot.lane.b32.xlu0 %v8008, 64
      %v8250 = vpop.permute.xlu0 %8249
      %8251 = vrot.lane.b32.xlu0 %v7996, 31
      %v8252 = vpop.permute.xlu0 %8251
      %8253 = vrot.lane.b32.xlu0 %v7997, 31
      %v8254 = vpop.permute.xlu0 %8253
      %8255 = vrot.lane.b32.xlu0 %v7998, 31
      %v8256 = vpop.permute.xlu0 %8255
      %8257 = vrot.lane.b32.xlu0 %v7999, 31
      %v8258 = vpop.permute.xlu0 %8257
      %8259 = vrot.lane.b32.xlu0 %v8000, 31
      %v8260 = vpop.permute.xlu0 %8259
      %8261 = vrot.lane.b32.xlu0 %v8001, 31
      %v8262 = vpop.permute.xlu0 %8261
      %8263 = vrot.lane.b32.xlu0 %v8002, 31
      %v8264 = vpop.permute.xlu0 %8263
      %8265 = vrot.lane.b32.xlu0 %v8003, 31
      %v8266 = vpop.permute.xlu0 %8265
      %v8267 = vsel %vm1772, %v8252, %v8254
      %v8268 = vsel %vm1772, %v8254, %v8256
      %v8269 = vsel %vm1772, %v8256, %v8258
      %v8270 = vsel %vm1772, %v8260, %v8262
      %v8271 = vsel %vm1772, %v8262, %v8264
      %v8272 = vsel %vm1772, %v8264, %v8266
      %v8280 = vsel %vm463, %v8250, 0
      %8282 = vmatprep.subr.bf16.mxu0 %v8268
      %8283 = vmatpush1.bf16.msra.mxu0 %v8267
      %8284 = vmatprep.subr.bf16.mxu0 %v8271
      %8285 = vmatpush1.bf16.msra.mxu0 %v8270
      %8286 = vmatprep.subr.bf16.mxu0 0
      %8287 = vmatpush1.bf16.msra.mxu0 0
      %8288 = vmatprep.subr.bf16.mxu0 0
      %8289 = vmatpush1.bf16.msra.mxu0 0
      %8290 = vmatprep.subr.bf16.mxu0 0
      %8291 = vmatpush1.bf16.msra.mxu0 0
      %8292 = vmatprep.subr.bf16.mxu0 0
      %8293 = vmatpush1.bf16.msra.mxu0 0
      %8294 = vmatprep.subr.bf16.mxu0 0
      %8295 = vmatpush1.bf16.msra.mxu0 0
      %8296 = vmatprep.subr.bf16.mxu0 0
      %8297 = vmatpush1.bf16.msra.mxu0 0
      %8298 = vmatprep.subr.bf16.mxu0 0
      %8299 = vmatpush1.bf16.msra.mxu0 0
      %8300 = vmatprep.subr.bf16.mxu0 0
      %8301 = vmatpush1.bf16.msra.mxu0 0
      %8302 = vmatprep.subr.bf16.mxu0 0
      %8303 = vmatpush1.bf16.msra.mxu0 0
      %8304 = vmatprep.subr.bf16.mxu0 0
      %8305 = vmatpush1.bf16.msra.mxu0 0
      %8306 = vmatprep.subr.bf16.mxu0 0
      %8307 = vmatpush1.bf16.msra.mxu0 0
      %8308 = vmatprep.subr.bf16.mxu0 0
      %8309 = vmatpush1.bf16.msra.mxu0 0
      %8310 = vmatprep.subr.bf16.mxu0 0
      %8311 = vmatpush1.bf16.msra.mxu0 0
      %8312 = vmatprep.subr.bf16.mxu0 0
      %8313 = vmatpush1.bf16.msra.mxu0 0
      %8314 = vmatprep.mubr.bf16.mxu0 0
      %8315 = vmatmul.mubr.bf16.gmra.mrb[0].mxu0 %v8280
      %v8316 = vpop.f32.mrb[0].mxu0
      %v8317 = vadd.f32 0.0, %v8316
      %v8318 = vpop.f32.mrb[0].mxu0
      %v8319 = vadd.f32 0.0, %v8318
      %v8320 = vpop.f32.mrb[0].mxu0
      %v8321 = vadd.f32 0.0, %v8320
      %v8322 = vpop.f32.mrb[0].mxu0
      %v8323 = vadd.f32 0.0, %v8322
      %8324 = vdwg.mxu0
      %8325 = vmatprep.subr.bf16.mxu0 0
      %8326 = vmatpush1.bf16.msra.mxu0 %v8269
      %8327 = vmatprep.subr.bf16.mxu0 0
      %8328 = vmatpush1.bf16.msra.mxu0 %v8272
      %8329 = vmatprep.subr.bf16.mxu0 0
      %8330 = vmatpush1.bf16.msra.mxu0 0
      %8331 = vmatprep.subr.bf16.mxu0 0
      %8332 = vmatpush1.bf16.msra.mxu0 0
      %8333 = vmatprep.subr.bf16.mxu0 0
      %8334 = vmatpush1.bf16.msra.mxu0 0
      %8335 = vmatprep.subr.bf16.mxu0 0
      %8336 = vmatpush1.bf16.msra.mxu0 0
      %8337 = vmatprep.subr.bf16.mxu0 0
      %8338 = vmatpush1.bf16.msra.mxu0 0
      %8339 = vmatprep.subr.bf16.mxu0 0
      %8340 = vmatpush1.bf16.msra.mxu0 0
      %8341 = vmatprep.subr.bf16.mxu0 0
      %8342 = vmatpush1.bf16.msra.mxu0 0
      %8343 = vmatprep.subr.bf16.mxu0 0
      %8344 = vmatpush1.bf16.msra.mxu0 0
      %8345 = vmatprep.subr.bf16.mxu0 0
      %8346 = vmatpush1.bf16.msra.mxu0 0
      %8347 = vmatprep.subr.bf16.mxu0 0
      %8348 = vmatpush1.bf16.msra.mxu0 0
      %8349 = vmatprep.subr.bf16.mxu0 0
      %8350 = vmatpush1.bf16.msra.mxu0 0
      %8351 = vmatprep.subr.bf16.mxu0 0
      %8352 = vmatpush1.bf16.msra.mxu0 0
      %8353 = vmatprep.subr.bf16.mxu0 0
      %8354 = vmatpush1.bf16.msra.mxu0 0
      %8355 = vmatprep.subr.bf16.mxu0 0
      %8356 = vmatpush1.bf16.msra.mxu0 0
      %8357 = vmatprep.mubr.bf16.mxu0 0
      %8358 = vmatmul.mubr.bf16.gmra.mrb[0].mxu0 %v8280
      %v8359 = vpop.f32.mrb[0].mxu0
      %v8360 = vadd.f32 0.0, %v8359
      %v8361 = vpop.f32.mrb[0].mxu0
      %v8362 = vpop.f32.mrb[0].mxu0
      %v8363 = vadd.f32 0.0, %v8362
      %v8364 = vpop.f32.mrb[0].mxu0
      %8365 = vdwg.mxu0
      %v8366 = vadd.f32 %v8200, %v8317
      %v8367 = vadd.f32 %v8202, %v8319
      %v8368 = vadd.f32 %v8243, %v8360
      %v8369 = vadd.f32 %v8204, %v8321
      %v8370 = vadd.f32 %v8206, %v8323
      %v8371 = vadd.f32 %v8246, %v8363
      %8372 = vrot.lane.b32.xlu0 %v8008, 32
      %v8373 = vpop.permute.xlu0 %8372
      %8374 = vrot.lane.b32.xlu0 %v7996, 1
      %v8375 = vpop.permute.xlu0 %8374
      %8376 = vrot.lane.b32.xlu0 %v7997, 1
      %v8377 = vpop.permute.xlu0 %8376
      %8378 = vrot.lane.b32.xlu0 %v7998, 1
      %v8379 = vpop.permute.xlu0 %8378
      %8380 = vrot.lane.b32.xlu0 %v7999, 1
      %v8381 = vpop.permute.xlu0 %8380
      %8382 = vrot.lane.b32.xlu0 %v8000, 1
      %v8383 = vpop.permute.xlu0 %8382
      %8384 = vrot.lane.b32.xlu0 %v8001, 1
      %v8385 = vpop.permute.xlu0 %8384
      %8386 = vrot.lane.b32.xlu0 %v8002, 1
      %v8387 = vpop.permute.xlu0 %8386
      %8388 = vrot.lane.b32.xlu0 %v8003, 1
      %v8389 = vpop.permute.xlu0 %8388
      %v8390 = vsel %vm2011, %v8375, %v8377
      %v8391 = vsel %vm2011, %v8377, %v8379
      %v8392 = vsel %vm2011, %v8379, %v8381
      %v8393 = vsel %vm2011, %v8383, %v8385
      %v8394 = vsel %vm2011, %v8385, %v8387
      %v8395 = vsel %vm2011, %v8387, %v8389
      %v8403 = vsel %vm463, %v8373, 0
      %8405 = vmatprep.subr.bf16.mxu0 %v8391
      %8406 = vmatpush1.bf16.msra.mxu0 %v8390
      %8407 = vmatprep.subr.bf16.mxu0 %v8394
      %8408 = vmatpush1.bf16.msra.mxu0 %v8393
      %8409 = vmatprep.subr.bf16.mxu0 0
      %8410 = vmatpush1.bf16.msra.mxu0 0
      %8411 = vmatprep.subr.bf16.mxu0 0
      %8412 = vmatpush1.bf16.msra.mxu0 0
      %8413 = vmatprep.subr.bf16.mxu0 0
      %8414 = vmatpush1.bf16.msra.mxu0 0
      %8415 = vmatprep.subr.bf16.mxu0 0
      %8416 = vmatpush1.bf16.msra.mxu0 0
      %8417 = vmatprep.subr.bf16.mxu0 0
      %8418 = vmatpush1.bf16.msra.mxu0 0
      %8419 = vmatprep.subr.bf16.mxu0 0
      %8420 = vmatpush1.bf16.msra.mxu0 0
      %8421 = vmatprep.subr.bf16.mxu0 0
      %8422 = vmatpush1.bf16.msra.mxu0 0
      %8423 = vmatprep.subr.bf16.mxu0 0
      %8424 = vmatpush1.bf16.msra.mxu0 0
      %8425 = vmatprep.subr.bf16.mxu0 0
      %8426 = vmatpush1.bf16.msra.mxu0 0
      %8427 = vmatprep.subr.bf16.mxu0 0
      %8428 = vmatpush1.bf16.msra.mxu0 0
      %8429 = vmatprep.subr.bf16.mxu0 0
      %8430 = vmatpush1.bf16.msra.mxu0 0
      %8431 = vmatprep.subr.bf16.mxu0 0
      %8432 = vmatpush1.bf16.msra.mxu0 0
      %8433 = vmatprep.subr.bf16.mxu0 0
      %8434 = vmatpush1.bf16.msra.mxu0 0
      %8435 = vmatprep.subr.bf16.mxu0 0
      %8436 = vmatpush1.bf16.msra.mxu0 0
      %8437 = vmatprep.mubr.bf16.mxu0 0
      %8438 = vmatmul.mubr.bf16.gmra.mrb[0].mxu0 %v8403
      %v8439 = vpop.f32.mrb[0].mxu0
      %v8440 = vadd.f32 0.0, %v8439
      %v8441 = vpop.f32.mrb[0].mxu0
      %v8442 = vadd.f32 0.0, %v8441
      %v8443 = vpop.f32.mrb[0].mxu0
      %v8444 = vadd.f32 0.0, %v8443
      %v8445 = vpop.f32.mrb[0].mxu0
      %v8446 = vadd.f32 0.0, %v8445
      %8447 = vdwg.mxu0
      %8448 = vmatprep.subr.bf16.mxu0 0
      %8449 = vmatpush1.bf16.msra.mxu0 %v8392
      %8450 = vmatprep.subr.bf16.mxu0 0
      %8451 = vmatpush1.bf16.msra.mxu0 %v8395
      %8452 = vmatprep.subr.bf16.mxu0 0
      %8453 = vmatpush1.bf16.msra.mxu0 0
      %8454 = vmatprep.subr.bf16.mxu0 0
      %8455 = vmatpush1.bf16.msra.mxu0 0
      %8456 = vmatprep.subr.bf16.mxu0 0
      %8457 = vmatpush1.bf16.msra.mxu0 0
      %8458 = vmatprep.subr.bf16.mxu0 0
      %8459 = vmatpush1.bf16.msra.mxu0 0
      %8460 = vmatprep.subr.bf16.mxu0 0
      %8461 = vmatpush1.bf16.msra.mxu0 0
      %8462 = vmatprep.subr.bf16.mxu0 0
      %8463 = vmatpush1.bf16.msra.mxu0 0
      %8464 = vmatprep.subr.bf16.mxu0 0
      %8465 = vmatpush1.bf16.msra.mxu0 0
      %8466 = vmatprep.subr.bf16.mxu0 0
      %8467 = vmatpush1.bf16.msra.mxu0 0
      %8468 = vmatprep.subr.bf16.mxu0 0
      %8469 = vmatpush1.bf16.msra.mxu0 0
      %8470 = vmatprep.subr.bf16.mxu0 0
      %8471 = vmatpush1.bf16.msra.mxu0 0
      %8472 = vmatprep.subr.bf16.mxu0 0
      %8473 = vmatpush1.bf16.msra.mxu0 0
      %8474 = vmatprep.subr.bf16.mxu0 0
      %8475 = vmatpush1.bf16.msra.mxu0 0
      %8476 = vmatprep.subr.bf16.mxu0 0
      %8477 = vmatpush1.bf16.msra.mxu0 0
      %8478 = vmatprep.subr.bf16.mxu0 0
      %8479 = vmatpush1.bf16.msra.mxu0 0
      %8480 = vmatprep.mubr.bf16.mxu0 0
      %8481 = vmatmul.mubr.bf16.gmra.mrb[0].mxu0 %v8403
      %v8482 = vpop.f32.mrb[0].mxu0
      %v8483 = vadd.f32 0.0, %v8482
      %v8484 = vpop.f32.mrb[0].mxu0
      %v8485 = vpop.f32.mrb[0].mxu0
      %v8486 = vadd.f32 0.0, %v8485
      %v8487 = vpop.f32.mrb[0].mxu0
      %8488 = vdwg.mxu0
      %v8489 = vadd.f32 %v8366, %v8440
      %v8490 = vadd.f32 %v8367, %v8442
      %v8491 = vadd.f32 %v8368, %v8483
      %v8492 = vadd.f32 %v8369, %v8444
      %v8493 = vadd.f32 %v8370, %v8446
      %v8494 = vadd.f32 %v8371, %v8486
      %v8495 = vld [vmem:[%s7 + $0x4] sm:$0xf]
      %v8496 = vld [vmem:[%s7 + $0x10] sm:$0xf]
      %v8499 = vunpack.c.l.b16 %v8495
      %v8500 = vunpack.c.l.b16 %v8496
      %v8501 = vpack.c.b16 %v8500, %v8499
      %v8503 = vsel %vm463, %v8501, 0
      %8505 = vmatprep.subr.bf16.mxu0 %v7998
      %8506 = vmatpush1.bf16.msra.mxu0 %v7997
      %8507 = vmatprep.subr.bf16.mxu0 %v8002
      %8508 = vmatpush1.bf16.msra.mxu0 %v8001
      %8509 = vmatprep.subr.bf16.mxu0 0
      %8510 = vmatpush1.bf16.msra.mxu0 0
      %8511 = vmatprep.subr.bf16.mxu0 0
      %8512 = vmatpush1.bf16.msra.mxu0 0
      %8513 = vmatprep.subr.bf16.mxu0 0
      %8514 = vmatpush1.bf16.msra.mxu0 0
      %8515 = vmatprep.subr.bf16.mxu0 0
      %8516 = vmatpush1.bf16.msra.mxu0 0
      %8517 = vmatprep.subr.bf16.mxu0 0
      %8518 = vmatpush1.bf16.msra.mxu0 0
      %8519 = vmatprep.subr.bf16.mxu0 0
      %8520 = vmatpush1.bf16.msra.mxu0 0
      %8521 = vmatprep.subr.bf16.mxu0 0
      %8522 = vmatpush1.bf16.msra.mxu0 0
      %8523 = vmatprep.subr.bf16.mxu0 0
      %8524 = vmatpush1.bf16.msra.mxu0 0
      %8525 = vmatprep.subr.bf16.mxu0 0
      %8526 = vmatpush1.bf16.msra.mxu0 0
      %8527 = vmatprep.subr.bf16.mxu0 0
      %8528 = vmatpush1.bf16.msra.mxu0 0
      %8529 = vmatprep.subr.bf16.mxu0 0
      %8530 = vmatpush1.bf16.msra.mxu0 0
      %8531 = vmatprep.subr.bf16.mxu0 0
      %8532 = vmatpush1.bf16.msra.mxu0 0
      %8533 = vmatprep.subr.bf16.mxu0 0
      %8534 = vmatpush1.bf16.msra.mxu0 0
      %8535 = vmatprep.subr.bf16.mxu0 0
      %8536 = vmatpush1.bf16.msra.mxu0 0
      %8537 = vmatprep.mubr.bf16.mxu0 0
      %8538 = vmatmul.mubr.bf16.gmra.mrb[0].mxu0 %v8503
      %v8539 = vpop.f32.mrb[0].mxu0
      %v8540 = vadd.f32 0.0, %v8539
      %v8541 = vpop.f32.mrb[0].mxu0
      %v8542 = vadd.f32 0.0, %v8541
      %v8543 = vpop.f32.mrb[0].mxu0
      %v8544 = vadd.f32 0.0, %v8543
      %v8545 = vpop.f32.mrb[0].mxu0
      %v8546 = vadd.f32 0.0, %v8545
      %8547 = vdwg.mxu0
      %8548 = vmatprep.subr.bf16.mxu0 0
      %8549 = vmatpush1.bf16.msra.mxu0 %v7999
      %8550 = vmatprep.subr.bf16.mxu0 0
      %8551 = vmatpush1.bf16.msra.mxu0 %v8003
      %8552 = vmatprep.subr.bf16.mxu0 0
      %8553 = vmatpush1.bf16.msra.mxu0 0
      %8554 = vmatprep.subr.bf16.mxu0 0
      %8555 = vmatpush1.bf16.msra.mxu0 0
      %8556 = vmatprep.subr.bf16.mxu0 0
      %8557 = vmatpush1.bf16.msra.mxu0 0
      %8558 = vmatprep.subr.bf16.mxu0 0
      %8559 = vmatpush1.bf16.msra.mxu0 0
      %8560 = vmatprep.subr.bf16.mxu0 0
      %8561 = vmatpush1.bf16.msra.mxu0 0
      %8562 = vmatprep.subr.bf16.mxu0 0
      %8563 = vmatpush1.bf16.msra.mxu0 0
      %8564 = vmatprep.subr.bf16.mxu0 0
      %8565 = vmatpush1.bf16.msra.mxu0 0
      %8566 = vmatprep.subr.bf16.mxu0 0
      %8567 = vmatpush1.bf16.msra.mxu0 0
      %8568 = vmatprep.subr.bf16.mxu0 0
      %8569 = vmatpush1.bf16.msra.mxu0 0
      %8570 = vmatprep.subr.bf16.mxu0 0
      %8571 = vmatpush1.bf16.msra.mxu0 0
      %8572 = vmatprep.subr.bf16.mxu0 0
      %8573 = vmatpush1.bf16.msra.mxu0 0
      %8574 = vmatprep.subr.bf16.mxu0 0
      %8575 = vmatpush1.bf16.msra.mxu0 0
      %8576 = vmatprep.subr.bf16.mxu0 0
      %8577 = vmatpush1.bf16.msra.mxu0 0
      %8578 = vmatprep.subr.bf16.mxu0 0
      %8579 = vmatpush1.bf16.msra.mxu0 0
      %8580 = vmatprep.mubr.bf16.mxu0 0
      %8581 = vmatmul.mubr.bf16.gmra.mrb[0].mxu0 %v8503
      %v8582 = vpop.f32.mrb[0].mxu0
      %v8583 = vadd.f32 0.0, %v8582
      %v8584 = vpop.f32.mrb[0].mxu0
      %v8585 = vpop.f32.mrb[0].mxu0
      %v8586 = vadd.f32 0.0, %v8585
      %v8587 = vpop.f32.mrb[0].mxu0
      %8588 = vdwg.mxu0
      %v8589 = vadd.f32 %v8489, %v8540
      %v8590 = vadd.f32 %v8490, %v8542
      %v8591 = vadd.f32 %v8491, %v8583
      %v8592 = vadd.f32 %v8492, %v8544
      %v8593 = vadd.f32 %v8493, %v8546
      %v8594 = vadd.f32 %v8494, %v8586
      %v8595 = vld [vmem:[#allocation5 + $0x8] sm:$0xff]
      %v8596 = vld [vmem:[#allocation5 + $0x10] sm:$0xff]
      %v8597 = vld [vmem:[#allocation5 + $0x18] sm:$0xff]
      %v8598 = vld [vmem:[#allocation5 + $0x20] sm:$0xff]
      %v8599 = vld [vmem:[#allocation5 + $0x40] sm:$0xff]
      %v8600 = vld [vmem:[#allocation5 + $0x48] sm:$0xff]
      %v8601 = vld [vmem:[#allocation5 + $0x50] sm:$0xff]
      %v8602 = vld [vmem:[#allocation5 + $0x58] sm:$0xff]
      %8603 = vrot.lane.b32.xlu0 %v8501, 96
      %v8604 = vpop.permute.xlu0 %8603
      %8613 = vrot.lane.b32.xlu0 %v8595, 127
      %v8614 = vpop.permute.xlu0 %8613
      %8615 = vrot.lane.b32.xlu0 %v8596, 127
      %v8616 = vpop.permute.xlu0 %8615
      %8617 = vrot.lane.b32.xlu0 %v8597, 127
      %v8618 = vpop.permute.xlu0 %8617
      %8619 = vrot.lane.b32.xlu0 %v8598, 127
      %v8620 = vpop.permute.xlu0 %8619
      %8621 = vrot.lane.b32.xlu0 %v8599, 127
      %v8622 = vpop.permute.xlu0 %8621
      %8623 = vrot.lane.b32.xlu0 %v8600, 127
      %v8624 = vpop.permute.xlu0 %8623
      %8625 = vrot.lane.b32.xlu0 %v8601, 127
      %v8626 = vpop.permute.xlu0 %8625
      %8627 = vrot.lane.b32.xlu0 %v8602, 127
      %v8628 = vpop.permute.xlu0 %8627
      %v8629 = vsel %vm2484, %v8614, %v8616
      %v8630 = vsel %vm2484, %v8616, %v8618
      %v8631 = vsel %vm2484, %v8618, %v8620
      %v8632 = vsel %vm2484, %v8622, %v8624
      %v8633 = vsel %vm2484, %v8624, %v8626
      %v8634 = vsel %vm2484, %v8626, %v8628
      %v8642 = vsel %vm463, %v8604, 0
      %8644 = vmatprep.subr.bf16.mxu0 %v8630
      %8645 = vmatpush1.bf16.msra.mxu0 %v8629
      %8646 = vmatprep.subr.bf16.mxu0 %v8633
      %8647 = vmatpush1.bf16.msra.mxu0 %v8632
      %8648 = vmatprep.subr.bf16.mxu0 0
      %8649 = vmatpush1.bf16.msra.mxu0 0
      %8650 = vmatprep.subr.bf16.mxu0 0
      %8651 = vmatpush1.bf16.msra.mxu0 0
      %8652 = vmatprep.subr.bf16.mxu0 0
      %8653 = vmatpush1.bf16.msra.mxu0 0
      %8654 = vmatprep.subr.bf16.mxu0 0
      %8655 = vmatpush1.bf16.msra.mxu0 0
      %8656 = vmatprep.subr.bf16.mxu0 0
      %8657 = vmatpush1.bf16.msra.mxu0 0
      %8658 = vmatprep.subr.bf16.mxu0 0
      %8659 = vmatpush1.bf16.msra.mxu0 0
      %8660 = vmatprep.subr.bf16.mxu0 0
      %8661 = vmatpush1.bf16.msra.mxu0 0
      %8662 = vmatprep.subr.bf16.mxu0 0
      %8663 = vmatpush1.bf16.msra.mxu0 0
      %8664 = vmatprep.subr.bf16.mxu0 0
      %8665 = vmatpush1.bf16.msra.mxu0 0
      %8666 = vmatprep.subr.bf16.mxu0 0
      %8667 = vmatpush1.bf16.msra.mxu0 0
      %8668 = vmatprep.subr.bf16.mxu0 0
      %8669 = vmatpush1.bf16.msra.mxu0 0
      %8670 = vmatprep.subr.bf16.mxu0 0
      %8671 = vmatpush1.bf16.msra.mxu0 0
      %8672 = vmatprep.subr.bf16.mxu0 0
      %8673 = vmatpush1.bf16.msra.mxu0 0
      %8674 = vmatprep.subr.bf16.mxu0 0
      %8675 = vmatpush1.bf16.msra.mxu0 0
      %8676 = vmatprep.mubr.bf16.mxu0 0
      %8677 = vmatmul.mubr.bf16.gmra.mrb[0].mxu0 %v8642
      %v8678 = vpop.f32.mrb[0].mxu0
      %v8679 = vadd.f32 0.0, %v8678
      %v8680 = vpop.f32.mrb[0].mxu0
      %v8681 = vadd.f32 0.0, %v8680
      %v8682 = vpop.f32.mrb[0].mxu0
      %v8683 = vadd.f32 0.0, %v8682
      %v8684 = vpop.f32.mrb[0].mxu0
      %v8685 = vadd.f32 0.0, %v8684
      %8686 = vdwg.mxu0
      %8687 = vmatprep.subr.bf16.mxu0 0
      %8688 = vmatpush1.bf16.msra.mxu0 %v8631
      %8689 = vmatprep.subr.bf16.mxu0 0
      %8690 = vmatpush1.bf16.msra.mxu0 %v8634
      %8691 = vmatprep.subr.bf16.mxu0 0
      %8692 = vmatpush1.bf16.msra.mxu0 0
      %8693 = vmatprep.subr.bf16.mxu0 0
      %8694 = vmatpush1.bf16.msra.mxu0 0
      %8695 = vmatprep.subr.bf16.mxu0 0
      %8696 = vmatpush1.bf16.msra.mxu0 0
      %8697 = vmatprep.subr.bf16.mxu0 0
      %8698 = vmatpush1.bf16.msra.mxu0 0
      %8699 = vmatprep.subr.bf16.mxu0 0
      %8700 = vmatpush1.bf16.msra.mxu0 0
      %8701 = vmatprep.subr.bf16.mxu0 0
      %8702 = vmatpush1.bf16.msra.mxu0 0
      %8703 = vmatprep.subr.bf16.mxu0 0
      %8704 = vmatpush1.bf16.msra.mxu0 0
      %8705 = vmatprep.subr.bf16.mxu0 0
      %8706 = vmatpush1.bf16.msra.mxu0 0
      %8707 = vmatprep.subr.bf16.mxu0 0
      %8708 = vmatpush1.bf16.msra.mxu0 0
      %8709 = vmatprep.subr.bf16.mxu0 0
      %8710 = vmatpush1.bf16.msra.mxu0 0
      %8711 = vmatprep.subr.bf16.mxu0 0
      %8712 = vmatpush1.bf16.msra.mxu0 0
      %8713 = vmatprep.subr.bf16.mxu0 0
      %8714 = vmatpush1.bf16.msra.mxu0 0
      %8715 = vmatprep.subr.bf16.mxu0 0
      %8716 = vmatpush1.bf16.msra.mxu0 0
      %8717 = vmatprep.subr.bf16.mxu0 0
      %8718 = vmatpush1.bf16.msra.mxu0 0
      %8719 = vmatprep.mubr.bf16.mxu0 0
      %8720 = vmatmul.mubr.bf16.gmra.mrb[0].mxu0 %v8642
      %v8721 = vpop.f32.mrb[0].mxu0
      %v8722 = vadd.f32 0.0, %v8721
      %v8723 = vpop.f32.mrb[0].mxu0
      %v8724 = vpop.f32.mrb[0].mxu0
      %v8725 = vadd.f32 0.0, %v8724
      %v8726 = vpop.f32.mrb[0].mxu0
      %8727 = vdwg.mxu0
      %v8728 = vadd.f32 %v8589, %v8679
      %v8729 = vadd.f32 %v8590, %v8681
      %v8730 = vadd.f32 %v8591, %v8722
      %v8731 = vadd.f32 %v8592, %v8683
      %v8732 = vadd.f32 %v8593, %v8685
      %v8733 = vadd.f32 %v8594, %v8725
      %8734 = vrot.lane.b32.xlu0 %v8501, 64
      %v8735 = vpop.permute.xlu0 %8734
      %8736 = vrot.lane.b32.xlu0 %v8595, 97
      %v8737 = vpop.permute.xlu0 %8736
      %8738 = vrot.lane.b32.xlu0 %v8596, 97
      %v8739 = vpop.permute.xlu0 %8738
      %8740 = vrot.lane.b32.xlu0 %v8597, 97
      %v8741 = vpop.permute.xlu0 %8740
      %8742 = vrot.lane.b32.xlu0 %v8598, 97
      %v8743 = vpop.permute.xlu0 %8742
      %8744 = vrot.lane.b32.xlu0 %v8599, 97
      %v8745 = vpop.permute.xlu0 %8744
      %8746 = vrot.lane.b32.xlu0 %v8600, 97
      %v8747 = vpop.permute.xlu0 %8746
      %8748 = vrot.lane.b32.xlu0 %v8601, 97
      %v8749 = vpop.permute.xlu0 %8748
      %8750 = vrot.lane.b32.xlu0 %v8602, 97
      %v8751 = vpop.permute.xlu0 %8750
      %v8752 = vsel %vm2743, %v8737, %v8739
      %v8753 = vsel %vm2743, %v8739, %v8741
      %v8754 = vsel %vm2743, %v8741, %v8743
      %v8755 = vsel %vm2743, %v8745, %v8747
      %v8756 = vsel %vm2743, %v8747, %v8749
      %v8757 = vsel %vm2743, %v8749, %v8751
      %v8765 = vsel %vm463, %v8735, 0
      %8767 = vmatprep.subr.bf16.mxu0 %v8753
      %8768 = vmatpush1.bf16.msra.mxu0 %v8752
      %8769 = vmatprep.subr.bf16.mxu0 %v8756
      %8770 = vmatpush1.bf16.msra.mxu0 %v8755
      %8771 = vmatprep.subr.bf16.mxu0 0
      %8772 = vmatpush1.bf16.msra.mxu0 0
      %8773 = vmatprep.subr.bf16.mxu0 0
      %8774 = vmatpush1.bf16.msra.mxu0 0
      %8775 = vmatprep.subr.bf16.mxu0 0
      %8776 = vmatpush1.bf16.msra.mxu0 0
      %8777 = vmatprep.subr.bf16.mxu0 0
      %8778 = vmatpush1.bf16.msra.mxu0 0
      %8779 = vmatprep.subr.bf16.mxu0 0
      %8780 = vmatpush1.bf16.msra.mxu0 0
      %8781 = vmatprep.subr.bf16.mxu0 0
      %8782 = vmatpush1.bf16.msra.mxu0 0
      %8783 = vmatprep.subr.bf16.mxu0 0
      %8784 = vmatpush1.bf16.msra.mxu0 0
      %8785 = vmatprep.subr.bf16.mxu0 0
      %8786 = vmatpush1.bf16.msra.mxu0 0
      %8787 = vmatprep.subr.bf16.mxu0 0
      %8788 = vmatpush1.bf16.msra.mxu0 0
      %8789 = vmatprep.subr.bf16.mxu0 0
      %8790 = vmatpush1.bf16.msra.mxu0 0
      %8791 = vmatprep.subr.bf16.mxu0 0
      %8792 = vmatpush1.bf16.msra.mxu0 0
      %8793 = vmatprep.subr.bf16.mxu0 0
      %8794 = vmatpush1.bf16.msra.mxu0 0
      %8795 = vmatprep.subr.bf16.mxu0 0
      %8796 = vmatpush1.bf16.msra.mxu0 0
      %8797 = vmatprep.subr.bf16.mxu0 0
      %8798 = vmatpush1.bf16.msra.mxu0 0
      %8799 = vmatprep.mubr.bf16.mxu0 0
      %8800 = vmatmul.mubr.bf16.gmra.mrb[0].mxu0 %v8765
      %v8801 = vpop.f32.mrb[0].mxu0
      %v8802 = vadd.f32 0.0, %v8801
      %v8803 = vpop.f32.mrb[0].mxu0
      %v8804 = vadd.f32 0.0, %v8803
      %v8805 = vpop.f32.mrb[0].mxu0
      %v8806 = vadd.f32 0.0, %v8805
      %v8807 = vpop.f32.mrb[0].mxu0
      %v8808 = vadd.f32 0.0, %v8807
      %8809 = vdwg.mxu0
      %8810 = vmatprep.subr.bf16.mxu0 0
      %8811 = vmatpush1.bf16.msra.mxu0 %v8754
      %8812 = vmatprep.subr.bf16.mxu0 0
      %8813 = vmatpush1.bf16.msra.mxu0 %v8757
      %8814 = vmatprep.subr.bf16.mxu0 0
      %8815 = vmatpush1.bf16.msra.mxu0 0
      %8816 = vmatprep.subr.bf16.mxu0 0
      %8817 = vmatpush1.bf16.msra.mxu0 0
      %8818 = vmatprep.subr.bf16.mxu0 0
      %8819 = vmatpush1.bf16.msra.mxu0 0
      %8820 = vmatprep.subr.bf16.mxu0 0
      %8821 = vmatpush1.bf16.msra.mxu0 0
      %8822 = vmatprep.subr.bf16.mxu0 0
      %8823 = vmatpush1.bf16.msra.mxu0 0
      %8824 = vmatprep.subr.bf16.mxu0 0
      %8825 = vmatpush1.bf16.msra.mxu0 0
      %8826 = vmatprep.subr.bf16.mxu0 0
      %8827 = vmatpush1.bf16.msra.mxu0 0
      %8828 = vmatprep.subr.bf16.mxu0 0
      %8829 = vmatpush1.bf16.msra.mxu0 0
      %8830 = vmatprep.subr.bf16.mxu0 0
      %8831 = vmatpush1.bf16.msra.mxu0 0
      %8832 = vmatprep.subr.bf16.mxu0 0
      %8833 = vmatpush1.bf16.msra.mxu0 0
      %8834 = vmatprep.subr.bf16.mxu0 0
      %8835 = vmatpush1.bf16.msra.mxu0 0
      %8836 = vmatprep.subr.bf16.mxu0 0
      %8837 = vmatpush1.bf16.msra.mxu0 0
      %8838 = vmatprep.subr.bf16.mxu0 0
      %8839 = vmatpush1.bf16.msra.mxu0 0
      %8840 = vmatprep.subr.bf16.mxu0 0
      %8841 = vmatpush1.bf16.msra.mxu0 0
      %8842 = vmatprep.mubr.bf16.mxu0 0
      %8843 = vmatmul.mubr.bf16.gmra.mrb[0].mxu0 %v8765
      %v8844 = vpop.f32.mrb[0].mxu0
      %v8845 = vadd.f32 0.0, %v8844
      %v8846 = vpop.f32.mrb[0].mxu0
      %v8847 = vpop.f32.mrb[0].mxu0
      %v8848 = vadd.f32 0.0, %v8847
      %v8849 = vpop.f32.mrb[0].mxu0
      %8850 = vdwg.mxu0
      %v8851 = vadd.f32 %v8728, %v8802
      %v8852 = vadd.f32 %v8729, %v8804
      %v8853 = vadd.f32 %v8730, %v8845
      %v8854 = vadd.f32 %v8731, %v8806
      %v8855 = vadd.f32 %v8732, %v8808
      %v8856 = vadd.f32 %v8733, %v8848
      %8857 = vrot.lane.b32.xlu0 %v8501, 32
      %v8858 = vpop.permute.xlu0 %8857
      %8859 = vrot.lane.b32.xlu0 %v8595, 96
      %v8860 = vpop.permute.xlu0 %8859
      %8861 = vrot.lane.b32.xlu0 %v8596, 96
      %v8862 = vpop.permute.xlu0 %8861
      %8863 = vrot.lane.b32.xlu0 %v8597, 96
      %v8864 = vpop.permute.xlu0 %8863
      %8865 = vrot.lane.b32.xlu0 %v8598, 96
      %v8866 = vpop.permute.xlu0 %8865
      %8867 = vrot.lane.b32.xlu0 %v8599, 96
      %v8868 = vpop.permute.xlu0 %8867
      %8869 = vrot.lane.b32.xlu0 %v8600, 96
      %v8870 = vpop.permute.xlu0 %8869
      %8871 = vrot.lane.b32.xlu0 %v8601, 96
      %v8872 = vpop.permute.xlu0 %8871
      %8873 = vrot.lane.b32.xlu0 %v8602, 96
      %v8874 = vpop.permute.xlu0 %8873
      %v8875 = vsel %vm2982, %v8860, %v8862
      %v8876 = vsel %vm2982, %v8862, %v8864
      %v8877 = vsel %vm2982, %v8864, %v8866
      %v8878 = vsel %vm2982, %v8868, %v8870
      %v8879 = vsel %vm2982, %v8870, %v8872
      %v8880 = vsel %vm2982, %v8872, %v8874
      %v8888 = vsel %vm463, %v8858, 0
      %8890 = vmatprep.subr.bf16.mxu0 %v8876
      %8891 = vmatpush1.bf16.msra.mxu0 %v8875
      %8892 = vmatprep.subr.bf16.mxu0 %v8879
      %8893 = vmatpush1.bf16.msra.mxu0 %v8878
      %8894 = vmatprep.subr.bf16.mxu0 0
      %8895 = vmatpush1.bf16.msra.mxu0 0
      %8896 = vmatprep.subr.bf16.mxu0 0
      %8897 = vmatpush1.bf16.msra.mxu0 0
      %8898 = vmatprep.subr.bf16.mxu0 0
      %8899 = vmatpush1.bf16.msra.mxu0 0
      %8900 = vmatprep.subr.bf16.mxu0 0
      %8901 = vmatpush1.bf16.msra.mxu0 0
      %8902 = vmatprep.subr.bf16.mxu0 0
      %8903 = vmatpush1.bf16.msra.mxu0 0
      %8904 = vmatprep.subr.bf16.mxu0 0
      %8905 = vmatpush1.bf16.msra.mxu0 0
      %8906 = vmatprep.subr.bf16.mxu0 0
      %8907 = vmatpush1.bf16.msra.mxu0 0
      %8908 = vmatprep.subr.bf16.mxu0 0
      %8909 = vmatpush1.bf16.msra.mxu0 0
      %8910 = vmatprep.subr.bf16.mxu0 0
      %8911 = vmatpush1.bf16.msra.mxu0 0
      %8912 = vmatprep.subr.bf16.mxu0 0
      %8913 = vmatpush1.bf16.msra.mxu0 0
      %8914 = vmatprep.subr.bf16.mxu0 0
      %8915 = vmatpush1.bf16.msra.mxu0 0
      %8916 = vmatprep.subr.bf16.mxu0 0
      %8917 = vmatpush1.bf16.msra.mxu0 0
      %8918 = vmatprep.subr.bf16.mxu0 0
      %8919 = vmatpush1.bf16.msra.mxu0 0
      %8920 = vmatprep.subr.bf16.mxu0 0
      %8921 = vmatpush1.bf16.msra.mxu0 0
      %8922 = vmatprep.mubr.bf16.mxu0 0
      %8923 = vmatmul.mubr.bf16.gmra.mrb[0].mxu0 %v8888
      %v8924 = vpop.f32.mrb[0].mxu0
      %v8925 = vadd.f32 0.0, %v8924
      %v8926 = vpop.f32.mrb[0].mxu0
      %v8927 = vadd.f32 0.0, %v8926
      %v8928 = vpop.f32.mrb[0].mxu0
      %v8929 = vadd.f32 0.0, %v8928
      %v8930 = vpop.f32.mrb[0].mxu0
      %v8931 = vadd.f32 0.0, %v8930
      %8932 = vdwg.mxu0
      %8933 = vmatprep.subr.bf16.mxu0 0
      %8934 = vmatpush1.bf16.msra.mxu0 %v8877
      %8935 = vmatprep.subr.bf16.mxu0 0
      %8936 = vmatpush1.bf16.msra.mxu0 %v8880
      %8937 = vmatprep.subr.bf16.mxu0 0
      %8938 = vmatpush1.bf16.msra.mxu0 0
      %8939 = vmatprep.subr.bf16.mxu0 0
      %8940 = vmatpush1.bf16.msra.mxu0 0
      %8941 = vmatprep.subr.bf16.mxu0 0
      %8942 = vmatpush1.bf16.msra.mxu0 0
      %8943 = vmatprep.subr.bf16.mxu0 0
      %8944 = vmatpush1.bf16.msra.mxu0 0
      %8945 = vmatprep.subr.bf16.mxu0 0
      %8946 = vmatpush1.bf16.msra.mxu0 0
      %8947 = vmatprep.subr.bf16.mxu0 0
      %8948 = vmatpush1.bf16.msra.mxu0 0
      %8949 = vmatprep.subr.bf16.mxu0 0
      %8950 = vmatpush1.bf16.msra.mxu0 0
      %8951 = vmatprep.subr.bf16.mxu0 0
      %8952 = vmatpush1.bf16.msra.mxu0 0
      %8953 = vmatprep.subr.bf16.mxu0 0
      %8954 = vmatpush1.bf16.msra.mxu0 0
      %8955 = vmatprep.subr.bf16.mxu0 0
      %8956 = vmatpush1.bf16.msra.mxu0 0
      %8957 = vmatprep.subr.bf16.mxu0 0
      %8958 = vmatpush1.bf16.msra.mxu0 0
      %8959 = vmatprep.subr.bf16.mxu0 0
      %8960 = vmatpush1.bf16.msra.mxu0 0
      %8961 = vmatprep.subr.bf16.mxu0 0
      %8962 = vmatpush1.bf16.msra.mxu0 0
      %8963 = vmatprep.subr.bf16.mxu0 0
      %8964 = vmatpush1.bf16.msra.mxu0 0
      %8965 = vmatprep.mubr.bf16.mxu0 0
      %8966 = vmatmul.mubr.bf16.gmra.mrb[0].mxu0 %v8888
      %v8967 = vpop.f32.mrb[0].mxu0
      %v8968 = vadd.f32 0.0, %v8967
      %v8969 = vpop.f32.mrb[0].mxu0
      %v8970 = vpop.f32.mrb[0].mxu0
      %v8971 = vadd.f32 0.0, %v8970
      %v8972 = vpop.f32.mrb[0].mxu0
      %8973 = vdwg.mxu0
      %v8974 = vadd.f32 %v8851, %v8925
      %v8975 = vadd.f32 %v8852, %v8927
      %v8976 = vadd.f32 %v8853, %v8968
      %v8977 = vadd.f32 %v8854, %v8929
      %v8978 = vadd.f32 %v8855, %v8931
      %v8979 = vadd.f32 %v8856, %v8971
      %v8980 = vld [vmem:[%s7 + $0x8] sm:$0xf]
      %v8981 = vld [vmem:[%s7 + $0x14] sm:$0xf]
      %v8984 = vunpack.c.l.b16 %v8980
      %v8985 = vunpack.c.l.b16 %v8981
      %v8986 = vpack.c.b16 %v8985, %v8984
      %8987 = vrot.lane.b32.xlu0 %v8595, 95
      %v8988 = vpop.permute.xlu0 %8987
      %8989 = vrot.lane.b32.xlu0 %v8596, 95
      %v8990 = vpop.permute.xlu0 %8989
      %8991 = vrot.lane.b32.xlu0 %v8597, 95
      %v8992 = vpop.permute.xlu0 %8991
      %8993 = vrot.lane.b32.xlu0 %v8598, 95
      %v8994 = vpop.permute.xlu0 %8993
      %8995 = vrot.lane.b32.xlu0 %v8599, 95
      %v8996 = vpop.permute.xlu0 %8995
      %8997 = vrot.lane.b32.xlu0 %v8600, 95
      %v8998 = vpop.permute.xlu0 %8997
      %8999 = vrot.lane.b32.xlu0 %v8601, 95
      %v9000 = vpop.permute.xlu0 %8999
      %9001 = vrot.lane.b32.xlu0 %v8602, 95
      %v9002 = vpop.permute.xlu0 %9001
      %v9003 = vsel %vm3241, %v8988, %v8990
      %v9004 = vsel %vm3241, %v8990, %v8992
      %v9005 = vsel %vm3241, %v8992, %v8994
      %v9006 = vsel %vm3241, %v8996, %v8998
      %v9007 = vsel %vm3241, %v8998, %v9000
      %v9008 = vsel %vm3241, %v9000, %v9002
      %v9016 = vsel %vm463, %v8986, 0
      %9018 = vmatprep.subr.bf16.mxu0 %v9004
      %9019 = vmatpush1.bf16.msra.mxu0 %v9003
      %9020 = vmatprep.subr.bf16.mxu0 %v9007
      %9021 = vmatpush1.bf16.msra.mxu0 %v9006
      %9022 = vmatprep.subr.bf16.mxu0 0
      %9023 = vmatpush1.bf16.msra.mxu0 0
      %9024 = vmatprep.subr.bf16.mxu0 0
      %9025 = vmatpush1.bf16.msra.mxu0 0
      %9026 = vmatprep.subr.bf16.mxu0 0
      %9027 = vmatpush1.bf16.msra.mxu0 0
      %9028 = vmatprep.subr.bf16.mxu0 0
      %9029 = vmatpush1.bf16.msra.mxu0 0
      %9030 = vmatprep.subr.bf16.mxu0 0
      %9031 = vmatpush1.bf16.msra.mxu0 0
      %9032 = vmatprep.subr.bf16.mxu0 0
      %9033 = vmatpush1.bf16.msra.mxu0 0
      %9034 = vmatprep.subr.bf16.mxu0 0
      %9035 = vmatpush1.bf16.msra.mxu0 0
      %9036 = vmatprep.subr.bf16.mxu0 0
      %9037 = vmatpush1.bf16.msra.mxu0 0
      %9038 = vmatprep.subr.bf16.mxu0 0
      %9039 = vmatpush1.bf16.msra.mxu0 0
      %9040 = vmatprep.subr.bf16.mxu0 0
      %9041 = vmatpush1.bf16.msra.mxu0 0
      %9042 = vmatprep.subr.bf16.mxu0 0
      %9043 = vmatpush1.bf16.msra.mxu0 0
      %9044 = vmatprep.subr.bf16.mxu0 0
      %9045 = vmatpush1.bf16.msra.mxu0 0
      %9046 = vmatprep.subr.bf16.mxu0 0
      %9047 = vmatpush1.bf16.msra.mxu0 0
      %9048 = vmatprep.subr.bf16.mxu0 0
      %9049 = vmatpush1.bf16.msra.mxu0 0
      %9050 = vmatprep.mubr.bf16.mxu0 0
      %9051 = vmatmul.mubr.bf16.gmra.mrb[0].mxu0 %v9016
      %v9052 = vpop.f32.mrb[0].mxu0
      %v9053 = vadd.f32 0.0, %v9052
      %v9054 = vpop.f32.mrb[0].mxu0
      %v9055 = vadd.f32 0.0, %v9054
      %v9056 = vpop.f32.mrb[0].mxu0
      %v9057 = vadd.f32 0.0, %v9056
      %v9058 = vpop.f32.mrb[0].mxu0
      %v9059 = vadd.f32 0.0, %v9058
      %9060 = vdwg.mxu0
      %9061 = vmatprep.subr.bf16.mxu0 0
      %9062 = vmatpush1.bf16.msra.mxu0 %v9005
      %9063 = vmatprep.subr.bf16.mxu0 0
      %9064 = vmatpush1.bf16.msra.mxu0 %v9008
      %9065 = vmatprep.subr.bf16.mxu0 0
      %9066 = vmatpush1.bf16.msra.mxu0 0
      %9067 = vmatprep.subr.bf16.mxu0 0
      %9068 = vmatpush1.bf16.msra.mxu0 0
      %9069 = vmatprep.subr.bf16.mxu0 0
      %9070 = vmatpush1.bf16.msra.mxu0 0
      %9071 = vmatprep.subr.bf16.mxu0 0
      %9072 = vmatpush1.bf16.msra.mxu0 0
      %9073 = vmatprep.subr.bf16.mxu0 0
      %9074 = vmatpush1.bf16.msra.mxu0 0
      %9075 = vmatprep.subr.bf16.mxu0 0
      %9076 = vmatpush1.bf16.msra.mxu0 0
      %9077 = vmatprep.subr.bf16.mxu0 0
      %9078 = vmatpush1.bf16.msra.mxu0 0
      %9079 = vmatprep.subr.bf16.mxu0 0
      %9080 = vmatpush1.bf16.msra.mxu0 0
      %9081 = vmatprep.subr.bf16.mxu0 0
      %9082 = vmatpush1.bf16.msra.mxu0 0
      %9083 = vmatprep.subr.bf16.mxu0 0
      %9084 = vmatpush1.bf16.msra.mxu0 0
      %9085 = vmatprep.subr.bf16.mxu0 0
      %9086 = vmatpush1.bf16.msra.mxu0 0
      %9087 = vmatprep.subr.bf16.mxu0 0
      %9088 = vmatpush1.bf16.msra.mxu0 0
      %9089 = vmatprep.subr.bf16.mxu0 0
      %9090 = vmatpush1.bf16.msra.mxu0 0
      %9091 = vmatprep.subr.bf16.mxu0 0
      %9092 = vmatpush1.bf16.msra.mxu0 0
      %9093 = vmatprep.mubr.bf16.mxu0 0
      %9094 = vmatmul.mubr.bf16.gmra.mrb[0].mxu0 %v9016
      %v9095 = vpop.f32.mrb[0].mxu0
      %v9096 = vadd.f32 0.0, %v9095
      %v9097 = vpop.f32.mrb[0].mxu0
      %v9098 = vpop.f32.mrb[0].mxu0
      %v9099 = vadd.f32 0.0, %v9098
      %v9100 = vpop.f32.mrb[0].mxu0
      %9101 = vdwg.mxu0
      %v9102 = vadd.f32 %v8974, %v9053
      %v9103 = vadd.f32 %v8975, %v9055
      %v9104 = vadd.f32 %v8976, %v9096
      %v9105 = vadd.f32 %v8977, %v9057
      %v9106 = vadd.f32 %v8978, %v9059
      %v9107 = vadd.f32 %v8979, %v9099
      %v9108 = vld [vmem:[%s8] sm:$0xff]
      %v9109 = vld [vmem:[%s8 + $0x8] sm:$0xff]
      %9111 = vset.pattern.permute.xlu0 0
      %9112 = vperm.xlu0 %9111, %v9108
      %v9113 = vpop.permute.xlu0 %9112
      %9116 = vset.pattern.permute.xlu0 0
      %9117 = vperm.xlu0 %9116, %v9109
      %v9118 = vpop.permute.xlu0 %9117
      %v9120 = vadd.f32 %v9102, %v9113
      %v9121 = vadd.f32 %v9103, %v9113
      %v9122 = vadd.f32 %v9104, %v9113
      %v9123 = vadd.f32 %v9105, %v9118
      %v9124 = vadd.f32 %v9106, %v9118
      %v9125 = vadd.f32 %v9107, %v9118
      %9126 = vst [vmem:[%s356] sm:$0xff] %v9120
      %9127 = vst [vmem:[%s356 + $0x8] sm:$0xff] %v9121
      %9128 = vst [vmem:[%s356 + $0x10] sm:$0xff] %v9122
      %9129 = vst [vmem:[%s356 + $0x28] sm:$0xff] %v9123
      %9130 = vst [vmem:[%s356 + $0x30] sm:$0xff] %v9124
      %9131 = vst [vmem:[%s356 + $0x38] sm:$0xff] %v9125
      %v9132 = vld [vmem:[%s7] sm:$0xf]
      %v9133 = vld [vmem:[%s7 + $0xc] sm:$0xf]
      %v9134 = vld [vmem:[#allocation5 + $0x18] sm:$0xff]
      %v9135 = vld [vmem:[#allocation5 + $0x20] sm:$0xff]
      %v9136 = vld [vmem:[#allocation5 + $0x28] sm:$0xff]
      %v9137 = vld [vmem:[#allocation5 + $0x50] sm:$0xff]
      %v9138 = vld [vmem:[#allocation5 + $0x58] sm:$0xff]
      %v9139 = vld [vmem:[#allocation5 + $0x60] sm:$0xff]
      %v9142 = vunpack.c.l.b16 %v9132
      %v9143 = vunpack.c.l.b16 %v9133
      %v9144 = vpack.c.b16 %v9143, %v9142
      %9145 = vrot.lane.b32.xlu0 %v9144, 96
      %v9146 = vpop.permute.xlu0 %9145
      %9153 = vrot.lane.b32.xlu0 %v9134, 32
      %v9154 = vpop.permute.xlu0 %9153
      %9155 = vrot.lane.b32.xlu0 %v9135, 32
      %v9156 = vpop.permute.xlu0 %9155
      %9157 = vrot.lane.b32.xlu0 %v9136, 32
      %v9158 = vpop.permute.xlu0 %9157
      %9159 = vrot.lane.b32.xlu0 %v9137, 32
      %v9160 = vpop.permute.xlu0 %9159
      %9161 = vrot.lane.b32.xlu0 %v9138, 32
      %v9162 = vpop.permute.xlu0 %9161
      %9163 = vrot.lane.b32.xlu0 %v9139, 32
      %v9164 = vpop.permute.xlu0 %9163
      %v9165 = vsel %vm1330, %v9154, %v9156
      %v9166 = vsel %vm1330, %v9156, %v9158
      %v9167 = vsel %vm1330, %v9160, %v9162
      %v9168 = vsel %vm1330, %v9162, %v9164
      %v9174 = vsel %vm463, %v9146, 0
      %9176 = vmatprep.subr.bf16.mxu0 %v9166
      %9177 = vmatpush1.bf16.msra.mxu0 %v9165
      %9178 = vmatprep.subr.bf16.mxu0 %v9168
      %9179 = vmatpush1.bf16.msra.mxu0 %v9167
      %9180 = vmatprep.subr.bf16.mxu0 0
      %9181 = vmatpush1.bf16.msra.mxu0 0
      %9182 = vmatprep.subr.bf16.mxu0 0
      %9183 = vmatpush1.bf16.msra.mxu0 0
      %9184 = vmatprep.subr.bf16.mxu0 0
      %9185 = vmatpush1.bf16.msra.mxu0 0
      %9186 = vmatprep.subr.bf16.mxu0 0
      %9187 = vmatpush1.bf16.msra.mxu0 0
      %9188 = vmatprep.subr.bf16.mxu0 0
      %9189 = vmatpush1.bf16.msra.mxu0 0
      %9190 = vmatprep.subr.bf16.mxu0 0
      %9191 = vmatpush1.bf16.msra.mxu0 0
      %9192 = vmatprep.subr.bf16.mxu0 0
      %9193 = vmatpush1.bf16.msra.mxu0 0
      %9194 = vmatprep.subr.bf16.mxu0 0
      %9195 = vmatpush1.bf16.msra.mxu0 0
      %9196 = vmatprep.subr.bf16.mxu0 0
      %9197 = vmatpush1.bf16.msra.mxu0 0
      %9198 = vmatprep.subr.bf16.mxu0 0
      %9199 = vmatpush1.bf16.msra.mxu0 0
      %9200 = vmatprep.subr.bf16.mxu0 0
      %9201 = vmatpush1.bf16.msra.mxu0 0
      %9202 = vmatprep.subr.bf16.mxu0 0
      %9203 = vmatpush1.bf16.msra.mxu0 0
      %9204 = vmatprep.subr.bf16.mxu0 0
      %9205 = vmatpush1.bf16.msra.mxu0 0
      %9206 = vmatprep.subr.bf16.mxu0 0
      %9207 = vmatpush1.bf16.msra.mxu0 0
      %9208 = vmatprep.mubr.bf16.mxu0 0
      %9209 = vmatmul.mubr.bf16.gmra.mrb[0].mxu0 %v9174
      %v9210 = vpop.f32.mrb[0].mxu0
      %v9211 = vadd.f32 0.0, %v9210
      %v9212 = vpop.f32.mrb[0].mxu0
      %v9213 = vadd.f32 0.0, %v9212
      %v9214 = vpop.f32.mrb[0].mxu0
      %v9215 = vadd.f32 0.0, %v9214
      %v9216 = vpop.f32.mrb[0].mxu0
      %v9217 = vadd.f32 0.0, %v9216
      %9218 = vdwg.mxu0
      %9219 = vrot.lane.b32.xlu0 %v9134, 33
      %v9220 = vpop.permute.xlu0 %9219
      %9221 = vrot.lane.b32.xlu0 %v9135, 33
      %v9222 = vpop.permute.xlu0 %9221
      %9223 = vrot.lane.b32.xlu0 %v9136, 33
      %v9224 = vpop.permute.xlu0 %9223
      %9225 = vrot.lane.b32.xlu0 %v9137, 33
      %v9226 = vpop.permute.xlu0 %9225
      %9227 = vrot.lane.b32.xlu0 %v9138, 33
      %v9228 = vpop.permute.xlu0 %9227
      %9229 = vrot.lane.b32.xlu0 %v9139, 33
      %v9230 = vpop.permute.xlu0 %9229
      %v9231 = vsel %vm1537, %v9220, %v9222
      %v9232 = vsel %vm1537, %v9222, %v9224
      %v9233 = vsel %vm1537, %v9226, %v9228
      %v9234 = vsel %vm1537, %v9228, %v9230
      %v9240 = vsel %vm463, %v9144, 0
      %9242 = vmatprep.subr.bf16.mxu0 %v9232
      %9243 = vmatpush1.bf16.msra.mxu0 %v9231
      %9244 = vmatprep.subr.bf16.mxu0 %v9234
      %9245 = vmatpush1.bf16.msra.mxu0 %v9233
      %9246 = vmatprep.subr.bf16.mxu0 0
      %9247 = vmatpush1.bf16.msra.mxu0 0
      %9248 = vmatprep.subr.bf16.mxu0 0
      %9249 = vmatpush1.bf16.msra.mxu0 0
      %9250 = vmatprep.subr.bf16.mxu0 0
      %9251 = vmatpush1.bf16.msra.mxu0 0
      %9252 = vmatprep.subr.bf16.mxu0 0
      %9253 = vmatpush1.bf16.msra.mxu0 0
      %9254 = vmatprep.subr.bf16.mxu0 0
      %9255 = vmatpush1.bf16.msra.mxu0 0
      %9256 = vmatprep.subr.bf16.mxu0 0
      %9257 = vmatpush1.bf16.msra.mxu0 0
      %9258 = vmatprep.subr.bf16.mxu0 0
      %9259 = vmatpush1.bf16.msra.mxu0 0
      %9260 = vmatprep.subr.bf16.mxu0 0
      %9261 = vmatpush1.bf16.msra.mxu0 0
      %9262 = vmatprep.subr.bf16.mxu0 0
      %9263 = vmatpush1.bf16.msra.mxu0 0
      %9264 = vmatprep.subr.bf16.mxu0 0
      %9265 = vmatpush1.bf16.msra.mxu0 0
      %9266 = vmatprep.subr.bf16.mxu0 0
      %9267 = vmatpush1.bf16.msra.mxu0 0
      %9268 = vmatprep.subr.bf16.mxu0 0
      %9269 = vmatpush1.bf16.msra.mxu0 0
      %9270 = vmatprep.subr.bf16.mxu0 0
      %9271 = vmatpush1.bf16.msra.mxu0 0
      %9272 = vmatprep.subr.bf16.mxu0 0
      %9273 = vmatpush1.bf16.msra.mxu0 0
      %9274 = vmatprep.mubr.bf16.mxu0 0
      %9275 = vmatmul.mubr.bf16.gmra.mrb[0].mxu0 %v9240
      %v9276 = vpop.f32.mrb[0].mxu0
      %v9277 = vadd.f32 %v9211, %v9276
      %v9278 = vpop.f32.mrb[0].mxu0
      %v9279 = vadd.f32 %v9213, %v9278
      %v9280 = vpop.f32.mrb[0].mxu0
      %v9281 = vadd.f32 %v9215, %v9280
      %v9282 = vpop.f32.mrb[0].mxu0
      %v9283 = vadd.f32 %v9217, %v9282
      %9284 = vdwg.mxu0
      %9285 = vrot.lane.b32.xlu0 %v9144, 64
      %v9286 = vpop.permute.xlu0 %9285
      %9287 = vrot.lane.b32.xlu0 %v9134, 31
      %v9288 = vpop.permute.xlu0 %9287
      %9289 = vrot.lane.b32.xlu0 %v9135, 31
      %v9290 = vpop.permute.xlu0 %9289
      %9291 = vrot.lane.b32.xlu0 %v9136, 31
      %v9292 = vpop.permute.xlu0 %9291
      %9293 = vrot.lane.b32.xlu0 %v9137, 31
      %v9294 = vpop.permute.xlu0 %9293
      %9295 = vrot.lane.b32.xlu0 %v9138, 31
      %v9296 = vpop.permute.xlu0 %9295
      %9297 = vrot.lane.b32.xlu0 %v9139, 31
      %v9298 = vpop.permute.xlu0 %9297
      %v9299 = vsel %vm1772, %v9288, %v9290
      %v9300 = vsel %vm1772, %v9290, %v9292
      %v9301 = vsel %vm1772, %v9294, %v9296
      %v9302 = vsel %vm1772, %v9296, %v9298
      %v9308 = vsel %vm463, %v9286, 0
      %9310 = vmatprep.subr.bf16.mxu0 %v9300
      %9311 = vmatpush1.bf16.msra.mxu0 %v9299
      %9312 = vmatprep.subr.bf16.mxu0 %v9302
      %9313 = vmatpush1.bf16.msra.mxu0 %v9301
      %9314 = vmatprep.subr.bf16.mxu0 0
      %9315 = vmatpush1.bf16.msra.mxu0 0
      %9316 = vmatprep.subr.bf16.mxu0 0
      %9317 = vmatpush1.bf16.msra.mxu0 0
      %9318 = vmatprep.subr.bf16.mxu0 0
      %9319 = vmatpush1.bf16.msra.mxu0 0
      %9320 = vmatprep.subr.bf16.mxu0 0
      %9321 = vmatpush1.bf16.msra.mxu0 0
      %9322 = vmatprep.subr.bf16.mxu0 0
      %9323 = vmatpush1.bf16.msra.mxu0 0
      %9324 = vmatprep.subr.bf16.mxu0 0
      %9325 = vmatpush1.bf16.msra.mxu0 0
      %9326 = vmatprep.subr.bf16.mxu0 0
      %9327 = vmatpush1.bf16.msra.mxu0 0
      %9328 = vmatprep.subr.bf16.mxu0 0
      %9329 = vmatpush1.bf16.msra.mxu0 0
      %9330 = vmatprep.subr.bf16.mxu0 0
      %9331 = vmatpush1.bf16.msra.mxu0 0
      %9332 = vmatprep.subr.bf16.mxu0 0
      %9333 = vmatpush1.bf16.msra.mxu0 0
      %9334 = vmatprep.subr.bf16.mxu0 0
      %9335 = vmatpush1.bf16.msra.mxu0 0
      %9336 = vmatprep.subr.bf16.mxu0 0
      %9337 = vmatpush1.bf16.msra.mxu0 0
      %9338 = vmatprep.subr.bf16.mxu0 0
      %9339 = vmatpush1.bf16.msra.mxu0 0
      %9340 = vmatprep.subr.bf16.mxu0 0
      %9341 = vmatpush1.bf16.msra.mxu0 0
      %9342 = vmatprep.mubr.bf16.mxu0 0
      %9343 = vmatmul.mubr.bf16.gmra.mrb[0].mxu0 %v9308
      %v9344 = vpop.f32.mrb[0].mxu0
      %v9345 = vadd.f32 0.0, %v9344
      %v9346 = vpop.f32.mrb[0].mxu0
      %v9347 = vadd.f32 0.0, %v9346
      %v9348 = vpop.f32.mrb[0].mxu0
      %v9349 = vadd.f32 0.0, %v9348
      %v9350 = vpop.f32.mrb[0].mxu0
      %v9351 = vadd.f32 0.0, %v9350
      %9352 = vdwg.mxu0
      %v9353 = vadd.f32 %v9277, %v9345
      %v9354 = vadd.f32 %v9279, %v9347
      %v9355 = vadd.f32 %v9281, %v9349
      %v9356 = vadd.f32 %v9283, %v9351
      %9357 = vrot.lane.b32.xlu0 %v9144, 32
      %v9358 = vpop.permute.xlu0 %9357
      %9359 = vrot.lane.b32.xlu0 %v9134, 1
      %v9360 = vpop.permute.xlu0 %9359
      %9361 = vrot.lane.b32.xlu0 %v9135, 1
      %v9362 = vpop.permute.xlu0 %9361
      %9363 = vrot.lane.b32.xlu0 %v9136, 1
      %v9364 = vpop.permute.xlu0 %9363
      %9365 = vrot.lane.b32.xlu0 %v9137, 1
      %v9366 = vpop.permute.xlu0 %9365
      %9367 = vrot.lane.b32.xlu0 %v9138, 1
      %v9368 = vpop.permute.xlu0 %9367
      %9369 = vrot.lane.b32.xlu0 %v9139, 1
      %v9370 = vpop.permute.xlu0 %9369
      %v9371 = vsel %vm2011, %v9360, %v9362
      %v9372 = vsel %vm2011, %v9362, %v9364
      %v9373 = vsel %vm2011, %v9366, %v9368
      %v9374 = vsel %vm2011, %v9368, %v9370
      %v9380 = vsel %vm463, %v9358, 0
      %9382 = vmatprep.subr.bf16.mxu0 %v9372
      %9383 = vmatpush1.bf16.msra.mxu0 %v9371
      %9384 = vmatprep.subr.bf16.mxu0 %v9374
      %9385 = vmatpush1.bf16.msra.mxu0 %v9373
      %9386 = vmatprep.subr.bf16.mxu0 0
      %9387 = vmatpush1.bf16.msra.mxu0 0
      %9388 = vmatprep.subr.bf16.mxu0 0
      %9389 = vmatpush1.bf16.msra.mxu0 0
      %9390 = vmatprep.subr.bf16.mxu0 0
      %9391 = vmatpush1.bf16.msra.mxu0 0
      %9392 = vmatprep.subr.bf16.mxu0 0
      %9393 = vmatpush1.bf16.msra.mxu0 0
      %9394 = vmatprep.subr.bf16.mxu0 0
      %9395 = vmatpush1.bf16.msra.mxu0 0
      %9396 = vmatprep.subr.bf16.mxu0 0
      %9397 = vmatpush1.bf16.msra.mxu0 0
      %9398 = vmatprep.subr.bf16.mxu0 0
      %9399 = vmatpush1.bf16.msra.mxu0 0
      %9400 = vmatprep.subr.bf16.mxu0 0
      %9401 = vmatpush1.bf16.msra.mxu0 0
      %9402 = vmatprep.subr.bf16.mxu0 0
      %9403 = vmatpush1.bf16.msra.mxu0 0
      %9404 = vmatprep.subr.bf16.mxu0 0
      %9405 = vmatpush1.bf16.msra.mxu0 0
      %9406 = vmatprep.subr.bf16.mxu0 0
      %9407 = vmatpush1.bf16.msra.mxu0 0
      %9408 = vmatprep.subr.bf16.mxu0 0
      %9409 = vmatpush1.bf16.msra.mxu0 0
      %9410 = vmatprep.subr.bf16.mxu0 0
      %9411 = vmatpush1.bf16.msra.mxu0 0
      %9412 = vmatprep.subr.bf16.mxu0 0
      %9413 = vmatpush1.bf16.msra.mxu0 0
      %9414 = vmatprep.mubr.bf16.mxu0 0
      %9415 = vmatmul.mubr.bf16.gmra.mrb[0].mxu0 %v9380
      %v9416 = vpop.f32.mrb[0].mxu0
      %v9417 = vadd.f32 0.0, %v9416
      %v9418 = vpop.f32.mrb[0].mxu0
      %v9419 = vadd.f32 0.0, %v9418
      %v9420 = vpop.f32.mrb[0].mxu0
      %v9421 = vadd.f32 0.0, %v9420
      %v9422 = vpop.f32.mrb[0].mxu0
      %v9423 = vadd.f32 0.0, %v9422
      %9424 = vdwg.mxu0
      %v9425 = vadd.f32 %v9353, %v9417
      %v9426 = vadd.f32 %v9354, %v9419
      %v9427 = vadd.f32 %v9355, %v9421
      %v9428 = vadd.f32 %v9356, %v9423
      %v9429 = vld [vmem:[%s7 + $0x4] sm:$0xf]
      %v9430 = vld [vmem:[%s7 + $0x10] sm:$0xf]
      %v9433 = vunpack.c.l.b16 %v9429
      %v9434 = vunpack.c.l.b16 %v9430
      %v9435 = vpack.c.b16 %v9434, %v9433
      %v9437 = vsel %vm463, %v9435, 0
      %9439 = vmatprep.subr.bf16.mxu0 %v9136
      %9440 = vmatpush1.bf16.msra.mxu0 %v9135
      %9441 = vmatprep.subr.bf16.mxu0 %v9139
      %9442 = vmatpush1.bf16.msra.mxu0 %v9138
      %9443 = vmatprep.subr.bf16.mxu0 0
      %9444 = vmatpush1.bf16.msra.mxu0 0
      %9445 = vmatprep.subr.bf16.mxu0 0
      %9446 = vmatpush1.bf16.msra.mxu0 0
      %9447 = vmatprep.subr.bf16.mxu0 0
      %9448 = vmatpush1.bf16.msra.mxu0 0
      %9449 = vmatprep.subr.bf16.mxu0 0
      %9450 = vmatpush1.bf16.msra.mxu0 0
      %9451 = vmatprep.subr.bf16.mxu0 0
      %9452 = vmatpush1.bf16.msra.mxu0 0
      %9453 = vmatprep.subr.bf16.mxu0 0
      %9454 = vmatpush1.bf16.msra.mxu0 0
      %9455 = vmatprep.subr.bf16.mxu0 0
      %9456 = vmatpush1.bf16.msra.mxu0 0
      %9457 = vmatprep.subr.bf16.mxu0 0
      %9458 = vmatpush1.bf16.msra.mxu0 0
      %9459 = vmatprep.subr.bf16.mxu0 0
      %9460 = vmatpush1.bf16.msra.mxu0 0
      %9461 = vmatprep.subr.bf16.mxu0 0
      %9462 = vmatpush1.bf16.msra.mxu0 0
      %9463 = vmatprep.subr.bf16.mxu0 0
      %9464 = vmatpush1.bf16.msra.mxu0 0
      %9465 = vmatprep.subr.bf16.mxu0 0
      %9466 = vmatpush1.bf16.msra.mxu0 0
      %9467 = vmatprep.subr.bf16.mxu0 0
      %9468 = vmatpush1.bf16.msra.mxu0 0
      %9469 = vmatprep.subr.bf16.mxu0 0
      %9470 = vmatpush1.bf16.msra.mxu0 0
      %9471 = vmatprep.mubr.bf16.mxu0 0
      %9472 = vmatmul.mubr.bf16.gmra.mrb[0].mxu0 %v9437
      %v9473 = vpop.f32.mrb[0].mxu0
      %v9474 = vadd.f32 0.0, %v9473
      %v9475 = vpop.f32.mrb[0].mxu0
      %v9476 = vadd.f32 0.0, %v9475
      %v9477 = vpop.f32.mrb[0].mxu0
      %v9478 = vadd.f32 0.0, %v9477
      %v9479 = vpop.f32.mrb[0].mxu0
      %v9480 = vadd.f32 0.0, %v9479
      %9481 = vdwg.mxu0
      %v9482 = vadd.f32 %v9425, %v9474
      %v9483 = vadd.f32 %v9426, %v9476
      %v9484 = vadd.f32 %v9427, %v9478
      %v9485 = vadd.f32 %v9428, %v9480
      %v9486 = vld [vmem:[#allocation5 + $0x20] sm:$0xff]
      %v9487 = vld [vmem:[#allocation5 + $0x28] sm:$0xff]
      %v9488 = vld [vmem:[#allocation5 + $0x30] sm:$0xff]
      %v9489 = vld [vmem:[#allocation5 + $0x58] sm:$0xff]
      %v9490 = vld [vmem:[#allocation5 + $0x60] sm:$0xff]
      %v9491 = vld [vmem:[#allocation5 + $0x68] sm:$0xff]
      %9492 = vrot.lane.b32.xlu0 %v9435, 96
      %v9493 = vpop.permute.xlu0 %9492
      %9500 = vrot.lane.b32.xlu0 %v9486, 127
      %v9501 = vpop.permute.xlu0 %9500
      %9502 = vrot.lane.b32.xlu0 %v9487, 127
      %v9503 = vpop.permute.xlu0 %9502
      %9504 = vrot.lane.b32.xlu0 %v9488, 127
      %v9505 = vpop.permute.xlu0 %9504
      %9506 = vrot.lane.b32.xlu0 %v9489, 127
      %v9507 = vpop.permute.xlu0 %9506
      %9508 = vrot.lane.b32.xlu0 %v9490, 127
      %v9509 = vpop.permute.xlu0 %9508
      %9510 = vrot.lane.b32.xlu0 %v9491, 127
      %v9511 = vpop.permute.xlu0 %9510
      %v9512 = vsel %vm2484, %v9501, %v9503
      %v9513 = vsel %vm2484, %v9503, %v9505
      %v9514 = vsel %vm2484, %v9507, %v9509
      %v9515 = vsel %vm2484, %v9509, %v9511
      %v9521 = vsel %vm463, %v9493, 0
      %9523 = vmatprep.subr.bf16.mxu0 %v9513
      %9524 = vmatpush1.bf16.msra.mxu0 %v9512
      %9525 = vmatprep.subr.bf16.mxu0 %v9515
      %9526 = vmatpush1.bf16.msra.mxu0 %v9514
      %9527 = vmatprep.subr.bf16.mxu0 0
      %9528 = vmatpush1.bf16.msra.mxu0 0
      %9529 = vmatprep.subr.bf16.mxu0 0
      %9530 = vmatpush1.bf16.msra.mxu0 0
      %9531 = vmatprep.subr.bf16.mxu0 0
      %9532 = vmatpush1.bf16.msra.mxu0 0
      %9533 = vmatprep.subr.bf16.mxu0 0
      %9534 = vmatpush1.bf16.msra.mxu0 0
      %9535 = vmatprep.subr.bf16.mxu0 0
      %9536 = vmatpush1.bf16.msra.mxu0 0
      %9537 = vmatprep.subr.bf16.mxu0 0
      %9538 = vmatpush1.bf16.msra.mxu0 0
      %9539 = vmatprep.subr.bf16.mxu0 0
      %9540 = vmatpush1.bf16.msra.mxu0 0
      %9541 = vmatprep.subr.bf16.mxu0 0
      %9542 = vmatpush1.bf16.msra.mxu0 0
      %9543 = vmatprep.subr.bf16.mxu0 0
      %9544 = vmatpush1.bf16.msra.mxu0 0
      %9545 = vmatprep.subr.bf16.mxu0 0
      %9546 = vmatpush1.bf16.msra.mxu0 0
      %9547 = vmatprep.subr.bf16.mxu0 0
      %9548 = vmatpush1.bf16.msra.mxu0 0
      %9549 = vmatprep.subr.bf16.mxu0 0
      %9550 = vmatpush1.bf16.msra.mxu0 0
      %9551 = vmatprep.subr.bf16.mxu0 0
      %9552 = vmatpush1.bf16.msra.mxu0 0
      %9553 = vmatprep.subr.bf16.mxu0 0
      %9554 = vmatpush1.bf16.msra.mxu0 0
      %9555 = vmatprep.mubr.bf16.mxu0 0
      %9556 = vmatmul.mubr.bf16.gmra.mrb[0].mxu0 %v9521
      %v9557 = vpop.f32.mrb[0].mxu0
      %v9558 = vadd.f32 0.0, %v9557
      %v9559 = vpop.f32.mrb[0].mxu0
      %v9560 = vadd.f32 0.0, %v9559
      %v9561 = vpop.f32.mrb[0].mxu0
      %v9562 = vadd.f32 0.0, %v9561
      %v9563 = vpop.f32.mrb[0].mxu0
      %v9564 = vadd.f32 0.0, %v9563
      %9565 = vdwg.mxu0
      %v9566 = vadd.f32 %v9482, %v9558
      %v9567 = vadd.f32 %v9483, %v9560
      %v9568 = vadd.f32 %v9484, %v9562
      %v9569 = vadd.f32 %v9485, %v9564
      %9570 = vrot.lane.b32.xlu0 %v9435, 64
      %v9571 = vpop.permute.xlu0 %9570
      %9572 = vrot.lane.b32.xlu0 %v9486, 97
      %v9573 = vpop.permute.xlu0 %9572
      %9574 = vrot.lane.b32.xlu0 %v9487, 97
      %v9575 = vpop.permute.xlu0 %9574
      %9576 = vrot.lane.b32.xlu0 %v9488, 97
      %v9577 = vpop.permute.xlu0 %9576
      %9578 = vrot.lane.b32.xlu0 %v9489, 97
      %v9579 = vpop.permute.xlu0 %9578
      %9580 = vrot.lane.b32.xlu0 %v9490, 97
      %v9581 = vpop.permute.xlu0 %9580
      %9582 = vrot.lane.b32.xlu0 %v9491, 97
      %v9583 = vpop.permute.xlu0 %9582
      %v9584 = vsel %vm2743, %v9573, %v9575
      %v9585 = vsel %vm2743, %v9575, %v9577
      %v9586 = vsel %vm2743, %v9579, %v9581
      %v9587 = vsel %vm2743, %v9581, %v9583
      %v9593 = vsel %vm463, %v9571, 0
      %9595 = vmatprep.subr.bf16.mxu0 %v9585
      %9596 = vmatpush1.bf16.msra.mxu0 %v9584
      %9597 = vmatprep.subr.bf16.mxu0 %v9587
      %9598 = vmatpush1.bf16.msra.mxu0 %v9586
      %9599 = vmatprep.subr.bf16.mxu0 0
      %9600 = vmatpush1.bf16.msra.mxu0 0
      %9601 = vmatprep.subr.bf16.mxu0 0
      %9602 = vmatpush1.bf16.msra.mxu0 0
      %9603 = vmatprep.subr.bf16.mxu0 0
      %9604 = vmatpush1.bf16.msra.mxu0 0
      %9605 = vmatprep.subr.bf16.mxu0 0
      %9606 = vmatpush1.bf16.msra.mxu0 0
      %9607 = vmatprep.subr.bf16.mxu0 0
      %9608 = vmatpush1.bf16.msra.mxu0 0
      %9609 = vmatprep.subr.bf16.mxu0 0
      %9610 = vmatpush1.bf16.msra.mxu0 0
      %9611 = vmatprep.subr.bf16.mxu0 0
      %9612 = vmatpush1.bf16.msra.mxu0 0
      %9613 = vmatprep.subr.bf16.mxu0 0
      %9614 = vmatpush1.bf16.msra.mxu0 0
      %9615 = vmatprep.subr.bf16.mxu0 0
      %9616 = vmatpush1.bf16.msra.mxu0 0
      %9617 = vmatprep.subr.bf16.mxu0 0
      %9618 = vmatpush1.bf16.msra.mxu0 0
      %9619 = vmatprep.subr.bf16.mxu0 0
      %9620 = vmatpush1.bf16.msra.mxu0 0
      %9621 = vmatprep.subr.bf16.mxu0 0
      %9622 = vmatpush1.bf16.msra.mxu0 0
      %9623 = vmatprep.subr.bf16.mxu0 0
      %9624 = vmatpush1.bf16.msra.mxu0 0
      %9625 = vmatprep.subr.bf16.mxu0 0
      %9626 = vmatpush1.bf16.msra.mxu0 0
      %9627 = vmatprep.mubr.bf16.mxu0 0
      %9628 = vmatmul.mubr.bf16.gmra.mrb[0].mxu0 %v9593
      %v9629 = vpop.f32.mrb[0].mxu0
      %v9630 = vadd.f32 0.0, %v9629
      %v9631 = vpop.f32.mrb[0].mxu0
      %v9632 = vadd.f32 0.0, %v9631
      %v9633 = vpop.f32.mrb[0].mxu0
      %v9634 = vadd.f32 0.0, %v9633
      %v9635 = vpop.f32.mrb[0].mxu0
      %v9636 = vadd.f32 0.0, %v9635
      %9637 = vdwg.mxu0
      %v9638 = vadd.f32 %v9566, %v9630
      %v9639 = vadd.f32 %v9567, %v9632
      %v9640 = vadd.f32 %v9568, %v9634
      %v9641 = vadd.f32 %v9569, %v9636
      %9642 = vrot.lane.b32.xlu0 %v9435, 32
      %v9643 = vpop.permute.xlu0 %9642
      %9644 = vrot.lane.b32.xlu0 %v9486, 96
      %v9645 = vpop.permute.xlu0 %9644
      %9646 = vrot.lane.b32.xlu0 %v9487, 96
      %v9647 = vpop.permute.xlu0 %9646
      %9648 = vrot.lane.b32.xlu0 %v9488, 96
      %v9649 = vpop.permute.xlu0 %9648
      %9650 = vrot.lane.b32.xlu0 %v9489, 96
      %v9651 = vpop.permute.xlu0 %9650
      %9652 = vrot.lane.b32.xlu0 %v9490, 96
      %v9653 = vpop.permute.xlu0 %9652
      %9654 = vrot.lane.b32.xlu0 %v9491, 96
      %v9655 = vpop.permute.xlu0 %9654
      %v9656 = vsel %vm2982, %v9645, %v9647
      %v9657 = vsel %vm2982, %v9647, %v9649
      %v9658 = vsel %vm2982, %v9651, %v9653
      %v9659 = vsel %vm2982, %v9653, %v9655
      %v9665 = vsel %vm463, %v9643, 0
      %9667 = vmatprep.subr.bf16.mxu0 %v9657
      %9668 = vmatpush1.bf16.msra.mxu0 %v9656
      %9669 = vmatprep.subr.bf16.mxu0 %v9659
      %9670 = vmatpush1.bf16.msra.mxu0 %v9658
      %9671 = vmatprep.subr.bf16.mxu0 0
      %9672 = vmatpush1.bf16.msra.mxu0 0
      %9673 = vmatprep.subr.bf16.mxu0 0
      %9674 = vmatpush1.bf16.msra.mxu0 0
      %9675 = vmatprep.subr.bf16.mxu0 0
      %9676 = vmatpush1.bf16.msra.mxu0 0
      %9677 = vmatprep.subr.bf16.mxu0 0
      %9678 = vmatpush1.bf16.msra.mxu0 0
      %9679 = vmatprep.subr.bf16.mxu0 0
      %9680 = vmatpush1.bf16.msra.mxu0 0
      %9681 = vmatprep.subr.bf16.mxu0 0
      %9682 = vmatpush1.bf16.msra.mxu0 0
      %9683 = vmatprep.subr.bf16.mxu0 0
      %9684 = vmatpush1.bf16.msra.mxu0 0
      %9685 = vmatprep.subr.bf16.mxu0 0
      %9686 = vmatpush1.bf16.msra.mxu0 0
      %9687 = vmatprep.subr.bf16.mxu0 0
      %9688 = vmatpush1.bf16.msra.mxu0 0
      %9689 = vmatprep.subr.bf16.mxu0 0
      %9690 = vmatpush1.bf16.msra.mxu0 0
      %9691 = vmatprep.subr.bf16.mxu0 0
      %9692 = vmatpush1.bf16.msra.mxu0 0
      %9693 = vmatprep.subr.bf16.mxu0 0
      %9694 = vmatpush1.bf16.msra.mxu0 0
      %9695 = vmatprep.subr.bf16.mxu0 0
      %9696 = vmatpush1.bf16.msra.mxu0 0
      %9697 = vmatprep.subr.bf16.mxu0 0
      %9698 = vmatpush1.bf16.msra.mxu0 0
      %9699 = vmatprep.mubr.bf16.mxu0 0
      %9700 = vmatmul.mubr.bf16.gmra.mrb[0].mxu0 %v9665
      %v9701 = vpop.f32.mrb[0].mxu0
      %v9702 = vadd.f32 0.0, %v9701
      %v9703 = vpop.f32.mrb[0].mxu0
      %v9704 = vadd.f32 0.0, %v9703
      %v9705 = vpop.f32.mrb[0].mxu0
      %v9706 = vadd.f32 0.0, %v9705
      %v9707 = vpop.f32.mrb[0].mxu0
      %v9708 = vadd.f32 0.0, %v9707
      %9709 = vdwg.mxu0
      %v9710 = vadd.f32 %v9638, %v9702
      %v9711 = vadd.f32 %v9639, %v9704
      %v9712 = vadd.f32 %v9640, %v9706
      %v9713 = vadd.f32 %v9641, %v9708
      %v9714 = vld [vmem:[%s7 + $0x8] sm:$0xf]
      %v9715 = vld [vmem:[%s7 + $0x14] sm:$0xf]
      %v9718 = vunpack.c.l.b16 %v9714
      %v9719 = vunpack.c.l.b16 %v9715
      %v9720 = vpack.c.b16 %v9719, %v9718
      %9721 = vrot.lane.b32.xlu0 %v9486, 95
      %v9722 = vpop.permute.xlu0 %9721
      %9723 = vrot.lane.b32.xlu0 %v9487, 95
      %v9724 = vpop.permute.xlu0 %9723
      %9725 = vrot.lane.b32.xlu0 %v9488, 95
      %v9726 = vpop.permute.xlu0 %9725
      %9727 = vrot.lane.b32.xlu0 %v9489, 95
      %v9728 = vpop.permute.xlu0 %9727
      %9729 = vrot.lane.b32.xlu0 %v9490, 95
      %v9730 = vpop.permute.xlu0 %9729
      %9731 = vrot.lane.b32.xlu0 %v9491, 95
      %v9732 = vpop.permute.xlu0 %9731
      %v9733 = vsel %vm3241, %v9722, %v9724
      %v9734 = vsel %vm3241, %v9724, %v9726
      %v9735 = vsel %vm3241, %v9728, %v9730
      %v9736 = vsel %vm3241, %v9730, %v9732
      %v9742 = vsel %vm463, %v9720, 0
      %9744 = vmatprep.subr.bf16.mxu0 %v9734
      %9745 = vmatpush1.bf16.msra.mxu0 %v9733
      %9746 = vmatprep.subr.bf16.mxu0 %v9736
      %9747 = vmatpush1.bf16.msra.mxu0 %v9735
      %9748 = vmatprep.subr.bf16.mxu0 0
      %9749 = vmatpush1.bf16.msra.mxu0 0
      %9750 = vmatprep.subr.bf16.mxu0 0
      %9751 = vmatpush1.bf16.msra.mxu0 0
      %9752 = vmatprep.subr.bf16.mxu0 0
      %9753 = vmatpush1.bf16.msra.mxu0 0
      %9754 = vmatprep.subr.bf16.mxu0 0
      %9755 = vmatpush1.bf16.msra.mxu0 0
      %9756 = vmatprep.subr.bf16.mxu0 0
      %9757 = vmatpush1.bf16.msra.mxu0 0
      %9758 = vmatprep.subr.bf16.mxu0 0
      %9759 = vmatpush1.bf16.msra.mxu0 0
      %9760 = vmatprep.subr.bf16.mxu0 0
      %9761 = vmatpush1.bf16.msra.mxu0 0
      %9762 = vmatprep.subr.bf16.mxu0 0
      %9763 = vmatpush1.bf16.msra.mxu0 0
      %9764 = vmatprep.subr.bf16.mxu0 0
      %9765 = vmatpush1.bf16.msra.mxu0 0
      %9766 = vmatprep.subr.bf16.mxu0 0
      %9767 = vmatpush1.bf16.msra.mxu0 0
      %9768 = vmatprep.subr.bf16.mxu0 0
      %9769 = vmatpush1.bf16.msra.mxu0 0
      %9770 = vmatprep.subr.bf16.mxu0 0
      %9771 = vmatpush1.bf16.msra.mxu0 0
      %9772 = vmatprep.subr.bf16.mxu0 0
      %9773 = vmatpush1.bf16.msra.mxu0 0
      %9774 = vmatprep.subr.bf16.mxu0 0
      %9775 = vmatpush1.bf16.msra.mxu0 0
      %9776 = vmatprep.mubr.bf16.mxu0 0
      %9777 = vmatmul.mubr.bf16.gmra.mrb[0].mxu0 %v9742
      %v9778 = vpop.f32.mrb[0].mxu0
      %v9779 = vadd.f32 0.0, %v9778
      %v9780 = vpop.f32.mrb[0].mxu0
      %v9781 = vadd.f32 0.0, %v9780
      %v9782 = vpop.f32.mrb[0].mxu0
      %v9783 = vadd.f32 0.0, %v9782
      %v9784 = vpop.f32.mrb[0].mxu0
      %v9785 = vadd.f32 0.0, %v9784
      %9786 = vdwg.mxu0
      %v9787 = vadd.f32 %v9710, %v9779
      %v9788 = vadd.f32 %v9711, %v9781
      %v9789 = vadd.f32 %v9712, %v9783
      %v9790 = vadd.f32 %v9713, %v9785
      %v9791 = vld [vmem:[%s8] sm:$0xff]
      %v9792 = vld [vmem:[%s8 + $0x8] sm:$0xff]
      %9794 = vset.pattern.permute.xlu0 0
      %9795 = vperm.xlu0 %9794, %v9791
      %v9796 = vpop.permute.xlu0 %9795
      %9799 = vset.pattern.permute.xlu0 0
      %9800 = vperm.xlu0 %9799, %v9792
      %v9801 = vpop.permute.xlu0 %9800
      %v9803 = vadd.f32 %v9787, %v9796
      %v9804 = vadd.f32 %v9788, %v9796
      %v9805 = vadd.f32 %v9789, %v9801
      %v9806 = vadd.f32 %v9790, %v9801
      %9807 = vst [vmem:[%s356 + $0x18] sm:$0xff] %v9803
      %9808 = vst [vmem:[%s356 + $0x20] sm:$0xff] %v9804
      %9809 = vst [vmem:[%s356 + $0x40] sm:$0xff] %v9805
      %9810 = vst [vmem:[%s356 + $0x48] sm:$0xff] %v9806
      %p9811 = scmp.lt.s32.totalorder %s21, 1
      %s9812 = scalar_select %p9811, %s21, 1
      %s9813 = smul.addr %s9812, 10
      %s9814 = smul.addr %s9813, 8
      %s9815 = scalar_lea.vmem %s10, %s9814
      // Predicated region
      $region61: #{super_resolution_forward.1} parent=59 // pred_check
        %p9816 = pneg %p254
      $region62: #{super_resolution_forward.1} parent=59 // pred_check_branch
        %9818 = sbr.rel (%p9816) target = $region64
      $region63: #{super_resolution_forward.1} parent=59 // pred_region
        _
      $region64: #{super_resolution_forward.1} parent=59 // pred_fallthru
        _
    $region60: #{super_resolution_forward.1} parent=5 // pred_fallthru
      _
    %p9819 = scmp.le.s32.totalorder 2, %s16
    // Predicated region
    $region65: #{super_resolution_forward.1} parent=5 // pred_check
      %p9820 = pneg %p9819
    $region66: #{super_resolution_forward.1} parent=5 // pred_check_branch
      %9822 = sbr.rel (%p9820) target = $region68
    $region67: #{super_resolution_forward.1} parent=5 // pred_region
      %s9823 = ssub.s32 %s16, 2
      // Predicated region
      $region69: #{super_resolution_forward.1} parent=67 // pred_check
        %p9824 = pneg %p260
      $region70: #{super_resolution_forward.1} parent=67 // pred_check_branch
        %9826 = sbr.rel (%p9824) target = $region72
      $region71: #{super_resolution_forward.1} parent=67 // pred_region
        %p9827 = scmp.lt.s32.totalorder %s22, 1
        %s9828 = scalar_select %p9827, %s22, 1
        %s9829 = smul.addr %s9828, 10
        %s9830 = smul.addr %s9829, 8
        %s9831 = scalar_lea.vmem %s10, %s9830
      $region72: #{super_resolution_forward.1} parent=67 // pred_fallthru
        _
    $region68: #{super_resolution_forward.1} parent=5 // pred_fallthru
      _
  $region6: #{super_resolution_forward.1} parent=0 // loop_footer
    %s20 = sadd.s32 1, %s16
  $region7: #{super_resolution_forward.1} parent=0 // loop_footer_branch
    %15 = sbr.rel target = $region3
  $region8: #{super_resolution_forward.1} parent=0 // loop_exit
    _

</llo_original>
